<compile_context>
chip_gen: v5e
topology: v5e:2x2
jax: 0.10.0
libtpu: 0.0.40
codegen_flags: <defaults>
</compile_context>

<pallas_src>
import math
import numpy as np

import jax
import jax.numpy as jnp
from jax.experimental import pallas as pl
from jax.experimental.pallas import tpu as pltpu


# ----------------------------------------------------------------------------
# Hermite-Gaussian ("hermite_a") steerable basis — host-side glue (tiny).
# ----------------------------------------------------------------------------
def _hermite_poly(x, n):
    """Probabilists' Hermite polynomial He_n(x)."""
    h_prev = np.ones_like(x)
    if n == 0:
        return h_prev
    h = np.array(x, copy=True)
    for m in range(1, n):
        h_prev, h = h, x * h - m * h_prev
    return h


def _onescale_grid_hermite_gaussian(size, scale, max_order):
    X = np.linspace(-(size // 2), size // 2, size)
    order_y, order_x = np.indices([max_order + 1, max_order + 1])
    G = np.exp(-X ** 2 / (2.0 * scale ** 2)) / scale
    basis_x = np.stack([G * _hermite_poly(X / scale, int(n)) for n in order_x.ravel()])
    basis_y = np.stack([G * _hermite_poly(X / scale, int(n)) for n in order_y.ravel()])
    return basis_x[:, :, None] * basis_y[:, None, :]          # (num_funcs, size, size)


def hermite_basis_a(kernel_size, scales, effective_size):
    """'hermite_a' basis: returns (num_funcs, num_scales, k, k)."""
    max_order = effective_size - 1
    max_scale = float(np.max(scales))
    per_scale = []
    for scale in scales:
        size_before_pad = int(kernel_size * float(scale) / max_scale) // 2 * 2 + 1
        size_before_pad = max(min(size_before_pad, kernel_size), 1)
        b = _onescale_grid_hermite_gaussian(size_before_pad, float(scale), max_order)
        pad = (kernel_size - size_before_pad) // 2
        b = np.pad(b, ((0, 0), (pad, pad), (pad, pad)))
        per_scale.append(b)
    return np.stack(per_scale, axis=1).astype(np.float32)     # (F, S, k, k)


def calculate_scales(learn_mode, scales_param, num_scales, basis_min_scale):
    # TODO(synk): scales are resolved host-side (NumPy), so gradients do not flow
    # through the learnable scales; only 'ratio' and 'direct' learn modes implemented.
    p = np.abs(np.asarray(scales_param, dtype=np.float64)).reshape(-1)
    if learn_mode == "ratio":
        ratio = float(p[0])
        scales = basis_min_scale * ratio ** np.arange(num_scales, dtype=np.float64)
    elif learn_mode == "direct":
        scales = basis_min_scale * p[:num_scales]
    else:
        raise NotImplementedError(f"learn_mode={learn_mode!r}")
    return scales


# ----------------------------------------------------------------------------
# Pallas kernel: scale-grouped conv, one im2col matmul per (scale, batch, offset).
# ----------------------------------------------------------------------------
def _grouped_scale_conv(x_pad, w_packed, *, B, S, ss, O, C, Hp, Wp, k, Ho, Wo,
                        stride, dilation):
    """x_pad:    (B, C, S+ss-1, Hp, Wp) bf16, C already padded to a sublane multiple.
       w_packed: (S, ss, O, k*k*C) bf16, filters flattened in (kh, kw, c) order.
       Returns   (B, O, S*Ho*Wo) f32 — final output layout (minor-dim split is free)."""
    KKC = k * k * C
    HW = Ho * Wo

    def conv_kernel(x_ref, w_ref, o_ref, col_ref):
        i = pl.program_id(2)                       # filter-scale offset (reduction axis)

        # ---- stage the k*k taps into the lane-dense im2col panel (KKC, Ho*Wo) ----
        for kh in range(k):
            for kw in range(k):
                h0 = kh * dilation
                w0 = kw * dilation
                if stride == 1:
                    patch = x_ref[0, :, 0, h0:h0 + Ho, w0:w0 + Wo]       # (C, Ho, Wo)
                else:
                    # TODO(synk): stride>1 lane-strided slicing is not exercised by this test.
                    patch = jax.lax.slice(
                        x_ref[0, :, 0],
                        (0, h0, w0),
                        (C, h0 + (Ho - 1) * stride + 1, w0 + (Wo - 1) * stride + 1),
                        (1, stride, stride))
                r0 = (kh * k + kw) * C                                   # aligned (C % 8 == 0)
                col_ref[r0:r0 + C, :] = patch.reshape(C, HW)

        # ---- single MXU matmul: (O, k*k*C) @ (k*k*C, Ho*Wo), bf16 operands, f32 acc ----
        w_i = w_ref[0, i]                                                # (O, KKC), VMEM-resident
        contrib = jnp.dot(w_i, col_ref[...], preferred_element_type=jnp.float32)

        @pl.when(i == 0)
        def _():
            o_ref[0] = contrib

        @pl.when(i != 0)
        def _():
            o_ref[0] = o_ref[0] + contrib

    return pl.pallas_call(
        conv_kernel,
        out_shape=jax.ShapeDtypeStruct((B, O, S * HW), jnp.float32),
        grid_spec=pltpu.PrefetchScalarGridSpec(
            num_scalar_prefetch=0,
            grid=(S, B, ss),                     # ss innermost => output stays resident
            in_specs=[
                # one zero-padded (batch, internal-scale) slab; scale index = s + i
                pl.BlockSpec((1, C, 1, Hp, Wp), lambda s, b, i: (b, 0, s + i, 0, 0)),
                # whole per-scale filter bank: block index depends only on s
                pl.BlockSpec((1, ss, O, KKC), lambda s, b, i: (s, 0, 0, 0)),
            ],
            out_specs=pl.BlockSpec((1, O, HW), lambda s, b, i: (b, 0, s)),
            scratch_shapes=[pltpu.VMEM((KKC, HW), jnp.bfloat16)],
        ),
        compiler_params=pltpu.CompilerParams(
            dimension_semantics=("parallel", "parallel", "arbitrary")),
    )(x_pad, w_packed)


# ----------------------------------------------------------------------------
# Module wrapper (mirrors SESConv_H_H_Learnable forward semantics)
# ----------------------------------------------------------------------------
class SESConvHHLearnablePallas:
    def __init__(self, in_channels, out_channels, scale_size, scales_param,
                 learn_mode, effective_size, nr_internal_scales, stride=1,
                 bias=False, basis_type="hermite_a", largest_kernel_size=None,
                 init_k=4, dilation=1, padding_mode="constant",
                 basis_min_scale=1.0, key=None):
        if basis_type != "hermite_a":
            # TODO(synk): only the 'hermite_a' basis family is implemented here.
            raise NotImplementedError(basis_type)
        self.in_channels = in_channels
        self.out_channels = out_channels
        self.scale_size = scale_size
        self.scales_param = scales_param
        self.learn_mode = learn_mode
        self.effective_size = effective_size
        self.num_scales = nr_internal_scales
        self.stride = stride
        self.dilation = dilation
        self.padding_mode = padding_mode
        self.basis_min_scale = basis_min_scale
        self.largest_kernel_size = largest_kernel_size
        self.init_k = init_k if largest_kernel_size is None else None
        self.num_funcs = effective_size ** 2

        # kaiming_uniform_(a=sqrt(5)) => bound = 1/sqrt(fan_in), fan_in = C*scale_size*num_funcs
        bound = 1.0 / math.sqrt(in_channels * scale_size * self.num_funcs)
        self.weight = jax.random.uniform(
            key, (out_channels, in_channels, scale_size, self.num_funcs),
            jnp.float32, -bound, bound)
        self.bias = jnp.zeros((out_channels,), jnp.float32) if bias else None

    # ---- geometry shared by the Pallas forward and the pure-JAX reference ----
    def _resolve_geometry(self):
        scales = calculate_scales(self.learn_mode, self.scales_param,
                                  self.num_scales, self.basis_min_scale)
        if self.largest_kernel_size is None:
            max_scale = float(np.max(scales))
            ks = 2.0 * np.ceil(self.init_k * max_scale) + 1.0
            ks = float(np.nan_to_num(ks, nan=3.0))
            kernel_size = max(int(ks), 3)
        else:
            kernel_size = self.largest_kernel_size
        padding = kernel_size // 2
        return scales, kernel_size, padding

    def __call__(self, x):
        # x: [B, C_in, S, H, W]  (S must equal nr_internal_scales)
        scales, k, padding = self._resolve_geometry()
        S = len(scales)
        B, C, Sx, H, W = x.shape
        assert Sx == S and C == self.in_channels
        O, ss = self.out_channels, self.scale_size

        basis = jnp.asarray(hermite_basis_a(k, scales, self.effective_size))   # (F,S,k,k)

        # ---- filter synthesis: one fused einsum straight into the packed layout ----
        # (S, ss, O, kh, kw, c); zero-pad channels to a sublane multiple, cast to bf16.
        C_pad = ((C + 7) // 8) * 8
        w_full = jnp.einsum("ocif,fskl->sioklc", self.weight, basis)           # (S,ss,O,k,k,C)
        if C_pad != C:
            w_full = jnp.pad(w_full, ((0, 0), (0, 0), (0, 0), (0, 0), (0, 0),
                                      (0, C_pad - C)))
        w_packed = w_full.reshape(S, ss, O, k * k * C_pad).astype(jnp.bfloat16)

        # ---- input packing: zero-pad scale dim (by ss-1) and spatial dims, pad channels,
        #      cast to bf16. NO ss-fold duplication: the kernel reads overlapping scale
        #      windows directly through its index_map.
        if self.padding_mode != "constant":
            # TODO(synk): only constant (zero) padding_mode implemented.
            raise NotImplementedError(self.padding_mode)
        # NOTE: the PyTorch module computes x.mean() before the scale pad but pads with zeros anyway.
        x_pad = jnp.pad(x, ((0, 0), (0, C_pad - C), (0, ss - 1),
                            (padding, padding), (padding, padding))).astype(jnp.bfloat16)
        Hp, Wp = H + 2 * padding, W + 2 * padding

        Ho = (Hp - self.dilation * (k - 1) - 1) // self.stride + 1
        Wo = (Wp - self.dilation * (k - 1) - 1) // self.stride + 1

        # ---- Pallas conv kernel (output already in final [B, O, S, Ho*Wo] order) ----
        out_flat = _grouped_scale_conv(
            x_pad, w_packed, B=B, S=S, ss=ss, O=O, C=C_pad, Hp=Hp, Wp=Wp,
            k=k, Ho=Ho, Wo=Wo, stride=self.stride, dilation=self.dilation)

        out = out_flat.reshape(B, O, S, Ho, Wo)          # minor-dim split: free
        if self.bias is not None:
            out = out + self.bias.reshape(1, -1, 1, 1, 1)
        return out


# ----------------------------------------------------------------------------
# Pure-JAX reference (mirrors the PyTorch forward), used for a sanity check.
# ----------------------------------------------------------------------------
def reference_forward(m, x):
    scales, k, pad = m._resolve_geometry()
    S = len(scales)
    basis = jnp.asarray(hermite_basis_a(k, scales, m.effective_size))          # (F,S,k,k)
    kern = jnp.einsum("ocif,fskl->socikl", m.weight, basis)                    # (S,O,C,ss,k,k)
    B, C, Sx, H, W = x.shape
    xp = x
    if m.scale_size != 1:
        xp = jnp.pad(xp, ((0, 0), (0, 0), (0, m.scale_size - 1), (0, 0), (0, 0)))
    out = 0.0
    for i in range(m.scale_size):
        xi = xp[:, :, i:i + S]
        xi = jnp.pad(xi, ((0, 0), (0, 0), (0, 0), (pad, pad), (pad, pad)))
        per_scale = []
        for s in range(S):
            y = jax.lax.conv_general_dilated(
                xi[:, :, s], kern[s, :, :, i],
                window_strides=(m.stride, m.stride), padding="VALID",
                rhs_dilation=(m.dilation, m.dilation),
                dimension_numbers=("NCHW", "OIHW", "NCHW"))
            per_scale.append(y)
        out = out + jnp.stack(per_scale, axis=2)                               # (B,O,S,Ho,Wo)
    if m.bias is not None:
        out = out + m.bias.reshape(1, -1, 1, 1, 1)
    return out


# ----------------------------------------------------------------------------
if __name__ == "__main__":
    key = jax.random.PRNGKey(0)
    k_x, k_w = jax.random.split(key)

    B, C_in, C_out = 2, 4, 8
    S = 3                 # nr_internal_scales (input/output scale channels)
    scale_size = 2        # filter extent along the scale axis
    effective_size = 3    # -> num_funcs = 9
    H = W = 16

    scales_param = jnp.array([1.2], jnp.float32)   # learnable geometric ratio

    module = SESConvHHLearnablePallas(
        in_channels=C_in, out_channels=C_out, scale_size=scale_size,
        scales_param=scales_param, learn_mode="ratio",
        effective_size=effective_size, nr_internal_scales=S,
        stride=1, bias=False, basis_type="hermite_a",
        largest_kernel_size=None, init_k=4, dilation=1,
        padding_mode="constant", basis_min_scale=0.3, key=k_w)

    x = jax.random.normal(k_x, (B, C_in, S, H, W), jnp.float32)

    out = module(x)
    out = jax.block_until_ready(out)
    assert out.shape == (B, C_out, S, H, W), out.shape

    ref = jax.block_until_ready(reference_forward(module, x))
    out_np, ref_np = np.asarray(out), np.asarray(ref)
    err = np.max(np.abs(out_np - ref_np))
    tol = 2e-2 * max(np.max(np.abs(ref_np)), 1.0) + 1e-4
    assert np.isfinite(out_np).all()
    assert err < tol, f"max abs err {err} exceeds tol {tol}"

    print("KERNEL_OK")
</pallas_src>

<mosaic_0001>
module attributes {stable_mosaic.version = 11 : i64} {
  func.func @conv_kernel(%arg0: i32, %arg1: i32, %arg2: i32, %arg3: memref<1x8x1x20x20xbf16, #tpu.memory_space<vmem>>, %arg4: memref<1x2x8x200xbf16, #tpu.memory_space<vmem>>, %arg5: memref<1x8x256xf32, #tpu.memory_space<vmem>>, %arg6: memref<200x256xbf16, #tpu.memory_space<vmem>>) attributes {dimension_semantics = [#tpu.dimension_semantics<parallel>, #tpu.dimension_semantics<parallel>, #tpu.dimension_semantics<arbitrary>], iteration_bounds = array<i64: 3, 2, 2>, scalar_prefetch = 0 : i64, scratch_operands = 1 : i64, tpu.core_type = #tpu.core_type<tc>, window_params = [{transform_indices = @transform_0, window_bounds = array<i64: 1, 8, 1, 20, 20>}, {transform_indices = @transform_1, window_bounds = array<i64: 1, 2, 8, 200>}, {transform_indices = @transform_2, window_bounds = array<i64: 1, 8, 256>}]} {
    %c0 = arith.constant 0 : index
    %c0_0 = arith.constant 0 : index
    %c0_1 = arith.constant 0 : index
    %c0_2 = arith.constant 0 : index
    %c0_3 = arith.constant 0 : index
    %0 = vector.load %arg3[%c0, %c0_0, %c0_1, %c0_2, %c0_3] : memref<1x8x1x20x20xbf16, #tpu.memory_space<vmem>>, vector<1x8x1x16x16xbf16>
    %1 = vector.shape_cast %0 : vector<1x8x1x16x16xbf16> to vector<8x16x16xbf16>
    %2 = vector.shape_cast %1 : vector<8x16x16xbf16> to vector<8x256xbf16>
    %c0_4 = arith.constant 0 : index
    %c0_5 = arith.constant 0 : index
    %3 = vector.load %arg6[%c0_4, %c0_5] : memref<200x256xbf16, #tpu.memory_space<vmem>>, vector<8x256xbf16>
    tpu.vector_store %arg6[%c0_4, %c0_5], %2 {strides = array<i32>} : memref<200x256xbf16, #tpu.memory_space<vmem>>, vector<8x256xbf16>,
    %c0_6 = arith.constant 0 : index
    %c0_7 = arith.constant 0 : index
    %c0_8 = arith.constant 0 : index
    %c0_9 = arith.constant 0 : index
    %c1 = arith.constant 1 : index
    %4 = vector.load %arg3[%c0_6, %c0_7, %c0_8, %c0_9, %c1] : memref<1x8x1x20x20xbf16, #tpu.memory_space<vmem>>, vector<1x8x1x16x16xbf16>
    %5 = vector.shape_cast %4 : vector<1x8x1x16x16xbf16> to vector<8x16x16xbf16>
    %6 = vector.shape_cast %5 : vector<8x16x16xbf16> to vector<8x256xbf16>
    %c8 = arith.constant 8 : index
    %c0_10 = arith.constant 0 : index
    %7 = vector.load %arg6[%c8, %c0_10] : memref<200x256xbf16, #tpu.memory_space<vmem>>, vector<8x256xbf16>
    tpu.vector_store %arg6[%c8, %c0_10], %6 {strides = array<i32>} : memref<200x256xbf16, #tpu.memory_space<vmem>>, vector<8x256xbf16>,
    %c0_11 = arith.constant 0 : index
    %c0_12 = arith.constant 0 : index
    %c0_13 = arith.constant 0 : index
    %c0_14 = arith.constant 0 : index
    %c2 = arith.constant 2 : index
    %8 = vector.load %arg3[%c0_11, %c0_12, %c0_13, %c0_14, %c2] : memref<1x8x1x20x20xbf16, #tpu.memory_space<vmem>>, vector<1x8x1x16x16xbf16>
    %9 = vector.shape_cast %8 : vector<1x8x1x16x16xbf16> to vector<8x16x16xbf16>
    %10 = vector.shape_cast %9 : vector<8x16x16xbf16> to vector<8x256xbf16>
    %c16 = arith.constant 16 : index
    %c0_15 = arith.constant 0 : index
    %11 = vector.load %arg6[%c16, %c0_15] : memref<200x256xbf16, #tpu.memory_space<vmem>>, vector<8x256xbf16>
    tpu.vector_store %arg6[%c16, %c0_15], %10 {strides = array<i32>} : memref<200x256xbf16, #tpu.memory_space<vmem>>, vector<8x256xbf16>,
    %c0_16 = arith.constant 0 : index
    %c0_17 = arith.constant 0 : index
    %c0_18 = arith.constant 0 : index
    %c0_19 = arith.constant 0 : index
    %c3 = arith.constant 3 : index
    %12 = vector.load %arg3[%c0_16, %c0_17, %c0_18, %c0_19, %c3] : memref<1x8x1x20x20xbf16, #tpu.memory_space<vmem>>, vector<1x8x1x16x16xbf16>
    %13 = vector.shape_cast %12 : vector<1x8x1x16x16xbf16> to vector<8x16x16xbf16>
    %14 = vector.shape_cast %13 : vector<8x16x16xbf16> to vector<8x256xbf16>
    %c24 = arith.constant 24 : index
    %c0_20 = arith.constant 0 : index
    %15 = vector.load %arg6[%c24, %c0_20] : memref<200x256xbf16, #tpu.memory_space<vmem>>, vector<8x256xbf16>
    tpu.vector_store %arg6[%c24, %c0_20], %14 {strides = array<i32>} : memref<200x256xbf16, #tpu.memory_space<vmem>>, vector<8x256xbf16>,
    %c0_21 = arith.constant 0 : index
    %c0_22 = arith.constant 0 : index
    %c0_23 = arith.constant 0 : index
    %c0_24 = arith.constant 0 : index
    %c4 = arith.constant 4 : index
    %16 = vector.load %arg3[%c0_21, %c0_22, %c0_23, %c0_24, %c4] : memref<1x8x1x20x20xbf16, #tpu.memory_space<vmem>>, vector<1x8x1x16x16xbf16>
    %17 = vector.shape_cast %16 : vector<1x8x1x16x16xbf16> to vector<8x16x16xbf16>
    %18 = vector.shape_cast %17 : vector<8x16x16xbf16> to vector<8x256xbf16>
    %c32 = arith.constant 32 : index
    %c0_25 = arith.constant 0 : index
    %19 = vector.load %arg6[%c32, %c0_25] : memref<200x256xbf16, #tpu.memory_space<vmem>>, vector<8x256xbf16>
    tpu.vector_store %arg6[%c32, %c0_25], %18 {strides = array<i32>} : memref<200x256xbf16, #tpu.memory_space<vmem>>, vector<8x256xbf16>,
    %c0_26 = arith.constant 0 : index
    %c0_27 = arith.constant 0 : index
    %c0_28 = arith.constant 0 : index
    %c1_29 = arith.constant 1 : index
    %c0_30 = arith.constant 0 : index
    %20 = vector.load %arg3[%c0_26, %c0_27, %c0_28, %c1_29, %c0_30] : memref<1x8x1x20x20xbf16, #tpu.memory_space<vmem>>, vector<1x8x1x16x16xbf16>
    %21 = vector.shape_cast %20 : vector<1x8x1x16x16xbf16> to vector<8x16x16xbf16>
    %22 = vector.shape_cast %21 : vector<8x16x16xbf16> to vector<8x256xbf16>
    %c40 = arith.constant 40 : index
    %c0_31 = arith.constant 0 : index
    %23 = vector.load %arg6[%c40, %c0_31] : memref<200x256xbf16, #tpu.memory_space<vmem>>, vector<8x256xbf16>
    tpu.vector_store %arg6[%c40, %c0_31], %22 {strides = array<i32>} : memref<200x256xbf16, #tpu.memory_space<vmem>>, vector<8x256xbf16>,
    %c0_32 = arith.constant 0 : index
    %c0_33 = arith.constant 0 : index
    %c0_34 = arith.constant 0 : index
    %c1_35 = arith.constant 1 : index
    %c1_36 = arith.constant 1 : index
    %24 = vector.load %arg3[%c0_32, %c0_33, %c0_34, %c1_35, %c1_36] : memref<1x8x1x20x20xbf16, #tpu.memory_space<vmem>>, vector<1x8x1x16x16xbf16>
    %25 = vector.shape_cast %24 : vector<1x8x1x16x16xbf16> to vector<8x16x16xbf16>
    %26 = vector.shape_cast %25 : vector<8x16x16xbf16> to vector<8x256xbf16>
    %c48 = arith.constant 48 : index
    %c0_37 = arith.constant 0 : index
    %27 = vector.load %arg6[%c48, %c0_37] : memref<200x256xbf16, #tpu.memory_space<vmem>>, vector<8x256xbf16>
    tpu.vector_store %arg6[%c48, %c0_37], %26 {strides = array<i32>} : memref<200x256xbf16, #tpu.memory_space<vmem>>, vector<8x256xbf16>,
    %c0_38 = arith.constant 0 : index
    %c0_39 = arith.constant 0 : index
    %c0_40 = arith.constant 0 : index
    %c1_41 = arith.constant 1 : index
    %c2_42 = arith.constant 2 : index
    %28 = vector.load %arg3[%c0_38, %c0_39, %c0_40, %c1_41, %c2_42] : memref<1x8x1x20x20xbf16, #tpu.memory_space<vmem>>, vector<1x8x1x16x16xbf16>
    %29 = vector.shape_cast %28 : vector<1x8x1x16x16xbf16> to vector<8x16x16xbf16>
    %30 = vector.shape_cast %29 : vector<8x16x16xbf16> to vector<8x256xbf16>
    %c56 = arith.constant 56 : index
    %c0_43 = arith.constant 0 : index
    %31 = vector.load %arg6[%c56, %c0_43] : memref<200x256xbf16, #tpu.memory_space<vmem>>, vector<8x256xbf16>
    tpu.vector_store %arg6[%c56, %c0_43], %30 {strides = array<i32>} : memref<200x256xbf16, #tpu.memory_space<vmem>>, vector<8x256xbf16>,
    %c0_44 = arith.constant 0 : index
    %c0_45 = arith.constant 0 : index
    %c0_46 = arith.constant 0 : index
    %c1_47 = arith.constant 1 : index
    %c3_48 = arith.constant 3 : index
    %32 = vector.load %arg3[%c0_44, %c0_45, %c0_46, %c1_47, %c3_48] : memref<1x8x1x20x20xbf16, #tpu.memory_space<vmem>>, vector<1x8x1x16x16xbf16>
    %33 = vector.shape_cast %32 : vector<1x8x1x16x16xbf16> to vector<8x16x16xbf16>
    %34 = vector.shape_cast %33 : vector<8x16x16xbf16> to vector<8x256xbf16>
    %c64 = arith.constant 64 : index
    %c0_49 = arith.constant 0 : index
    %35 = vector.load %arg6[%c64, %c0_49] : memref<200x256xbf16, #tpu.memory_space<vmem>>, vector<8x256xbf16>
    tpu.vector_store %arg6[%c64, %c0_49], %34 {strides = array<i32>} : memref<200x256xbf16, #tpu.memory_space<vmem>>, vector<8x256xbf16>,
    %c0_50 = arith.constant 0 : index
    %c0_51 = arith.constant 0 : index
    %c0_52 = arith.constant 0 : index
    %c1_53 = arith.constant 1 : index
    %c4_54 = arith.constant 4 : index
    %36 = vector.load %arg3[%c0_50, %c0_51, %c0_52, %c1_53, %c4_54] : memref<1x8x1x20x20xbf16, #tpu.memory_space<vmem>>, vector<1x8x1x16x16xbf16>
    %37 = vector.shape_cast %36 : vector<1x8x1x16x16xbf16> to vector<8x16x16xbf16>
    %38 = vector.shape_cast %37 : vector<8x16x16xbf16> to vector<8x256xbf16>
    %c72 = arith.constant 72 : index
    %c0_55 = arith.constant 0 : index
    %39 = vector.load %arg6[%c72, %c0_55] : memref<200x256xbf16, #tpu.memory_space<vmem>>, vector<8x256xbf16>
    tpu.vector_store %arg6[%c72, %c0_55], %38 {strides = array<i32>} : memref<200x256xbf16, #tpu.memory_space<vmem>>, vector<8x256xbf16>,
    %c0_56 = arith.constant 0 : index
    %c0_57 = arith.constant 0 : index
    %c0_58 = arith.constant 0 : index
    %c2_59 = arith.constant 2 : index
    %c0_60 = arith.constant 0 : index
    %40 = vector.load %arg3[%c0_56, %c0_57, %c0_58, %c2_59, %c0_60] : memref<1x8x1x20x20xbf16, #tpu.memory_space<vmem>>, vector<1x8x1x16x16xbf16>
    %41 = vector.shape_cast %40 : vector<1x8x1x16x16xbf16> to vector<8x16x16xbf16>
    %42 = vector.shape_cast %41 : vector<8x16x16xbf16> to vector<8x256xbf16>
    %c80 = arith.constant 80 : index
    %c0_61 = arith.constant 0 : index
    %43 = vector.load %arg6[%c80, %c0_61] : memref<200x256xbf16, #tpu.memory_space<vmem>>, vector<8x256xbf16>
    tpu.vector_store %arg6[%c80, %c0_61], %42 {strides = array<i32>} : memref<200x256xbf16, #tpu.memory_space<vmem>>, vector<8x256xbf16>,
    %c0_62 = arith.constant 0 : index
    %c0_63 = arith.constant 0 : index
    %c0_64 = arith.constant 0 : index
    %c2_65 = arith.constant 2 : index
    %c1_66 = arith.constant 1 : index
    %44 = vector.load %arg3[%c0_62, %c0_63, %c0_64, %c2_65, %c1_66] : memref<1x8x1x20x20xbf16, #tpu.memory_space<vmem>>, vector<1x8x1x16x16xbf16>
    %45 = vector.shape_cast %44 : vector<1x8x1x16x16xbf16> to vector<8x16x16xbf16>
    %46 = vector.shape_cast %45 : vector<8x16x16xbf16> to vector<8x256xbf16>
    %c88 = arith.constant 88 : index
    %c0_67 = arith.constant 0 : index
    %47 = vector.load %arg6[%c88, %c0_67] : memref<200x256xbf16, #tpu.memory_space<vmem>>, vector<8x256xbf16>
    tpu.vector_store %arg6[%c88, %c0_67], %46 {strides = array<i32>} : memref<200x256xbf16, #tpu.memory_space<vmem>>, vector<8x256xbf16>,
    %c0_68 = arith.constant 0 : index
    %c0_69 = arith.constant 0 : index
    %c0_70 = arith.constant 0 : index
    %c2_71 = arith.constant 2 : index
    %c2_72 = arith.constant 2 : index
    %48 = vector.load %arg3[%c0_68, %c0_69, %c0_70, %c2_71, %c2_72] : memref<1x8x1x20x20xbf16, #tpu.memory_space<vmem>>, vector<1x8x1x16x16xbf16>
    %49 = vector.shape_cast %48 : vector<1x8x1x16x16xbf16> to vector<8x16x16xbf16>
    %50 = vector.shape_cast %49 : vector<8x16x16xbf16> to vector<8x256xbf16>
    %c96 = arith.constant 96 : index
    %c0_73 = arith.constant 0 : index
    %51 = vector.load %arg6[%c96, %c0_73] : memref<200x256xbf16, #tpu.memory_space<vmem>>, vector<8x256xbf16>
    tpu.vector_store %arg6[%c96, %c0_73], %50 {strides = array<i32>} : memref<200x256xbf16, #tpu.memory_space<vmem>>, vector<8x256xbf16>,
    %c0_74 = arith.constant 0 : index
    %c0_75 = arith.constant 0 : index
    %c0_76 = arith.constant 0 : index
    %c2_77 = arith.constant 2 : index
    %c3_78 = arith.constant 3 : index
    %52 = vector.load %arg3[%c0_74, %c0_75, %c0_76, %c2_77, %c3_78] : memref<1x8x1x20x20xbf16, #tpu.memory_space<vmem>>, vector<1x8x1x16x16xbf16>
    %53 = vector.shape_cast %52 : vector<1x8x1x16x16xbf16> to vector<8x16x16xbf16>
    %54 = vector.shape_cast %53 : vector<8x16x16xbf16> to vector<8x256xbf16>
    %c104 = arith.constant 104 : index
    %c0_79 = arith.constant 0 : index
    %55 = vector.load %arg6[%c104, %c0_79] : memref<200x256xbf16, #tpu.memory_space<vmem>>, vector<8x256xbf16>
    tpu.vector_store %arg6[%c104, %c0_79], %54 {strides = array<i32>} : memref<200x256xbf16, #tpu.memory_space<vmem>>, vector<8x256xbf16>,
    %c0_80 = arith.constant 0 : index
    %c0_81 = arith.constant 0 : index
    %c0_82 = arith.constant 0 : index
    %c2_83 = arith.constant 2 : index
    %c4_84 = arith.constant 4 : index
    %56 = vector.load %arg3[%c0_80, %c0_81, %c0_82, %c2_83, %c4_84] : memref<1x8x1x20x20xbf16, #tpu.memory_space<vmem>>, vector<1x8x1x16x16xbf16>
    %57 = vector.shape_cast %56 : vector<1x8x1x16x16xbf16> to vector<8x16x16xbf16>
    %58 = vector.shape_cast %57 : vector<8x16x16xbf16> to vector<8x256xbf16>
    %c112 = arith.constant 112 : index
    %c0_85 = arith.constant 0 : index
    %59 = vector.load %arg6[%c112, %c0_85] : memref<200x256xbf16, #tpu.memory_space<vmem>>, vector<8x256xbf16>
    tpu.vector_store %arg6[%c112, %c0_85], %58 {strides = array<i32>} : memref<200x256xbf16, #tpu.memory_space<vmem>>, vector<8x256xbf16>,
    %c0_86 = arith.constant 0 : index
    %c0_87 = arith.constant 0 : index
    %c0_88 = arith.constant 0 : index
    %c3_89 = arith.constant 3 : index
    %c0_90 = arith.constant 0 : index
    %60 = vector.load %arg3[%c0_86, %c0_87, %c0_88, %c3_89, %c0_90] : memref<1x8x1x20x20xbf16, #tpu.memory_space<vmem>>, vector<1x8x1x16x16xbf16>
    %61 = vector.shape_cast %60 : vector<1x8x1x16x16xbf16> to vector<8x16x16xbf16>
    %62 = vector.shape_cast %61 : vector<8x16x16xbf16> to vector<8x256xbf16>
    %c120 = arith.constant 120 : index
    %c0_91 = arith.constant 0 : index
    %63 = vector.load %arg6[%c120, %c0_91] : memref<200x256xbf16, #tpu.memory_space<vmem>>, vector<8x256xbf16>
    tpu.vector_store %arg6[%c120, %c0_91], %62 {strides = array<i32>} : memref<200x256xbf16, #tpu.memory_space<vmem>>, vector<8x256xbf16>,
    %c0_92 = arith.constant 0 : index
    %c0_93 = arith.constant 0 : index
    %c0_94 = arith.constant 0 : index
    %c3_95 = arith.constant 3 : index
    %c1_96 = arith.constant 1 : index
    %64 = vector.load %arg3[%c0_92, %c0_93, %c0_94, %c3_95, %c1_96] : memref<1x8x1x20x20xbf16, #tpu.memory_space<vmem>>, vector<1x8x1x16x16xbf16>
    %65 = vector.shape_cast %64 : vector<1x8x1x16x16xbf16> to vector<8x16x16xbf16>
    %66 = vector.shape_cast %65 : vector<8x16x16xbf16> to vector<8x256xbf16>
    %c128 = arith.constant 128 : index
    %c0_97 = arith.constant 0 : index
    %67 = vector.load %arg6[%c128, %c0_97] : memref<200x256xbf16, #tpu.memory_space<vmem>>, vector<8x256xbf16>
    tpu.vector_store %arg6[%c128, %c0_97], %66 {strides = array<i32>} : memref<200x256xbf16, #tpu.memory_space<vmem>>, vector<8x256xbf16>,
    %c0_98 = arith.constant 0 : index
    %c0_99 = arith.constant 0 : index
    %c0_100 = arith.constant 0 : index
    %c3_101 = arith.constant 3 : index
    %c2_102 = arith.constant 2 : index
    %68 = vector.load %arg3[%c0_98, %c0_99, %c0_100, %c3_101, %c2_102] : memref<1x8x1x20x20xbf16, #tpu.memory_space<vmem>>, vector<1x8x1x16x16xbf16>
    %69 = vector.shape_cast %68 : vector<1x8x1x16x16xbf16> to vector<8x16x16xbf16>
    %70 = vector.shape_cast %69 : vector<8x16x16xbf16> to vector<8x256xbf16>
    %c136 = arith.constant 136 : index
    %c0_103 = arith.constant 0 : index
    %71 = vector.load %arg6[%c136, %c0_103] : memref<200x256xbf16, #tpu.memory_space<vmem>>, vector<8x256xbf16>
    tpu.vector_store %arg6[%c136, %c0_103], %70 {strides = array<i32>} : memref<200x256xbf16, #tpu.memory_space<vmem>>, vector<8x256xbf16>,
    %c0_104 = arith.constant 0 : index
    %c0_105 = arith.constant 0 : index
    %c0_106 = arith.constant 0 : index
    %c3_107 = arith.constant 3 : index
    %c3_108 = arith.constant 3 : index
    %72 = vector.load %arg3[%c0_104, %c0_105, %c0_106, %c3_107, %c3_108] : memref<1x8x1x20x20xbf16, #tpu.memory_space<vmem>>, vector<1x8x1x16x16xbf16>
    %73 = vector.shape_cast %72 : vector<1x8x1x16x16xbf16> to vector<8x16x16xbf16>
    %74 = vector.shape_cast %73 : vector<8x16x16xbf16> to vector<8x256xbf16>
    %c144 = arith.constant 144 : index
    %c0_109 = arith.constant 0 : index
    %75 = vector.load %arg6[%c144, %c0_109] : memref<200x256xbf16, #tpu.memory_space<vmem>>, vector<8x256xbf16>
    tpu.vector_store %arg6[%c144, %c0_109], %74 {strides = array<i32>} : memref<200x256xbf16, #tpu.memory_space<vmem>>, vector<8x256xbf16>,
    %c0_110 = arith.constant 0 : index
    %c0_111 = arith.constant 0 : index
    %c0_112 = arith.constant 0 : index
    %c3_113 = arith.constant 3 : index
    %c4_114 = arith.constant 4 : index
    %76 = vector.load %arg3[%c0_110, %c0_111, %c0_112, %c3_113, %c4_114] : memref<1x8x1x20x20xbf16, #tpu.memory_space<vmem>>, vector<1x8x1x16x16xbf16>
    %77 = vector.shape_cast %76 : vector<1x8x1x16x16xbf16> to vector<8x16x16xbf16>
    %78 = vector.shape_cast %77 : vector<8x16x16xbf16> to vector<8x256xbf16>
    %c152 = arith.constant 152 : index
    %c0_115 = arith.constant 0 : index
    %79 = vector.load %arg6[%c152, %c0_115] : memref<200x256xbf16, #tpu.memory_space<vmem>>, vector<8x256xbf16>
    tpu.vector_store %arg6[%c152, %c0_115], %78 {strides = array<i32>} : memref<200x256xbf16, #tpu.memory_space<vmem>>, vector<8x256xbf16>,
    %c0_116 = arith.constant 0 : index
    %c0_117 = arith.constant 0 : index
    %c0_118 = arith.constant 0 : index
    %c4_119 = arith.constant 4 : index
    %c0_120 = arith.constant 0 : index
    %80 = vector.load %arg3[%c0_116, %c0_117, %c0_118, %c4_119, %c0_120] : memref<1x8x1x20x20xbf16, #tpu.memory_space<vmem>>, vector<1x8x1x16x16xbf16>
    %81 = vector.shape_cast %80 : vector<1x8x1x16x16xbf16> to vector<8x16x16xbf16>
    %82 = vector.shape_cast %81 : vector<8x16x16xbf16> to vector<8x256xbf16>
    %c160 = arith.constant 160 : index
    %c0_121 = arith.constant 0 : index
    %83 = vector.load %arg6[%c160, %c0_121] : memref<200x256xbf16, #tpu.memory_space<vmem>>, vector<8x256xbf16>
    tpu.vector_store %arg6[%c160, %c0_121], %82 {strides = array<i32>} : memref<200x256xbf16, #tpu.memory_space<vmem>>, vector<8x256xbf16>,
    %c0_122 = arith.constant 0 : index
    %c0_123 = arith.constant 0 : index
    %c0_124 = arith.constant 0 : index
    %c4_125 = arith.constant 4 : index
    %c1_126 = arith.constant 1 : index
    %84 = vector.load %arg3[%c0_122, %c0_123, %c0_124, %c4_125, %c1_126] : memref<1x8x1x20x20xbf16, #tpu.memory_space<vmem>>, vector<1x8x1x16x16xbf16>
    %85 = vector.shape_cast %84 : vector<1x8x1x16x16xbf16> to vector<8x16x16xbf16>
    %86 = vector.shape_cast %85 : vector<8x16x16xbf16> to vector<8x256xbf16>
    %c168 = arith.constant 168 : index
    %c0_127 = arith.constant 0 : index
    %87 = vector.load %arg6[%c168, %c0_127] : memref<200x256xbf16, #tpu.memory_space<vmem>>, vector<8x256xbf16>
    tpu.vector_store %arg6[%c168, %c0_127], %86 {strides = array<i32>} : memref<200x256xbf16, #tpu.memory_space<vmem>>, vector<8x256xbf16>,
    %c0_128 = arith.constant 0 : index
    %c0_129 = arith.constant 0 : index
    %c0_130 = arith.constant 0 : index
    %c4_131 = arith.constant 4 : index
    %c2_132 = arith.constant 2 : index
    %88 = vector.load %arg3[%c0_128, %c0_129, %c0_130, %c4_131, %c2_132] : memref<1x8x1x20x20xbf16, #tpu.memory_space<vmem>>, vector<1x8x1x16x16xbf16>
    %89 = vector.shape_cast %88 : vector<1x8x1x16x16xbf16> to vector<8x16x16xbf16>
    %90 = vector.shape_cast %89 : vector<8x16x16xbf16> to vector<8x256xbf16>
    %c176 = arith.constant 176 : index
    %c0_133 = arith.constant 0 : index
    %91 = vector.load %arg6[%c176, %c0_133] : memref<200x256xbf16, #tpu.memory_space<vmem>>, vector<8x256xbf16>
    tpu.vector_store %arg6[%c176, %c0_133], %90 {strides = array<i32>} : memref<200x256xbf16, #tpu.memory_space<vmem>>, vector<8x256xbf16>,
    %c0_134 = arith.constant 0 : index
    %c0_135 = arith.constant 0 : index
    %c0_136 = arith.constant 0 : index
    %c4_137 = arith.constant 4 : index
    %c3_138 = arith.constant 3 : index
    %92 = vector.load %arg3[%c0_134, %c0_135, %c0_136, %c4_137, %c3_138] : memref<1x8x1x20x20xbf16, #tpu.memory_space<vmem>>, vector<1x8x1x16x16xbf16>
    %93 = vector.shape_cast %92 : vector<1x8x1x16x16xbf16> to vector<8x16x16xbf16>
    %94 = vector.shape_cast %93 : vector<8x16x16xbf16> to vector<8x256xbf16>
    %c184 = arith.constant 184 : index
    %c0_139 = arith.constant 0 : index
    %95 = vector.load %arg6[%c184, %c0_139] : memref<200x256xbf16, #tpu.memory_space<vmem>>, vector<8x256xbf16>
    tpu.vector_store %arg6[%c184, %c0_139], %94 {strides = array<i32>} : memref<200x256xbf16, #tpu.memory_space<vmem>>, vector<8x256xbf16>,
    %c0_140 = arith.constant 0 : index
    %c0_141 = arith.constant 0 : index
    %c0_142 = arith.constant 0 : index
    %c4_143 = arith.constant 4 : index
    %c4_144 = arith.constant 4 : index
    %96 = vector.load %arg3[%c0_140, %c0_141, %c0_142, %c4_143, %c4_144] : memref<1x8x1x20x20xbf16, #tpu.memory_space<vmem>>, vector<1x8x1x16x16xbf16>
    %97 = vector.shape_cast %96 : vector<1x8x1x16x16xbf16> to vector<8x16x16xbf16>
    %98 = vector.shape_cast %97 : vector<8x16x16xbf16> to vector<8x256xbf16>
    %c192 = arith.constant 192 : index
    %c0_145 = arith.constant 0 : index
    %99 = vector.load %arg6[%c192, %c0_145] : memref<200x256xbf16, #tpu.memory_space<vmem>>, vector<8x256xbf16>
    tpu.vector_store %arg6[%c192, %c0_145], %98 {strides = array<i32>} : memref<200x256xbf16, #tpu.memory_space<vmem>>, vector<8x256xbf16>,
    %c0_146 = arith.constant 0 : index
    %100 = arith.index_cast %arg2 : i32 to index
    %c0_147 = arith.constant 0 : index
    %c0_148 = arith.constant 0 : index
    %101 = vector.load %arg4[%c0_146, %100, %c0_147, %c0_148] : memref<1x2x8x200xbf16, #tpu.memory_space<vmem>>, vector<1x1x8x200xbf16>
    %102 = vector.shape_cast %101 : vector<1x1x8x200xbf16> to vector<8x200xbf16>
    %c0_149 = arith.constant 0 : index
    %c0_150 = arith.constant 0 : index
    %103 = vector.load %arg6[%c0_149, %c0_150] : memref<200x256xbf16, #tpu.memory_space<vmem>>, vector<200x256xbf16>
    %cst = arith.constant dense<0.000000e+00> : vector<8x256xf32>
    %104 = tpu.matmul %102, %103, %cst {dimension_numbers = #tpu.dot_dimension_numbers<[1], [0], [0], [1], [0, 0, 1, 1], [], []>} : vector<8x200xbf16>, vector<200x256xbf16>, vector<8x256xf32> -> vector<8x256xf32>
    %c0_i32 = arith.constant 0 : i32
    %105 = arith.cmpi eq, %arg2, %c0_i32 : i32
    %106 = arith.extui %105 : i1 to i32
    %c0_i32_151 = arith.constant 0 : i32
    %107 = arith.cmpi ne, %106, %c0_i32_151 : i32
    scf.if %107 {
      %c0_154 = arith.constant 0 : index
      %c0_155 = arith.constant 0 : index
      %c0_156 = arith.constant 0 : index
      %111 = vector.load %arg5[%c0_154, %c0_155, %c0_156] : memref<1x8x256xf32, #tpu.memory_space<vmem>>, vector<1x8x256xf32>
      %112 = vector.shape_cast %111 : vector<1x8x256xf32> to vector<8x256xf32>
      %113 = vector.shape_cast %104 : vector<8x256xf32> to vector<1x8x256xf32>
      tpu.vector_store %arg5[%c0_154, %c0_155, %c0_156], %113 {strides = array<i32>} : memref<1x8x256xf32, #tpu.memory_space<vmem>>, vector<1x8x256xf32>,
    } else {
    }
    %c0_i32_152 = arith.constant 0 : i32
    %108 = arith.cmpi ne, %arg2, %c0_i32_152 : i32
    %109 = arith.extui %108 : i1 to i32
    %c0_i32_153 = arith.constant 0 : i32
    %110 = arith.cmpi ne, %109, %c0_i32_153 : i32
    scf.if %110 {
      %c0_154 = arith.constant 0 : index
      %c0_155 = arith.constant 0 : index
      %c0_156 = arith.constant 0 : index
      %111 = vector.load %arg5[%c0_154, %c0_155, %c0_156] : memref<1x8x256xf32, #tpu.memory_space<vmem>>, vector<1x8x256xf32>
      %112 = vector.shape_cast %111 : vector<1x8x256xf32> to vector<8x256xf32>
      %113 = arith.addf %112, %104 : vector<8x256xf32>
      %c0_157 = arith.constant 0 : index
      %c0_158 = arith.constant 0 : index
      %c0_159 = arith.constant 0 : index
      %114 = vector.load %arg5[%c0_157, %c0_158, %c0_159] : memref<1x8x256xf32, #tpu.memory_space<vmem>>, vector<1x8x256xf32>
      %115 = vector.shape_cast %114 : vector<1x8x256xf32> to vector<8x256xf32>
      %116 = vector.shape_cast %113 : vector<8x256xf32> to vector<1x8x256xf32>
      tpu.vector_store %arg5[%c0_157, %c0_158, %c0_159], %116 {strides = array<i32>} : memref<1x8x256xf32, #tpu.memory_space<vmem>>, vector<1x8x256xf32>,
    } else {
    }
    return
  }
  func.func @transform_0(%arg0: i32, %arg1: i32, %arg2: i32) -> (i32, i32, i32, i32, i32) {
    %0 = arith.addi %arg0, %arg2 : i32
    %c0_i32 = arith.constant 0 : i32
    %c0_i32_0 = arith.constant 0 : i32
    %c0_i32_1 = arith.constant 0 : i32
    %c0_i32_2 = arith.constant 0 : i32
    return %arg1, %c0_i32, %0, %c0_i32_0, %c0_i32_1 : i32, i32, i32, i32, i32
  }
  func.func @transform_1(%arg0: i32, %arg1: i32, %arg2: i32) -> (i32, i32, i32, i32) {
    %c0_i32 = arith.constant 0 : i32
    %c0_i32_0 = arith.constant 0 : i32
    %c0_i32_1 = arith.constant 0 : i32
    %c0_i32_2 = arith.constant 0 : i32
    return %arg0, %c0_i32, %c0_i32_0, %c0_i32_1 : i32, i32, i32, i32
  }
  func.func @transform_2(%arg0: i32, %arg1: i32, %arg2: i32) -> (i32, i32, i32) {
    %c0_i32 = arith.constant 0 : i32
    %c0_i32_0 = arith.constant 0 : i32
    return %arg1, %c0_i32, %arg0 : i32, i32, i32
  }
}

</mosaic_0001>

<llo_original>
// kernel: tpu_custom_call.1
$region0: #{tpu_custom_call.1}
  #allocation0 [shape = 'u32[]', space=smem, size = 0x4, offset = 0x4, fixed_abs, tag = 'smem constant byte address 0x4 - core index']
  #allocation1 [shape = 'u32[72,128]{1,0:T(1,128)}', space=vmem, size = 0x9000, scoped, tag = 'internal scratch']
  #allocation2 [shape = 'bf16[200,256]{1,0:T(8,128)(2,1)}', space=vmem, size = 0x19000, scoped, tag = 'scratch operand']
  %s0 = inlined_call_operand.vmem [shape: bf16[2,8,4,20,20], index: 0, kind: input, shape index: {}]
  %s1 = inlined_call_operand.vmem [shape: bf16[3,2,8,200], index: 1, kind: input, shape index: {}]
  %s2 = inlined_call_operand.hbm [shape: f32[2,8,768], index: 2, kind: output, shape index: {}]
  %s3 = sld [smem:[#allocation0]]
  $region90: #{tpu_custom_call.1} parent=0
    _
  %s5 = ssub.s32 1, %s3
  %s6 = scalar_select 0, %s5, %s3
  $region1: #{tpu_custom_call.1} parent=0
    #allocation3 [shape = 'u8[98304]{0}', space=vmem, size = 0x18000, scoped, tag = 'input window, operand 0']
    #allocation4 [shape = 'u8[16384]{0}', space=vmem, size = 0x4000, scoped, tag = 'output window, operand 0']
    #allocation5 [shape = 's32[2]{0}', space=sflag, size = 0x8, scoped, tag = 'scoped memory for tpu_custom_call.1']
    %7 = vsyncpa [#allocation5], 0
    %s8 = scalar_lea.sflag [#allocation5], 1
    %9 = vsyncpa %s8, 0
    loop: start=0, step=1, limit=14
    $region2: #{tpu_custom_call.1} parent=1 // loop_pre_header
      _
    $region3: #{tpu_custom_call.1} parent=1 // loop_header
      %s11 = sphi 0, %s15
      %p12 = scmp.ge.s32.totalorder %s11, 14
      %s18 = sphi 0, %s37
      %s19 = sphi 0, %s33
      %s20 = sphi 0, %s29
      %s21 = sphi 0, %s18
      %s22 = sphi 0, %s19
      %s23 = sphi 0, %s20
      %s24 = sphi 0, %s21
      %s25 = sphi 0, %s22
      %s26 = sphi 0, %s23
      %s44 = sphi 0, %s46
      %s47 = sphi 0, %s44
      %s48 = sphi 0, %s47
      %s64 = sphi 0, %s48
      %s70 = sphi 0, %s72
      %s73 = sphi 0, %s70
      %s74 = sphi 0, %s73
      %s90 = sphi 0, %s74
      %s98 = sphi 0, %s100
      %s101 = sphi 0, %s98
      %s102 = sphi 0, %s101
      %s118 = sphi 0, %s102
    $region4: #{tpu_custom_call.1} parent=1 // loop_header_branch
      %14 = sbr.rel (%p12) target = $region8
    $region5: #{tpu_custom_call.1} parent=1 // loop_body
      %s16 = ssub.s32 %s11, 1
      %s17 = ssub.s32 %s11, 2
      %s27 = sadd.s32 1, %s20
      %p28 = scmp.ge.s32.totalorder %s27, 2
      %s29 = scalar_select %p28, 0, %s27
      %s30 = sadd.s32 1, %s19
      %s31 = scalar_select %p28, %s30, %s19
      %p32 = scmp.ge.s32.totalorder %s31, 2
      %s33 = scalar_select %p32, 0, %s31
      %s34 = sadd.s32 1, %s18
      %s35 = scalar_select %p32, %s34, %s18
      %p36 = scmp.ge.s32.totalorder %s35, 3
      %s37 = scalar_select %p36, 0, %s35
      %s38 = sadd.s32 %s18, %s20
      %s39 = sadd.s32 %s37, %s29
      %s40 = ssub.s32 %s19, %s33
      %s41 = ssub.s32 %s38, %s39
      %s42 = sor.u32 %s40, %s41
      %p43 = scmp.eq.s32.totalorder %s42, 0
      %s45 = sadd.s32 %s44, 1
      %s46 = scalar_select %p43, %s44, %s45
      %p49 = pneg %p43
      %p50 = scmp.eq.s32.totalorder %s11, 11
      %p51 = por %p49, %p50
      %p52 = scmp.ne.s32.totalorder %s44, %s47
      %p53 = scmp.eq.s32.totalorder %s11, 0
      %p54 = por %p52, %p53
      %p55 = scmp.ne.s32.totalorder %s44, %s47
      %p56 = scmp.eq.s32.totalorder %s16, 11
      %p57 = por %p55, %p56
      %p58 = scmp.ne.s32.totalorder %s47, %s48
      %p59 = scmp.eq.s32.totalorder %s16, 0
      %p60 = por %p58, %p59
      %p61 = scmp.ne.s32.totalorder %s47, %s48
      %p62 = scmp.eq.s32.totalorder %s17, 11
      %p63 = por %p61, %p62
      %p65 = scmp.ne.s32.totalorder %s48, %s64
      %p66 = scmp.eq.s32.totalorder %s17, 0
      %p67 = por %p65, %p66
      %s68 = ssub.s32 %s18, %s37
      %p69 = scmp.eq.s32.totalorder %s68, 0
      %s71 = sadd.s32 %s70, 1
      %s72 = scalar_select %p69, %s70, %s71
      %p75 = pneg %p69
      %p76 = scmp.eq.s32.totalorder %s11, 11
      %p77 = por %p75, %p76
      %p78 = scmp.ne.s32.totalorder %s70, %s73
      %p79 = scmp.eq.s32.totalorder %s11, 0
      %p80 = por %p78, %p79
      %p81 = scmp.ne.s32.totalorder %s70, %s73
      %p82 = scmp.eq.s32.totalorder %s16, 11
      %p83 = por %p81, %p82
      %p84 = scmp.ne.s32.totalorder %s73, %s74
      %p85 = scmp.eq.s32.totalorder %s16, 0
      %p86 = por %p84, %p85
      %p87 = scmp.ne.s32.totalorder %s73, %s74
      %p88 = scmp.eq.s32.totalorder %s17, 11
      %p89 = por %p87, %p88
      %p91 = scmp.ne.s32.totalorder %s74, %s90
      %p92 = scmp.eq.s32.totalorder %s17, 0
      %p93 = por %p91, %p92
      %s94 = ssub.s32 %s19, %s33
      %s95 = ssub.s32 %s18, %s37
      %s96 = sor.u32 %s94, %s95
      %p97 = scmp.eq.s32.totalorder %s96, 0
      %s99 = sadd.s32 %s98, 1
      %s100 = scalar_select %p97, %s98, %s99
      %p103 = pneg %p97
      %p104 = scmp.eq.s32.totalorder %s11, 11
      %p105 = por %p103, %p104
      %p106 = scmp.ne.s32.totalorder %s98, %s101
      %p107 = scmp.eq.s32.totalorder %s11, 0
      %p108 = por %p106, %p107
      %p109 = scmp.ne.s32.totalorder %s98, %s101
      %p110 = scmp.eq.s32.totalorder %s16, 11
      %p111 = por %p109, %p110
      %p112 = scmp.ne.s32.totalorder %s101, %s102
      %p113 = scmp.eq.s32.totalorder %s16, 0
      %p114 = por %p112, %p113
      %p115 = scmp.ne.s32.totalorder %s101, %s102
      %p116 = scmp.eq.s32.totalorder %s17, 11
      %p117 = por %p115, %p116
      %p119 = scmp.ne.s32.totalorder %s102, %s118
      %p120 = scmp.eq.s32.totalorder %s17, 0
      %p121 = por %p119, %p120
      %p122 = scmp.le.s32.totalorder 1, %s11
      %p123 = scmp.lt.s32.totalorder %s11, 13
      %p124 = pnand %p122, %p123
      %p125 = pneg %p124
      // Predicated region
      $region9: #{tpu_custom_call.1} parent=5 // pred_check
        _
      $region10: #{tpu_custom_call.1} parent=5 // pred_check_branch
        %127 = sbr.rel (%p124) target = $region12
      $region11: #{tpu_custom_call.1} parent=5 // pred_region
        %s128 = ssub.s32 %s11, 1
      $region12: #{tpu_custom_call.1} parent=5 // pred_fallthru
        _
      %p129 = scmp.lt.s32.totalorder %s11, 12
      // Predicated region
      $region13: #{tpu_custom_call.1} parent=5 // pred_check
        %p130 = pneg %p129
      $region14: #{tpu_custom_call.1} parent=5 // pred_check_branch
        %132 = sbr.rel (%p130) target = $region16
      $region15: #{tpu_custom_call.1} parent=5 // pred_region
        // Predicated region
        $region17: #{tpu_custom_call.1} parent=15 // pred_check
          %p133 = pneg %p54
        $region18: #{tpu_custom_call.1} parent=15 // pred_check_branch
          %135 = sbr.rel (%p133) target = $region20
        $region19: #{tpu_custom_call.1} parent=15 // pred_region
          %s136 = sand.u32 %s44, 1
          %s137 = sand.u32 %s44, 1
          %s138 = smul.addr %s137, 96
          %s139 = scalar_lea.vmem [#allocation3], %s138
          %s140 = sadd.s32 %s18, %s20
          %s141 = smul.addr %s140, 3
          %s142 = smul.addr %s19, 96
          %s143 = sadd.s32 %s141, %s142
          %s144 = smul.addr %s143, 4
          %s145 = scalar_lea.vmem %s0, %s144
          // Predicated region
          $region21: #{tpu_custom_call.1} parent=19 // pred_check
            _
          $region22: #{tpu_custom_call.1} parent=19 // pred_check_branch
            %147 = sbr.rel (0) target = $region24
          $region23: #{tpu_custom_call.1} parent=19 // pred_region
            // Predicated region
            $region25: #{tpu_custom_call.1} parent=23 // pred_check
              _
            $region26: #{tpu_custom_call.1} parent=23 // pred_check_branch
              %149 = sbr.rel target = $region28
            $region27: #{tpu_custom_call.1} parent=23 // pred_region
              // Predicated region
              $region40: #{tpu_custom_call.1} parent=27 // pred_check
                _
              $region41: #{tpu_custom_call.1} parent=27 // pred_check_branch
                %211 = sbr.rel (0) target = $region43
              $region42: #{tpu_custom_call.1} parent=27 // pred_region
                loop: start=0, step=1, limit=1
                $region44: #{tpu_custom_call.1} parent=42 // loop_pre_header
                  _
                $region45: #{tpu_custom_call.1} parent=42 // loop_header
                  %s213 = sphi 0, %s217
                  %p214 = scmp.ge.s32.totalorder %s213, 1
                  %s218 = sphi %s145, %s145
                  %s219 = sphi %s139, %s139
                $region46: #{tpu_custom_call.1} parent=42 // loop_header_branch
                  %216 = sbr.rel (%p214) target = $region50
                $region47: #{tpu_custom_call.1} parent=42 // loop_body
                  _
                $region48: #{tpu_custom_call.1} parent=42 // loop_footer
                  %s217 = sadd.s32 1, %s213
                $region49: #{tpu_custom_call.1} parent=42 // loop_footer_branch
                  %212 = sbr.rel target = $region45
                $region50: #{tpu_custom_call.1} parent=42 // loop_exit
                  _
                %s221 = ssub.s32 16, 1
                loop: start=0, step=1, limit=1
                $region51: #{tpu_custom_call.1} parent=42 // loop_pre_header
                  _
                $region52: #{tpu_custom_call.1} parent=42 // loop_header
                  %s223 = sphi 0, %s227
                  %p224 = scmp.ge.s32.totalorder %s223, 1
                  %s228 = sphi %s145, %s145
                  %s229 = sphi %s139, %s139
                $region53: #{tpu_custom_call.1} parent=42 // loop_header_branch
                  %226 = sbr.rel (%p224) target = $region57
                $region54: #{tpu_custom_call.1} parent=42 // loop_body
                  %v230 = vld [vmem:[%s228] sm:%s221]
                  %231 = vst [vmem:[%s229] sm:%s221] %v230
                  %v232 = vld [vmem:[%s228 + $0x4] sm:%s221]
                  %233 = vst [vmem:[%s229 + $0x4] sm:%s221] %v232
                  %v234 = vld [vmem:[%s228 + $0x8] sm:%s221]
                  %235 = vst [vmem:[%s229 + $0x8] sm:%s221] %v234
                  %v236 = vld [vmem:[%s228 + $0x30] sm:%s221]
                  %237 = vst [vmem:[%s229 + $0xc] sm:%s221] %v236
                  %v238 = vld [vmem:[%s228 + $0x34] sm:%s221]
                  %239 = vst [vmem:[%s229 + $0x10] sm:%s221] %v238
                  %v240 = vld [vmem:[%s228 + $0x38] sm:%s221]
                  %241 = vst [vmem:[%s229 + $0x14] sm:%s221] %v240
                  %v242 = vld [vmem:[%s228 + $0x60] sm:%s221]
                  %243 = vst [vmem:[%s229 + $0x18] sm:%s221] %v242
                  %v244 = vld [vmem:[%s228 + $0x64] sm:%s221]
                  %245 = vst [vmem:[%s229 + $0x1c] sm:%s221] %v244
                  %v246 = vld [vmem:[%s228 + $0x68] sm:%s221]
                  %247 = vst [vmem:[%s229 + $0x20] sm:%s221] %v246
                  %v248 = vld [vmem:[%s228 + $0x90] sm:%s221]
                  %249 = vst [vmem:[%s229 + $0x24] sm:%s221] %v248
                  %v250 = vld [vmem:[%s228 + $0x94] sm:%s221]
                  %251 = vst [vmem:[%s229 + $0x28] sm:%s221] %v250
                  %v252 = vld [vmem:[%s228 + $0x98] sm:%s221]
                  %253 = vst [vmem:[%s229 + $0x2c] sm:%s221] %v252
                  %v254 = vld [vmem:[%s228 + $0xc0] sm:%s221]
                  %255 = vst [vmem:[%s229 + $0x30] sm:%s221] %v254
                  %v256 = vld [vmem:[%s228 + $0xc4] sm:%s221]
                  %257 = vst [vmem:[%s229 + $0x34] sm:%s221] %v256
                  %v258 = vld [vmem:[%s228 + $0xc8] sm:%s221]
                  %259 = vst [vmem:[%s229 + $0x38] sm:%s221] %v258
                  %v260 = vld [vmem:[%s228 + $0xf0] sm:%s221]
                  %261 = vst [vmem:[%s229 + $0x3c] sm:%s221] %v260
                  %v262 = vld [vmem:[%s228 + $0xf4] sm:%s221]
                  %263 = vst [vmem:[%s229 + $0x40] sm:%s221] %v262
                  %v264 = vld [vmem:[%s228 + $0xf8] sm:%s221]
                  %265 = vst [vmem:[%s229 + $0x44] sm:%s221] %v264
                  %v266 = vld [vmem:[%s228 + $0x120] sm:%s221]
                  %267 = vst [vmem:[%s229 + $0x48] sm:%s221] %v266
                  %v268 = vld [vmem:[%s228 + $0x124] sm:%s221]
                  %269 = vst [vmem:[%s229 + $0x4c] sm:%s221] %v268
                  %v270 = vld [vmem:[%s228 + $0x128] sm:%s221]
                  %271 = vst [vmem:[%s229 + $0x50] sm:%s221] %v270
                  %v272 = vld [vmem:[%s228 + $0x150] sm:%s221]
                  %273 = vst [vmem:[%s229 + $0x54] sm:%s221] %v272
                  %v274 = vld [vmem:[%s228 + $0x154] sm:%s221]
                  %275 = vst [vmem:[%s229 + $0x58] sm:%s221] %v274
                  %v276 = vld [vmem:[%s228 + $0x158] sm:%s221]
                  %277 = vst [vmem:[%s229 + $0x5c] sm:%s221] %v276
                $region55: #{tpu_custom_call.1} parent=42 // loop_footer
                  %s227 = sadd.s32 1, %s223
                $region56: #{tpu_custom_call.1} parent=42 // loop_footer_branch
                  %222 = sbr.rel target = $region52
                $region57: #{tpu_custom_call.1} parent=42 // loop_exit
                  _
              $region43: #{tpu_custom_call.1} parent=27 // pred_fallthru
                _
            $region28: #{tpu_custom_call.1} parent=23 // pred_fallthru
              _
            // Predicated region
            $region29: #{tpu_custom_call.1} parent=23 // pred_check
              _
            $region30: #{tpu_custom_call.1} parent=23 // pred_check_branch
              %151 = sbr.rel (0) target = $region32
            $region31: #{tpu_custom_call.1} parent=23 // pred_region
              %s153 = ssub.s32 16, 1
              loop: start=0, step=1, limit=1
              $region33: #{tpu_custom_call.1} parent=31 // loop_pre_header
                _
              $region34: #{tpu_custom_call.1} parent=31 // loop_header
                %s155 = sphi 0, %s159
                %p156 = scmp.ge.s32.totalorder %s155, 1
                %s160 = sphi %s145, %s145
                %s161 = sphi %s139, %s139
              $region35: #{tpu_custom_call.1} parent=31 // loop_header_branch
                %158 = sbr.rel (%p156) target = $region39
              $region36: #{tpu_custom_call.1} parent=31 // loop_body
                %v162 = vld [vmem:[%s160] sm:%s153]
                %163 = vst [vmem:[%s161] sm:%s153] %v162
                %v164 = vld [vmem:[%s160 + $0x4] sm:%s153]
                %165 = vst [vmem:[%s161 + $0x4] sm:%s153] %v164
                %v166 = vld [vmem:[%s160 + $0x8] sm:%s153]
                %167 = vst [vmem:[%s161 + $0x8] sm:%s153] %v166
                %v168 = vld [vmem:[%s160 + $0x30] sm:%s153]
                %169 = vst [vmem:[%s161 + $0xc] sm:%s153] %v168
                %v170 = vld [vmem:[%s160 + $0x34] sm:%s153]
                %171 = vst [vmem:[%s161 + $0x10] sm:%s153] %v170
                %v172 = vld [vmem:[%s160 + $0x38] sm:%s153]
                %173 = vst [vmem:[%s161 + $0x14] sm:%s153] %v172
                %v174 = vld [vmem:[%s160 + $0x60] sm:%s153]
                %175 = vst [vmem:[%s161 + $0x18] sm:%s153] %v174
                %v176 = vld [vmem:[%s160 + $0x64] sm:%s153]
                %177 = vst [vmem:[%s161 + $0x1c] sm:%s153] %v176
                %v178 = vld [vmem:[%s160 + $0x68] sm:%s153]
                %179 = vst [vmem:[%s161 + $0x20] sm:%s153] %v178
                %v180 = vld [vmem:[%s160 + $0x90] sm:%s153]
                %181 = vst [vmem:[%s161 + $0x24] sm:%s153] %v180
                %v182 = vld [vmem:[%s160 + $0x94] sm:%s153]
                %183 = vst [vmem:[%s161 + $0x28] sm:%s153] %v182
                %v184 = vld [vmem:[%s160 + $0x98] sm:%s153]
                %185 = vst [vmem:[%s161 + $0x2c] sm:%s153] %v184
                %v186 = vld [vmem:[%s160 + $0xc0] sm:%s153]
                %187 = vst [vmem:[%s161 + $0x30] sm:%s153] %v186
                %v188 = vld [vmem:[%s160 + $0xc4] sm:%s153]
                %189 = vst [vmem:[%s161 + $0x34] sm:%s153] %v188
                %v190 = vld [vmem:[%s160 + $0xc8] sm:%s153]
                %191 = vst [vmem:[%s161 + $0x38] sm:%s153] %v190
                %v192 = vld [vmem:[%s160 + $0xf0] sm:%s153]
                %193 = vst [vmem:[%s161 + $0x3c] sm:%s153] %v192
                %v194 = vld [vmem:[%s160 + $0xf4] sm:%s153]
                %195 = vst [vmem:[%s161 + $0x40] sm:%s153] %v194
                %v196 = vld [vmem:[%s160 + $0xf8] sm:%s153]
                %197 = vst [vmem:[%s161 + $0x44] sm:%s153] %v196
                %v198 = vld [vmem:[%s160 + $0x120] sm:%s153]
                %199 = vst [vmem:[%s161 + $0x48] sm:%s153] %v198
                %v200 = vld [vmem:[%s160 + $0x124] sm:%s153]
                %201 = vst [vmem:[%s161 + $0x4c] sm:%s153] %v200
                %v202 = vld [vmem:[%s160 + $0x128] sm:%s153]
                %203 = vst [vmem:[%s161 + $0x50] sm:%s153] %v202
                %v204 = vld [vmem:[%s160 + $0x150] sm:%s153]
                %205 = vst [vmem:[%s161 + $0x54] sm:%s153] %v204
                %v206 = vld [vmem:[%s160 + $0x154] sm:%s153]
                %207 = vst [vmem:[%s161 + $0x58] sm:%s153] %v206
                %v208 = vld [vmem:[%s160 + $0x158] sm:%s153]
                %209 = vst [vmem:[%s161 + $0x5c] sm:%s153] %v208
              $region37: #{tpu_custom_call.1} parent=31 // loop_footer
                %s159 = sadd.s32 1, %s155
              $region38: #{tpu_custom_call.1} parent=31 // loop_footer_branch
                %154 = sbr.rel target = $region34
              $region39: #{tpu_custom_call.1} parent=31 // loop_exit
                _
            $region32: #{tpu_custom_call.1} parent=23 // pred_fallthru
              _
          $region24: #{tpu_custom_call.1} parent=19 // pred_fallthru
            _
          %278 = vnop
        $region20: #{tpu_custom_call.1} parent=15 // pred_fallthru
          _
        // Predicated region
        $region58: #{tpu_custom_call.1} parent=15 // pred_check
          %p279 = pneg %p80
        $region59: #{tpu_custom_call.1} parent=15 // pred_check_branch
          %281 = sbr.rel (%p279) target = $region61
        $region60: #{tpu_custom_call.1} parent=15 // pred_region
          %p282 = scmp.lt.s32.totalorder %s18, 2
          %s283 = scalar_select %p282, %s18, 2
          %s284 = smul.addr %s283, 4
          %s285 = smul.addr %s284, 4
          %s286 = scalar_lea.vmem %s1, %s285
        $region61: #{tpu_custom_call.1} parent=15 // pred_fallthru
          _
      $region16: #{tpu_custom_call.1} parent=5 // pred_fallthru
        _
      %p287 = scmp.le.s32.totalorder 1, %s11
      %p288 = scmp.lt.s32.totalorder %s11, 13
      %p289 = pnand %p287, %p288
      %p290 = pneg %p289
      // Predicated region
      $region62: #{tpu_custom_call.1} parent=5 // pred_check
        _
      $region63: #{tpu_custom_call.1} parent=5 // pred_check_branch
        %292 = sbr.rel (%p289) target = $region65
      $region64: #{tpu_custom_call.1} parent=5 // pred_region
        %s293 = ssub.s32 %s11, 1
        %s294 = sand.u32 %s47, 1
        %s295 = sand.u32 %s47, 1
        %s296 = smul.addr %s295, 96
        %s297 = scalar_lea.vmem [#allocation3], %s296
        // Predicated region
        $region66: #{tpu_custom_call.1} parent=64 // pred_check
          %p298 = pneg %p60
        $region67: #{tpu_custom_call.1} parent=64 // pred_check_branch
          %300 = sbr.rel (%p298) target = $region69
        $region68: #{tpu_custom_call.1} parent=64 // pred_region
          _
        $region69: #{tpu_custom_call.1} parent=64 // pred_fallthru
          _
        %s301 = sand.u32 %s47, 1
        %s302 = sand.u32 %s47, 1
        %s303 = smul.addr %s302, 96
        %s304 = scalar_lea.vmem [#allocation3], %s303
        %p305 = pneg %p60
        %p306 = pneg %p57
        %p307 = scmp.lt.s32.totalorder %s21, 2
        %s308 = scalar_select %p307, %s21, 2
        %s309 = smul.addr %s308, 4
        %s310 = smul.addr %s309, 4
        %s311 = scalar_lea.vmem %s1, %s310
        %p312 = pneg %p86
        %p313 = pneg %p83
        %p314 = pneg %p114
        %p315 = pneg %p111
        %s316 = sand.u32 %s101, 1
        %s317 = scalar_lea.sflag [#allocation5], %s316
        %s318 = sand.u32 %s101, 1
        %s319 = smul.addr %s318, 16
        %s320 = scalar_lea.vmem [#allocation4], %s319
        %s321 = sadd.s32 %s21, %s23
        %p322 = scmp.lt.s32.totalorder %s21, 2
        %s323 = scalar_select %p322, %s21, 2
        %s324 = smul.addr %s323, 4
        %s325 = smul.addr %s324, 4
        %s326 = scalar_lea.vmem %s1, %s325
        %s327 = smul.u32 2, %s21
        %v329 = vld [vmem:[%s297] sm:$0xf]
        %v330 = vld [vmem:[%s297 + $0x4] sm:$0xf]
        %v331 = vld [vmem:[%s297 + $0xc] sm:$0xf]
        %v332 = vld [vmem:[%s297 + $0x10] sm:$0xf]
        %v333 = vld [vmem:[%s297 + $0x18] sm:$0xf]
        %v334 = vld [vmem:[%s297 + $0x1c] sm:$0xf]
        %v335 = vld [vmem:[%s297 + $0x24] sm:$0xf]
        %v336 = vld [vmem:[%s297 + $0x28] sm:$0xf]
        %v337 = vld [vmem:[%s297 + $0x30] sm:$0xf]
        %v338 = vld [vmem:[%s297 + $0x34] sm:$0xf]
        %v339 = vld [vmem:[%s297 + $0x3c] sm:$0xf]
        %v340 = vld [vmem:[%s297 + $0x40] sm:$0xf]
        %v341 = vld [vmem:[%s297 + $0x48] sm:$0xf]
        %v342 = vld [vmem:[%s297 + $0x4c] sm:$0xf]
        %v343 = vld [vmem:[%s297 + $0x54] sm:$0xf]
        %v344 = vld [vmem:[%s297 + $0x58] sm:$0xf]
        %v345 = vrot.slane %v337, 4
        %vm346 = vcmask 1047556
        %v347 = vsel %vm346, %v345, %v329
        %v349 = vunpack.c.l.s4 1983009808
        %v350 = vunpack.c.0.s8 %v349
        %v351 = vperm.slane %v347, %v350
        %v352 = vrot.slane %v341, 4
        %v353 = vsel %vm346, %v352, %v333
        %v355 = vunpack.c.l.s4 1983009808
        %v356 = vunpack.c.0.s8 %v355
        %v357 = vperm.slane %v353, %v356
        %v358 = vrot.slane %v357, 4
        %v359 = vsel %vm346, %v358, %v351
        %v360 = vrot.slane %v351, 4
        %v361 = vsel %vm346, %v357, %v360
        %v363 = vunpack.c.l.s4 1934713408
        %v364 = vunpack.c.0.s8 %v363
        %v365 = vperm.slane %v359, %v364
        %v367 = vunpack.c.l.s4 1934713408
        %v368 = vunpack.c.0.s8 %v367
        %v369 = vperm.slane %v361, %v368
        %v370 = vrot.slane %v365, 4
        %v371 = vsel %vm346, 0, %v370
        %v372 = vrot.slane %v369, 4
        %v373 = vsel %vm346, 0, %v372
        %v374 = vrot.slane %v339, 4
        %v375 = vsel %vm346, %v374, %v331
        %v377 = vunpack.c.l.s4 1983009808
        %v378 = vunpack.c.0.s8 %v377
        %v379 = vperm.slane %v375, %v378
        %v380 = vrot.slane %v343, 4
        %v381 = vsel %vm346, %v380, %v335
        %v383 = vunpack.c.l.s4 1983009808
        %v384 = vunpack.c.0.s8 %v383
        %v385 = vperm.slane %v381, %v384
        %v386 = vrot.slane %v385, 4
        %v387 = vsel %vm346, %v386, %v379
        %v388 = vrot.slane %v379, 4
        %v389 = vsel %vm346, %v385, %v388
        %v391 = vunpack.c.l.s4 1934713408
        %v392 = vunpack.c.0.s8 %v391
        %v393 = vperm.slane %v387, %v392
        %v395 = vunpack.c.l.s4 1934713408
        %v396 = vunpack.c.0.s8 %v395
        %v397 = vperm.slane %v389, %v396
        %v398 = vrot.slane %v393, 4
        %v399 = vsel %vm346, 0, %v398
        %v400 = vrot.slane %v397, 4
        %v401 = vsel %vm346, 0, %v400
        %v402 = vrot.slane %v338, 4
        %v403 = vsel %vm346, %v402, %v330
        %v405 = vunpack.c.l.s4 1983009808
        %v406 = vunpack.c.0.s8 %v405
        %v407 = vperm.slane %v403, %v406
        %v408 = vrot.slane %v342, 4
        %v409 = vsel %vm346, %v408, %v334
        %v411 = vunpack.c.l.s4 1983009808
        %v412 = vunpack.c.0.s8 %v411
        %v413 = vperm.slane %v409, %v412
        %v414 = vrot.slane %v413, 4
        %v415 = vsel %vm346, %v414, %v407
        %v416 = vrot.slane %v407, 4
        %v417 = vsel %vm346, %v413, %v416
        %v419 = vunpack.c.l.s4 1934713408
        %v420 = vunpack.c.0.s8 %v419
        %v421 = vperm.slane %v415, %v420
        %v423 = vunpack.c.l.s4 1934713408
        %v424 = vunpack.c.0.s8 %v423
        %v425 = vperm.slane %v417, %v424
        %v426 = vrot.slane %v421, 4
        %v427 = vsel %vm346, 0, %v426
        %v428 = vrot.slane %v425, 4
        %v429 = vsel %vm346, 0, %v428
        %v430 = vrot.slane %v340, 4
        %v431 = vsel %vm346, %v430, %v332
        %v433 = vunpack.c.l.s4 1983009808
        %v434 = vunpack.c.0.s8 %v433
        %v435 = vperm.slane %v431, %v434
        %v436 = vrot.slane %v344, 4
        %v437 = vsel %vm346, %v436, %v336
        %v439 = vunpack.c.l.s4 1983009808
        %v440 = vunpack.c.0.s8 %v439
        %v441 = vperm.slane %v437, %v440
        %v442 = vrot.slane %v441, 4
        %v443 = vsel %vm346, %v442, %v435
        %v444 = vrot.slane %v435, 4
        %v445 = vsel %vm346, %v441, %v444
        %v447 = vunpack.c.l.s4 1934713408
        %v448 = vunpack.c.0.s8 %v447
        %v449 = vperm.slane %v443, %v448
        %v451 = vunpack.c.l.s4 1934713408
        %v452 = vunpack.c.0.s8 %v451
        %v453 = vperm.slane %v445, %v452
        %v454 = vrot.slane %v449, 4
        %v455 = vsel %vm346, 0, %v454
        %v456 = vrot.slane %v453, 4
        %v457 = vsel %vm346, 0, %v456
        %v460 = vpack.i.b16 %v393, %v365
        %v461 = vshrl.u32 %v365, 16
        %v462 = vshrl.u32 %v393, 16
        %v463 = vpack.i.b16 %v462, %v461
        %v466 = vpack.i.b16 %v399, %v371
        %v467 = vshrl.u32 %v371, 16
        %v468 = vshrl.u32 %v399, 16
        %v469 = vpack.i.b16 %v468, %v467
        %v472 = vpack.i.b16 %v397, %v369
        %v473 = vshrl.u32 %v369, 16
        %v474 = vshrl.u32 %v397, 16
        %v475 = vpack.i.b16 %v474, %v473
        %v478 = vpack.i.b16 %v401, %v373
        %v479 = vshrl.u32 %v373, 16
        %v480 = vshrl.u32 %v401, 16
        %v481 = vpack.i.b16 %v480, %v479
        %v484 = vpack.i.b16 %v449, %v421
        %v485 = vshrl.u32 %v421, 16
        %v486 = vshrl.u32 %v449, 16
        %v487 = vpack.i.b16 %v486, %v485
        %v490 = vpack.i.b16 %v455, %v427
        %v491 = vshrl.u32 %v427, 16
        %v492 = vshrl.u32 %v455, 16
        %v493 = vpack.i.b16 %v492, %v491
        %v496 = vpack.i.b16 %v453, %v425
        %v497 = vshrl.u32 %v425, 16
        %v498 = vshrl.u32 %v453, 16
        %v499 = vpack.i.b16 %v498, %v497
        %v502 = vpack.i.b16 %v457, %v429
        %v503 = vshrl.u32 %v429, 16
        %v504 = vshrl.u32 %v457, 16
        %v505 = vpack.i.b16 %v504, %v503
        %v506 = vunpack.c.l.b16 %v463
        %v507 = vpack.c.b16 %v506, %v506
        %508 = vrot.lane.b32.xlu0 %v507, 16
        %v509 = vpop.permute.xlu0 %508
        %v510 = vunpack.c.l.b16 %v466
        %v511 = vpack.c.b16 %v510, %v510
        %512 = vrot.lane.b32.xlu0 %v511, 32
        %v513 = vpop.permute.xlu0 %512
        %v514 = vunpack.c.l.b16 %v469
        %v515 = vpack.c.b16 %v514, %v514
        %516 = vrot.lane.b32.xlu0 %v515, 48
        %v517 = vpop.permute.xlu0 %516
        %v518 = vunpack.c.l.b16 %v472
        %v519 = vpack.c.b16 %v518, %v518
        %520 = vrot.lane.b32.xlu0 %v519, 64
        %v521 = vpop.permute.xlu0 %520
        %v522 = vunpack.c.l.b16 %v475
        %v523 = vpack.c.b16 %v522, %v522
        %524 = vrot.lane.b32.xlu0 %v523, 80
        %v525 = vpop.permute.xlu0 %524
        %v526 = vunpack.c.l.b16 %v478
        %v527 = vpack.c.b16 %v526, %v526
        %528 = vrot.lane.b32.xlu0 %v527, 96
        %v529 = vpop.permute.xlu0 %528
        %v530 = vunpack.c.l.b16 %v481
        %v531 = vpack.c.b16 %v530, %v530
        %532 = vrot.lane.b32.xlu0 %v531, 112
        %v533 = vpop.permute.xlu0 %532
        %v534 = vunpack.c.l.b16 %v487
        %v535 = vpack.c.b16 %v534, %v534
        %536 = vrot.lane.b32.xlu0 %v535, 16
        %v537 = vpop.permute.xlu0 %536
        %v538 = vunpack.c.l.b16 %v490
        %v539 = vpack.c.b16 %v538, %v538
        %540 = vrot.lane.b32.xlu0 %v539, 32
        %v541 = vpop.permute.xlu0 %540
        %v542 = vunpack.c.l.b16 %v493
        %v543 = vpack.c.b16 %v542, %v542
        %544 = vrot.lane.b32.xlu0 %v543, 48
        %v545 = vpop.permute.xlu0 %544
        %v546 = vunpack.c.l.b16 %v496
        %v547 = vpack.c.b16 %v546, %v546
        %548 = vrot.lane.b32.xlu0 %v547, 64
        %v549 = vpop.permute.xlu0 %548
        %v550 = vunpack.c.l.b16 %v499
        %v551 = vpack.c.b16 %v550, %v550
        %552 = vrot.lane.b32.xlu0 %v551, 80
        %v553 = vpop.permute.xlu0 %552
        %v554 = vunpack.c.l.b16 %v502
        %v555 = vpack.c.b16 %v554, %v554
        %556 = vrot.lane.b32.xlu0 %v555, 96
        %v557 = vpop.permute.xlu0 %556
        %v558 = vunpack.c.l.b16 %v505
        %v559 = vpack.c.b16 %v558, %v558
        %560 = vrot.lane.b32.xlu0 %v559, 112
        %v561 = vpop.permute.xlu0 %560
        %vm562 = vcmask 130048
        %v565 = vsel %vm562, %v460, %v509
        %vm566 = vcmask 261120
        %v568 = vsel %vm566, %v565, %v513
        %vm569 = vcmask 392192
        %v571 = vsel %vm569, %v568, %v517
        %vm572 = vcmask 523264
        %v574 = vsel %vm572, %v571, %v521
        %vm575 = vcmask 654336
        %v577 = vsel %vm575, %v574, %v525
        %vm578 = vcmask 785408
        %v580 = vsel %vm578, %v577, %v529
        %vm581 = vcmask 916480
        %v583 = vsel %vm581, %v580, %v533
        %v586 = vsel %vm562, %v484, %v537
        %v588 = vsel %vm566, %v586, %v541
        %v590 = vsel %vm569, %v588, %v545
        %v592 = vsel %vm572, %v590, %v549
        %v594 = vsel %vm575, %v592, %v553
        %v596 = vsel %vm578, %v594, %v557
        %v598 = vsel %vm581, %v596, %v561
        %v601 = vunpack.c.l.b16 %v583
        %v602 = vunpack.c.l.b16 %v598
        %v603 = vpack.c.b16 %v602, %v601
        %605 = vst [vmem:[#allocation2] sm:$0xff] %v603
        %v606 = vld [vmem:[%s297] sm:$0xf]
        %v607 = vld [vmem:[%s297 + $0x4] sm:$0xf]
        %v608 = vld [vmem:[%s297 + $0xc] sm:$0xf]
        %v609 = vld [vmem:[%s297 + $0x10] sm:$0xf]
        %v610 = vld [vmem:[%s297 + $0x18] sm:$0xf]
        %v611 = vld [vmem:[%s297 + $0x1c] sm:$0xf]
        %v612 = vld [vmem:[%s297 + $0x24] sm:$0xf]
        %v613 = vld [vmem:[%s297 + $0x28] sm:$0xf]
        %v614 = vld [vmem:[%s297 + $0x30] sm:$0xf]
        %v615 = vld [vmem:[%s297 + $0x34] sm:$0xf]
        %v616 = vld [vmem:[%s297 + $0x3c] sm:$0xf]
        %v617 = vld [vmem:[%s297 + $0x40] sm:$0xf]
        %v618 = vld [vmem:[%s297 + $0x48] sm:$0xf]
        %v619 = vld [vmem:[%s297 + $0x4c] sm:$0xf]
        %v620 = vld [vmem:[%s297 + $0x54] sm:$0xf]
        %v621 = vld [vmem:[%s297 + $0x58] sm:$0xf]
        %638 = vrot.lane.b32.xlu0 %v606, 127
        %v639 = vpop.permute.xlu0 %638
        %640 = vrot.lane.b32.xlu0 %v607, 127
        %v641 = vpop.permute.xlu0 %640
        %642 = vrot.lane.b32.xlu0 %v608, 127
        %v643 = vpop.permute.xlu0 %642
        %644 = vrot.lane.b32.xlu0 %v609, 127
        %v645 = vpop.permute.xlu0 %644
        %646 = vrot.lane.b32.xlu0 %v610, 127
        %v647 = vpop.permute.xlu0 %646
        %648 = vrot.lane.b32.xlu0 %v611, 127
        %v649 = vpop.permute.xlu0 %648
        %650 = vrot.lane.b32.xlu0 %v612, 127
        %v651 = vpop.permute.xlu0 %650
        %652 = vrot.lane.b32.xlu0 %v613, 127
        %v653 = vpop.permute.xlu0 %652
        %654 = vrot.lane.b32.xlu0 %v614, 127
        %v655 = vpop.permute.xlu0 %654
        %656 = vrot.lane.b32.xlu0 %v615, 127
        %v657 = vpop.permute.xlu0 %656
        %658 = vrot.lane.b32.xlu0 %v616, 127
        %v659 = vpop.permute.xlu0 %658
        %660 = vrot.lane.b32.xlu0 %v617, 127
        %v661 = vpop.permute.xlu0 %660
        %662 = vrot.lane.b32.xlu0 %v618, 127
        %v663 = vpop.permute.xlu0 %662
        %664 = vrot.lane.b32.xlu0 %v619, 127
        %v665 = vpop.permute.xlu0 %664
        %666 = vrot.lane.b32.xlu0 %v620, 127
        %v667 = vpop.permute.xlu0 %666
        %668 = vrot.lane.b32.xlu0 %v621, 127
        %v669 = vpop.permute.xlu0 %668
        %v686 = vrot.slane %v655, 4
        %v687 = vsel %vm346, %v686, %v639
        %v689 = vunpack.c.l.s4 1983009808
        %v690 = vunpack.c.0.s8 %v689
        %v691 = vperm.slane %v687, %v690
        %v692 = vrot.slane %v663, 4
        %v693 = vsel %vm346, %v692, %v647
        %v695 = vunpack.c.l.s4 1983009808
        %v696 = vunpack.c.0.s8 %v695
        %v697 = vperm.slane %v693, %v696
        %v698 = vrot.slane %v697, 4
        %v699 = vsel %vm346, %v698, %v691
        %v700 = vrot.slane %v691, 4
        %v701 = vsel %vm346, %v697, %v700
        %v703 = vunpack.c.l.s4 1934713408
        %v704 = vunpack.c.0.s8 %v703
        %v705 = vperm.slane %v699, %v704
        %v707 = vunpack.c.l.s4 1934713408
        %v708 = vunpack.c.0.s8 %v707
        %v709 = vperm.slane %v701, %v708
        %v710 = vrot.slane %v705, 4
        %v711 = vsel %vm346, 0, %v710
        %v712 = vrot.slane %v709, 4
        %v713 = vsel %vm346, 0, %v712
        %v714 = vrot.slane %v659, 4
        %v715 = vsel %vm346, %v714, %v643
        %v717 = vunpack.c.l.s4 1983009808
        %v718 = vunpack.c.0.s8 %v717
        %v719 = vperm.slane %v715, %v718
        %v720 = vrot.slane %v667, 4
        %v721 = vsel %vm346, %v720, %v651
        %v723 = vunpack.c.l.s4 1983009808
        %v724 = vunpack.c.0.s8 %v723
        %v725 = vperm.slane %v721, %v724
        %v726 = vrot.slane %v725, 4
        %v727 = vsel %vm346, %v726, %v719
        %v728 = vrot.slane %v719, 4
        %v729 = vsel %vm346, %v725, %v728
        %v731 = vunpack.c.l.s4 1934713408
        %v732 = vunpack.c.0.s8 %v731
        %v733 = vperm.slane %v727, %v732
        %v735 = vunpack.c.l.s4 1934713408
        %v736 = vunpack.c.0.s8 %v735
        %v737 = vperm.slane %v729, %v736
        %v738 = vrot.slane %v733, 4
        %v739 = vsel %vm346, 0, %v738
        %v740 = vrot.slane %v737, 4
        %v741 = vsel %vm346, 0, %v740
        %v742 = vrot.slane %v657, 4
        %v743 = vsel %vm346, %v742, %v641
        %v745 = vunpack.c.l.s4 1983009808
        %v746 = vunpack.c.0.s8 %v745
        %v747 = vperm.slane %v743, %v746
        %v748 = vrot.slane %v665, 4
        %v749 = vsel %vm346, %v748, %v649
        %v751 = vunpack.c.l.s4 1983009808
        %v752 = vunpack.c.0.s8 %v751
        %v753 = vperm.slane %v749, %v752
        %v754 = vrot.slane %v753, 4
        %v755 = vsel %vm346, %v754, %v747
        %v756 = vrot.slane %v747, 4
        %v757 = vsel %vm346, %v753, %v756
        %v759 = vunpack.c.l.s4 1934713408
        %v760 = vunpack.c.0.s8 %v759
        %v761 = vperm.slane %v755, %v760
        %v763 = vunpack.c.l.s4 1934713408
        %v764 = vunpack.c.0.s8 %v763
        %v765 = vperm.slane %v757, %v764
        %v766 = vrot.slane %v761, 4
        %v767 = vsel %vm346, 0, %v766
        %v768 = vrot.slane %v765, 4
        %v769 = vsel %vm346, 0, %v768
        %v770 = vrot.slane %v661, 4
        %v771 = vsel %vm346, %v770, %v645
        %v773 = vunpack.c.l.s4 1983009808
        %v774 = vunpack.c.0.s8 %v773
        %v775 = vperm.slane %v771, %v774
        %v776 = vrot.slane %v669, 4
        %v777 = vsel %vm346, %v776, %v653
        %v779 = vunpack.c.l.s4 1983009808
        %v780 = vunpack.c.0.s8 %v779
        %v781 = vperm.slane %v777, %v780
        %v782 = vrot.slane %v781, 4
        %v783 = vsel %vm346, %v782, %v775
        %v784 = vrot.slane %v775, 4
        %v785 = vsel %vm346, %v781, %v784
        %v787 = vunpack.c.l.s4 1934713408
        %v788 = vunpack.c.0.s8 %v787
        %v789 = vperm.slane %v783, %v788
        %v791 = vunpack.c.l.s4 1934713408
        %v792 = vunpack.c.0.s8 %v791
        %v793 = vperm.slane %v785, %v792
        %v794 = vrot.slane %v789, 4
        %v795 = vsel %vm346, 0, %v794
        %v796 = vrot.slane %v793, 4
        %v797 = vsel %vm346, 0, %v796
        %v800 = vpack.i.b16 %v733, %v705
        %v801 = vshrl.u32 %v705, 16
        %v802 = vshrl.u32 %v733, 16
        %v803 = vpack.i.b16 %v802, %v801
        %v806 = vpack.i.b16 %v739, %v711
        %v807 = vshrl.u32 %v711, 16
        %v808 = vshrl.u32 %v739, 16
        %v809 = vpack.i.b16 %v808, %v807
        %v812 = vpack.i.b16 %v737, %v709
        %v813 = vshrl.u32 %v709, 16
        %v814 = vshrl.u32 %v737, 16
        %v815 = vpack.i.b16 %v814, %v813
        %v818 = vpack.i.b16 %v741, %v713
        %v819 = vshrl.u32 %v713, 16
        %v820 = vshrl.u32 %v741, 16
        %v821 = vpack.i.b16 %v820, %v819
        %v824 = vpack.i.b16 %v789, %v761
        %v825 = vshrl.u32 %v761, 16
        %v826 = vshrl.u32 %v789, 16
        %v827 = vpack.i.b16 %v826, %v825
        %v830 = vpack.i.b16 %v795, %v767
        %v831 = vshrl.u32 %v767, 16
        %v832 = vshrl.u32 %v795, 16
        %v833 = vpack.i.b16 %v832, %v831
        %v836 = vpack.i.b16 %v793, %v765
        %v837 = vshrl.u32 %v765, 16
        %v838 = vshrl.u32 %v793, 16
        %v839 = vpack.i.b16 %v838, %v837
        %v842 = vpack.i.b16 %v797, %v769
        %v843 = vshrl.u32 %v769, 16
        %v844 = vshrl.u32 %v797, 16
        %v845 = vpack.i.b16 %v844, %v843
        %v846 = vunpack.c.l.b16 %v803
        %v847 = vpack.c.b16 %v846, %v846
        %848 = vrot.lane.b32.xlu0 %v847, 16
        %v849 = vpop.permute.xlu0 %848
        %v850 = vunpack.c.l.b16 %v806
        %v851 = vpack.c.b16 %v850, %v850
        %852 = vrot.lane.b32.xlu0 %v851, 32
        %v853 = vpop.permute.xlu0 %852
        %v854 = vunpack.c.l.b16 %v809
        %v855 = vpack.c.b16 %v854, %v854
        %856 = vrot.lane.b32.xlu0 %v855, 48
        %v857 = vpop.permute.xlu0 %856
        %v858 = vunpack.c.l.b16 %v812
        %v859 = vpack.c.b16 %v858, %v858
        %860 = vrot.lane.b32.xlu0 %v859, 64
        %v861 = vpop.permute.xlu0 %860
        %v862 = vunpack.c.l.b16 %v815
        %v863 = vpack.c.b16 %v862, %v862
        %864 = vrot.lane.b32.xlu0 %v863, 80
        %v865 = vpop.permute.xlu0 %864
        %v866 = vunpack.c.l.b16 %v818
        %v867 = vpack.c.b16 %v866, %v866
        %868 = vrot.lane.b32.xlu0 %v867, 96
        %v869 = vpop.permute.xlu0 %868
        %v870 = vunpack.c.l.b16 %v821
        %v871 = vpack.c.b16 %v870, %v870
        %872 = vrot.lane.b32.xlu0 %v871, 112
        %v873 = vpop.permute.xlu0 %872
        %v874 = vunpack.c.l.b16 %v827
        %v875 = vpack.c.b16 %v874, %v874
        %876 = vrot.lane.b32.xlu0 %v875, 16
        %v877 = vpop.permute.xlu0 %876
        %v878 = vunpack.c.l.b16 %v830
        %v879 = vpack.c.b16 %v878, %v878
        %880 = vrot.lane.b32.xlu0 %v879, 32
        %v881 = vpop.permute.xlu0 %880
        %v882 = vunpack.c.l.b16 %v833
        %v883 = vpack.c.b16 %v882, %v882
        %884 = vrot.lane.b32.xlu0 %v883, 48
        %v885 = vpop.permute.xlu0 %884
        %v886 = vunpack.c.l.b16 %v836
        %v887 = vpack.c.b16 %v886, %v886
        %888 = vrot.lane.b32.xlu0 %v887, 64
        %v889 = vpop.permute.xlu0 %888
        %v890 = vunpack.c.l.b16 %v839
        %v891 = vpack.c.b16 %v890, %v890
        %892 = vrot.lane.b32.xlu0 %v891, 80
        %v893 = vpop.permute.xlu0 %892
        %v894 = vunpack.c.l.b16 %v842
        %v895 = vpack.c.b16 %v894, %v894
        %896 = vrot.lane.b32.xlu0 %v895, 96
        %v897 = vpop.permute.xlu0 %896
        %v898 = vunpack.c.l.b16 %v845
        %v899 = vpack.c.b16 %v898, %v898
        %900 = vrot.lane.b32.xlu0 %v899, 112
        %v901 = vpop.permute.xlu0 %900
        %v904 = vsel %vm562, %v800, %v849
        %v906 = vsel %vm566, %v904, %v853
        %v908 = vsel %vm569, %v906, %v857
        %v910 = vsel %vm572, %v908, %v861
        %v912 = vsel %vm575, %v910, %v865
        %v914 = vsel %vm578, %v912, %v869
        %v916 = vsel %vm581, %v914, %v873
        %v919 = vsel %vm562, %v824, %v877
        %v921 = vsel %vm566, %v919, %v881
        %v923 = vsel %vm569, %v921, %v885
        %v925 = vsel %vm572, %v923, %v889
        %v927 = vsel %vm575, %v925, %v893
        %v929 = vsel %vm578, %v927, %v897
        %v931 = vsel %vm581, %v929, %v901
        %v934 = vunpack.c.l.b16 %v916
        %v935 = vunpack.c.l.b16 %v931
        %v936 = vpack.c.b16 %v935, %v934
        %938 = vst [vmem:[#allocation2 + $0x8] sm:$0xff] %v936
        %v939 = vld [vmem:[%s297] sm:$0xf]
        %v940 = vld [vmem:[%s297 + $0x4] sm:$0xf]
        %v941 = vld [vmem:[%s297 + $0xc] sm:$0xf]
        %v942 = vld [vmem:[%s297 + $0x10] sm:$0xf]
        %v943 = vld [vmem:[%s297 + $0x18] sm:$0xf]
        %v944 = vld [vmem:[%s297 + $0x1c] sm:$0xf]
        %v945 = vld [vmem:[%s297 + $0x24] sm:$0xf]
        %v946 = vld [vmem:[%s297 + $0x28] sm:$0xf]
        %v947 = vld [vmem:[%s297 + $0x30] sm:$0xf]
        %v948 = vld [vmem:[%s297 + $0x34] sm:$0xf]
        %v949 = vld [vmem:[%s297 + $0x3c] sm:$0xf]
        %v950 = vld [vmem:[%s297 + $0x40] sm:$0xf]
        %v951 = vld [vmem:[%s297 + $0x48] sm:$0xf]
        %v952 = vld [vmem:[%s297 + $0x4c] sm:$0xf]
        %v953 = vld [vmem:[%s297 + $0x54] sm:$0xf]
        %v954 = vld [vmem:[%s297 + $0x58] sm:$0xf]
        %971 = vrot.lane.b32.xlu0 %v939, 126
        %v972 = vpop.permute.xlu0 %971
        %973 = vrot.lane.b32.xlu0 %v940, 126
        %v974 = vpop.permute.xlu0 %973
        %975 = vrot.lane.b32.xlu0 %v941, 126
        %v976 = vpop.permute.xlu0 %975
        %977 = vrot.lane.b32.xlu0 %v942, 126
        %v978 = vpop.permute.xlu0 %977
        %979 = vrot.lane.b32.xlu0 %v943, 126
        %v980 = vpop.permute.xlu0 %979
        %981 = vrot.lane.b32.xlu0 %v944, 126
        %v982 = vpop.permute.xlu0 %981
        %983 = vrot.lane.b32.xlu0 %v945, 126
        %v984 = vpop.permute.xlu0 %983
        %985 = vrot.lane.b32.xlu0 %v946, 126
        %v986 = vpop.permute.xlu0 %985
        %987 = vrot.lane.b32.xlu0 %v947, 126
        %v988 = vpop.permute.xlu0 %987
        %989 = vrot.lane.b32.xlu0 %v948, 126
        %v990 = vpop.permute.xlu0 %989
        %991 = vrot.lane.b32.xlu0 %v949, 126
        %v992 = vpop.permute.xlu0 %991
        %993 = vrot.lane.b32.xlu0 %v950, 126
        %v994 = vpop.permute.xlu0 %993
        %995 = vrot.lane.b32.xlu0 %v951, 126
        %v996 = vpop.permute.xlu0 %995
        %997 = vrot.lane.b32.xlu0 %v952, 126
        %v998 = vpop.permute.xlu0 %997
        %999 = vrot.lane.b32.xlu0 %v953, 126
        %v1000 = vpop.permute.xlu0 %999
        %1001 = vrot.lane.b32.xlu0 %v954, 126
        %v1002 = vpop.permute.xlu0 %1001
        %v1019 = vrot.slane %v988, 4
        %v1020 = vsel %vm346, %v1019, %v972
        %v1022 = vunpack.c.l.s4 1983009808
        %v1023 = vunpack.c.0.s8 %v1022
        %v1024 = vperm.slane %v1020, %v1023
        %v1025 = vrot.slane %v996, 4
        %v1026 = vsel %vm346, %v1025, %v980
        %v1028 = vunpack.c.l.s4 1983009808
        %v1029 = vunpack.c.0.s8 %v1028
        %v1030 = vperm.slane %v1026, %v1029
        %v1031 = vrot.slane %v1030, 4
        %v1032 = vsel %vm346, %v1031, %v1024
        %v1033 = vrot.slane %v1024, 4
        %v1034 = vsel %vm346, %v1030, %v1033
        %v1036 = vunpack.c.l.s4 1934713408
        %v1037 = vunpack.c.0.s8 %v1036
        %v1038 = vperm.slane %v1032, %v1037
        %v1040 = vunpack.c.l.s4 1934713408
        %v1041 = vunpack.c.0.s8 %v1040
        %v1042 = vperm.slane %v1034, %v1041
        %v1043 = vrot.slane %v1038, 4
        %v1044 = vsel %vm346, 0, %v1043
        %v1045 = vrot.slane %v1042, 4
        %v1046 = vsel %vm346, 0, %v1045
        %v1047 = vrot.slane %v992, 4
        %v1048 = vsel %vm346, %v1047, %v976
        %v1050 = vunpack.c.l.s4 1983009808
        %v1051 = vunpack.c.0.s8 %v1050
        %v1052 = vperm.slane %v1048, %v1051
        %v1053 = vrot.slane %v1000, 4
        %v1054 = vsel %vm346, %v1053, %v984
        %v1056 = vunpack.c.l.s4 1983009808
        %v1057 = vunpack.c.0.s8 %v1056
        %v1058 = vperm.slane %v1054, %v1057
        %v1059 = vrot.slane %v1058, 4
        %v1060 = vsel %vm346, %v1059, %v1052
        %v1061 = vrot.slane %v1052, 4
        %v1062 = vsel %vm346, %v1058, %v1061
        %v1064 = vunpack.c.l.s4 1934713408
        %v1065 = vunpack.c.0.s8 %v1064
        %v1066 = vperm.slane %v1060, %v1065
        %v1068 = vunpack.c.l.s4 1934713408
        %v1069 = vunpack.c.0.s8 %v1068
        %v1070 = vperm.slane %v1062, %v1069
        %v1071 = vrot.slane %v1066, 4
        %v1072 = vsel %vm346, 0, %v1071
        %v1073 = vrot.slane %v1070, 4
        %v1074 = vsel %vm346, 0, %v1073
        %v1075 = vrot.slane %v990, 4
        %v1076 = vsel %vm346, %v1075, %v974
        %v1078 = vunpack.c.l.s4 1983009808
        %v1079 = vunpack.c.0.s8 %v1078
        %v1080 = vperm.slane %v1076, %v1079
        %v1081 = vrot.slane %v998, 4
        %v1082 = vsel %vm346, %v1081, %v982
        %v1084 = vunpack.c.l.s4 1983009808
        %v1085 = vunpack.c.0.s8 %v1084
        %v1086 = vperm.slane %v1082, %v1085
        %v1087 = vrot.slane %v1086, 4
        %v1088 = vsel %vm346, %v1087, %v1080
        %v1089 = vrot.slane %v1080, 4
        %v1090 = vsel %vm346, %v1086, %v1089
        %v1092 = vunpack.c.l.s4 1934713408
        %v1093 = vunpack.c.0.s8 %v1092
        %v1094 = vperm.slane %v1088, %v1093
        %v1096 = vunpack.c.l.s4 1934713408
        %v1097 = vunpack.c.0.s8 %v1096
        %v1098 = vperm.slane %v1090, %v1097
        %v1099 = vrot.slane %v1094, 4
        %v1100 = vsel %vm346, 0, %v1099
        %v1101 = vrot.slane %v1098, 4
        %v1102 = vsel %vm346, 0, %v1101
        %v1103 = vrot.slane %v994, 4
        %v1104 = vsel %vm346, %v1103, %v978
        %v1106 = vunpack.c.l.s4 1983009808
        %v1107 = vunpack.c.0.s8 %v1106
        %v1108 = vperm.slane %v1104, %v1107
        %v1109 = vrot.slane %v1002, 4
        %v1110 = vsel %vm346, %v1109, %v986
        %v1112 = vunpack.c.l.s4 1983009808
        %v1113 = vunpack.c.0.s8 %v1112
        %v1114 = vperm.slane %v1110, %v1113
        %v1115 = vrot.slane %v1114, 4
        %v1116 = vsel %vm346, %v1115, %v1108
        %v1117 = vrot.slane %v1108, 4
        %v1118 = vsel %vm346, %v1114, %v1117
        %v1120 = vunpack.c.l.s4 1934713408
        %v1121 = vunpack.c.0.s8 %v1120
        %v1122 = vperm.slane %v1116, %v1121
        %v1124 = vunpack.c.l.s4 1934713408
        %v1125 = vunpack.c.0.s8 %v1124
        %v1126 = vperm.slane %v1118, %v1125
        %v1127 = vrot.slane %v1122, 4
        %v1128 = vsel %vm346, 0, %v1127
        %v1129 = vrot.slane %v1126, 4
        %v1130 = vsel %vm346, 0, %v1129
        %v1133 = vpack.i.b16 %v1066, %v1038
        %v1134 = vshrl.u32 %v1038, 16
        %v1135 = vshrl.u32 %v1066, 16
        %v1136 = vpack.i.b16 %v1135, %v1134
        %v1139 = vpack.i.b16 %v1072, %v1044
        %v1140 = vshrl.u32 %v1044, 16
        %v1141 = vshrl.u32 %v1072, 16
        %v1142 = vpack.i.b16 %v1141, %v1140
        %v1145 = vpack.i.b16 %v1070, %v1042
        %v1146 = vshrl.u32 %v1042, 16
        %v1147 = vshrl.u32 %v1070, 16
        %v1148 = vpack.i.b16 %v1147, %v1146
        %v1151 = vpack.i.b16 %v1074, %v1046
        %v1152 = vshrl.u32 %v1046, 16
        %v1153 = vshrl.u32 %v1074, 16
        %v1154 = vpack.i.b16 %v1153, %v1152
        %v1157 = vpack.i.b16 %v1122, %v1094
        %v1158 = vshrl.u32 %v1094, 16
        %v1159 = vshrl.u32 %v1122, 16
        %v1160 = vpack.i.b16 %v1159, %v1158
        %v1163 = vpack.i.b16 %v1128, %v1100
        %v1164 = vshrl.u32 %v1100, 16
        %v1165 = vshrl.u32 %v1128, 16
        %v1166 = vpack.i.b16 %v1165, %v1164
        %v1169 = vpack.i.b16 %v1126, %v1098
        %v1170 = vshrl.u32 %v1098, 16
        %v1171 = vshrl.u32 %v1126, 16
        %v1172 = vpack.i.b16 %v1171, %v1170
        %v1175 = vpack.i.b16 %v1130, %v1102
        %v1176 = vshrl.u32 %v1102, 16
        %v1177 = vshrl.u32 %v1130, 16
        %v1178 = vpack.i.b16 %v1177, %v1176
        %v1179 = vunpack.c.l.b16 %v1136
        %v1180 = vpack.c.b16 %v1179, %v1179
        %1181 = vrot.lane.b32.xlu0 %v1180, 16
        %v1182 = vpop.permute.xlu0 %1181
        %v1183 = vunpack.c.l.b16 %v1139
        %v1184 = vpack.c.b16 %v1183, %v1183
        %1185 = vrot.lane.b32.xlu0 %v1184, 32
        %v1186 = vpop.permute.xlu0 %1185
        %v1187 = vunpack.c.l.b16 %v1142
        %v1188 = vpack.c.b16 %v1187, %v1187
        %1189 = vrot.lane.b32.xlu0 %v1188, 48
        %v1190 = vpop.permute.xlu0 %1189
        %v1191 = vunpack.c.l.b16 %v1145
        %v1192 = vpack.c.b16 %v1191, %v1191
        %1193 = vrot.lane.b32.xlu0 %v1192, 64
        %v1194 = vpop.permute.xlu0 %1193
        %v1195 = vunpack.c.l.b16 %v1148
        %v1196 = vpack.c.b16 %v1195, %v1195
        %1197 = vrot.lane.b32.xlu0 %v1196, 80
        %v1198 = vpop.permute.xlu0 %1197
        %v1199 = vunpack.c.l.b16 %v1151
        %v1200 = vpack.c.b16 %v1199, %v1199
        %1201 = vrot.lane.b32.xlu0 %v1200, 96
        %v1202 = vpop.permute.xlu0 %1201
        %v1203 = vunpack.c.l.b16 %v1154
        %v1204 = vpack.c.b16 %v1203, %v1203
        %1205 = vrot.lane.b32.xlu0 %v1204, 112
        %v1206 = vpop.permute.xlu0 %1205
        %v1207 = vunpack.c.l.b16 %v1160
        %v1208 = vpack.c.b16 %v1207, %v1207
        %1209 = vrot.lane.b32.xlu0 %v1208, 16
        %v1210 = vpop.permute.xlu0 %1209
        %v1211 = vunpack.c.l.b16 %v1163
        %v1212 = vpack.c.b16 %v1211, %v1211
        %1213 = vrot.lane.b32.xlu0 %v1212, 32
        %v1214 = vpop.permute.xlu0 %1213
        %v1215 = vunpack.c.l.b16 %v1166
        %v1216 = vpack.c.b16 %v1215, %v1215
        %1217 = vrot.lane.b32.xlu0 %v1216, 48
        %v1218 = vpop.permute.xlu0 %1217
        %v1219 = vunpack.c.l.b16 %v1169
        %v1220 = vpack.c.b16 %v1219, %v1219
        %1221 = vrot.lane.b32.xlu0 %v1220, 64
        %v1222 = vpop.permute.xlu0 %1221
        %v1223 = vunpack.c.l.b16 %v1172
        %v1224 = vpack.c.b16 %v1223, %v1223
        %1225 = vrot.lane.b32.xlu0 %v1224, 80
        %v1226 = vpop.permute.xlu0 %1225
        %v1227 = vunpack.c.l.b16 %v1175
        %v1228 = vpack.c.b16 %v1227, %v1227
        %1229 = vrot.lane.b32.xlu0 %v1228, 96
        %v1230 = vpop.permute.xlu0 %1229
        %v1231 = vunpack.c.l.b16 %v1178
        %v1232 = vpack.c.b16 %v1231, %v1231
        %1233 = vrot.lane.b32.xlu0 %v1232, 112
        %v1234 = vpop.permute.xlu0 %1233
        %v1237 = vsel %vm562, %v1133, %v1182
        %v1239 = vsel %vm566, %v1237, %v1186
        %v1241 = vsel %vm569, %v1239, %v1190
        %v1243 = vsel %vm572, %v1241, %v1194
        %v1245 = vsel %vm575, %v1243, %v1198
        %v1247 = vsel %vm578, %v1245, %v1202
        %v1249 = vsel %vm581, %v1247, %v1206
        %v1252 = vsel %vm562, %v1157, %v1210
        %v1254 = vsel %vm566, %v1252, %v1214
        %v1256 = vsel %vm569, %v1254, %v1218
        %v1258 = vsel %vm572, %v1256, %v1222
        %v1260 = vsel %vm575, %v1258, %v1226
        %v1262 = vsel %vm578, %v1260, %v1230
        %v1264 = vsel %vm581, %v1262, %v1234
        %v1267 = vunpack.c.l.b16 %v1249
        %v1268 = vunpack.c.l.b16 %v1264
        %v1269 = vpack.c.b16 %v1268, %v1267
        %1271 = vst [vmem:[#allocation2 + $0x10] sm:$0xff] %v1269
        %v1272 = vld [vmem:[%s297] sm:$0xf]
        %v1273 = vld [vmem:[%s297 + $0x4] sm:$0xf]
        %v1274 = vld [vmem:[%s297 + $0xc] sm:$0xf]
        %v1275 = vld [vmem:[%s297 + $0x10] sm:$0xf]
        %v1276 = vld [vmem:[%s297 + $0x18] sm:$0xf]
        %v1277 = vld [vmem:[%s297 + $0x1c] sm:$0xf]
        %v1278 = vld [vmem:[%s297 + $0x24] sm:$0xf]
        %v1279 = vld [vmem:[%s297 + $0x28] sm:$0xf]
        %v1280 = vld [vmem:[%s297 + $0x30] sm:$0xf]
        %v1281 = vld [vmem:[%s297 + $0x34] sm:$0xf]
        %v1282 = vld [vmem:[%s297 + $0x3c] sm:$0xf]
        %v1283 = vld [vmem:[%s297 + $0x40] sm:$0xf]
        %v1284 = vld [vmem:[%s297 + $0x48] sm:$0xf]
        %v1285 = vld [vmem:[%s297 + $0x4c] sm:$0xf]
        %v1286 = vld [vmem:[%s297 + $0x54] sm:$0xf]
        %v1287 = vld [vmem:[%s297 + $0x58] sm:$0xf]
        %1304 = vrot.lane.b32.xlu0 %v1272, 125
        %v1305 = vpop.permute.xlu0 %1304
        %1306 = vrot.lane.b32.xlu0 %v1273, 125
        %v1307 = vpop.permute.xlu0 %1306
        %1308 = vrot.lane.b32.xlu0 %v1274, 125
        %v1309 = vpop.permute.xlu0 %1308
        %1310 = vrot.lane.b32.xlu0 %v1275, 125
        %v1311 = vpop.permute.xlu0 %1310
        %1312 = vrot.lane.b32.xlu0 %v1276, 125
        %v1313 = vpop.permute.xlu0 %1312
        %1314 = vrot.lane.b32.xlu0 %v1277, 125
        %v1315 = vpop.permute.xlu0 %1314
        %1316 = vrot.lane.b32.xlu0 %v1278, 125
        %v1317 = vpop.permute.xlu0 %1316
        %1318 = vrot.lane.b32.xlu0 %v1279, 125
        %v1319 = vpop.permute.xlu0 %1318
        %1320 = vrot.lane.b32.xlu0 %v1280, 125
        %v1321 = vpop.permute.xlu0 %1320
        %1322 = vrot.lane.b32.xlu0 %v1281, 125
        %v1323 = vpop.permute.xlu0 %1322
        %1324 = vrot.lane.b32.xlu0 %v1282, 125
        %v1325 = vpop.permute.xlu0 %1324
        %1326 = vrot.lane.b32.xlu0 %v1283, 125
        %v1327 = vpop.permute.xlu0 %1326
        %1328 = vrot.lane.b32.xlu0 %v1284, 125
        %v1329 = vpop.permute.xlu0 %1328
        %1330 = vrot.lane.b32.xlu0 %v1285, 125
        %v1331 = vpop.permute.xlu0 %1330
        %1332 = vrot.lane.b32.xlu0 %v1286, 125
        %v1333 = vpop.permute.xlu0 %1332
        %1334 = vrot.lane.b32.xlu0 %v1287, 125
        %v1335 = vpop.permute.xlu0 %1334
        %v1352 = vrot.slane %v1321, 4
        %v1353 = vsel %vm346, %v1352, %v1305
        %v1355 = vunpack.c.l.s4 1983009808
        %v1356 = vunpack.c.0.s8 %v1355
        %v1357 = vperm.slane %v1353, %v1356
        %v1358 = vrot.slane %v1329, 4
        %v1359 = vsel %vm346, %v1358, %v1313
        %v1361 = vunpack.c.l.s4 1983009808
        %v1362 = vunpack.c.0.s8 %v1361
        %v1363 = vperm.slane %v1359, %v1362
        %v1364 = vrot.slane %v1363, 4
        %v1365 = vsel %vm346, %v1364, %v1357
        %v1366 = vrot.slane %v1357, 4
        %v1367 = vsel %vm346, %v1363, %v1366
        %v1369 = vunpack.c.l.s4 1934713408
        %v1370 = vunpack.c.0.s8 %v1369
        %v1371 = vperm.slane %v1365, %v1370
        %v1373 = vunpack.c.l.s4 1934713408
        %v1374 = vunpack.c.0.s8 %v1373
        %v1375 = vperm.slane %v1367, %v1374
        %v1376 = vrot.slane %v1371, 4
        %v1377 = vsel %vm346, 0, %v1376
        %v1378 = vrot.slane %v1375, 4
        %v1379 = vsel %vm346, 0, %v1378
        %v1380 = vrot.slane %v1325, 4
        %v1381 = vsel %vm346, %v1380, %v1309
        %v1383 = vunpack.c.l.s4 1983009808
        %v1384 = vunpack.c.0.s8 %v1383
        %v1385 = vperm.slane %v1381, %v1384
        %v1386 = vrot.slane %v1333, 4
        %v1387 = vsel %vm346, %v1386, %v1317
        %v1389 = vunpack.c.l.s4 1983009808
        %v1390 = vunpack.c.0.s8 %v1389
        %v1391 = vperm.slane %v1387, %v1390
        %v1392 = vrot.slane %v1391, 4
        %v1393 = vsel %vm346, %v1392, %v1385
        %v1394 = vrot.slane %v1385, 4
        %v1395 = vsel %vm346, %v1391, %v1394
        %v1397 = vunpack.c.l.s4 1934713408
        %v1398 = vunpack.c.0.s8 %v1397
        %v1399 = vperm.slane %v1393, %v1398
        %v1401 = vunpack.c.l.s4 1934713408
        %v1402 = vunpack.c.0.s8 %v1401
        %v1403 = vperm.slane %v1395, %v1402
        %v1404 = vrot.slane %v1399, 4
        %v1405 = vsel %vm346, 0, %v1404
        %v1406 = vrot.slane %v1403, 4
        %v1407 = vsel %vm346, 0, %v1406
        %v1408 = vrot.slane %v1323, 4
        %v1409 = vsel %vm346, %v1408, %v1307
        %v1411 = vunpack.c.l.s4 1983009808
        %v1412 = vunpack.c.0.s8 %v1411
        %v1413 = vperm.slane %v1409, %v1412
        %v1414 = vrot.slane %v1331, 4
        %v1415 = vsel %vm346, %v1414, %v1315
        %v1417 = vunpack.c.l.s4 1983009808
        %v1418 = vunpack.c.0.s8 %v1417
        %v1419 = vperm.slane %v1415, %v1418
        %v1420 = vrot.slane %v1419, 4
        %v1421 = vsel %vm346, %v1420, %v1413
        %v1422 = vrot.slane %v1413, 4
        %v1423 = vsel %vm346, %v1419, %v1422
        %v1425 = vunpack.c.l.s4 1934713408
        %v1426 = vunpack.c.0.s8 %v1425
        %v1427 = vperm.slane %v1421, %v1426
        %v1429 = vunpack.c.l.s4 1934713408
        %v1430 = vunpack.c.0.s8 %v1429
        %v1431 = vperm.slane %v1423, %v1430
        %v1432 = vrot.slane %v1427, 4
        %v1433 = vsel %vm346, 0, %v1432
        %v1434 = vrot.slane %v1431, 4
        %v1435 = vsel %vm346, 0, %v1434
        %v1436 = vrot.slane %v1327, 4
        %v1437 = vsel %vm346, %v1436, %v1311
        %v1439 = vunpack.c.l.s4 1983009808
        %v1440 = vunpack.c.0.s8 %v1439
        %v1441 = vperm.slane %v1437, %v1440
        %v1442 = vrot.slane %v1335, 4
        %v1443 = vsel %vm346, %v1442, %v1319
        %v1445 = vunpack.c.l.s4 1983009808
        %v1446 = vunpack.c.0.s8 %v1445
        %v1447 = vperm.slane %v1443, %v1446
        %v1448 = vrot.slane %v1447, 4
        %v1449 = vsel %vm346, %v1448, %v1441
        %v1450 = vrot.slane %v1441, 4
        %v1451 = vsel %vm346, %v1447, %v1450
        %v1453 = vunpack.c.l.s4 1934713408
        %v1454 = vunpack.c.0.s8 %v1453
        %v1455 = vperm.slane %v1449, %v1454
        %v1457 = vunpack.c.l.s4 1934713408
        %v1458 = vunpack.c.0.s8 %v1457
        %v1459 = vperm.slane %v1451, %v1458
        %v1460 = vrot.slane %v1455, 4
        %v1461 = vsel %vm346, 0, %v1460
        %v1462 = vrot.slane %v1459, 4
        %v1463 = vsel %vm346, 0, %v1462
        %v1466 = vpack.i.b16 %v1399, %v1371
        %v1467 = vshrl.u32 %v1371, 16
        %v1468 = vshrl.u32 %v1399, 16
        %v1469 = vpack.i.b16 %v1468, %v1467
        %v1472 = vpack.i.b16 %v1405, %v1377
        %v1473 = vshrl.u32 %v1377, 16
        %v1474 = vshrl.u32 %v1405, 16
        %v1475 = vpack.i.b16 %v1474, %v1473
        %v1478 = vpack.i.b16 %v1403, %v1375
        %v1479 = vshrl.u32 %v1375, 16
        %v1480 = vshrl.u32 %v1403, 16
        %v1481 = vpack.i.b16 %v1480, %v1479
        %v1484 = vpack.i.b16 %v1407, %v1379
        %v1485 = vshrl.u32 %v1379, 16
        %v1486 = vshrl.u32 %v1407, 16
        %v1487 = vpack.i.b16 %v1486, %v1485
        %v1490 = vpack.i.b16 %v1455, %v1427
        %v1491 = vshrl.u32 %v1427, 16
        %v1492 = vshrl.u32 %v1455, 16
        %v1493 = vpack.i.b16 %v1492, %v1491
        %v1496 = vpack.i.b16 %v1461, %v1433
        %v1497 = vshrl.u32 %v1433, 16
        %v1498 = vshrl.u32 %v1461, 16
        %v1499 = vpack.i.b16 %v1498, %v1497
        %v1502 = vpack.i.b16 %v1459, %v1431
        %v1503 = vshrl.u32 %v1431, 16
        %v1504 = vshrl.u32 %v1459, 16
        %v1505 = vpack.i.b16 %v1504, %v1503
        %v1508 = vpack.i.b16 %v1463, %v1435
        %v1509 = vshrl.u32 %v1435, 16
        %v1510 = vshrl.u32 %v1463, 16
        %v1511 = vpack.i.b16 %v1510, %v1509
        %v1512 = vunpack.c.l.b16 %v1469
        %v1513 = vpack.c.b16 %v1512, %v1512
        %1514 = vrot.lane.b32.xlu0 %v1513, 16
        %v1515 = vpop.permute.xlu0 %1514
        %v1516 = vunpack.c.l.b16 %v1472
        %v1517 = vpack.c.b16 %v1516, %v1516
        %1518 = vrot.lane.b32.xlu0 %v1517, 32
        %v1519 = vpop.permute.xlu0 %1518
        %v1520 = vunpack.c.l.b16 %v1475
        %v1521 = vpack.c.b16 %v1520, %v1520
        %1522 = vrot.lane.b32.xlu0 %v1521, 48
        %v1523 = vpop.permute.xlu0 %1522
        %v1524 = vunpack.c.l.b16 %v1478
        %v1525 = vpack.c.b16 %v1524, %v1524
        %1526 = vrot.lane.b32.xlu0 %v1525, 64
        %v1527 = vpop.permute.xlu0 %1526
        %v1528 = vunpack.c.l.b16 %v1481
        %v1529 = vpack.c.b16 %v1528, %v1528
        %1530 = vrot.lane.b32.xlu0 %v1529, 80
        %v1531 = vpop.permute.xlu0 %1530
        %v1532 = vunpack.c.l.b16 %v1484
        %v1533 = vpack.c.b16 %v1532, %v1532
        %1534 = vrot.lane.b32.xlu0 %v1533, 96
        %v1535 = vpop.permute.xlu0 %1534
        %v1536 = vunpack.c.l.b16 %v1487
        %v1537 = vpack.c.b16 %v1536, %v1536
        %1538 = vrot.lane.b32.xlu0 %v1537, 112
        %v1539 = vpop.permute.xlu0 %1538
        %v1540 = vunpack.c.l.b16 %v1493
        %v1541 = vpack.c.b16 %v1540, %v1540
        %1542 = vrot.lane.b32.xlu0 %v1541, 16
        %v1543 = vpop.permute.xlu0 %1542
        %v1544 = vunpack.c.l.b16 %v1496
        %v1545 = vpack.c.b16 %v1544, %v1544
        %1546 = vrot.lane.b32.xlu0 %v1545, 32
        %v1547 = vpop.permute.xlu0 %1546
        %v1548 = vunpack.c.l.b16 %v1499
        %v1549 = vpack.c.b16 %v1548, %v1548
        %1550 = vrot.lane.b32.xlu0 %v1549, 48
        %v1551 = vpop.permute.xlu0 %1550
        %v1552 = vunpack.c.l.b16 %v1502
        %v1553 = vpack.c.b16 %v1552, %v1552
        %1554 = vrot.lane.b32.xlu0 %v1553, 64
        %v1555 = vpop.permute.xlu0 %1554
        %v1556 = vunpack.c.l.b16 %v1505
        %v1557 = vpack.c.b16 %v1556, %v1556
        %1558 = vrot.lane.b32.xlu0 %v1557, 80
        %v1559 = vpop.permute.xlu0 %1558
        %v1560 = vunpack.c.l.b16 %v1508
        %v1561 = vpack.c.b16 %v1560, %v1560
        %1562 = vrot.lane.b32.xlu0 %v1561, 96
        %v1563 = vpop.permute.xlu0 %1562
        %v1564 = vunpack.c.l.b16 %v1511
        %v1565 = vpack.c.b16 %v1564, %v1564
        %1566 = vrot.lane.b32.xlu0 %v1565, 112
        %v1567 = vpop.permute.xlu0 %1566
        %v1570 = vsel %vm562, %v1466, %v1515
        %v1572 = vsel %vm566, %v1570, %v1519
        %v1574 = vsel %vm569, %v1572, %v1523
        %v1576 = vsel %vm572, %v1574, %v1527
        %v1578 = vsel %vm575, %v1576, %v1531
        %v1580 = vsel %vm578, %v1578, %v1535
        %v1582 = vsel %vm581, %v1580, %v1539
        %v1585 = vsel %vm562, %v1490, %v1543
        %v1587 = vsel %vm566, %v1585, %v1547
        %v1589 = vsel %vm569, %v1587, %v1551
        %v1591 = vsel %vm572, %v1589, %v1555
        %v1593 = vsel %vm575, %v1591, %v1559
        %v1595 = vsel %vm578, %v1593, %v1563
        %v1597 = vsel %vm581, %v1595, %v1567
        %v1600 = vunpack.c.l.b16 %v1582
        %v1601 = vunpack.c.l.b16 %v1597
        %v1602 = vpack.c.b16 %v1601, %v1600
        %1604 = vst [vmem:[#allocation2 + $0x18] sm:$0xff] %v1602
        %v1605 = vld [vmem:[%s297] sm:$0xf]
        %v1606 = vld [vmem:[%s297 + $0x4] sm:$0xf]
        %v1607 = vld [vmem:[%s297 + $0xc] sm:$0xf]
        %v1608 = vld [vmem:[%s297 + $0x10] sm:$0xf]
        %v1609 = vld [vmem:[%s297 + $0x18] sm:$0xf]
        %v1610 = vld [vmem:[%s297 + $0x1c] sm:$0xf]
        %v1611 = vld [vmem:[%s297 + $0x24] sm:$0xf]
        %v1612 = vld [vmem:[%s297 + $0x28] sm:$0xf]
        %v1613 = vld [vmem:[%s297 + $0x30] sm:$0xf]
        %v1614 = vld [vmem:[%s297 + $0x34] sm:$0xf]
        %v1615 = vld [vmem:[%s297 + $0x3c] sm:$0xf]
        %v1616 = vld [vmem:[%s297 + $0x40] sm:$0xf]
        %v1617 = vld [vmem:[%s297 + $0x48] sm:$0xf]
        %v1618 = vld [vmem:[%s297 + $0x4c] sm:$0xf]
        %v1619 = vld [vmem:[%s297 + $0x54] sm:$0xf]
        %v1620 = vld [vmem:[%s297 + $0x58] sm:$0xf]
        %1637 = vrot.lane.b32.xlu0 %v1605, 124
        %v1638 = vpop.permute.xlu0 %1637
        %1639 = vrot.lane.b32.xlu0 %v1606, 124
        %v1640 = vpop.permute.xlu0 %1639
        %1641 = vrot.lane.b32.xlu0 %v1607, 124
        %v1642 = vpop.permute.xlu0 %1641
        %1643 = vrot.lane.b32.xlu0 %v1608, 124
        %v1644 = vpop.permute.xlu0 %1643
        %1645 = vrot.lane.b32.xlu0 %v1609, 124
        %v1646 = vpop.permute.xlu0 %1645
        %1647 = vrot.lane.b32.xlu0 %v1610, 124
        %v1648 = vpop.permute.xlu0 %1647
        %1649 = vrot.lane.b32.xlu0 %v1611, 124
        %v1650 = vpop.permute.xlu0 %1649
        %1651 = vrot.lane.b32.xlu0 %v1612, 124
        %v1652 = vpop.permute.xlu0 %1651
        %1653 = vrot.lane.b32.xlu0 %v1613, 124
        %v1654 = vpop.permute.xlu0 %1653
        %1655 = vrot.lane.b32.xlu0 %v1614, 124
        %v1656 = vpop.permute.xlu0 %1655
        %1657 = vrot.lane.b32.xlu0 %v1615, 124
        %v1658 = vpop.permute.xlu0 %1657
        %1659 = vrot.lane.b32.xlu0 %v1616, 124
        %v1660 = vpop.permute.xlu0 %1659
        %1661 = vrot.lane.b32.xlu0 %v1617, 124
        %v1662 = vpop.permute.xlu0 %1661
        %1663 = vrot.lane.b32.xlu0 %v1618, 124
        %v1664 = vpop.permute.xlu0 %1663
        %1665 = vrot.lane.b32.xlu0 %v1619, 124
        %v1666 = vpop.permute.xlu0 %1665
        %1667 = vrot.lane.b32.xlu0 %v1620, 124
        %v1668 = vpop.permute.xlu0 %1667
        %v1685 = vrot.slane %v1654, 4
        %v1686 = vsel %vm346, %v1685, %v1638
        %v1688 = vunpack.c.l.s4 1983009808
        %v1689 = vunpack.c.0.s8 %v1688
        %v1690 = vperm.slane %v1686, %v1689
        %v1691 = vrot.slane %v1662, 4
        %v1692 = vsel %vm346, %v1691, %v1646
        %v1694 = vunpack.c.l.s4 1983009808
        %v1695 = vunpack.c.0.s8 %v1694
        %v1696 = vperm.slane %v1692, %v1695
        %v1697 = vrot.slane %v1696, 4
        %v1698 = vsel %vm346, %v1697, %v1690
        %v1699 = vrot.slane %v1690, 4
        %v1700 = vsel %vm346, %v1696, %v1699
        %v1702 = vunpack.c.l.s4 1934713408
        %v1703 = vunpack.c.0.s8 %v1702
        %v1704 = vperm.slane %v1698, %v1703
        %v1706 = vunpack.c.l.s4 1934713408
        %v1707 = vunpack.c.0.s8 %v1706
        %v1708 = vperm.slane %v1700, %v1707
        %v1709 = vrot.slane %v1704, 4
        %v1710 = vsel %vm346, 0, %v1709
        %v1711 = vrot.slane %v1708, 4
        %v1712 = vsel %vm346, 0, %v1711
        %v1713 = vrot.slane %v1658, 4
        %v1714 = vsel %vm346, %v1713, %v1642
        %v1716 = vunpack.c.l.s4 1983009808
        %v1717 = vunpack.c.0.s8 %v1716
        %v1718 = vperm.slane %v1714, %v1717
        %v1719 = vrot.slane %v1666, 4
        %v1720 = vsel %vm346, %v1719, %v1650
        %v1722 = vunpack.c.l.s4 1983009808
        %v1723 = vunpack.c.0.s8 %v1722
        %v1724 = vperm.slane %v1720, %v1723
        %v1725 = vrot.slane %v1724, 4
        %v1726 = vsel %vm346, %v1725, %v1718
        %v1727 = vrot.slane %v1718, 4
        %v1728 = vsel %vm346, %v1724, %v1727
        %v1730 = vunpack.c.l.s4 1934713408
        %v1731 = vunpack.c.0.s8 %v1730
        %v1732 = vperm.slane %v1726, %v1731
        %v1734 = vunpack.c.l.s4 1934713408
        %v1735 = vunpack.c.0.s8 %v1734
        %v1736 = vperm.slane %v1728, %v1735
        %v1737 = vrot.slane %v1732, 4
        %v1738 = vsel %vm346, 0, %v1737
        %v1739 = vrot.slane %v1736, 4
        %v1740 = vsel %vm346, 0, %v1739
        %v1741 = vrot.slane %v1656, 4
        %v1742 = vsel %vm346, %v1741, %v1640
        %v1744 = vunpack.c.l.s4 1983009808
        %v1745 = vunpack.c.0.s8 %v1744
        %v1746 = vperm.slane %v1742, %v1745
        %v1747 = vrot.slane %v1664, 4
        %v1748 = vsel %vm346, %v1747, %v1648
        %v1750 = vunpack.c.l.s4 1983009808
        %v1751 = vunpack.c.0.s8 %v1750
        %v1752 = vperm.slane %v1748, %v1751
        %v1753 = vrot.slane %v1752, 4
        %v1754 = vsel %vm346, %v1753, %v1746
        %v1755 = vrot.slane %v1746, 4
        %v1756 = vsel %vm346, %v1752, %v1755
        %v1758 = vunpack.c.l.s4 1934713408
        %v1759 = vunpack.c.0.s8 %v1758
        %v1760 = vperm.slane %v1754, %v1759
        %v1762 = vunpack.c.l.s4 1934713408
        %v1763 = vunpack.c.0.s8 %v1762
        %v1764 = vperm.slane %v1756, %v1763
        %v1765 = vrot.slane %v1760, 4
        %v1766 = vsel %vm346, 0, %v1765
        %v1767 = vrot.slane %v1764, 4
        %v1768 = vsel %vm346, 0, %v1767
        %v1769 = vrot.slane %v1660, 4
        %v1770 = vsel %vm346, %v1769, %v1644
        %v1772 = vunpack.c.l.s4 1983009808
        %v1773 = vunpack.c.0.s8 %v1772
        %v1774 = vperm.slane %v1770, %v1773
        %v1775 = vrot.slane %v1668, 4
        %v1776 = vsel %vm346, %v1775, %v1652
        %v1778 = vunpack.c.l.s4 1983009808
        %v1779 = vunpack.c.0.s8 %v1778
        %v1780 = vperm.slane %v1776, %v1779
        %v1781 = vrot.slane %v1780, 4
        %v1782 = vsel %vm346, %v1781, %v1774
        %v1783 = vrot.slane %v1774, 4
        %v1784 = vsel %vm346, %v1780, %v1783
        %v1786 = vunpack.c.l.s4 1934713408
        %v1787 = vunpack.c.0.s8 %v1786
        %v1788 = vperm.slane %v1782, %v1787
        %v1790 = vunpack.c.l.s4 1934713408
        %v1791 = vunpack.c.0.s8 %v1790
        %v1792 = vperm.slane %v1784, %v1791
        %v1793 = vrot.slane %v1788, 4
        %v1794 = vsel %vm346, 0, %v1793
        %v1795 = vrot.slane %v1792, 4
        %v1796 = vsel %vm346, 0, %v1795
        %v1799 = vpack.i.b16 %v1732, %v1704
        %v1800 = vshrl.u32 %v1704, 16
        %v1801 = vshrl.u32 %v1732, 16
        %v1802 = vpack.i.b16 %v1801, %v1800
        %v1805 = vpack.i.b16 %v1738, %v1710
        %v1806 = vshrl.u32 %v1710, 16
        %v1807 = vshrl.u32 %v1738, 16
        %v1808 = vpack.i.b16 %v1807, %v1806
        %v1811 = vpack.i.b16 %v1736, %v1708
        %v1812 = vshrl.u32 %v1708, 16
        %v1813 = vshrl.u32 %v1736, 16
        %v1814 = vpack.i.b16 %v1813, %v1812
        %v1817 = vpack.i.b16 %v1740, %v1712
        %v1818 = vshrl.u32 %v1712, 16
        %v1819 = vshrl.u32 %v1740, 16
        %v1820 = vpack.i.b16 %v1819, %v1818
        %v1823 = vpack.i.b16 %v1788, %v1760
        %v1824 = vshrl.u32 %v1760, 16
        %v1825 = vshrl.u32 %v1788, 16
        %v1826 = vpack.i.b16 %v1825, %v1824
        %v1829 = vpack.i.b16 %v1794, %v1766
        %v1830 = vshrl.u32 %v1766, 16
        %v1831 = vshrl.u32 %v1794, 16
        %v1832 = vpack.i.b16 %v1831, %v1830
        %v1835 = vpack.i.b16 %v1792, %v1764
        %v1836 = vshrl.u32 %v1764, 16
        %v1837 = vshrl.u32 %v1792, 16
        %v1838 = vpack.i.b16 %v1837, %v1836
        %v1841 = vpack.i.b16 %v1796, %v1768
        %v1842 = vshrl.u32 %v1768, 16
        %v1843 = vshrl.u32 %v1796, 16
        %v1844 = vpack.i.b16 %v1843, %v1842
        %v1845 = vunpack.c.l.b16 %v1802
        %v1846 = vpack.c.b16 %v1845, %v1845
        %1847 = vrot.lane.b32.xlu0 %v1846, 16
        %v1848 = vpop.permute.xlu0 %1847
        %v1849 = vunpack.c.l.b16 %v1805
        %v1850 = vpack.c.b16 %v1849, %v1849
        %1851 = vrot.lane.b32.xlu0 %v1850, 32
        %v1852 = vpop.permute.xlu0 %1851
        %v1853 = vunpack.c.l.b16 %v1808
        %v1854 = vpack.c.b16 %v1853, %v1853
        %1855 = vrot.lane.b32.xlu0 %v1854, 48
        %v1856 = vpop.permute.xlu0 %1855
        %v1857 = vunpack.c.l.b16 %v1811
        %v1858 = vpack.c.b16 %v1857, %v1857
        %1859 = vrot.lane.b32.xlu0 %v1858, 64
        %v1860 = vpop.permute.xlu0 %1859
        %v1861 = vunpack.c.l.b16 %v1814
        %v1862 = vpack.c.b16 %v1861, %v1861
        %1863 = vrot.lane.b32.xlu0 %v1862, 80
        %v1864 = vpop.permute.xlu0 %1863
        %v1865 = vunpack.c.l.b16 %v1817
        %v1866 = vpack.c.b16 %v1865, %v1865
        %1867 = vrot.lane.b32.xlu0 %v1866, 96
        %v1868 = vpop.permute.xlu0 %1867
        %v1869 = vunpack.c.l.b16 %v1820
        %v1870 = vpack.c.b16 %v1869, %v1869
        %1871 = vrot.lane.b32.xlu0 %v1870, 112
        %v1872 = vpop.permute.xlu0 %1871
        %v1873 = vunpack.c.l.b16 %v1826
        %v1874 = vpack.c.b16 %v1873, %v1873
        %1875 = vrot.lane.b32.xlu0 %v1874, 16
        %v1876 = vpop.permute.xlu0 %1875
        %v1877 = vunpack.c.l.b16 %v1829
        %v1878 = vpack.c.b16 %v1877, %v1877
        %1879 = vrot.lane.b32.xlu0 %v1878, 32
        %v1880 = vpop.permute.xlu0 %1879
        %v1881 = vunpack.c.l.b16 %v1832
        %v1882 = vpack.c.b16 %v1881, %v1881
        %1883 = vrot.lane.b32.xlu0 %v1882, 48
        %v1884 = vpop.permute.xlu0 %1883
        %v1885 = vunpack.c.l.b16 %v1835
        %v1886 = vpack.c.b16 %v1885, %v1885
        %1887 = vrot.lane.b32.xlu0 %v1886, 64
        %v1888 = vpop.permute.xlu0 %1887
        %v1889 = vunpack.c.l.b16 %v1838
        %v1890 = vpack.c.b16 %v1889, %v1889
        %1891 = vrot.lane.b32.xlu0 %v1890, 80
        %v1892 = vpop.permute.xlu0 %1891
        %v1893 = vunpack.c.l.b16 %v1841
        %v1894 = vpack.c.b16 %v1893, %v1893
        %1895 = vrot.lane.b32.xlu0 %v1894, 96
        %v1896 = vpop.permute.xlu0 %1895
        %v1897 = vunpack.c.l.b16 %v1844
        %v1898 = vpack.c.b16 %v1897, %v1897
        %1899 = vrot.lane.b32.xlu0 %v1898, 112
        %v1900 = vpop.permute.xlu0 %1899
        %v1903 = vsel %vm562, %v1799, %v1848
        %v1905 = vsel %vm566, %v1903, %v1852
        %v1907 = vsel %vm569, %v1905, %v1856
        %v1909 = vsel %vm572, %v1907, %v1860
        %v1911 = vsel %vm575, %v1909, %v1864
        %v1913 = vsel %vm578, %v1911, %v1868
        %v1915 = vsel %vm581, %v1913, %v1872
        %v1918 = vsel %vm562, %v1823, %v1876
        %v1920 = vsel %vm566, %v1918, %v1880
        %v1922 = vsel %vm569, %v1920, %v1884
        %v1924 = vsel %vm572, %v1922, %v1888
        %v1926 = vsel %vm575, %v1924, %v1892
        %v1928 = vsel %vm578, %v1926, %v1896
        %v1930 = vsel %vm581, %v1928, %v1900
        %v1933 = vunpack.c.l.b16 %v1915
        %v1934 = vunpack.c.l.b16 %v1930
        %v1935 = vpack.c.b16 %v1934, %v1933
        %1937 = vst [vmem:[#allocation2 + $0x20] sm:$0xff] %v1935
        %v1938 = vld [vmem:[%s297] sm:$0xf]
        %v1939 = vld [vmem:[%s297 + $0x4] sm:$0xf]
        %v1940 = vld [vmem:[%s297 + $0x8] sm:$0x1]
        %v1941 = vld [vmem:[%s297 + $0xc] sm:$0xf]
        %v1942 = vld [vmem:[%s297 + $0x10] sm:$0xf]
        %v1943 = vld [vmem:[%s297 + $0x14] sm:$0x1]
        %v1944 = vld [vmem:[%s297 + $0x18] sm:$0xf]
        %v1945 = vld [vmem:[%s297 + $0x1c] sm:$0xf]
        %v1946 = vld [vmem:[%s297 + $0x20] sm:$0x1]
        %v1947 = vld [vmem:[%s297 + $0x24] sm:$0xf]
        %v1948 = vld [vmem:[%s297 + $0x28] sm:$0xf]
        %v1949 = vld [vmem:[%s297 + $0x2c] sm:$0x1]
        %v1950 = vld [vmem:[%s297 + $0x30] sm:$0xf]
        %v1951 = vld [vmem:[%s297 + $0x34] sm:$0xf]
        %v1952 = vld [vmem:[%s297 + $0x38] sm:$0x1]
        %v1953 = vld [vmem:[%s297 + $0x3c] sm:$0xf]
        %v1954 = vld [vmem:[%s297 + $0x40] sm:$0xf]
        %v1955 = vld [vmem:[%s297 + $0x44] sm:$0x1]
        %v1956 = vld [vmem:[%s297 + $0x48] sm:$0xf]
        %v1957 = vld [vmem:[%s297 + $0x4c] sm:$0xf]
        %v1958 = vld [vmem:[%s297 + $0x50] sm:$0x1]
        %v1959 = vld [vmem:[%s297 + $0x54] sm:$0xf]
        %v1960 = vld [vmem:[%s297 + $0x58] sm:$0xf]
        %v1961 = vld [vmem:[%s297 + $0x5c] sm:$0x1]
        %vm1962 = vsmask.f32 3328
        %vm1963 = vsmask.f32 7440
        %vm1964 = vmor %vm1962, %vm1963
        %v1966 = vshrl.u32 %v1938, 16
        %v1968 = vrot.slane %v1966, 4
        %v1969 = vshll.u32 %v1938, 16
        %v1971 = vrot.slane %v1969, 5
        %v1972 = vor.u32 %v1968, %v1971
        %v1973 = vrot.slane %v1972, 4
        %v1975 = vshll.u32 %v1939, 16
        %v1977 = vrot.slane %v1975, 5
        %v1978 = vsel %vm1964, %v1973, %v1977
        %v1979 = vshrl.u32 %v1939, 16
        %v1981 = vrot.slane %v1979, 4
        %v1982 = vor.u32 %v1981, %v1977
        %v1983 = vrot.slane %v1982, 4
        %v1985 = vshll.u32 %v1940, 16
        %v1987 = vrot.slane %v1985, 5
        %v1988 = vsel %vm1964, %v1983, %v1987
        %v1990 = vshrl.u32 %v1941, 16
        %v1992 = vrot.slane %v1990, 4
        %v1993 = vshll.u32 %v1941, 16
        %v1995 = vrot.slane %v1993, 5
        %v1996 = vor.u32 %v1992, %v1995
        %v1997 = vrot.slane %v1996, 4
        %v1999 = vshll.u32 %v1942, 16
        %v2001 = vrot.slane %v1999, 5
        %v2002 = vsel %vm1964, %v1997, %v2001
        %v2003 = vshrl.u32 %v1942, 16
        %v2005 = vrot.slane %v2003, 4
        %v2006 = vor.u32 %v2005, %v2001
        %v2007 = vrot.slane %v2006, 4
        %v2009 = vshll.u32 %v1943, 16
        %v2011 = vrot.slane %v2009, 5
        %v2012 = vsel %vm1964, %v2007, %v2011
        %v2014 = vshrl.u32 %v1944, 16
        %v2016 = vrot.slane %v2014, 4
        %v2017 = vshll.u32 %v1944, 16
        %v2019 = vrot.slane %v2017, 5
        %v2020 = vor.u32 %v2016, %v2019
        %v2021 = vrot.slane %v2020, 4
        %v2023 = vshll.u32 %v1945, 16
        %v2025 = vrot.slane %v2023, 5
        %v2026 = vsel %vm1964, %v2021, %v2025
        %v2027 = vshrl.u32 %v1945, 16
        %v2029 = vrot.slane %v2027, 4
        %v2030 = vor.u32 %v2029, %v2025
        %v2031 = vrot.slane %v2030, 4
        %v2033 = vshll.u32 %v1946, 16
        %v2035 = vrot.slane %v2033, 5
        %v2036 = vsel %vm1964, %v2031, %v2035
        %v2038 = vshrl.u32 %v1947, 16
        %v2040 = vrot.slane %v2038, 4
        %v2041 = vshll.u32 %v1947, 16
        %v2043 = vrot.slane %v2041, 5
        %v2044 = vor.u32 %v2040, %v2043
        %v2045 = vrot.slane %v2044, 4
        %v2047 = vshll.u32 %v1948, 16
        %v2049 = vrot.slane %v2047, 5
        %v2050 = vsel %vm1964, %v2045, %v2049
        %v2051 = vshrl.u32 %v1948, 16
        %v2053 = vrot.slane %v2051, 4
        %v2054 = vor.u32 %v2053, %v2049
        %v2055 = vrot.slane %v2054, 4
        %v2057 = vshll.u32 %v1949, 16
        %v2059 = vrot.slane %v2057, 5
        %v2060 = vsel %vm1964, %v2055, %v2059
        %v2062 = vshrl.u32 %v1950, 16
        %v2064 = vrot.slane %v2062, 4
        %v2065 = vshll.u32 %v1950, 16
        %v2067 = vrot.slane %v2065, 5
        %v2068 = vor.u32 %v2064, %v2067
        %v2069 = vrot.slane %v2068, 4
        %v2071 = vshll.u32 %v1951, 16
        %v2073 = vrot.slane %v2071, 5
        %v2074 = vsel %vm1964, %v2069, %v2073
        %v2075 = vshrl.u32 %v1951, 16
        %v2077 = vrot.slane %v2075, 4
        %v2078 = vor.u32 %v2077, %v2073
        %v2079 = vrot.slane %v2078, 4
        %v2081 = vshll.u32 %v1952, 16
        %v2083 = vrot.slane %v2081, 5
        %v2084 = vsel %vm1964, %v2079, %v2083
        %v2086 = vshrl.u32 %v1953, 16
        %v2088 = vrot.slane %v2086, 4
        %v2089 = vshll.u32 %v1953, 16
        %v2091 = vrot.slane %v2089, 5
        %v2092 = vor.u32 %v2088, %v2091
        %v2093 = vrot.slane %v2092, 4
        %v2095 = vshll.u32 %v1954, 16
        %v2097 = vrot.slane %v2095, 5
        %v2098 = vsel %vm1964, %v2093, %v2097
        %v2099 = vshrl.u32 %v1954, 16
        %v2101 = vrot.slane %v2099, 4
        %v2102 = vor.u32 %v2101, %v2097
        %v2103 = vrot.slane %v2102, 4
        %v2105 = vshll.u32 %v1955, 16
        %v2107 = vrot.slane %v2105, 5
        %v2108 = vsel %vm1964, %v2103, %v2107
        %v2110 = vshrl.u32 %v1956, 16
        %v2112 = vrot.slane %v2110, 4
        %v2113 = vshll.u32 %v1956, 16
        %v2115 = vrot.slane %v2113, 5
        %v2116 = vor.u32 %v2112, %v2115
        %v2117 = vrot.slane %v2116, 4
        %v2119 = vshll.u32 %v1957, 16
        %v2121 = vrot.slane %v2119, 5
        %v2122 = vsel %vm1964, %v2117, %v2121
        %v2123 = vshrl.u32 %v1957, 16
        %v2125 = vrot.slane %v2123, 4
        %v2126 = vor.u32 %v2125, %v2121
        %v2127 = vrot.slane %v2126, 4
        %v2129 = vshll.u32 %v1958, 16
        %v2131 = vrot.slane %v2129, 5
        %v2132 = vsel %vm1964, %v2127, %v2131
        %v2134 = vshrl.u32 %v1959, 16
        %v2136 = vrot.slane %v2134, 4
        %v2137 = vshll.u32 %v1959, 16
        %v2139 = vrot.slane %v2137, 5
        %v2140 = vor.u32 %v2136, %v2139
        %v2141 = vrot.slane %v2140, 4
        %v2143 = vshll.u32 %v1960, 16
        %v2145 = vrot.slane %v2143, 5
        %v2146 = vsel %vm1964, %v2141, %v2145
        %v2147 = vshrl.u32 %v1960, 16
        %v2149 = vrot.slane %v2147, 4
        %v2150 = vor.u32 %v2149, %v2145
        %v2151 = vrot.slane %v2150, 4
        %v2153 = vshll.u32 %v1961, 16
        %v2155 = vrot.slane %v2153, 5
        %v2156 = vsel %vm1964, %v2151, %v2155
        %v2173 = vrot.slane %v2074, 4
        %v2174 = vsel %vm346, %v2173, %v1978
        %v2176 = vunpack.c.l.s4 1983009808
        %v2177 = vunpack.c.0.s8 %v2176
        %v2178 = vperm.slane %v2174, %v2177
        %v2179 = vrot.slane %v2122, 4
        %v2180 = vsel %vm346, %v2179, %v2026
        %v2182 = vunpack.c.l.s4 1983009808
        %v2183 = vunpack.c.0.s8 %v2182
        %v2184 = vperm.slane %v2180, %v2183
        %v2185 = vrot.slane %v2184, 4
        %v2186 = vsel %vm346, %v2185, %v2178
        %v2187 = vrot.slane %v2178, 4
        %v2188 = vsel %vm346, %v2184, %v2187
        %v2190 = vunpack.c.l.s4 1934713408
        %v2191 = vunpack.c.0.s8 %v2190
        %v2192 = vperm.slane %v2186, %v2191
        %v2194 = vunpack.c.l.s4 1934713408
        %v2195 = vunpack.c.0.s8 %v2194
        %v2196 = vperm.slane %v2188, %v2195
        %v2197 = vrot.slane %v2192, 4
        %v2198 = vsel %vm346, 0, %v2197
        %v2199 = vrot.slane %v2196, 4
        %v2200 = vsel %vm346, 0, %v2199
        %v2201 = vrot.slane %v2098, 4
        %v2202 = vsel %vm346, %v2201, %v2002
        %v2204 = vunpack.c.l.s4 1983009808
        %v2205 = vunpack.c.0.s8 %v2204
        %v2206 = vperm.slane %v2202, %v2205
        %v2207 = vrot.slane %v2146, 4
        %v2208 = vsel %vm346, %v2207, %v2050
        %v2210 = vunpack.c.l.s4 1983009808
        %v2211 = vunpack.c.0.s8 %v2210
        %v2212 = vperm.slane %v2208, %v2211
        %v2213 = vrot.slane %v2212, 4
        %v2214 = vsel %vm346, %v2213, %v2206
        %v2215 = vrot.slane %v2206, 4
        %v2216 = vsel %vm346, %v2212, %v2215
        %v2218 = vunpack.c.l.s4 1934713408
        %v2219 = vunpack.c.0.s8 %v2218
        %v2220 = vperm.slane %v2214, %v2219
        %v2222 = vunpack.c.l.s4 1934713408
        %v2223 = vunpack.c.0.s8 %v2222
        %v2224 = vperm.slane %v2216, %v2223
        %v2225 = vrot.slane %v2220, 4
        %v2226 = vsel %vm346, 0, %v2225
        %v2227 = vrot.slane %v2224, 4
        %v2228 = vsel %vm346, 0, %v2227
        %v2229 = vrot.slane %v2084, 4
        %v2230 = vsel %vm346, %v2229, %v1988
        %v2232 = vunpack.c.l.s4 1983009808
        %v2233 = vunpack.c.0.s8 %v2232
        %v2234 = vperm.slane %v2230, %v2233
        %v2235 = vrot.slane %v2132, 4
        %v2236 = vsel %vm346, %v2235, %v2036
        %v2238 = vunpack.c.l.s4 1983009808
        %v2239 = vunpack.c.0.s8 %v2238
        %v2240 = vperm.slane %v2236, %v2239
        %v2241 = vrot.slane %v2240, 4
        %v2242 = vsel %vm346, %v2241, %v2234
        %v2243 = vrot.slane %v2234, 4
        %v2244 = vsel %vm346, %v2240, %v2243
        %v2246 = vunpack.c.l.s4 1934713408
        %v2247 = vunpack.c.0.s8 %v2246
        %v2248 = vperm.slane %v2242, %v2247
        %v2250 = vunpack.c.l.s4 1934713408
        %v2251 = vunpack.c.0.s8 %v2250
        %v2252 = vperm.slane %v2244, %v2251
        %v2253 = vrot.slane %v2248, 4
        %v2254 = vsel %vm346, 0, %v2253
        %v2255 = vrot.slane %v2252, 4
        %v2256 = vsel %vm346, 0, %v2255
        %v2257 = vrot.slane %v2108, 4
        %v2258 = vsel %vm346, %v2257, %v2012
        %v2260 = vunpack.c.l.s4 1983009808
        %v2261 = vunpack.c.0.s8 %v2260
        %v2262 = vperm.slane %v2258, %v2261
        %v2263 = vrot.slane %v2156, 4
        %v2264 = vsel %vm346, %v2263, %v2060
        %v2266 = vunpack.c.l.s4 1983009808
        %v2267 = vunpack.c.0.s8 %v2266
        %v2268 = vperm.slane %v2264, %v2267
        %v2269 = vrot.slane %v2268, 4
        %v2270 = vsel %vm346, %v2269, %v2262
        %v2271 = vrot.slane %v2262, 4
        %v2272 = vsel %vm346, %v2268, %v2271
        %v2274 = vunpack.c.l.s4 1934713408
        %v2275 = vunpack.c.0.s8 %v2274
        %v2276 = vperm.slane %v2270, %v2275
        %v2278 = vunpack.c.l.s4 1934713408
        %v2279 = vunpack.c.0.s8 %v2278
        %v2280 = vperm.slane %v2272, %v2279
        %v2281 = vrot.slane %v2276, 4
        %v2282 = vsel %vm346, 0, %v2281
        %v2283 = vrot.slane %v2280, 4
        %v2284 = vsel %vm346, 0, %v2283
        %v2287 = vpack.i.b16 %v2220, %v2192
        %v2288 = vshrl.u32 %v2192, 16
        %v2289 = vshrl.u32 %v2220, 16
        %v2290 = vpack.i.b16 %v2289, %v2288
        %v2293 = vpack.i.b16 %v2226, %v2198
        %v2294 = vshrl.u32 %v2198, 16
        %v2295 = vshrl.u32 %v2226, 16
        %v2296 = vpack.i.b16 %v2295, %v2294
        %v2299 = vpack.i.b16 %v2224, %v2196
        %v2300 = vshrl.u32 %v2196, 16
        %v2301 = vshrl.u32 %v2224, 16
        %v2302 = vpack.i.b16 %v2301, %v2300
        %v2305 = vpack.i.b16 %v2228, %v2200
        %v2306 = vshrl.u32 %v2200, 16
        %v2307 = vshrl.u32 %v2228, 16
        %v2308 = vpack.i.b16 %v2307, %v2306
        %v2311 = vpack.i.b16 %v2276, %v2248
        %v2312 = vshrl.u32 %v2248, 16
        %v2313 = vshrl.u32 %v2276, 16
        %v2314 = vpack.i.b16 %v2313, %v2312
        %v2317 = vpack.i.b16 %v2282, %v2254
        %v2318 = vshrl.u32 %v2254, 16
        %v2319 = vshrl.u32 %v2282, 16
        %v2320 = vpack.i.b16 %v2319, %v2318
        %v2323 = vpack.i.b16 %v2280, %v2252
        %v2324 = vshrl.u32 %v2252, 16
        %v2325 = vshrl.u32 %v2280, 16
        %v2326 = vpack.i.b16 %v2325, %v2324
        %v2329 = vpack.i.b16 %v2284, %v2256
        %v2330 = vshrl.u32 %v2256, 16
        %v2331 = vshrl.u32 %v2284, 16
        %v2332 = vpack.i.b16 %v2331, %v2330
        %v2333 = vunpack.c.l.b16 %v2290
        %v2334 = vpack.c.b16 %v2333, %v2333
        %2335 = vrot.lane.b32.xlu0 %v2334, 16
        %v2336 = vpop.permute.xlu0 %2335
        %v2337 = vunpack.c.l.b16 %v2293
        %v2338 = vpack.c.b16 %v2337, %v2337
        %2339 = vrot.lane.b32.xlu0 %v2338, 32
        %v2340 = vpop.permute.xlu0 %2339
        %v2341 = vunpack.c.l.b16 %v2296
        %v2342 = vpack.c.b16 %v2341, %v2341
        %2343 = vrot.lane.b32.xlu0 %v2342, 48
        %v2344 = vpop.permute.xlu0 %2343
        %v2345 = vunpack.c.l.b16 %v2299
        %v2346 = vpack.c.b16 %v2345, %v2345
        %2347 = vrot.lane.b32.xlu0 %v2346, 64
        %v2348 = vpop.permute.xlu0 %2347
        %v2349 = vunpack.c.l.b16 %v2302
        %v2350 = vpack.c.b16 %v2349, %v2349
        %2351 = vrot.lane.b32.xlu0 %v2350, 80
        %v2352 = vpop.permute.xlu0 %2351
        %v2353 = vunpack.c.l.b16 %v2305
        %v2354 = vpack.c.b16 %v2353, %v2353
        %2355 = vrot.lane.b32.xlu0 %v2354, 96
        %v2356 = vpop.permute.xlu0 %2355
        %v2357 = vunpack.c.l.b16 %v2308
        %v2358 = vpack.c.b16 %v2357, %v2357
        %2359 = vrot.lane.b32.xlu0 %v2358, 112
        %v2360 = vpop.permute.xlu0 %2359
        %v2361 = vunpack.c.l.b16 %v2314
        %v2362 = vpack.c.b16 %v2361, %v2361
        %2363 = vrot.lane.b32.xlu0 %v2362, 16
        %v2364 = vpop.permute.xlu0 %2363
        %v2365 = vunpack.c.l.b16 %v2317
        %v2366 = vpack.c.b16 %v2365, %v2365
        %2367 = vrot.lane.b32.xlu0 %v2366, 32
        %v2368 = vpop.permute.xlu0 %2367
        %v2369 = vunpack.c.l.b16 %v2320
        %v2370 = vpack.c.b16 %v2369, %v2369
        %2371 = vrot.lane.b32.xlu0 %v2370, 48
        %v2372 = vpop.permute.xlu0 %2371
        %v2373 = vunpack.c.l.b16 %v2323
        %v2374 = vpack.c.b16 %v2373, %v2373
        %2375 = vrot.lane.b32.xlu0 %v2374, 64
        %v2376 = vpop.permute.xlu0 %2375
        %v2377 = vunpack.c.l.b16 %v2326
        %v2378 = vpack.c.b16 %v2377, %v2377
        %2379 = vrot.lane.b32.xlu0 %v2378, 80
        %v2380 = vpop.permute.xlu0 %2379
        %v2381 = vunpack.c.l.b16 %v2329
        %v2382 = vpack.c.b16 %v2381, %v2381
        %2383 = vrot.lane.b32.xlu0 %v2382, 96
        %v2384 = vpop.permute.xlu0 %2383
        %v2385 = vunpack.c.l.b16 %v2332
        %v2386 = vpack.c.b16 %v2385, %v2385
        %2387 = vrot.lane.b32.xlu0 %v2386, 112
        %v2388 = vpop.permute.xlu0 %2387
        %v2391 = vsel %vm562, %v2287, %v2336
        %v2393 = vsel %vm566, %v2391, %v2340
        %v2395 = vsel %vm569, %v2393, %v2344
        %v2397 = vsel %vm572, %v2395, %v2348
        %v2399 = vsel %vm575, %v2397, %v2352
        %v2401 = vsel %vm578, %v2399, %v2356
        %v2403 = vsel %vm581, %v2401, %v2360
        %v2406 = vsel %vm562, %v2311, %v2364
        %v2408 = vsel %vm566, %v2406, %v2368
        %v2410 = vsel %vm569, %v2408, %v2372
        %v2412 = vsel %vm572, %v2410, %v2376
        %v2414 = vsel %vm575, %v2412, %v2380
        %v2416 = vsel %vm578, %v2414, %v2384
        %v2418 = vsel %vm581, %v2416, %v2388
        %v2421 = vunpack.c.l.b16 %v2403
        %v2422 = vunpack.c.l.b16 %v2418
        %v2423 = vpack.c.b16 %v2422, %v2421
        %2425 = vst [vmem:[#allocation2 + $0x28] sm:$0xff] %v2423
        %v2426 = vld [vmem:[%s297] sm:$0xf]
        %v2427 = vld [vmem:[%s297 + $0x4] sm:$0xf]
        %v2428 = vld [vmem:[%s297 + $0x8] sm:$0x1]
        %v2429 = vld [vmem:[%s297 + $0xc] sm:$0xf]
        %v2430 = vld [vmem:[%s297 + $0x10] sm:$0xf]
        %v2431 = vld [vmem:[%s297 + $0x14] sm:$0x1]
        %v2432 = vld [vmem:[%s297 + $0x18] sm:$0xf]
        %v2433 = vld [vmem:[%s297 + $0x1c] sm:$0xf]
        %v2434 = vld [vmem:[%s297 + $0x20] sm:$0x1]
        %v2435 = vld [vmem:[%s297 + $0x24] sm:$0xf]
        %v2436 = vld [vmem:[%s297 + $0x28] sm:$0xf]
        %v2437 = vld [vmem:[%s297 + $0x2c] sm:$0x1]
        %v2438 = vld [vmem:[%s297 + $0x30] sm:$0xf]
        %v2439 = vld [vmem:[%s297 + $0x34] sm:$0xf]
        %v2440 = vld [vmem:[%s297 + $0x38] sm:$0x1]
        %v2441 = vld [vmem:[%s297 + $0x3c] sm:$0xf]
        %v2442 = vld [vmem:[%s297 + $0x40] sm:$0xf]
        %v2443 = vld [vmem:[%s297 + $0x44] sm:$0x1]
        %v2444 = vld [vmem:[%s297 + $0x48] sm:$0xf]
        %v2445 = vld [vmem:[%s297 + $0x4c] sm:$0xf]
        %v2446 = vld [vmem:[%s297 + $0x50] sm:$0x1]
        %v2447 = vld [vmem:[%s297 + $0x54] sm:$0xf]
        %v2448 = vld [vmem:[%s297 + $0x58] sm:$0xf]
        %v2449 = vld [vmem:[%s297 + $0x5c] sm:$0x1]
        %v2451 = vshrl.u32 %v2426, 16
        %v2453 = vrot.slane %v2451, 4
        %v2454 = vshll.u32 %v2426, 16
        %v2456 = vrot.slane %v2454, 5
        %v2457 = vor.u32 %v2453, %v2456
        %v2458 = vrot.slane %v2457, 4
        %v2460 = vshll.u32 %v2427, 16
        %v2462 = vrot.slane %v2460, 5
        %v2463 = vsel %vm1964, %v2458, %v2462
        %v2464 = vshrl.u32 %v2427, 16
        %v2466 = vrot.slane %v2464, 4
        %v2467 = vor.u32 %v2466, %v2462
        %v2468 = vrot.slane %v2467, 4
        %v2470 = vshll.u32 %v2428, 16
        %v2472 = vrot.slane %v2470, 5
        %v2473 = vsel %vm1964, %v2468, %v2472
        %v2475 = vshrl.u32 %v2429, 16
        %v2477 = vrot.slane %v2475, 4
        %v2478 = vshll.u32 %v2429, 16
        %v2480 = vrot.slane %v2478, 5
        %v2481 = vor.u32 %v2477, %v2480
        %v2482 = vrot.slane %v2481, 4
        %v2484 = vshll.u32 %v2430, 16
        %v2486 = vrot.slane %v2484, 5
        %v2487 = vsel %vm1964, %v2482, %v2486
        %v2488 = vshrl.u32 %v2430, 16
        %v2490 = vrot.slane %v2488, 4
        %v2491 = vor.u32 %v2490, %v2486
        %v2492 = vrot.slane %v2491, 4
        %v2494 = vshll.u32 %v2431, 16
        %v2496 = vrot.slane %v2494, 5
        %v2497 = vsel %vm1964, %v2492, %v2496
        %v2499 = vshrl.u32 %v2432, 16
        %v2501 = vrot.slane %v2499, 4
        %v2502 = vshll.u32 %v2432, 16
        %v2504 = vrot.slane %v2502, 5
        %v2505 = vor.u32 %v2501, %v2504
        %v2506 = vrot.slane %v2505, 4
        %v2508 = vshll.u32 %v2433, 16
        %v2510 = vrot.slane %v2508, 5
        %v2511 = vsel %vm1964, %v2506, %v2510
        %v2512 = vshrl.u32 %v2433, 16
        %v2514 = vrot.slane %v2512, 4
        %v2515 = vor.u32 %v2514, %v2510
        %v2516 = vrot.slane %v2515, 4
        %v2518 = vshll.u32 %v2434, 16
        %v2520 = vrot.slane %v2518, 5
        %v2521 = vsel %vm1964, %v2516, %v2520
        %v2523 = vshrl.u32 %v2435, 16
        %v2525 = vrot.slane %v2523, 4
        %v2526 = vshll.u32 %v2435, 16
        %v2528 = vrot.slane %v2526, 5
        %v2529 = vor.u32 %v2525, %v2528
        %v2530 = vrot.slane %v2529, 4
        %v2532 = vshll.u32 %v2436, 16
        %v2534 = vrot.slane %v2532, 5
        %v2535 = vsel %vm1964, %v2530, %v2534
        %v2536 = vshrl.u32 %v2436, 16
        %v2538 = vrot.slane %v2536, 4
        %v2539 = vor.u32 %v2538, %v2534
        %v2540 = vrot.slane %v2539, 4
        %v2542 = vshll.u32 %v2437, 16
        %v2544 = vrot.slane %v2542, 5
        %v2545 = vsel %vm1964, %v2540, %v2544
        %v2547 = vshrl.u32 %v2438, 16
        %v2549 = vrot.slane %v2547, 4
        %v2550 = vshll.u32 %v2438, 16
        %v2552 = vrot.slane %v2550, 5
        %v2553 = vor.u32 %v2549, %v2552
        %v2554 = vrot.slane %v2553, 4
        %v2556 = vshll.u32 %v2439, 16
        %v2558 = vrot.slane %v2556, 5
        %v2559 = vsel %vm1964, %v2554, %v2558
        %v2560 = vshrl.u32 %v2439, 16
        %v2562 = vrot.slane %v2560, 4
        %v2563 = vor.u32 %v2562, %v2558
        %v2564 = vrot.slane %v2563, 4
        %v2566 = vshll.u32 %v2440, 16
        %v2568 = vrot.slane %v2566, 5
        %v2569 = vsel %vm1964, %v2564, %v2568
        %v2571 = vshrl.u32 %v2441, 16
        %v2573 = vrot.slane %v2571, 4
        %v2574 = vshll.u32 %v2441, 16
        %v2576 = vrot.slane %v2574, 5
        %v2577 = vor.u32 %v2573, %v2576
        %v2578 = vrot.slane %v2577, 4
        %v2580 = vshll.u32 %v2442, 16
        %v2582 = vrot.slane %v2580, 5
        %v2583 = vsel %vm1964, %v2578, %v2582
        %v2584 = vshrl.u32 %v2442, 16
        %v2586 = vrot.slane %v2584, 4
        %v2587 = vor.u32 %v2586, %v2582
        %v2588 = vrot.slane %v2587, 4
        %v2590 = vshll.u32 %v2443, 16
        %v2592 = vrot.slane %v2590, 5
        %v2593 = vsel %vm1964, %v2588, %v2592
        %v2595 = vshrl.u32 %v2444, 16
        %v2597 = vrot.slane %v2595, 4
        %v2598 = vshll.u32 %v2444, 16
        %v2600 = vrot.slane %v2598, 5
        %v2601 = vor.u32 %v2597, %v2600
        %v2602 = vrot.slane %v2601, 4
        %v2604 = vshll.u32 %v2445, 16
        %v2606 = vrot.slane %v2604, 5
        %v2607 = vsel %vm1964, %v2602, %v2606
        %v2608 = vshrl.u32 %v2445, 16
        %v2610 = vrot.slane %v2608, 4
        %v2611 = vor.u32 %v2610, %v2606
        %v2612 = vrot.slane %v2611, 4
        %v2614 = vshll.u32 %v2446, 16
        %v2616 = vrot.slane %v2614, 5
        %v2617 = vsel %vm1964, %v2612, %v2616
        %v2619 = vshrl.u32 %v2447, 16
        %v2621 = vrot.slane %v2619, 4
        %v2622 = vshll.u32 %v2447, 16
        %v2624 = vrot.slane %v2622, 5
        %v2625 = vor.u32 %v2621, %v2624
        %v2626 = vrot.slane %v2625, 4
        %v2628 = vshll.u32 %v2448, 16
        %v2630 = vrot.slane %v2628, 5
        %v2631 = vsel %vm1964, %v2626, %v2630
        %v2632 = vshrl.u32 %v2448, 16
        %v2634 = vrot.slane %v2632, 4
        %v2635 = vor.u32 %v2634, %v2630
        %v2636 = vrot.slane %v2635, 4
        %v2638 = vshll.u32 %v2449, 16
        %v2640 = vrot.slane %v2638, 5
        %v2641 = vsel %vm1964, %v2636, %v2640
        %2642 = vrot.lane.b32.xlu0 %v2463, 127
        %v2643 = vpop.permute.xlu0 %2642
        %2644 = vrot.lane.b32.xlu0 %v2473, 127
        %v2645 = vpop.permute.xlu0 %2644
        %2646 = vrot.lane.b32.xlu0 %v2487, 127
        %v2647 = vpop.permute.xlu0 %2646
        %2648 = vrot.lane.b32.xlu0 %v2497, 127
        %v2649 = vpop.permute.xlu0 %2648
        %2650 = vrot.lane.b32.xlu0 %v2511, 127
        %v2651 = vpop.permute.xlu0 %2650
        %2652 = vrot.lane.b32.xlu0 %v2521, 127
        %v2653 = vpop.permute.xlu0 %2652
        %2654 = vrot.lane.b32.xlu0 %v2535, 127
        %v2655 = vpop.permute.xlu0 %2654
        %2656 = vrot.lane.b32.xlu0 %v2545, 127
        %v2657 = vpop.permute.xlu0 %2656
        %2658 = vrot.lane.b32.xlu0 %v2559, 127
        %v2659 = vpop.permute.xlu0 %2658
        %2660 = vrot.lane.b32.xlu0 %v2569, 127
        %v2661 = vpop.permute.xlu0 %2660
        %2662 = vrot.lane.b32.xlu0 %v2583, 127
        %v2663 = vpop.permute.xlu0 %2662
        %2664 = vrot.lane.b32.xlu0 %v2593, 127
        %v2665 = vpop.permute.xlu0 %2664
        %2666 = vrot.lane.b32.xlu0 %v2607, 127
        %v2667 = vpop.permute.xlu0 %2666
        %2668 = vrot.lane.b32.xlu0 %v2617, 127
        %v2669 = vpop.permute.xlu0 %2668
        %2670 = vrot.lane.b32.xlu0 %v2631, 127
        %v2671 = vpop.permute.xlu0 %2670
        %2672 = vrot.lane.b32.xlu0 %v2641, 127
        %v2673 = vpop.permute.xlu0 %2672
        %v2690 = vrot.slane %v2659, 4
        %v2691 = vsel %vm346, %v2690, %v2643
        %v2693 = vunpack.c.l.s4 1983009808
        %v2694 = vunpack.c.0.s8 %v2693
        %v2695 = vperm.slane %v2691, %v2694
        %v2696 = vrot.slane %v2667, 4
        %v2697 = vsel %vm346, %v2696, %v2651
        %v2699 = vunpack.c.l.s4 1983009808
        %v2700 = vunpack.c.0.s8 %v2699
        %v2701 = vperm.slane %v2697, %v2700
        %v2702 = vrot.slane %v2701, 4
        %v2703 = vsel %vm346, %v2702, %v2695
        %v2704 = vrot.slane %v2695, 4
        %v2705 = vsel %vm346, %v2701, %v2704
        %v2707 = vunpack.c.l.s4 1934713408
        %v2708 = vunpack.c.0.s8 %v2707
        %v2709 = vperm.slane %v2703, %v2708
        %v2711 = vunpack.c.l.s4 1934713408
        %v2712 = vunpack.c.0.s8 %v2711
        %v2713 = vperm.slane %v2705, %v2712
        %v2714 = vrot.slane %v2709, 4
        %v2715 = vsel %vm346, 0, %v2714
        %v2716 = vrot.slane %v2713, 4
        %v2717 = vsel %vm346, 0, %v2716
        %v2718 = vrot.slane %v2663, 4
        %v2719 = vsel %vm346, %v2718, %v2647
        %v2721 = vunpack.c.l.s4 1983009808
        %v2722 = vunpack.c.0.s8 %v2721
        %v2723 = vperm.slane %v2719, %v2722
        %v2724 = vrot.slane %v2671, 4
        %v2725 = vsel %vm346, %v2724, %v2655
        %v2727 = vunpack.c.l.s4 1983009808
        %v2728 = vunpack.c.0.s8 %v2727
        %v2729 = vperm.slane %v2725, %v2728
        %v2730 = vrot.slane %v2729, 4
        %v2731 = vsel %vm346, %v2730, %v2723
        %v2732 = vrot.slane %v2723, 4
        %v2733 = vsel %vm346, %v2729, %v2732
        %v2735 = vunpack.c.l.s4 1934713408
        %v2736 = vunpack.c.0.s8 %v2735
        %v2737 = vperm.slane %v2731, %v2736
        %v2739 = vunpack.c.l.s4 1934713408
        %v2740 = vunpack.c.0.s8 %v2739
        %v2741 = vperm.slane %v2733, %v2740
        %v2742 = vrot.slane %v2737, 4
        %v2743 = vsel %vm346, 0, %v2742
        %v2744 = vrot.slane %v2741, 4
        %v2745 = vsel %vm346, 0, %v2744
        %v2746 = vrot.slane %v2661, 4
        %v2747 = vsel %vm346, %v2746, %v2645
        %v2749 = vunpack.c.l.s4 1983009808
        %v2750 = vunpack.c.0.s8 %v2749
        %v2751 = vperm.slane %v2747, %v2750
        %v2752 = vrot.slane %v2669, 4
        %v2753 = vsel %vm346, %v2752, %v2653
        %v2755 = vunpack.c.l.s4 1983009808
        %v2756 = vunpack.c.0.s8 %v2755
        %v2757 = vperm.slane %v2753, %v2756
        %v2758 = vrot.slane %v2757, 4
        %v2759 = vsel %vm346, %v2758, %v2751
        %v2760 = vrot.slane %v2751, 4
        %v2761 = vsel %vm346, %v2757, %v2760
        %v2763 = vunpack.c.l.s4 1934713408
        %v2764 = vunpack.c.0.s8 %v2763
        %v2765 = vperm.slane %v2759, %v2764
        %v2767 = vunpack.c.l.s4 1934713408
        %v2768 = vunpack.c.0.s8 %v2767
        %v2769 = vperm.slane %v2761, %v2768
        %v2770 = vrot.slane %v2765, 4
        %v2771 = vsel %vm346, 0, %v2770
        %v2772 = vrot.slane %v2769, 4
        %v2773 = vsel %vm346, 0, %v2772
        %v2774 = vrot.slane %v2665, 4
        %v2775 = vsel %vm346, %v2774, %v2649
        %v2777 = vunpack.c.l.s4 1983009808
        %v2778 = vunpack.c.0.s8 %v2777
        %v2779 = vperm.slane %v2775, %v2778
        %v2780 = vrot.slane %v2673, 4
        %v2781 = vsel %vm346, %v2780, %v2657
        %v2783 = vunpack.c.l.s4 1983009808
        %v2784 = vunpack.c.0.s8 %v2783
        %v2785 = vperm.slane %v2781, %v2784
        %v2786 = vrot.slane %v2785, 4
        %v2787 = vsel %vm346, %v2786, %v2779
        %v2788 = vrot.slane %v2779, 4
        %v2789 = vsel %vm346, %v2785, %v2788
        %v2791 = vunpack.c.l.s4 1934713408
        %v2792 = vunpack.c.0.s8 %v2791
        %v2793 = vperm.slane %v2787, %v2792
        %v2795 = vunpack.c.l.s4 1934713408
        %v2796 = vunpack.c.0.s8 %v2795
        %v2797 = vperm.slane %v2789, %v2796
        %v2798 = vrot.slane %v2793, 4
        %v2799 = vsel %vm346, 0, %v2798
        %v2800 = vrot.slane %v2797, 4
        %v2801 = vsel %vm346, 0, %v2800
        %v2804 = vpack.i.b16 %v2737, %v2709
        %v2805 = vshrl.u32 %v2709, 16
        %v2806 = vshrl.u32 %v2737, 16
        %v2807 = vpack.i.b16 %v2806, %v2805
        %v2810 = vpack.i.b16 %v2743, %v2715
        %v2811 = vshrl.u32 %v2715, 16
        %v2812 = vshrl.u32 %v2743, 16
        %v2813 = vpack.i.b16 %v2812, %v2811
        %v2816 = vpack.i.b16 %v2741, %v2713
        %v2817 = vshrl.u32 %v2713, 16
        %v2818 = vshrl.u32 %v2741, 16
        %v2819 = vpack.i.b16 %v2818, %v2817
        %v2822 = vpack.i.b16 %v2745, %v2717
        %v2823 = vshrl.u32 %v2717, 16
        %v2824 = vshrl.u32 %v2745, 16
        %v2825 = vpack.i.b16 %v2824, %v2823
        %v2828 = vpack.i.b16 %v2793, %v2765
        %v2829 = vshrl.u32 %v2765, 16
        %v2830 = vshrl.u32 %v2793, 16
        %v2831 = vpack.i.b16 %v2830, %v2829
        %v2834 = vpack.i.b16 %v2799, %v2771
        %v2835 = vshrl.u32 %v2771, 16
        %v2836 = vshrl.u32 %v2799, 16
        %v2837 = vpack.i.b16 %v2836, %v2835
        %v2840 = vpack.i.b16 %v2797, %v2769
        %v2841 = vshrl.u32 %v2769, 16
        %v2842 = vshrl.u32 %v2797, 16
        %v2843 = vpack.i.b16 %v2842, %v2841
        %v2846 = vpack.i.b16 %v2801, %v2773
        %v2847 = vshrl.u32 %v2773, 16
        %v2848 = vshrl.u32 %v2801, 16
        %v2849 = vpack.i.b16 %v2848, %v2847
        %v2850 = vunpack.c.l.b16 %v2807
        %v2851 = vpack.c.b16 %v2850, %v2850
        %2852 = vrot.lane.b32.xlu0 %v2851, 16
        %v2853 = vpop.permute.xlu0 %2852
        %v2854 = vunpack.c.l.b16 %v2810
        %v2855 = vpack.c.b16 %v2854, %v2854
        %2856 = vrot.lane.b32.xlu0 %v2855, 32
        %v2857 = vpop.permute.xlu0 %2856
        %v2858 = vunpack.c.l.b16 %v2813
        %v2859 = vpack.c.b16 %v2858, %v2858
        %2860 = vrot.lane.b32.xlu0 %v2859, 48
        %v2861 = vpop.permute.xlu0 %2860
        %v2862 = vunpack.c.l.b16 %v2816
        %v2863 = vpack.c.b16 %v2862, %v2862
        %2864 = vrot.lane.b32.xlu0 %v2863, 64
        %v2865 = vpop.permute.xlu0 %2864
        %v2866 = vunpack.c.l.b16 %v2819
        %v2867 = vpack.c.b16 %v2866, %v2866
        %2868 = vrot.lane.b32.xlu0 %v2867, 80
        %v2869 = vpop.permute.xlu0 %2868
        %v2870 = vunpack.c.l.b16 %v2822
        %v2871 = vpack.c.b16 %v2870, %v2870
        %2872 = vrot.lane.b32.xlu0 %v2871, 96
        %v2873 = vpop.permute.xlu0 %2872
        %v2874 = vunpack.c.l.b16 %v2825
        %v2875 = vpack.c.b16 %v2874, %v2874
        %2876 = vrot.lane.b32.xlu0 %v2875, 112
        %v2877 = vpop.permute.xlu0 %2876
        %v2878 = vunpack.c.l.b16 %v2831
        %v2879 = vpack.c.b16 %v2878, %v2878
        %2880 = vrot.lane.b32.xlu0 %v2879, 16
        %v2881 = vpop.permute.xlu0 %2880
        %v2882 = vunpack.c.l.b16 %v2834
        %v2883 = vpack.c.b16 %v2882, %v2882
        %2884 = vrot.lane.b32.xlu0 %v2883, 32
        %v2885 = vpop.permute.xlu0 %2884
        %v2886 = vunpack.c.l.b16 %v2837
        %v2887 = vpack.c.b16 %v2886, %v2886
        %2888 = vrot.lane.b32.xlu0 %v2887, 48
        %v2889 = vpop.permute.xlu0 %2888
        %v2890 = vunpack.c.l.b16 %v2840
        %v2891 = vpack.c.b16 %v2890, %v2890
        %2892 = vrot.lane.b32.xlu0 %v2891, 64
        %v2893 = vpop.permute.xlu0 %2892
        %v2894 = vunpack.c.l.b16 %v2843
        %v2895 = vpack.c.b16 %v2894, %v2894
        %2896 = vrot.lane.b32.xlu0 %v2895, 80
        %v2897 = vpop.permute.xlu0 %2896
        %v2898 = vunpack.c.l.b16 %v2846
        %v2899 = vpack.c.b16 %v2898, %v2898
        %2900 = vrot.lane.b32.xlu0 %v2899, 96
        %v2901 = vpop.permute.xlu0 %2900
        %v2902 = vunpack.c.l.b16 %v2849
        %v2903 = vpack.c.b16 %v2902, %v2902
        %2904 = vrot.lane.b32.xlu0 %v2903, 112
        %v2905 = vpop.permute.xlu0 %2904
        %v2908 = vsel %vm562, %v2804, %v2853
        %v2910 = vsel %vm566, %v2908, %v2857
        %v2912 = vsel %vm569, %v2910, %v2861
        %v2914 = vsel %vm572, %v2912, %v2865
        %v2916 = vsel %vm575, %v2914, %v2869
        %v2918 = vsel %vm578, %v2916, %v2873
        %v2920 = vsel %vm581, %v2918, %v2877
        %v2923 = vsel %vm562, %v2828, %v2881
        %v2925 = vsel %vm566, %v2923, %v2885
        %v2927 = vsel %vm569, %v2925, %v2889
        %v2929 = vsel %vm572, %v2927, %v2893
        %v2931 = vsel %vm575, %v2929, %v2897
        %v2933 = vsel %vm578, %v2931, %v2901
        %v2935 = vsel %vm581, %v2933, %v2905
        %v2938 = vunpack.c.l.b16 %v2920
        %v2939 = vunpack.c.l.b16 %v2935
        %v2940 = vpack.c.b16 %v2939, %v2938
        %2942 = vst [vmem:[#allocation2 + $0x30] sm:$0xff] %v2940
        %v2943 = vld [vmem:[%s297] sm:$0xf]
        %v2944 = vld [vmem:[%s297 + $0x4] sm:$0xf]
        %v2945 = vld [vmem:[%s297 + $0x8] sm:$0x1]
        %v2946 = vld [vmem:[%s297 + $0xc] sm:$0xf]
        %v2947 = vld [vmem:[%s297 + $0x10] sm:$0xf]
        %v2948 = vld [vmem:[%s297 + $0x14] sm:$0x1]
        %v2949 = vld [vmem:[%s297 + $0x18] sm:$0xf]
        %v2950 = vld [vmem:[%s297 + $0x1c] sm:$0xf]
        %v2951 = vld [vmem:[%s297 + $0x20] sm:$0x1]
        %v2952 = vld [vmem:[%s297 + $0x24] sm:$0xf]
        %v2953 = vld [vmem:[%s297 + $0x28] sm:$0xf]
        %v2954 = vld [vmem:[%s297 + $0x2c] sm:$0x1]
        %v2955 = vld [vmem:[%s297 + $0x30] sm:$0xf]
        %v2956 = vld [vmem:[%s297 + $0x34] sm:$0xf]
        %v2957 = vld [vmem:[%s297 + $0x38] sm:$0x1]
        %v2958 = vld [vmem:[%s297 + $0x3c] sm:$0xf]
        %v2959 = vld [vmem:[%s297 + $0x40] sm:$0xf]
        %v2960 = vld [vmem:[%s297 + $0x44] sm:$0x1]
        %v2961 = vld [vmem:[%s297 + $0x48] sm:$0xf]
        %v2962 = vld [vmem:[%s297 + $0x4c] sm:$0xf]
        %v2963 = vld [vmem:[%s297 + $0x50] sm:$0x1]
        %v2964 = vld [vmem:[%s297 + $0x54] sm:$0xf]
        %v2965 = vld [vmem:[%s297 + $0x58] sm:$0xf]
        %v2966 = vld [vmem:[%s297 + $0x5c] sm:$0x1]
        %v2968 = vshrl.u32 %v2943, 16
        %v2970 = vrot.slane %v2968, 4
        %v2971 = vshll.u32 %v2943, 16
        %v2973 = vrot.slane %v2971, 5
        %v2974 = vor.u32 %v2970, %v2973
        %v2975 = vrot.slane %v2974, 4
        %v2977 = vshll.u32 %v2944, 16
        %v2979 = vrot.slane %v2977, 5
        %v2980 = vsel %vm1964, %v2975, %v2979
        %v2981 = vshrl.u32 %v2944, 16
        %v2983 = vrot.slane %v2981, 4
        %v2984 = vor.u32 %v2983, %v2979
        %v2985 = vrot.slane %v2984, 4
        %v2987 = vshll.u32 %v2945, 16
        %v2989 = vrot.slane %v2987, 5
        %v2990 = vsel %vm1964, %v2985, %v2989
        %v2992 = vshrl.u32 %v2946, 16
        %v2994 = vrot.slane %v2992, 4
        %v2995 = vshll.u32 %v2946, 16
        %v2997 = vrot.slane %v2995, 5
        %v2998 = vor.u32 %v2994, %v2997
        %v2999 = vrot.slane %v2998, 4
        %v3001 = vshll.u32 %v2947, 16
        %v3003 = vrot.slane %v3001, 5
        %v3004 = vsel %vm1964, %v2999, %v3003
        %v3005 = vshrl.u32 %v2947, 16
        %v3007 = vrot.slane %v3005, 4
        %v3008 = vor.u32 %v3007, %v3003
        %v3009 = vrot.slane %v3008, 4
        %v3011 = vshll.u32 %v2948, 16
        %v3013 = vrot.slane %v3011, 5
        %v3014 = vsel %vm1964, %v3009, %v3013
        %v3016 = vshrl.u32 %v2949, 16
        %v3018 = vrot.slane %v3016, 4
        %v3019 = vshll.u32 %v2949, 16
        %v3021 = vrot.slane %v3019, 5
        %v3022 = vor.u32 %v3018, %v3021
        %v3023 = vrot.slane %v3022, 4
        %v3025 = vshll.u32 %v2950, 16
        %v3027 = vrot.slane %v3025, 5
        %v3028 = vsel %vm1964, %v3023, %v3027
        %v3029 = vshrl.u32 %v2950, 16
        %v3031 = vrot.slane %v3029, 4
        %v3032 = vor.u32 %v3031, %v3027
        %v3033 = vrot.slane %v3032, 4
        %v3035 = vshll.u32 %v2951, 16
        %v3037 = vrot.slane %v3035, 5
        %v3038 = vsel %vm1964, %v3033, %v3037
        %v3040 = vshrl.u32 %v2952, 16
        %v3042 = vrot.slane %v3040, 4
        %v3043 = vshll.u32 %v2952, 16
        %v3045 = vrot.slane %v3043, 5
        %v3046 = vor.u32 %v3042, %v3045
        %v3047 = vrot.slane %v3046, 4
        %v3049 = vshll.u32 %v2953, 16
        %v3051 = vrot.slane %v3049, 5
        %v3052 = vsel %vm1964, %v3047, %v3051
        %v3053 = vshrl.u32 %v2953, 16
        %v3055 = vrot.slane %v3053, 4
        %v3056 = vor.u32 %v3055, %v3051
        %v3057 = vrot.slane %v3056, 4
        %v3059 = vshll.u32 %v2954, 16
        %v3061 = vrot.slane %v3059, 5
        %v3062 = vsel %vm1964, %v3057, %v3061
        %v3064 = vshrl.u32 %v2955, 16
        %v3066 = vrot.slane %v3064, 4
        %v3067 = vshll.u32 %v2955, 16
        %v3069 = vrot.slane %v3067, 5
        %v3070 = vor.u32 %v3066, %v3069
        %v3071 = vrot.slane %v3070, 4
        %v3073 = vshll.u32 %v2956, 16
        %v3075 = vrot.slane %v3073, 5
        %v3076 = vsel %vm1964, %v3071, %v3075
        %v3077 = vshrl.u32 %v2956, 16
        %v3079 = vrot.slane %v3077, 4
        %v3080 = vor.u32 %v3079, %v3075
        %v3081 = vrot.slane %v3080, 4
        %v3083 = vshll.u32 %v2957, 16
        %v3085 = vrot.slane %v3083, 5
        %v3086 = vsel %vm1964, %v3081, %v3085
        %v3088 = vshrl.u32 %v2958, 16
        %v3090 = vrot.slane %v3088, 4
        %v3091 = vshll.u32 %v2958, 16
        %v3093 = vrot.slane %v3091, 5
        %v3094 = vor.u32 %v3090, %v3093
        %v3095 = vrot.slane %v3094, 4
        %v3097 = vshll.u32 %v2959, 16
        %v3099 = vrot.slane %v3097, 5
        %v3100 = vsel %vm1964, %v3095, %v3099
        %v3101 = vshrl.u32 %v2959, 16
        %v3103 = vrot.slane %v3101, 4
        %v3104 = vor.u32 %v3103, %v3099
        %v3105 = vrot.slane %v3104, 4
        %v3107 = vshll.u32 %v2960, 16
        %v3109 = vrot.slane %v3107, 5
        %v3110 = vsel %vm1964, %v3105, %v3109
        %v3112 = vshrl.u32 %v2961, 16
        %v3114 = vrot.slane %v3112, 4
        %v3115 = vshll.u32 %v2961, 16
        %v3117 = vrot.slane %v3115, 5
        %v3118 = vor.u32 %v3114, %v3117
        %v3119 = vrot.slane %v3118, 4
        %v3121 = vshll.u32 %v2962, 16
        %v3123 = vrot.slane %v3121, 5
        %v3124 = vsel %vm1964, %v3119, %v3123
        %v3125 = vshrl.u32 %v2962, 16
        %v3127 = vrot.slane %v3125, 4
        %v3128 = vor.u32 %v3127, %v3123
        %v3129 = vrot.slane %v3128, 4
        %v3131 = vshll.u32 %v2963, 16
        %v3133 = vrot.slane %v3131, 5
        %v3134 = vsel %vm1964, %v3129, %v3133
        %v3136 = vshrl.u32 %v2964, 16
        %v3138 = vrot.slane %v3136, 4
        %v3139 = vshll.u32 %v2964, 16
        %v3141 = vrot.slane %v3139, 5
        %v3142 = vor.u32 %v3138, %v3141
        %v3143 = vrot.slane %v3142, 4
        %v3145 = vshll.u32 %v2965, 16
        %v3147 = vrot.slane %v3145, 5
        %v3148 = vsel %vm1964, %v3143, %v3147
        %v3149 = vshrl.u32 %v2965, 16
        %v3151 = vrot.slane %v3149, 4
        %v3152 = vor.u32 %v3151, %v3147
        %v3153 = vrot.slane %v3152, 4
        %v3155 = vshll.u32 %v2966, 16
        %v3157 = vrot.slane %v3155, 5
        %v3158 = vsel %vm1964, %v3153, %v3157
        %3159 = vrot.lane.b32.xlu0 %v2980, 126
        %v3160 = vpop.permute.xlu0 %3159
        %3161 = vrot.lane.b32.xlu0 %v2990, 126
        %v3162 = vpop.permute.xlu0 %3161
        %3163 = vrot.lane.b32.xlu0 %v3004, 126
        %v3164 = vpop.permute.xlu0 %3163
        %3165 = vrot.lane.b32.xlu0 %v3014, 126
        %v3166 = vpop.permute.xlu0 %3165
        %3167 = vrot.lane.b32.xlu0 %v3028, 126
        %v3168 = vpop.permute.xlu0 %3167
        %3169 = vrot.lane.b32.xlu0 %v3038, 126
        %v3170 = vpop.permute.xlu0 %3169
        %3171 = vrot.lane.b32.xlu0 %v3052, 126
        %v3172 = vpop.permute.xlu0 %3171
        %3173 = vrot.lane.b32.xlu0 %v3062, 126
        %v3174 = vpop.permute.xlu0 %3173
        %3175 = vrot.lane.b32.xlu0 %v3076, 126
        %v3176 = vpop.permute.xlu0 %3175
        %3177 = vrot.lane.b32.xlu0 %v3086, 126
        %v3178 = vpop.permute.xlu0 %3177
        %3179 = vrot.lane.b32.xlu0 %v3100, 126
        %v3180 = vpop.permute.xlu0 %3179
        %3181 = vrot.lane.b32.xlu0 %v3110, 126
        %v3182 = vpop.permute.xlu0 %3181
        %3183 = vrot.lane.b32.xlu0 %v3124, 126
        %v3184 = vpop.permute.xlu0 %3183
        %3185 = vrot.lane.b32.xlu0 %v3134, 126
        %v3186 = vpop.permute.xlu0 %3185
        %3187 = vrot.lane.b32.xlu0 %v3148, 126
        %v3188 = vpop.permute.xlu0 %3187
        %3189 = vrot.lane.b32.xlu0 %v3158, 126
        %v3190 = vpop.permute.xlu0 %3189
        %v3207 = vrot.slane %v3176, 4
        %v3208 = vsel %vm346, %v3207, %v3160
        %v3210 = vunpack.c.l.s4 1983009808
        %v3211 = vunpack.c.0.s8 %v3210
        %v3212 = vperm.slane %v3208, %v3211
        %v3213 = vrot.slane %v3184, 4
        %v3214 = vsel %vm346, %v3213, %v3168
        %v3216 = vunpack.c.l.s4 1983009808
        %v3217 = vunpack.c.0.s8 %v3216
        %v3218 = vperm.slane %v3214, %v3217
        %v3219 = vrot.slane %v3218, 4
        %v3220 = vsel %vm346, %v3219, %v3212
        %v3221 = vrot.slane %v3212, 4
        %v3222 = vsel %vm346, %v3218, %v3221
        %v3224 = vunpack.c.l.s4 1934713408
        %v3225 = vunpack.c.0.s8 %v3224
        %v3226 = vperm.slane %v3220, %v3225
        %v3228 = vunpack.c.l.s4 1934713408
        %v3229 = vunpack.c.0.s8 %v3228
        %v3230 = vperm.slane %v3222, %v3229
        %v3231 = vrot.slane %v3226, 4
        %v3232 = vsel %vm346, 0, %v3231
        %v3233 = vrot.slane %v3230, 4
        %v3234 = vsel %vm346, 0, %v3233
        %v3235 = vrot.slane %v3180, 4
        %v3236 = vsel %vm346, %v3235, %v3164
        %v3238 = vunpack.c.l.s4 1983009808
        %v3239 = vunpack.c.0.s8 %v3238
        %v3240 = vperm.slane %v3236, %v3239
        %v3241 = vrot.slane %v3188, 4
        %v3242 = vsel %vm346, %v3241, %v3172
        %v3244 = vunpack.c.l.s4 1983009808
        %v3245 = vunpack.c.0.s8 %v3244
        %v3246 = vperm.slane %v3242, %v3245
        %v3247 = vrot.slane %v3246, 4
        %v3248 = vsel %vm346, %v3247, %v3240
        %v3249 = vrot.slane %v3240, 4
        %v3250 = vsel %vm346, %v3246, %v3249
        %v3252 = vunpack.c.l.s4 1934713408
        %v3253 = vunpack.c.0.s8 %v3252
        %v3254 = vperm.slane %v3248, %v3253
        %v3256 = vunpack.c.l.s4 1934713408
        %v3257 = vunpack.c.0.s8 %v3256
        %v3258 = vperm.slane %v3250, %v3257
        %v3259 = vrot.slane %v3254, 4
        %v3260 = vsel %vm346, 0, %v3259
        %v3261 = vrot.slane %v3258, 4
        %v3262 = vsel %vm346, 0, %v3261
        %v3263 = vrot.slane %v3178, 4
        %v3264 = vsel %vm346, %v3263, %v3162
        %v3266 = vunpack.c.l.s4 1983009808
        %v3267 = vunpack.c.0.s8 %v3266
        %v3268 = vperm.slane %v3264, %v3267
        %v3269 = vrot.slane %v3186, 4
        %v3270 = vsel %vm346, %v3269, %v3170
        %v3272 = vunpack.c.l.s4 1983009808
        %v3273 = vunpack.c.0.s8 %v3272
        %v3274 = vperm.slane %v3270, %v3273
        %v3275 = vrot.slane %v3274, 4
        %v3276 = vsel %vm346, %v3275, %v3268
        %v3277 = vrot.slane %v3268, 4
        %v3278 = vsel %vm346, %v3274, %v3277
        %v3280 = vunpack.c.l.s4 1934713408
        %v3281 = vunpack.c.0.s8 %v3280
        %v3282 = vperm.slane %v3276, %v3281
        %v3284 = vunpack.c.l.s4 1934713408
        %v3285 = vunpack.c.0.s8 %v3284
        %v3286 = vperm.slane %v3278, %v3285
        %v3287 = vrot.slane %v3282, 4
        %v3288 = vsel %vm346, 0, %v3287
        %v3289 = vrot.slane %v3286, 4
        %v3290 = vsel %vm346, 0, %v3289
        %v3291 = vrot.slane %v3182, 4
        %v3292 = vsel %vm346, %v3291, %v3166
        %v3294 = vunpack.c.l.s4 1983009808
        %v3295 = vunpack.c.0.s8 %v3294
        %v3296 = vperm.slane %v3292, %v3295
        %v3297 = vrot.slane %v3190, 4
        %v3298 = vsel %vm346, %v3297, %v3174
        %v3300 = vunpack.c.l.s4 1983009808
        %v3301 = vunpack.c.0.s8 %v3300
        %v3302 = vperm.slane %v3298, %v3301
        %v3303 = vrot.slane %v3302, 4
        %v3304 = vsel %vm346, %v3303, %v3296
        %v3305 = vrot.slane %v3296, 4
        %v3306 = vsel %vm346, %v3302, %v3305
        %v3308 = vunpack.c.l.s4 1934713408
        %v3309 = vunpack.c.0.s8 %v3308
        %v3310 = vperm.slane %v3304, %v3309
        %v3312 = vunpack.c.l.s4 1934713408
        %v3313 = vunpack.c.0.s8 %v3312
        %v3314 = vperm.slane %v3306, %v3313
        %v3315 = vrot.slane %v3310, 4
        %v3316 = vsel %vm346, 0, %v3315
        %v3317 = vrot.slane %v3314, 4
        %v3318 = vsel %vm346, 0, %v3317
        %v3321 = vpack.i.b16 %v3254, %v3226
        %v3322 = vshrl.u32 %v3226, 16
        %v3323 = vshrl.u32 %v3254, 16
        %v3324 = vpack.i.b16 %v3323, %v3322
        %v3327 = vpack.i.b16 %v3260, %v3232
        %v3328 = vshrl.u32 %v3232, 16
        %v3329 = vshrl.u32 %v3260, 16
        %v3330 = vpack.i.b16 %v3329, %v3328
        %v3333 = vpack.i.b16 %v3258, %v3230
        %v3334 = vshrl.u32 %v3230, 16
        %v3335 = vshrl.u32 %v3258, 16
        %v3336 = vpack.i.b16 %v3335, %v3334
        %v3339 = vpack.i.b16 %v3262, %v3234
        %v3340 = vshrl.u32 %v3234, 16
        %v3341 = vshrl.u32 %v3262, 16
        %v3342 = vpack.i.b16 %v3341, %v3340
        %v3345 = vpack.i.b16 %v3310, %v3282
        %v3346 = vshrl.u32 %v3282, 16
        %v3347 = vshrl.u32 %v3310, 16
        %v3348 = vpack.i.b16 %v3347, %v3346
        %v3351 = vpack.i.b16 %v3316, %v3288
        %v3352 = vshrl.u32 %v3288, 16
        %v3353 = vshrl.u32 %v3316, 16
        %v3354 = vpack.i.b16 %v3353, %v3352
        %v3357 = vpack.i.b16 %v3314, %v3286
        %v3358 = vshrl.u32 %v3286, 16
        %v3359 = vshrl.u32 %v3314, 16
        %v3360 = vpack.i.b16 %v3359, %v3358
        %v3363 = vpack.i.b16 %v3318, %v3290
        %v3364 = vshrl.u32 %v3290, 16
        %v3365 = vshrl.u32 %v3318, 16
        %v3366 = vpack.i.b16 %v3365, %v3364
        %v3367 = vunpack.c.l.b16 %v3324
        %v3368 = vpack.c.b16 %v3367, %v3367
        %3369 = vrot.lane.b32.xlu0 %v3368, 16
        %v3370 = vpop.permute.xlu0 %3369
        %v3371 = vunpack.c.l.b16 %v3327
        %v3372 = vpack.c.b16 %v3371, %v3371
        %3373 = vrot.lane.b32.xlu0 %v3372, 32
        %v3374 = vpop.permute.xlu0 %3373
        %v3375 = vunpack.c.l.b16 %v3330
        %v3376 = vpack.c.b16 %v3375, %v3375
        %3377 = vrot.lane.b32.xlu0 %v3376, 48
        %v3378 = vpop.permute.xlu0 %3377
        %v3379 = vunpack.c.l.b16 %v3333
        %v3380 = vpack.c.b16 %v3379, %v3379
        %3381 = vrot.lane.b32.xlu0 %v3380, 64
        %v3382 = vpop.permute.xlu0 %3381
        %v3383 = vunpack.c.l.b16 %v3336
        %v3384 = vpack.c.b16 %v3383, %v3383
        %3385 = vrot.lane.b32.xlu0 %v3384, 80
        %v3386 = vpop.permute.xlu0 %3385
        %v3387 = vunpack.c.l.b16 %v3339
        %v3388 = vpack.c.b16 %v3387, %v3387
        %3389 = vrot.lane.b32.xlu0 %v3388, 96
        %v3390 = vpop.permute.xlu0 %3389
        %v3391 = vunpack.c.l.b16 %v3342
        %v3392 = vpack.c.b16 %v3391, %v3391
        %3393 = vrot.lane.b32.xlu0 %v3392, 112
        %v3394 = vpop.permute.xlu0 %3393
        %v3395 = vunpack.c.l.b16 %v3348
        %v3396 = vpack.c.b16 %v3395, %v3395
        %3397 = vrot.lane.b32.xlu0 %v3396, 16
        %v3398 = vpop.permute.xlu0 %3397
        %v3399 = vunpack.c.l.b16 %v3351
        %v3400 = vpack.c.b16 %v3399, %v3399
        %3401 = vrot.lane.b32.xlu0 %v3400, 32
        %v3402 = vpop.permute.xlu0 %3401
        %v3403 = vunpack.c.l.b16 %v3354
        %v3404 = vpack.c.b16 %v3403, %v3403
        %3405 = vrot.lane.b32.xlu0 %v3404, 48
        %v3406 = vpop.permute.xlu0 %3405
        %v3407 = vunpack.c.l.b16 %v3357
        %v3408 = vpack.c.b16 %v3407, %v3407
        %3409 = vrot.lane.b32.xlu0 %v3408, 64
        %v3410 = vpop.permute.xlu0 %3409
        %v3411 = vunpack.c.l.b16 %v3360
        %v3412 = vpack.c.b16 %v3411, %v3411
        %3413 = vrot.lane.b32.xlu0 %v3412, 80
        %v3414 = vpop.permute.xlu0 %3413
        %v3415 = vunpack.c.l.b16 %v3363
        %v3416 = vpack.c.b16 %v3415, %v3415
        %3417 = vrot.lane.b32.xlu0 %v3416, 96
        %v3418 = vpop.permute.xlu0 %3417
        %v3419 = vunpack.c.l.b16 %v3366
        %v3420 = vpack.c.b16 %v3419, %v3419
        %3421 = vrot.lane.b32.xlu0 %v3420, 112
        %v3422 = vpop.permute.xlu0 %3421
        %v3425 = vsel %vm562, %v3321, %v3370
        %v3427 = vsel %vm566, %v3425, %v3374
        %v3429 = vsel %vm569, %v3427, %v3378
        %v3431 = vsel %vm572, %v3429, %v3382
        %v3433 = vsel %vm575, %v3431, %v3386
        %v3435 = vsel %vm578, %v3433, %v3390
        %v3437 = vsel %vm581, %v3435, %v3394
        %v3440 = vsel %vm562, %v3345, %v3398
        %v3442 = vsel %vm566, %v3440, %v3402
        %v3444 = vsel %vm569, %v3442, %v3406
        %v3446 = vsel %vm572, %v3444, %v3410
        %v3448 = vsel %vm575, %v3446, %v3414
        %v3450 = vsel %vm578, %v3448, %v3418
        %v3452 = vsel %vm581, %v3450, %v3422
        %v3455 = vunpack.c.l.b16 %v3437
        %v3456 = vunpack.c.l.b16 %v3452
        %v3457 = vpack.c.b16 %v3456, %v3455
        %3459 = vst [vmem:[#allocation2 + $0x38] sm:$0xff] %v3457
        %v3460 = vld [vmem:[%s297] sm:$0xf]
        %v3461 = vld [vmem:[%s297 + $0x4] sm:$0xf]
        %v3462 = vld [vmem:[%s297 + $0x8] sm:$0x1]
        %v3463 = vld [vmem:[%s297 + $0xc] sm:$0xf]
        %v3464 = vld [vmem:[%s297 + $0x10] sm:$0xf]
        %v3465 = vld [vmem:[%s297 + $0x14] sm:$0x1]
        %v3466 = vld [vmem:[%s297 + $0x18] sm:$0xf]
        %v3467 = vld [vmem:[%s297 + $0x1c] sm:$0xf]
        %v3468 = vld [vmem:[%s297 + $0x20] sm:$0x1]
        %v3469 = vld [vmem:[%s297 + $0x24] sm:$0xf]
        %v3470 = vld [vmem:[%s297 + $0x28] sm:$0xf]
        %v3471 = vld [vmem:[%s297 + $0x2c] sm:$0x1]
        %v3472 = vld [vmem:[%s297 + $0x30] sm:$0xf]
        %v3473 = vld [vmem:[%s297 + $0x34] sm:$0xf]
        %v3474 = vld [vmem:[%s297 + $0x38] sm:$0x1]
        %v3475 = vld [vmem:[%s297 + $0x3c] sm:$0xf]
        %v3476 = vld [vmem:[%s297 + $0x40] sm:$0xf]
        %v3477 = vld [vmem:[%s297 + $0x44] sm:$0x1]
        %v3478 = vld [vmem:[%s297 + $0x48] sm:$0xf]
        %v3479 = vld [vmem:[%s297 + $0x4c] sm:$0xf]
        %v3480 = vld [vmem:[%s297 + $0x50] sm:$0x1]
        %v3481 = vld [vmem:[%s297 + $0x54] sm:$0xf]
        %v3482 = vld [vmem:[%s297 + $0x58] sm:$0xf]
        %v3483 = vld [vmem:[%s297 + $0x5c] sm:$0x1]
        %v3485 = vshrl.u32 %v3460, 16
        %v3487 = vrot.slane %v3485, 4
        %v3488 = vshll.u32 %v3460, 16
        %v3490 = vrot.slane %v3488, 5
        %v3491 = vor.u32 %v3487, %v3490
        %v3492 = vrot.slane %v3491, 4
        %v3494 = vshll.u32 %v3461, 16
        %v3496 = vrot.slane %v3494, 5
        %v3497 = vsel %vm1964, %v3492, %v3496
        %v3498 = vshrl.u32 %v3461, 16
        %v3500 = vrot.slane %v3498, 4
        %v3501 = vor.u32 %v3500, %v3496
        %v3502 = vrot.slane %v3501, 4
        %v3504 = vshll.u32 %v3462, 16
        %v3506 = vrot.slane %v3504, 5
        %v3507 = vsel %vm1964, %v3502, %v3506
        %v3509 = vshrl.u32 %v3463, 16
        %v3511 = vrot.slane %v3509, 4
        %v3512 = vshll.u32 %v3463, 16
        %v3514 = vrot.slane %v3512, 5
        %v3515 = vor.u32 %v3511, %v3514
        %v3516 = vrot.slane %v3515, 4
        %v3518 = vshll.u32 %v3464, 16
        %v3520 = vrot.slane %v3518, 5
        %v3521 = vsel %vm1964, %v3516, %v3520
        %v3522 = vshrl.u32 %v3464, 16
        %v3524 = vrot.slane %v3522, 4
        %v3525 = vor.u32 %v3524, %v3520
        %v3526 = vrot.slane %v3525, 4
        %v3528 = vshll.u32 %v3465, 16
        %v3530 = vrot.slane %v3528, 5
        %v3531 = vsel %vm1964, %v3526, %v3530
        %v3533 = vshrl.u32 %v3466, 16
        %v3535 = vrot.slane %v3533, 4
        %v3536 = vshll.u32 %v3466, 16
        %v3538 = vrot.slane %v3536, 5
        %v3539 = vor.u32 %v3535, %v3538
        %v3540 = vrot.slane %v3539, 4
        %v3542 = vshll.u32 %v3467, 16
        %v3544 = vrot.slane %v3542, 5
        %v3545 = vsel %vm1964, %v3540, %v3544
        %v3546 = vshrl.u32 %v3467, 16
        %v3548 = vrot.slane %v3546, 4
        %v3549 = vor.u32 %v3548, %v3544
        %v3550 = vrot.slane %v3549, 4
        %v3552 = vshll.u32 %v3468, 16
        %v3554 = vrot.slane %v3552, 5
        %v3555 = vsel %vm1964, %v3550, %v3554
        %v3557 = vshrl.u32 %v3469, 16
        %v3559 = vrot.slane %v3557, 4
        %v3560 = vshll.u32 %v3469, 16
        %v3562 = vrot.slane %v3560, 5
        %v3563 = vor.u32 %v3559, %v3562
        %v3564 = vrot.slane %v3563, 4
        %v3566 = vshll.u32 %v3470, 16
        %v3568 = vrot.slane %v3566, 5
        %v3569 = vsel %vm1964, %v3564, %v3568
        %v3570 = vshrl.u32 %v3470, 16
        %v3572 = vrot.slane %v3570, 4
        %v3573 = vor.u32 %v3572, %v3568
        %v3574 = vrot.slane %v3573, 4
        %v3576 = vshll.u32 %v3471, 16
        %v3578 = vrot.slane %v3576, 5
        %v3579 = vsel %vm1964, %v3574, %v3578
        %v3581 = vshrl.u32 %v3472, 16
        %v3583 = vrot.slane %v3581, 4
        %v3584 = vshll.u32 %v3472, 16
        %v3586 = vrot.slane %v3584, 5
        %v3587 = vor.u32 %v3583, %v3586
        %v3588 = vrot.slane %v3587, 4
        %v3590 = vshll.u32 %v3473, 16
        %v3592 = vrot.slane %v3590, 5
        %v3593 = vsel %vm1964, %v3588, %v3592
        %v3594 = vshrl.u32 %v3473, 16
        %v3596 = vrot.slane %v3594, 4
        %v3597 = vor.u32 %v3596, %v3592
        %v3598 = vrot.slane %v3597, 4
        %v3600 = vshll.u32 %v3474, 16
        %v3602 = vrot.slane %v3600, 5
        %v3603 = vsel %vm1964, %v3598, %v3602
        %v3605 = vshrl.u32 %v3475, 16
        %v3607 = vrot.slane %v3605, 4
        %v3608 = vshll.u32 %v3475, 16
        %v3610 = vrot.slane %v3608, 5
        %v3611 = vor.u32 %v3607, %v3610
        %v3612 = vrot.slane %v3611, 4
        %v3614 = vshll.u32 %v3476, 16
        %v3616 = vrot.slane %v3614, 5
        %v3617 = vsel %vm1964, %v3612, %v3616
        %v3618 = vshrl.u32 %v3476, 16
        %v3620 = vrot.slane %v3618, 4
        %v3621 = vor.u32 %v3620, %v3616
        %v3622 = vrot.slane %v3621, 4
        %v3624 = vshll.u32 %v3477, 16
        %v3626 = vrot.slane %v3624, 5
        %v3627 = vsel %vm1964, %v3622, %v3626
        %v3629 = vshrl.u32 %v3478, 16
        %v3631 = vrot.slane %v3629, 4
        %v3632 = vshll.u32 %v3478, 16
        %v3634 = vrot.slane %v3632, 5
        %v3635 = vor.u32 %v3631, %v3634
        %v3636 = vrot.slane %v3635, 4
        %v3638 = vshll.u32 %v3479, 16
        %v3640 = vrot.slane %v3638, 5
        %v3641 = vsel %vm1964, %v3636, %v3640
        %v3642 = vshrl.u32 %v3479, 16
        %v3644 = vrot.slane %v3642, 4
        %v3645 = vor.u32 %v3644, %v3640
        %v3646 = vrot.slane %v3645, 4
        %v3648 = vshll.u32 %v3480, 16
        %v3650 = vrot.slane %v3648, 5
        %v3651 = vsel %vm1964, %v3646, %v3650
        %v3653 = vshrl.u32 %v3481, 16
        %v3655 = vrot.slane %v3653, 4
        %v3656 = vshll.u32 %v3481, 16
        %v3658 = vrot.slane %v3656, 5
        %v3659 = vor.u32 %v3655, %v3658
        %v3660 = vrot.slane %v3659, 4
        %v3662 = vshll.u32 %v3482, 16
        %v3664 = vrot.slane %v3662, 5
        %v3665 = vsel %vm1964, %v3660, %v3664
        %v3666 = vshrl.u32 %v3482, 16
        %v3668 = vrot.slane %v3666, 4
        %v3669 = vor.u32 %v3668, %v3664
        %v3670 = vrot.slane %v3669, 4
        %v3672 = vshll.u32 %v3483, 16
        %v3674 = vrot.slane %v3672, 5
        %v3675 = vsel %vm1964, %v3670, %v3674
        %3676 = vrot.lane.b32.xlu0 %v3497, 125
        %v3677 = vpop.permute.xlu0 %3676
        %3678 = vrot.lane.b32.xlu0 %v3507, 125
        %v3679 = vpop.permute.xlu0 %3678
        %3680 = vrot.lane.b32.xlu0 %v3521, 125
        %v3681 = vpop.permute.xlu0 %3680
        %3682 = vrot.lane.b32.xlu0 %v3531, 125
        %v3683 = vpop.permute.xlu0 %3682
        %3684 = vrot.lane.b32.xlu0 %v3545, 125
        %v3685 = vpop.permute.xlu0 %3684
        %3686 = vrot.lane.b32.xlu0 %v3555, 125
        %v3687 = vpop.permute.xlu0 %3686
        %3688 = vrot.lane.b32.xlu0 %v3569, 125
        %v3689 = vpop.permute.xlu0 %3688
        %3690 = vrot.lane.b32.xlu0 %v3579, 125
        %v3691 = vpop.permute.xlu0 %3690
        %3692 = vrot.lane.b32.xlu0 %v3593, 125
        %v3693 = vpop.permute.xlu0 %3692
        %3694 = vrot.lane.b32.xlu0 %v3603, 125
        %v3695 = vpop.permute.xlu0 %3694
        %3696 = vrot.lane.b32.xlu0 %v3617, 125
        %v3697 = vpop.permute.xlu0 %3696
        %3698 = vrot.lane.b32.xlu0 %v3627, 125
        %v3699 = vpop.permute.xlu0 %3698
        %3700 = vrot.lane.b32.xlu0 %v3641, 125
        %v3701 = vpop.permute.xlu0 %3700
        %3702 = vrot.lane.b32.xlu0 %v3651, 125
        %v3703 = vpop.permute.xlu0 %3702
        %3704 = vrot.lane.b32.xlu0 %v3665, 125
        %v3705 = vpop.permute.xlu0 %3704
        %3706 = vrot.lane.b32.xlu0 %v3675, 125
        %v3707 = vpop.permute.xlu0 %3706
        %v3724 = vrot.slane %v3693, 4
        %v3725 = vsel %vm346, %v3724, %v3677
        %v3727 = vunpack.c.l.s4 1983009808
        %v3728 = vunpack.c.0.s8 %v3727
        %v3729 = vperm.slane %v3725, %v3728
        %v3730 = vrot.slane %v3701, 4
        %v3731 = vsel %vm346, %v3730, %v3685
        %v3733 = vunpack.c.l.s4 1983009808
        %v3734 = vunpack.c.0.s8 %v3733
        %v3735 = vperm.slane %v3731, %v3734
        %v3736 = vrot.slane %v3735, 4
        %v3737 = vsel %vm346, %v3736, %v3729
        %v3738 = vrot.slane %v3729, 4
        %v3739 = vsel %vm346, %v3735, %v3738
        %v3741 = vunpack.c.l.s4 1934713408
        %v3742 = vunpack.c.0.s8 %v3741
        %v3743 = vperm.slane %v3737, %v3742
        %v3745 = vunpack.c.l.s4 1934713408
        %v3746 = vunpack.c.0.s8 %v3745
        %v3747 = vperm.slane %v3739, %v3746
        %v3748 = vrot.slane %v3743, 4
        %v3749 = vsel %vm346, 0, %v3748
        %v3750 = vrot.slane %v3747, 4
        %v3751 = vsel %vm346, 0, %v3750
        %v3752 = vrot.slane %v3697, 4
        %v3753 = vsel %vm346, %v3752, %v3681
        %v3755 = vunpack.c.l.s4 1983009808
        %v3756 = vunpack.c.0.s8 %v3755
        %v3757 = vperm.slane %v3753, %v3756
        %v3758 = vrot.slane %v3705, 4
        %v3759 = vsel %vm346, %v3758, %v3689
        %v3761 = vunpack.c.l.s4 1983009808
        %v3762 = vunpack.c.0.s8 %v3761
        %v3763 = vperm.slane %v3759, %v3762
        %v3764 = vrot.slane %v3763, 4
        %v3765 = vsel %vm346, %v3764, %v3757
        %v3766 = vrot.slane %v3757, 4
        %v3767 = vsel %vm346, %v3763, %v3766
        %v3769 = vunpack.c.l.s4 1934713408
        %v3770 = vunpack.c.0.s8 %v3769
        %v3771 = vperm.slane %v3765, %v3770
        %v3773 = vunpack.c.l.s4 1934713408
        %v3774 = vunpack.c.0.s8 %v3773
        %v3775 = vperm.slane %v3767, %v3774
        %v3776 = vrot.slane %v3771, 4
        %v3777 = vsel %vm346, 0, %v3776
        %v3778 = vrot.slane %v3775, 4
        %v3779 = vsel %vm346, 0, %v3778
        %v3780 = vrot.slane %v3695, 4
        %v3781 = vsel %vm346, %v3780, %v3679
        %v3783 = vunpack.c.l.s4 1983009808
        %v3784 = vunpack.c.0.s8 %v3783
        %v3785 = vperm.slane %v3781, %v3784
        %v3786 = vrot.slane %v3703, 4
        %v3787 = vsel %vm346, %v3786, %v3687
        %v3789 = vunpack.c.l.s4 1983009808
        %v3790 = vunpack.c.0.s8 %v3789
        %v3791 = vperm.slane %v3787, %v3790
        %v3792 = vrot.slane %v3791, 4
        %v3793 = vsel %vm346, %v3792, %v3785
        %v3794 = vrot.slane %v3785, 4
        %v3795 = vsel %vm346, %v3791, %v3794
        %v3797 = vunpack.c.l.s4 1934713408
        %v3798 = vunpack.c.0.s8 %v3797
        %v3799 = vperm.slane %v3793, %v3798
        %v3801 = vunpack.c.l.s4 1934713408
        %v3802 = vunpack.c.0.s8 %v3801
        %v3803 = vperm.slane %v3795, %v3802
        %v3804 = vrot.slane %v3799, 4
        %v3805 = vsel %vm346, 0, %v3804
        %v3806 = vrot.slane %v3803, 4
        %v3807 = vsel %vm346, 0, %v3806
        %v3808 = vrot.slane %v3699, 4
        %v3809 = vsel %vm346, %v3808, %v3683
        %v3811 = vunpack.c.l.s4 1983009808
        %v3812 = vunpack.c.0.s8 %v3811
        %v3813 = vperm.slane %v3809, %v3812
        %v3814 = vrot.slane %v3707, 4
        %v3815 = vsel %vm346, %v3814, %v3691
        %v3817 = vunpack.c.l.s4 1983009808
        %v3818 = vunpack.c.0.s8 %v3817
        %v3819 = vperm.slane %v3815, %v3818
        %v3820 = vrot.slane %v3819, 4
        %v3821 = vsel %vm346, %v3820, %v3813
        %v3822 = vrot.slane %v3813, 4
        %v3823 = vsel %vm346, %v3819, %v3822
        %v3825 = vunpack.c.l.s4 1934713408
        %v3826 = vunpack.c.0.s8 %v3825
        %v3827 = vperm.slane %v3821, %v3826
        %v3829 = vunpack.c.l.s4 1934713408
        %v3830 = vunpack.c.0.s8 %v3829
        %v3831 = vperm.slane %v3823, %v3830
        %v3832 = vrot.slane %v3827, 4
        %v3833 = vsel %vm346, 0, %v3832
        %v3834 = vrot.slane %v3831, 4
        %v3835 = vsel %vm346, 0, %v3834
        %v3838 = vpack.i.b16 %v3771, %v3743
        %v3839 = vshrl.u32 %v3743, 16
        %v3840 = vshrl.u32 %v3771, 16
        %v3841 = vpack.i.b16 %v3840, %v3839
        %v3844 = vpack.i.b16 %v3777, %v3749
        %v3845 = vshrl.u32 %v3749, 16
        %v3846 = vshrl.u32 %v3777, 16
        %v3847 = vpack.i.b16 %v3846, %v3845
        %v3850 = vpack.i.b16 %v3775, %v3747
        %v3851 = vshrl.u32 %v3747, 16
        %v3852 = vshrl.u32 %v3775, 16
        %v3853 = vpack.i.b16 %v3852, %v3851
        %v3856 = vpack.i.b16 %v3779, %v3751
        %v3857 = vshrl.u32 %v3751, 16
        %v3858 = vshrl.u32 %v3779, 16
        %v3859 = vpack.i.b16 %v3858, %v3857
        %v3862 = vpack.i.b16 %v3827, %v3799
        %v3863 = vshrl.u32 %v3799, 16
        %v3864 = vshrl.u32 %v3827, 16
        %v3865 = vpack.i.b16 %v3864, %v3863
        %v3868 = vpack.i.b16 %v3833, %v3805
        %v3869 = vshrl.u32 %v3805, 16
        %v3870 = vshrl.u32 %v3833, 16
        %v3871 = vpack.i.b16 %v3870, %v3869
        %v3874 = vpack.i.b16 %v3831, %v3803
        %v3875 = vshrl.u32 %v3803, 16
        %v3876 = vshrl.u32 %v3831, 16
        %v3877 = vpack.i.b16 %v3876, %v3875
        %v3880 = vpack.i.b16 %v3835, %v3807
        %v3881 = vshrl.u32 %v3807, 16
        %v3882 = vshrl.u32 %v3835, 16
        %v3883 = vpack.i.b16 %v3882, %v3881
        %v3884 = vunpack.c.l.b16 %v3841
        %v3885 = vpack.c.b16 %v3884, %v3884
        %3886 = vrot.lane.b32.xlu0 %v3885, 16
        %v3887 = vpop.permute.xlu0 %3886
        %v3888 = vunpack.c.l.b16 %v3844
        %v3889 = vpack.c.b16 %v3888, %v3888
        %3890 = vrot.lane.b32.xlu0 %v3889, 32
        %v3891 = vpop.permute.xlu0 %3890
        %v3892 = vunpack.c.l.b16 %v3847
        %v3893 = vpack.c.b16 %v3892, %v3892
        %3894 = vrot.lane.b32.xlu0 %v3893, 48
        %v3895 = vpop.permute.xlu0 %3894
        %v3896 = vunpack.c.l.b16 %v3850
        %v3897 = vpack.c.b16 %v3896, %v3896
        %3898 = vrot.lane.b32.xlu0 %v3897, 64
        %v3899 = vpop.permute.xlu0 %3898
        %v3900 = vunpack.c.l.b16 %v3853
        %v3901 = vpack.c.b16 %v3900, %v3900
        %3902 = vrot.lane.b32.xlu0 %v3901, 80
        %v3903 = vpop.permute.xlu0 %3902
        %v3904 = vunpack.c.l.b16 %v3856
        %v3905 = vpack.c.b16 %v3904, %v3904
        %3906 = vrot.lane.b32.xlu0 %v3905, 96
        %v3907 = vpop.permute.xlu0 %3906
        %v3908 = vunpack.c.l.b16 %v3859
        %v3909 = vpack.c.b16 %v3908, %v3908
        %3910 = vrot.lane.b32.xlu0 %v3909, 112
        %v3911 = vpop.permute.xlu0 %3910
        %v3912 = vunpack.c.l.b16 %v3865
        %v3913 = vpack.c.b16 %v3912, %v3912
        %3914 = vrot.lane.b32.xlu0 %v3913, 16
        %v3915 = vpop.permute.xlu0 %3914
        %v3916 = vunpack.c.l.b16 %v3868
        %v3917 = vpack.c.b16 %v3916, %v3916
        %3918 = vrot.lane.b32.xlu0 %v3917, 32
        %v3919 = vpop.permute.xlu0 %3918
        %v3920 = vunpack.c.l.b16 %v3871
        %v3921 = vpack.c.b16 %v3920, %v3920
        %3922 = vrot.lane.b32.xlu0 %v3921, 48
        %v3923 = vpop.permute.xlu0 %3922
        %v3924 = vunpack.c.l.b16 %v3874
        %v3925 = vpack.c.b16 %v3924, %v3924
        %3926 = vrot.lane.b32.xlu0 %v3925, 64
        %v3927 = vpop.permute.xlu0 %3926
        %v3928 = vunpack.c.l.b16 %v3877
        %v3929 = vpack.c.b16 %v3928, %v3928
        %3930 = vrot.lane.b32.xlu0 %v3929, 80
        %v3931 = vpop.permute.xlu0 %3930
        %v3932 = vunpack.c.l.b16 %v3880
        %v3933 = vpack.c.b16 %v3932, %v3932
        %3934 = vrot.lane.b32.xlu0 %v3933, 96
        %v3935 = vpop.permute.xlu0 %3934
        %v3936 = vunpack.c.l.b16 %v3883
        %v3937 = vpack.c.b16 %v3936, %v3936
        %3938 = vrot.lane.b32.xlu0 %v3937, 112
        %v3939 = vpop.permute.xlu0 %3938
        %v3942 = vsel %vm562, %v3838, %v3887
        %v3944 = vsel %vm566, %v3942, %v3891
        %v3946 = vsel %vm569, %v3944, %v3895
        %v3948 = vsel %vm572, %v3946, %v3899
        %v3950 = vsel %vm575, %v3948, %v3903
        %v3952 = vsel %vm578, %v3950, %v3907
        %v3954 = vsel %vm581, %v3952, %v3911
        %v3957 = vsel %vm562, %v3862, %v3915
        %v3959 = vsel %vm566, %v3957, %v3919
        %v3961 = vsel %vm569, %v3959, %v3923
        %v3963 = vsel %vm572, %v3961, %v3927
        %v3965 = vsel %vm575, %v3963, %v3931
        %v3967 = vsel %vm578, %v3965, %v3935
        %v3969 = vsel %vm581, %v3967, %v3939
        %v3972 = vunpack.c.l.b16 %v3954
        %v3973 = vunpack.c.l.b16 %v3969
        %v3974 = vpack.c.b16 %v3973, %v3972
        %3976 = vst [vmem:[#allocation2 + $0x40] sm:$0xff] %v3974
        %v3977 = vld [vmem:[%s297] sm:$0xf]
        %v3978 = vld [vmem:[%s297 + $0x4] sm:$0xf]
        %v3979 = vld [vmem:[%s297 + $0x8] sm:$0x1]
        %v3980 = vld [vmem:[%s297 + $0xc] sm:$0xf]
        %v3981 = vld [vmem:[%s297 + $0x10] sm:$0xf]
        %v3982 = vld [vmem:[%s297 + $0x14] sm:$0x1]
        %v3983 = vld [vmem:[%s297 + $0x18] sm:$0xf]
        %v3984 = vld [vmem:[%s297 + $0x1c] sm:$0xf]
        %v3985 = vld [vmem:[%s297 + $0x20] sm:$0x1]
        %v3986 = vld [vmem:[%s297 + $0x24] sm:$0xf]
        %v3987 = vld [vmem:[%s297 + $0x28] sm:$0xf]
        %v3988 = vld [vmem:[%s297 + $0x2c] sm:$0x1]
        %v3989 = vld [vmem:[%s297 + $0x30] sm:$0xf]
        %v3990 = vld [vmem:[%s297 + $0x34] sm:$0xf]
        %v3991 = vld [vmem:[%s297 + $0x38] sm:$0x1]
        %v3992 = vld [vmem:[%s297 + $0x3c] sm:$0xf]
        %v3993 = vld [vmem:[%s297 + $0x40] sm:$0xf]
        %v3994 = vld [vmem:[%s297 + $0x44] sm:$0x1]
        %v3995 = vld [vmem:[%s297 + $0x48] sm:$0xf]
        %v3996 = vld [vmem:[%s297 + $0x4c] sm:$0xf]
        %v3997 = vld [vmem:[%s297 + $0x50] sm:$0x1]
        %v3998 = vld [vmem:[%s297 + $0x54] sm:$0xf]
        %v3999 = vld [vmem:[%s297 + $0x58] sm:$0xf]
        %v4000 = vld [vmem:[%s297 + $0x5c] sm:$0x1]
        %v4002 = vshrl.u32 %v3977, 16
        %v4004 = vrot.slane %v4002, 4
        %v4005 = vshll.u32 %v3977, 16
        %v4007 = vrot.slane %v4005, 5
        %v4008 = vor.u32 %v4004, %v4007
        %v4009 = vrot.slane %v4008, 4
        %v4011 = vshll.u32 %v3978, 16
        %v4013 = vrot.slane %v4011, 5
        %v4014 = vsel %vm1964, %v4009, %v4013
        %v4015 = vshrl.u32 %v3978, 16
        %v4017 = vrot.slane %v4015, 4
        %v4018 = vor.u32 %v4017, %v4013
        %v4019 = vrot.slane %v4018, 4
        %v4021 = vshll.u32 %v3979, 16
        %v4023 = vrot.slane %v4021, 5
        %v4024 = vsel %vm1964, %v4019, %v4023
        %v4026 = vshrl.u32 %v3980, 16
        %v4028 = vrot.slane %v4026, 4
        %v4029 = vshll.u32 %v3980, 16
        %v4031 = vrot.slane %v4029, 5
        %v4032 = vor.u32 %v4028, %v4031
        %v4033 = vrot.slane %v4032, 4
        %v4035 = vshll.u32 %v3981, 16
        %v4037 = vrot.slane %v4035, 5
        %v4038 = vsel %vm1964, %v4033, %v4037
        %v4039 = vshrl.u32 %v3981, 16
        %v4041 = vrot.slane %v4039, 4
        %v4042 = vor.u32 %v4041, %v4037
        %v4043 = vrot.slane %v4042, 4
        %v4045 = vshll.u32 %v3982, 16
        %v4047 = vrot.slane %v4045, 5
        %v4048 = vsel %vm1964, %v4043, %v4047
        %v4050 = vshrl.u32 %v3983, 16
        %v4052 = vrot.slane %v4050, 4
        %v4053 = vshll.u32 %v3983, 16
        %v4055 = vrot.slane %v4053, 5
        %v4056 = vor.u32 %v4052, %v4055
        %v4057 = vrot.slane %v4056, 4
        %v4059 = vshll.u32 %v3984, 16
        %v4061 = vrot.slane %v4059, 5
        %v4062 = vsel %vm1964, %v4057, %v4061
        %v4063 = vshrl.u32 %v3984, 16
        %v4065 = vrot.slane %v4063, 4
        %v4066 = vor.u32 %v4065, %v4061
        %v4067 = vrot.slane %v4066, 4
        %v4069 = vshll.u32 %v3985, 16
        %v4071 = vrot.slane %v4069, 5
        %v4072 = vsel %vm1964, %v4067, %v4071
        %v4074 = vshrl.u32 %v3986, 16
        %v4076 = vrot.slane %v4074, 4
        %v4077 = vshll.u32 %v3986, 16
        %v4079 = vrot.slane %v4077, 5
        %v4080 = vor.u32 %v4076, %v4079
        %v4081 = vrot.slane %v4080, 4
        %v4083 = vshll.u32 %v3987, 16
        %v4085 = vrot.slane %v4083, 5
        %v4086 = vsel %vm1964, %v4081, %v4085
        %v4087 = vshrl.u32 %v3987, 16
        %v4089 = vrot.slane %v4087, 4
        %v4090 = vor.u32 %v4089, %v4085
        %v4091 = vrot.slane %v4090, 4
        %v4093 = vshll.u32 %v3988, 16
        %v4095 = vrot.slane %v4093, 5
        %v4096 = vsel %vm1964, %v4091, %v4095
        %v4098 = vshrl.u32 %v3989, 16
        %v4100 = vrot.slane %v4098, 4
        %v4101 = vshll.u32 %v3989, 16
        %v4103 = vrot.slane %v4101, 5
        %v4104 = vor.u32 %v4100, %v4103
        %v4105 = vrot.slane %v4104, 4
        %v4107 = vshll.u32 %v3990, 16
        %v4109 = vrot.slane %v4107, 5
        %v4110 = vsel %vm1964, %v4105, %v4109
        %v4111 = vshrl.u32 %v3990, 16
        %v4113 = vrot.slane %v4111, 4
        %v4114 = vor.u32 %v4113, %v4109
        %v4115 = vrot.slane %v4114, 4
        %v4117 = vshll.u32 %v3991, 16
        %v4119 = vrot.slane %v4117, 5
        %v4120 = vsel %vm1964, %v4115, %v4119
        %v4122 = vshrl.u32 %v3992, 16
        %v4124 = vrot.slane %v4122, 4
        %v4125 = vshll.u32 %v3992, 16
        %v4127 = vrot.slane %v4125, 5
        %v4128 = vor.u32 %v4124, %v4127
        %v4129 = vrot.slane %v4128, 4
        %v4131 = vshll.u32 %v3993, 16
        %v4133 = vrot.slane %v4131, 5
        %v4134 = vsel %vm1964, %v4129, %v4133
        %v4135 = vshrl.u32 %v3993, 16
        %v4137 = vrot.slane %v4135, 4
        %v4138 = vor.u32 %v4137, %v4133
        %v4139 = vrot.slane %v4138, 4
        %v4141 = vshll.u32 %v3994, 16
        %v4143 = vrot.slane %v4141, 5
        %v4144 = vsel %vm1964, %v4139, %v4143
        %v4146 = vshrl.u32 %v3995, 16
        %v4148 = vrot.slane %v4146, 4
        %v4149 = vshll.u32 %v3995, 16
        %v4151 = vrot.slane %v4149, 5
        %v4152 = vor.u32 %v4148, %v4151
        %v4153 = vrot.slane %v4152, 4
        %v4155 = vshll.u32 %v3996, 16
        %v4157 = vrot.slane %v4155, 5
        %v4158 = vsel %vm1964, %v4153, %v4157
        %v4159 = vshrl.u32 %v3996, 16
        %v4161 = vrot.slane %v4159, 4
        %v4162 = vor.u32 %v4161, %v4157
        %v4163 = vrot.slane %v4162, 4
        %v4165 = vshll.u32 %v3997, 16
        %v4167 = vrot.slane %v4165, 5
        %v4168 = vsel %vm1964, %v4163, %v4167
        %v4170 = vshrl.u32 %v3998, 16
        %v4172 = vrot.slane %v4170, 4
        %v4173 = vshll.u32 %v3998, 16
        %v4175 = vrot.slane %v4173, 5
        %v4176 = vor.u32 %v4172, %v4175
        %v4177 = vrot.slane %v4176, 4
        %v4179 = vshll.u32 %v3999, 16
        %v4181 = vrot.slane %v4179, 5
        %v4182 = vsel %vm1964, %v4177, %v4181
        %v4183 = vshrl.u32 %v3999, 16
        %v4185 = vrot.slane %v4183, 4
        %v4186 = vor.u32 %v4185, %v4181
        %v4187 = vrot.slane %v4186, 4
        %v4189 = vshll.u32 %v4000, 16
        %v4191 = vrot.slane %v4189, 5
        %v4192 = vsel %vm1964, %v4187, %v4191
        %4193 = vrot.lane.b32.xlu0 %v4014, 124
        %v4194 = vpop.permute.xlu0 %4193
        %4195 = vrot.lane.b32.xlu0 %v4024, 124
        %v4196 = vpop.permute.xlu0 %4195
        %4197 = vrot.lane.b32.xlu0 %v4038, 124
        %v4198 = vpop.permute.xlu0 %4197
        %4199 = vrot.lane.b32.xlu0 %v4048, 124
        %v4200 = vpop.permute.xlu0 %4199
        %4201 = vrot.lane.b32.xlu0 %v4062, 124
        %v4202 = vpop.permute.xlu0 %4201
        %4203 = vrot.lane.b32.xlu0 %v4072, 124
        %v4204 = vpop.permute.xlu0 %4203
        %4205 = vrot.lane.b32.xlu0 %v4086, 124
        %v4206 = vpop.permute.xlu0 %4205
        %4207 = vrot.lane.b32.xlu0 %v4096, 124
        %v4208 = vpop.permute.xlu0 %4207
        %4209 = vrot.lane.b32.xlu0 %v4110, 124
        %v4210 = vpop.permute.xlu0 %4209
        %4211 = vrot.lane.b32.xlu0 %v4120, 124
        %v4212 = vpop.permute.xlu0 %4211
        %4213 = vrot.lane.b32.xlu0 %v4134, 124
        %v4214 = vpop.permute.xlu0 %4213
        %4215 = vrot.lane.b32.xlu0 %v4144, 124
        %v4216 = vpop.permute.xlu0 %4215
        %4217 = vrot.lane.b32.xlu0 %v4158, 124
        %v4218 = vpop.permute.xlu0 %4217
        %4219 = vrot.lane.b32.xlu0 %v4168, 124
        %v4220 = vpop.permute.xlu0 %4219
        %4221 = vrot.lane.b32.xlu0 %v4182, 124
        %v4222 = vpop.permute.xlu0 %4221
        %4223 = vrot.lane.b32.xlu0 %v4192, 124
        %v4224 = vpop.permute.xlu0 %4223
        %v4241 = vrot.slane %v4210, 4
        %v4242 = vsel %vm346, %v4241, %v4194
        %v4244 = vunpack.c.l.s4 1983009808
        %v4245 = vunpack.c.0.s8 %v4244
        %v4246 = vperm.slane %v4242, %v4245
        %v4247 = vrot.slane %v4218, 4
        %v4248 = vsel %vm346, %v4247, %v4202
        %v4250 = vunpack.c.l.s4 1983009808
        %v4251 = vunpack.c.0.s8 %v4250
        %v4252 = vperm.slane %v4248, %v4251
        %v4253 = vrot.slane %v4252, 4
        %v4254 = vsel %vm346, %v4253, %v4246
        %v4255 = vrot.slane %v4246, 4
        %v4256 = vsel %vm346, %v4252, %v4255
        %v4258 = vunpack.c.l.s4 1934713408
        %v4259 = vunpack.c.0.s8 %v4258
        %v4260 = vperm.slane %v4254, %v4259
        %v4262 = vunpack.c.l.s4 1934713408
        %v4263 = vunpack.c.0.s8 %v4262
        %v4264 = vperm.slane %v4256, %v4263
        %v4265 = vrot.slane %v4260, 4
        %v4266 = vsel %vm346, 0, %v4265
        %v4267 = vrot.slane %v4264, 4
        %v4268 = vsel %vm346, 0, %v4267
        %v4269 = vrot.slane %v4214, 4
        %v4270 = vsel %vm346, %v4269, %v4198
        %v4272 = vunpack.c.l.s4 1983009808
        %v4273 = vunpack.c.0.s8 %v4272
        %v4274 = vperm.slane %v4270, %v4273
        %v4275 = vrot.slane %v4222, 4
        %v4276 = vsel %vm346, %v4275, %v4206
        %v4278 = vunpack.c.l.s4 1983009808
        %v4279 = vunpack.c.0.s8 %v4278
        %v4280 = vperm.slane %v4276, %v4279
        %v4281 = vrot.slane %v4280, 4
        %v4282 = vsel %vm346, %v4281, %v4274
        %v4283 = vrot.slane %v4274, 4
        %v4284 = vsel %vm346, %v4280, %v4283
        %v4286 = vunpack.c.l.s4 1934713408
        %v4287 = vunpack.c.0.s8 %v4286
        %v4288 = vperm.slane %v4282, %v4287
        %v4290 = vunpack.c.l.s4 1934713408
        %v4291 = vunpack.c.0.s8 %v4290
        %v4292 = vperm.slane %v4284, %v4291
        %v4293 = vrot.slane %v4288, 4
        %v4294 = vsel %vm346, 0, %v4293
        %v4295 = vrot.slane %v4292, 4
        %v4296 = vsel %vm346, 0, %v4295
        %v4297 = vrot.slane %v4212, 4
        %v4298 = vsel %vm346, %v4297, %v4196
        %v4300 = vunpack.c.l.s4 1983009808
        %v4301 = vunpack.c.0.s8 %v4300
        %v4302 = vperm.slane %v4298, %v4301
        %v4303 = vrot.slane %v4220, 4
        %v4304 = vsel %vm346, %v4303, %v4204
        %v4306 = vunpack.c.l.s4 1983009808
        %v4307 = vunpack.c.0.s8 %v4306
        %v4308 = vperm.slane %v4304, %v4307
        %v4309 = vrot.slane %v4308, 4
        %v4310 = vsel %vm346, %v4309, %v4302
        %v4311 = vrot.slane %v4302, 4
        %v4312 = vsel %vm346, %v4308, %v4311
        %v4314 = vunpack.c.l.s4 1934713408
        %v4315 = vunpack.c.0.s8 %v4314
        %v4316 = vperm.slane %v4310, %v4315
        %v4318 = vunpack.c.l.s4 1934713408
        %v4319 = vunpack.c.0.s8 %v4318
        %v4320 = vperm.slane %v4312, %v4319
        %v4321 = vrot.slane %v4316, 4
        %v4322 = vsel %vm346, 0, %v4321
        %v4323 = vrot.slane %v4320, 4
        %v4324 = vsel %vm346, 0, %v4323
        %v4325 = vrot.slane %v4216, 4
        %v4326 = vsel %vm346, %v4325, %v4200
        %v4328 = vunpack.c.l.s4 1983009808
        %v4329 = vunpack.c.0.s8 %v4328
        %v4330 = vperm.slane %v4326, %v4329
        %v4331 = vrot.slane %v4224, 4
        %v4332 = vsel %vm346, %v4331, %v4208
        %v4334 = vunpack.c.l.s4 1983009808
        %v4335 = vunpack.c.0.s8 %v4334
        %v4336 = vperm.slane %v4332, %v4335
        %v4337 = vrot.slane %v4336, 4
        %v4338 = vsel %vm346, %v4337, %v4330
        %v4339 = vrot.slane %v4330, 4
        %v4340 = vsel %vm346, %v4336, %v4339
        %v4342 = vunpack.c.l.s4 1934713408
        %v4343 = vunpack.c.0.s8 %v4342
        %v4344 = vperm.slane %v4338, %v4343
        %v4346 = vunpack.c.l.s4 1934713408
        %v4347 = vunpack.c.0.s8 %v4346
        %v4348 = vperm.slane %v4340, %v4347
        %v4349 = vrot.slane %v4344, 4
        %v4350 = vsel %vm346, 0, %v4349
        %v4351 = vrot.slane %v4348, 4
        %v4352 = vsel %vm346, 0, %v4351
        %v4355 = vpack.i.b16 %v4288, %v4260
        %v4356 = vshrl.u32 %v4260, 16
        %v4357 = vshrl.u32 %v4288, 16
        %v4358 = vpack.i.b16 %v4357, %v4356
        %v4361 = vpack.i.b16 %v4294, %v4266
        %v4362 = vshrl.u32 %v4266, 16
        %v4363 = vshrl.u32 %v4294, 16
        %v4364 = vpack.i.b16 %v4363, %v4362
        %v4367 = vpack.i.b16 %v4292, %v4264
        %v4368 = vshrl.u32 %v4264, 16
        %v4369 = vshrl.u32 %v4292, 16
        %v4370 = vpack.i.b16 %v4369, %v4368
        %v4373 = vpack.i.b16 %v4296, %v4268
        %v4374 = vshrl.u32 %v4268, 16
        %v4375 = vshrl.u32 %v4296, 16
        %v4376 = vpack.i.b16 %v4375, %v4374
        %v4379 = vpack.i.b16 %v4344, %v4316
        %v4380 = vshrl.u32 %v4316, 16
        %v4381 = vshrl.u32 %v4344, 16
        %v4382 = vpack.i.b16 %v4381, %v4380
        %v4385 = vpack.i.b16 %v4350, %v4322
        %v4386 = vshrl.u32 %v4322, 16
        %v4387 = vshrl.u32 %v4350, 16
        %v4388 = vpack.i.b16 %v4387, %v4386
        %v4391 = vpack.i.b16 %v4348, %v4320
        %v4392 = vshrl.u32 %v4320, 16
        %v4393 = vshrl.u32 %v4348, 16
        %v4394 = vpack.i.b16 %v4393, %v4392
        %v4397 = vpack.i.b16 %v4352, %v4324
        %v4398 = vshrl.u32 %v4324, 16
        %v4399 = vshrl.u32 %v4352, 16
        %v4400 = vpack.i.b16 %v4399, %v4398
        %v4401 = vunpack.c.l.b16 %v4358
        %v4402 = vpack.c.b16 %v4401, %v4401
        %4403 = vrot.lane.b32.xlu0 %v4402, 16
        %v4404 = vpop.permute.xlu0 %4403
        %v4405 = vunpack.c.l.b16 %v4361
        %v4406 = vpack.c.b16 %v4405, %v4405
        %4407 = vrot.lane.b32.xlu0 %v4406, 32
        %v4408 = vpop.permute.xlu0 %4407
        %v4409 = vunpack.c.l.b16 %v4364
        %v4410 = vpack.c.b16 %v4409, %v4409
        %4411 = vrot.lane.b32.xlu0 %v4410, 48
        %v4412 = vpop.permute.xlu0 %4411
        %v4413 = vunpack.c.l.b16 %v4367
        %v4414 = vpack.c.b16 %v4413, %v4413
        %4415 = vrot.lane.b32.xlu0 %v4414, 64
        %v4416 = vpop.permute.xlu0 %4415
        %v4417 = vunpack.c.l.b16 %v4370
        %v4418 = vpack.c.b16 %v4417, %v4417
        %4419 = vrot.lane.b32.xlu0 %v4418, 80
        %v4420 = vpop.permute.xlu0 %4419
        %v4421 = vunpack.c.l.b16 %v4373
        %v4422 = vpack.c.b16 %v4421, %v4421
        %4423 = vrot.lane.b32.xlu0 %v4422, 96
        %v4424 = vpop.permute.xlu0 %4423
        %v4425 = vunpack.c.l.b16 %v4376
        %v4426 = vpack.c.b16 %v4425, %v4425
        %4427 = vrot.lane.b32.xlu0 %v4426, 112
        %v4428 = vpop.permute.xlu0 %4427
        %v4429 = vunpack.c.l.b16 %v4382
        %v4430 = vpack.c.b16 %v4429, %v4429
        %4431 = vrot.lane.b32.xlu0 %v4430, 16
        %v4432 = vpop.permute.xlu0 %4431
        %v4433 = vunpack.c.l.b16 %v4385
        %v4434 = vpack.c.b16 %v4433, %v4433
        %4435 = vrot.lane.b32.xlu0 %v4434, 32
        %v4436 = vpop.permute.xlu0 %4435
        %v4437 = vunpack.c.l.b16 %v4388
        %v4438 = vpack.c.b16 %v4437, %v4437
        %4439 = vrot.lane.b32.xlu0 %v4438, 48
        %v4440 = vpop.permute.xlu0 %4439
        %v4441 = vunpack.c.l.b16 %v4391
        %v4442 = vpack.c.b16 %v4441, %v4441
        %4443 = vrot.lane.b32.xlu0 %v4442, 64
        %v4444 = vpop.permute.xlu0 %4443
        %v4445 = vunpack.c.l.b16 %v4394
        %v4446 = vpack.c.b16 %v4445, %v4445
        %4447 = vrot.lane.b32.xlu0 %v4446, 80
        %v4448 = vpop.permute.xlu0 %4447
        %v4449 = vunpack.c.l.b16 %v4397
        %v4450 = vpack.c.b16 %v4449, %v4449
        %4451 = vrot.lane.b32.xlu0 %v4450, 96
        %v4452 = vpop.permute.xlu0 %4451
        %v4453 = vunpack.c.l.b16 %v4400
        %v4454 = vpack.c.b16 %v4453, %v4453
        %4455 = vrot.lane.b32.xlu0 %v4454, 112
        %v4456 = vpop.permute.xlu0 %4455
        %v4459 = vsel %vm562, %v4355, %v4404
        %v4461 = vsel %vm566, %v4459, %v4408
        %v4463 = vsel %vm569, %v4461, %v4412
        %v4465 = vsel %vm572, %v4463, %v4416
        %v4467 = vsel %vm575, %v4465, %v4420
        %v4469 = vsel %vm578, %v4467, %v4424
        %v4471 = vsel %vm581, %v4469, %v4428
        %v4474 = vsel %vm562, %v4379, %v4432
        %v4476 = vsel %vm566, %v4474, %v4436
        %v4478 = vsel %vm569, %v4476, %v4440
        %v4480 = vsel %vm572, %v4478, %v4444
        %v4482 = vsel %vm575, %v4480, %v4448
        %v4484 = vsel %vm578, %v4482, %v4452
        %v4486 = vsel %vm581, %v4484, %v4456
        %v4489 = vunpack.c.l.b16 %v4471
        %v4490 = vunpack.c.l.b16 %v4486
        %v4491 = vpack.c.b16 %v4490, %v4489
        %4493 = vst [vmem:[#allocation2 + $0x48] sm:$0xff] %v4491
        %v4494 = vld [vmem:[%s297] sm:$0xe]
        %v4495 = vld [vmem:[%s297 + $0x4] sm:$0xf]
        %v4496 = vld [vmem:[%s297 + $0x8] sm:$0x1]
        %v4497 = vld [vmem:[%s297 + $0xc] sm:$0xe]
        %v4498 = vld [vmem:[%s297 + $0x10] sm:$0xf]
        %v4499 = vld [vmem:[%s297 + $0x14] sm:$0x1]
        %v4500 = vld [vmem:[%s297 + $0x18] sm:$0xe]
        %v4501 = vld [vmem:[%s297 + $0x1c] sm:$0xf]
        %v4502 = vld [vmem:[%s297 + $0x20] sm:$0x1]
        %v4503 = vld [vmem:[%s297 + $0x24] sm:$0xe]
        %v4504 = vld [vmem:[%s297 + $0x28] sm:$0xf]
        %v4505 = vld [vmem:[%s297 + $0x2c] sm:$0x1]
        %v4506 = vld [vmem:[%s297 + $0x30] sm:$0xe]
        %v4507 = vld [vmem:[%s297 + $0x34] sm:$0xf]
        %v4508 = vld [vmem:[%s297 + $0x38] sm:$0x1]
        %v4509 = vld [vmem:[%s297 + $0x3c] sm:$0xe]
        %v4510 = vld [vmem:[%s297 + $0x40] sm:$0xf]
        %v4511 = vld [vmem:[%s297 + $0x44] sm:$0x1]
        %v4512 = vld [vmem:[%s297 + $0x48] sm:$0xe]
        %v4513 = vld [vmem:[%s297 + $0x4c] sm:$0xf]
        %v4514 = vld [vmem:[%s297 + $0x50] sm:$0x1]
        %v4515 = vld [vmem:[%s297 + $0x54] sm:$0xe]
        %v4516 = vld [vmem:[%s297 + $0x58] sm:$0xf]
        %v4517 = vld [vmem:[%s297 + $0x5c] sm:$0x1]
        %vm4542 = vcmask 1042432
        %vm4543 = vcmask 1046532
        %vm4544 = vmor %vm4542, %vm4543
        %v4545 = vrot.slane %v4494, 5
        %v4546 = vrot.slane %v4545, 4
        %v4547 = vrot.slane %v4495, 5
        %v4548 = vsel %vm4544, %v4546, %v4547
        %v4549 = vrot.slane %v4547, 4
        %v4550 = vrot.slane %v4496, 5
        %v4551 = vsel %vm4544, %v4549, %v4550
        %v4552 = vrot.slane %v4497, 5
        %v4553 = vrot.slane %v4552, 4
        %v4554 = vrot.slane %v4498, 5
        %v4555 = vsel %vm4544, %v4553, %v4554
        %v4556 = vrot.slane %v4554, 4
        %v4557 = vrot.slane %v4499, 5
        %v4558 = vsel %vm4544, %v4556, %v4557
        %v4559 = vrot.slane %v4500, 5
        %v4560 = vrot.slane %v4559, 4
        %v4561 = vrot.slane %v4501, 5
        %v4562 = vsel %vm4544, %v4560, %v4561
        %v4563 = vrot.slane %v4561, 4
        %v4564 = vrot.slane %v4502, 5
        %v4565 = vsel %vm4544, %v4563, %v4564
        %v4566 = vrot.slane %v4503, 5
        %v4567 = vrot.slane %v4566, 4
        %v4568 = vrot.slane %v4504, 5
        %v4569 = vsel %vm4544, %v4567, %v4568
        %v4570 = vrot.slane %v4568, 4
        %v4571 = vrot.slane %v4505, 5
        %v4572 = vsel %vm4544, %v4570, %v4571
        %v4573 = vrot.slane %v4506, 5
        %v4574 = vrot.slane %v4573, 4
        %v4575 = vrot.slane %v4507, 5
        %v4576 = vsel %vm4544, %v4574, %v4575
        %v4577 = vrot.slane %v4575, 4
        %v4578 = vrot.slane %v4508, 5
        %v4579 = vsel %vm4544, %v4577, %v4578
        %v4580 = vrot.slane %v4509, 5
        %v4581 = vrot.slane %v4580, 4
        %v4582 = vrot.slane %v4510, 5
        %v4583 = vsel %vm4544, %v4581, %v4582
        %v4584 = vrot.slane %v4582, 4
        %v4585 = vrot.slane %v4511, 5
        %v4586 = vsel %vm4544, %v4584, %v4585
        %v4587 = vrot.slane %v4512, 5
        %v4588 = vrot.slane %v4587, 4
        %v4589 = vrot.slane %v4513, 5
        %v4590 = vsel %vm4544, %v4588, %v4589
        %v4591 = vrot.slane %v4589, 4
        %v4592 = vrot.slane %v4514, 5
        %v4593 = vsel %vm4544, %v4591, %v4592
        %v4594 = vrot.slane %v4515, 5
        %v4595 = vrot.slane %v4594, 4
        %v4596 = vrot.slane %v4516, 5
        %v4597 = vsel %vm4544, %v4595, %v4596
        %v4598 = vrot.slane %v4596, 4
        %v4599 = vrot.slane %v4517, 5
        %v4600 = vsel %vm4544, %v4598, %v4599
        %v4617 = vrot.slane %v4576, 4
        %v4618 = vsel %vm346, %v4617, %v4548
        %v4620 = vunpack.c.l.s4 1983009808
        %v4621 = vunpack.c.0.s8 %v4620
        %v4622 = vperm.slane %v4618, %v4621
        %v4623 = vrot.slane %v4590, 4
        %v4624 = vsel %vm346, %v4623, %v4562
        %v4626 = vunpack.c.l.s4 1983009808
        %v4627 = vunpack.c.0.s8 %v4626
        %v4628 = vperm.slane %v4624, %v4627
        %v4629 = vrot.slane %v4628, 4
        %v4630 = vsel %vm346, %v4629, %v4622
        %v4631 = vrot.slane %v4622, 4
        %v4632 = vsel %vm346, %v4628, %v4631
        %v4634 = vunpack.c.l.s4 1934713408
        %v4635 = vunpack.c.0.s8 %v4634
        %v4636 = vperm.slane %v4630, %v4635
        %v4638 = vunpack.c.l.s4 1934713408
        %v4639 = vunpack.c.0.s8 %v4638
        %v4640 = vperm.slane %v4632, %v4639
        %v4641 = vrot.slane %v4636, 4
        %v4642 = vsel %vm346, 0, %v4641
        %v4643 = vrot.slane %v4640, 4
        %v4644 = vsel %vm346, 0, %v4643
        %v4645 = vrot.slane %v4583, 4
        %v4646 = vsel %vm346, %v4645, %v4555
        %v4648 = vunpack.c.l.s4 1983009808
        %v4649 = vunpack.c.0.s8 %v4648
        %v4650 = vperm.slane %v4646, %v4649
        %v4651 = vrot.slane %v4597, 4
        %v4652 = vsel %vm346, %v4651, %v4569
        %v4654 = vunpack.c.l.s4 1983009808
        %v4655 = vunpack.c.0.s8 %v4654
        %v4656 = vperm.slane %v4652, %v4655
        %v4657 = vrot.slane %v4656, 4
        %v4658 = vsel %vm346, %v4657, %v4650
        %v4659 = vrot.slane %v4650, 4
        %v4660 = vsel %vm346, %v4656, %v4659
        %v4662 = vunpack.c.l.s4 1934713408
        %v4663 = vunpack.c.0.s8 %v4662
        %v4664 = vperm.slane %v4658, %v4663
        %v4666 = vunpack.c.l.s4 1934713408
        %v4667 = vunpack.c.0.s8 %v4666
        %v4668 = vperm.slane %v4660, %v4667
        %v4669 = vrot.slane %v4664, 4
        %v4670 = vsel %vm346, 0, %v4669
        %v4671 = vrot.slane %v4668, 4
        %v4672 = vsel %vm346, 0, %v4671
        %v4673 = vrot.slane %v4579, 4
        %v4674 = vsel %vm346, %v4673, %v4551
        %v4676 = vunpack.c.l.s4 1983009808
        %v4677 = vunpack.c.0.s8 %v4676
        %v4678 = vperm.slane %v4674, %v4677
        %v4679 = vrot.slane %v4593, 4
        %v4680 = vsel %vm346, %v4679, %v4565
        %v4682 = vunpack.c.l.s4 1983009808
        %v4683 = vunpack.c.0.s8 %v4682
        %v4684 = vperm.slane %v4680, %v4683
        %v4685 = vrot.slane %v4684, 4
        %v4686 = vsel %vm346, %v4685, %v4678
        %v4687 = vrot.slane %v4678, 4
        %v4688 = vsel %vm346, %v4684, %v4687
        %v4690 = vunpack.c.l.s4 1934713408
        %v4691 = vunpack.c.0.s8 %v4690
        %v4692 = vperm.slane %v4686, %v4691
        %v4694 = vunpack.c.l.s4 1934713408
        %v4695 = vunpack.c.0.s8 %v4694
        %v4696 = vperm.slane %v4688, %v4695
        %v4697 = vrot.slane %v4692, 4
        %v4698 = vsel %vm346, 0, %v4697
        %v4699 = vrot.slane %v4696, 4
        %v4700 = vsel %vm346, 0, %v4699
        %v4701 = vrot.slane %v4586, 4
        %v4702 = vsel %vm346, %v4701, %v4558
        %v4704 = vunpack.c.l.s4 1983009808
        %v4705 = vunpack.c.0.s8 %v4704
        %v4706 = vperm.slane %v4702, %v4705
        %v4707 = vrot.slane %v4600, 4
        %v4708 = vsel %vm346, %v4707, %v4572
        %v4710 = vunpack.c.l.s4 1983009808
        %v4711 = vunpack.c.0.s8 %v4710
        %v4712 = vperm.slane %v4708, %v4711
        %v4713 = vrot.slane %v4712, 4
        %v4714 = vsel %vm346, %v4713, %v4706
        %v4715 = vrot.slane %v4706, 4
        %v4716 = vsel %vm346, %v4712, %v4715
        %v4718 = vunpack.c.l.s4 1934713408
        %v4719 = vunpack.c.0.s8 %v4718
        %v4720 = vperm.slane %v4714, %v4719
        %v4722 = vunpack.c.l.s4 1934713408
        %v4723 = vunpack.c.0.s8 %v4722
        %v4724 = vperm.slane %v4716, %v4723
        %v4725 = vrot.slane %v4720, 4
        %v4726 = vsel %vm346, 0, %v4725
        %v4727 = vrot.slane %v4724, 4
        %v4728 = vsel %vm346, 0, %v4727
        %v4731 = vpack.i.b16 %v4664, %v4636
        %v4732 = vshrl.u32 %v4636, 16
        %v4733 = vshrl.u32 %v4664, 16
        %v4734 = vpack.i.b16 %v4733, %v4732
        %v4737 = vpack.i.b16 %v4670, %v4642
        %v4738 = vshrl.u32 %v4642, 16
        %v4739 = vshrl.u32 %v4670, 16
        %v4740 = vpack.i.b16 %v4739, %v4738
        %v4743 = vpack.i.b16 %v4668, %v4640
        %v4744 = vshrl.u32 %v4640, 16
        %v4745 = vshrl.u32 %v4668, 16
        %v4746 = vpack.i.b16 %v4745, %v4744
        %v4749 = vpack.i.b16 %v4672, %v4644
        %v4750 = vshrl.u32 %v4644, 16
        %v4751 = vshrl.u32 %v4672, 16
        %v4752 = vpack.i.b16 %v4751, %v4750
        %v4755 = vpack.i.b16 %v4720, %v4692
        %v4756 = vshrl.u32 %v4692, 16
        %v4757 = vshrl.u32 %v4720, 16
        %v4758 = vpack.i.b16 %v4757, %v4756
        %v4761 = vpack.i.b16 %v4726, %v4698
        %v4762 = vshrl.u32 %v4698, 16
        %v4763 = vshrl.u32 %v4726, 16
        %v4764 = vpack.i.b16 %v4763, %v4762
        %v4767 = vpack.i.b16 %v4724, %v4696
        %v4768 = vshrl.u32 %v4696, 16
        %v4769 = vshrl.u32 %v4724, 16
        %v4770 = vpack.i.b16 %v4769, %v4768
        %v4773 = vpack.i.b16 %v4728, %v4700
        %v4774 = vshrl.u32 %v4700, 16
        %v4775 = vshrl.u32 %v4728, 16
        %v4776 = vpack.i.b16 %v4775, %v4774
        %v4777 = vunpack.c.l.b16 %v4734
        %v4778 = vpack.c.b16 %v4777, %v4777
        %4779 = vrot.lane.b32.xlu0 %v4778, 16
        %v4780 = vpop.permute.xlu0 %4779
        %v4781 = vunpack.c.l.b16 %v4737
        %v4782 = vpack.c.b16 %v4781, %v4781
        %4783 = vrot.lane.b32.xlu0 %v4782, 32
        %v4784 = vpop.permute.xlu0 %4783
        %v4785 = vunpack.c.l.b16 %v4740
        %v4786 = vpack.c.b16 %v4785, %v4785
        %4787 = vrot.lane.b32.xlu0 %v4786, 48
        %v4788 = vpop.permute.xlu0 %4787
        %v4789 = vunpack.c.l.b16 %v4743
        %v4790 = vpack.c.b16 %v4789, %v4789
        %4791 = vrot.lane.b32.xlu0 %v4790, 64
        %v4792 = vpop.permute.xlu0 %4791
        %v4793 = vunpack.c.l.b16 %v4746
        %v4794 = vpack.c.b16 %v4793, %v4793
        %4795 = vrot.lane.b32.xlu0 %v4794, 80
        %v4796 = vpop.permute.xlu0 %4795
        %v4797 = vunpack.c.l.b16 %v4749
        %v4798 = vpack.c.b16 %v4797, %v4797
        %4799 = vrot.lane.b32.xlu0 %v4798, 96
        %v4800 = vpop.permute.xlu0 %4799
        %v4801 = vunpack.c.l.b16 %v4752
        %v4802 = vpack.c.b16 %v4801, %v4801
        %4803 = vrot.lane.b32.xlu0 %v4802, 112
        %v4804 = vpop.permute.xlu0 %4803
        %v4805 = vunpack.c.l.b16 %v4758
        %v4806 = vpack.c.b16 %v4805, %v4805
        %4807 = vrot.lane.b32.xlu0 %v4806, 16
        %v4808 = vpop.permute.xlu0 %4807
        %v4809 = vunpack.c.l.b16 %v4761
        %v4810 = vpack.c.b16 %v4809, %v4809
        %4811 = vrot.lane.b32.xlu0 %v4810, 32
        %v4812 = vpop.permute.xlu0 %4811
        %v4813 = vunpack.c.l.b16 %v4764
        %v4814 = vpack.c.b16 %v4813, %v4813
        %4815 = vrot.lane.b32.xlu0 %v4814, 48
        %v4816 = vpop.permute.xlu0 %4815
        %v4817 = vunpack.c.l.b16 %v4767
        %v4818 = vpack.c.b16 %v4817, %v4817
        %4819 = vrot.lane.b32.xlu0 %v4818, 64
        %v4820 = vpop.permute.xlu0 %4819
        %v4821 = vunpack.c.l.b16 %v4770
        %v4822 = vpack.c.b16 %v4821, %v4821
        %4823 = vrot.lane.b32.xlu0 %v4822, 80
        %v4824 = vpop.permute.xlu0 %4823
        %v4825 = vunpack.c.l.b16 %v4773
        %v4826 = vpack.c.b16 %v4825, %v4825
        %4827 = vrot.lane.b32.xlu0 %v4826, 96
        %v4828 = vpop.permute.xlu0 %4827
        %v4829 = vunpack.c.l.b16 %v4776
        %v4830 = vpack.c.b16 %v4829, %v4829
        %4831 = vrot.lane.b32.xlu0 %v4830, 112
        %v4832 = vpop.permute.xlu0 %4831
        %v4835 = vsel %vm562, %v4731, %v4780
        %v4837 = vsel %vm566, %v4835, %v4784
        %v4839 = vsel %vm569, %v4837, %v4788
        %v4841 = vsel %vm572, %v4839, %v4792
        %v4843 = vsel %vm575, %v4841, %v4796
        %v4845 = vsel %vm578, %v4843, %v4800
        %v4847 = vsel %vm581, %v4845, %v4804
        %v4850 = vsel %vm562, %v4755, %v4808
        %v4852 = vsel %vm566, %v4850, %v4812
        %v4854 = vsel %vm569, %v4852, %v4816
        %v4856 = vsel %vm572, %v4854, %v4820
        %v4858 = vsel %vm575, %v4856, %v4824
        %v4860 = vsel %vm578, %v4858, %v4828
        %v4862 = vsel %vm581, %v4860, %v4832
        %v4865 = vunpack.c.l.b16 %v4847
        %v4866 = vunpack.c.l.b16 %v4862
        %v4867 = vpack.c.b16 %v4866, %v4865
        %4869 = vst [vmem:[#allocation2 + $0x50] sm:$0xff] %v4867
        %v4870 = vld [vmem:[%s297] sm:$0xe]
        %v4871 = vld [vmem:[%s297 + $0x4] sm:$0xf]
        %v4872 = vld [vmem:[%s297 + $0x8] sm:$0x1]
        %v4873 = vld [vmem:[%s297 + $0xc] sm:$0xe]
        %v4874 = vld [vmem:[%s297 + $0x10] sm:$0xf]
        %v4875 = vld [vmem:[%s297 + $0x14] sm:$0x1]
        %v4876 = vld [vmem:[%s297 + $0x18] sm:$0xe]
        %v4877 = vld [vmem:[%s297 + $0x1c] sm:$0xf]
        %v4878 = vld [vmem:[%s297 + $0x20] sm:$0x1]
        %v4879 = vld [vmem:[%s297 + $0x24] sm:$0xe]
        %v4880 = vld [vmem:[%s297 + $0x28] sm:$0xf]
        %v4881 = vld [vmem:[%s297 + $0x2c] sm:$0x1]
        %v4882 = vld [vmem:[%s297 + $0x30] sm:$0xe]
        %v4883 = vld [vmem:[%s297 + $0x34] sm:$0xf]
        %v4884 = vld [vmem:[%s297 + $0x38] sm:$0x1]
        %v4885 = vld [vmem:[%s297 + $0x3c] sm:$0xe]
        %v4886 = vld [vmem:[%s297 + $0x40] sm:$0xf]
        %v4887 = vld [vmem:[%s297 + $0x44] sm:$0x1]
        %v4888 = vld [vmem:[%s297 + $0x48] sm:$0xe]
        %v4889 = vld [vmem:[%s297 + $0x4c] sm:$0xf]
        %v4890 = vld [vmem:[%s297 + $0x50] sm:$0x1]
        %v4891 = vld [vmem:[%s297 + $0x54] sm:$0xe]
        %v4892 = vld [vmem:[%s297 + $0x58] sm:$0xf]
        %v4893 = vld [vmem:[%s297 + $0x5c] sm:$0x1]
        %v4918 = vrot.slane %v4870, 5
        %v4919 = vrot.slane %v4918, 4
        %v4920 = vrot.slane %v4871, 5
        %v4921 = vsel %vm4544, %v4919, %v4920
        %v4922 = vrot.slane %v4920, 4
        %v4923 = vrot.slane %v4872, 5
        %v4924 = vsel %vm4544, %v4922, %v4923
        %v4925 = vrot.slane %v4873, 5
        %v4926 = vrot.slane %v4925, 4
        %v4927 = vrot.slane %v4874, 5
        %v4928 = vsel %vm4544, %v4926, %v4927
        %v4929 = vrot.slane %v4927, 4
        %v4930 = vrot.slane %v4875, 5
        %v4931 = vsel %vm4544, %v4929, %v4930
        %v4932 = vrot.slane %v4876, 5
        %v4933 = vrot.slane %v4932, 4
        %v4934 = vrot.slane %v4877, 5
        %v4935 = vsel %vm4544, %v4933, %v4934
        %v4936 = vrot.slane %v4934, 4
        %v4937 = vrot.slane %v4878, 5
        %v4938 = vsel %vm4544, %v4936, %v4937
        %v4939 = vrot.slane %v4879, 5
        %v4940 = vrot.slane %v4939, 4
        %v4941 = vrot.slane %v4880, 5
        %v4942 = vsel %vm4544, %v4940, %v4941
        %v4943 = vrot.slane %v4941, 4
        %v4944 = vrot.slane %v4881, 5
        %v4945 = vsel %vm4544, %v4943, %v4944
        %v4946 = vrot.slane %v4882, 5
        %v4947 = vrot.slane %v4946, 4
        %v4948 = vrot.slane %v4883, 5
        %v4949 = vsel %vm4544, %v4947, %v4948
        %v4950 = vrot.slane %v4948, 4
        %v4951 = vrot.slane %v4884, 5
        %v4952 = vsel %vm4544, %v4950, %v4951
        %v4953 = vrot.slane %v4885, 5
        %v4954 = vrot.slane %v4953, 4
        %v4955 = vrot.slane %v4886, 5
        %v4956 = vsel %vm4544, %v4954, %v4955
        %v4957 = vrot.slane %v4955, 4
        %v4958 = vrot.slane %v4887, 5
        %v4959 = vsel %vm4544, %v4957, %v4958
        %v4960 = vrot.slane %v4888, 5
        %v4961 = vrot.slane %v4960, 4
        %v4962 = vrot.slane %v4889, 5
        %v4963 = vsel %vm4544, %v4961, %v4962
        %v4964 = vrot.slane %v4962, 4
        %v4965 = vrot.slane %v4890, 5
        %v4966 = vsel %vm4544, %v4964, %v4965
        %v4967 = vrot.slane %v4891, 5
        %v4968 = vrot.slane %v4967, 4
        %v4969 = vrot.slane %v4892, 5
        %v4970 = vsel %vm4544, %v4968, %v4969
        %v4971 = vrot.slane %v4969, 4
        %v4972 = vrot.slane %v4893, 5
        %v4973 = vsel %vm4544, %v4971, %v4972
        %4974 = vrot.lane.b32.xlu0 %v4921, 127
        %v4975 = vpop.permute.xlu0 %4974
        %4976 = vrot.lane.b32.xlu0 %v4924, 127
        %v4977 = vpop.permute.xlu0 %4976
        %4978 = vrot.lane.b32.xlu0 %v4928, 127
        %v4979 = vpop.permute.xlu0 %4978
        %4980 = vrot.lane.b32.xlu0 %v4931, 127
        %v4981 = vpop.permute.xlu0 %4980
        %4982 = vrot.lane.b32.xlu0 %v4935, 127
        %v4983 = vpop.permute.xlu0 %4982
        %4984 = vrot.lane.b32.xlu0 %v4938, 127
        %v4985 = vpop.permute.xlu0 %4984
        %4986 = vrot.lane.b32.xlu0 %v4942, 127
        %v4987 = vpop.permute.xlu0 %4986
        %4988 = vrot.lane.b32.xlu0 %v4945, 127
        %v4989 = vpop.permute.xlu0 %4988
        %4990 = vrot.lane.b32.xlu0 %v4949, 127
        %v4991 = vpop.permute.xlu0 %4990
        %4992 = vrot.lane.b32.xlu0 %v4952, 127
        %v4993 = vpop.permute.xlu0 %4992
        %4994 = vrot.lane.b32.xlu0 %v4956, 127
        %v4995 = vpop.permute.xlu0 %4994
        %4996 = vrot.lane.b32.xlu0 %v4959, 127
        %v4997 = vpop.permute.xlu0 %4996
        %4998 = vrot.lane.b32.xlu0 %v4963, 127
        %v4999 = vpop.permute.xlu0 %4998
        %5000 = vrot.lane.b32.xlu0 %v4966, 127
        %v5001 = vpop.permute.xlu0 %5000
        %5002 = vrot.lane.b32.xlu0 %v4970, 127
        %v5003 = vpop.permute.xlu0 %5002
        %5004 = vrot.lane.b32.xlu0 %v4973, 127
        %v5005 = vpop.permute.xlu0 %5004
        %v5022 = vrot.slane %v4991, 4
        %v5023 = vsel %vm346, %v5022, %v4975
        %v5025 = vunpack.c.l.s4 1983009808
        %v5026 = vunpack.c.0.s8 %v5025
        %v5027 = vperm.slane %v5023, %v5026
        %v5028 = vrot.slane %v4999, 4
        %v5029 = vsel %vm346, %v5028, %v4983
        %v5031 = vunpack.c.l.s4 1983009808
        %v5032 = vunpack.c.0.s8 %v5031
        %v5033 = vperm.slane %v5029, %v5032
        %v5034 = vrot.slane %v5033, 4
        %v5035 = vsel %vm346, %v5034, %v5027
        %v5036 = vrot.slane %v5027, 4
        %v5037 = vsel %vm346, %v5033, %v5036
        %v5039 = vunpack.c.l.s4 1934713408
        %v5040 = vunpack.c.0.s8 %v5039
        %v5041 = vperm.slane %v5035, %v5040
        %v5043 = vunpack.c.l.s4 1934713408
        %v5044 = vunpack.c.0.s8 %v5043
        %v5045 = vperm.slane %v5037, %v5044
        %v5046 = vrot.slane %v5041, 4
        %v5047 = vsel %vm346, 0, %v5046
        %v5048 = vrot.slane %v5045, 4
        %v5049 = vsel %vm346, 0, %v5048
        %v5050 = vrot.slane %v4995, 4
        %v5051 = vsel %vm346, %v5050, %v4979
        %v5053 = vunpack.c.l.s4 1983009808
        %v5054 = vunpack.c.0.s8 %v5053
        %v5055 = vperm.slane %v5051, %v5054
        %v5056 = vrot.slane %v5003, 4
        %v5057 = vsel %vm346, %v5056, %v4987
        %v5059 = vunpack.c.l.s4 1983009808
        %v5060 = vunpack.c.0.s8 %v5059
        %v5061 = vperm.slane %v5057, %v5060
        %v5062 = vrot.slane %v5061, 4
        %v5063 = vsel %vm346, %v5062, %v5055
        %v5064 = vrot.slane %v5055, 4
        %v5065 = vsel %vm346, %v5061, %v5064
        %v5067 = vunpack.c.l.s4 1934713408
        %v5068 = vunpack.c.0.s8 %v5067
        %v5069 = vperm.slane %v5063, %v5068
        %v5071 = vunpack.c.l.s4 1934713408
        %v5072 = vunpack.c.0.s8 %v5071
        %v5073 = vperm.slane %v5065, %v5072
        %v5074 = vrot.slane %v5069, 4
        %v5075 = vsel %vm346, 0, %v5074
        %v5076 = vrot.slane %v5073, 4
        %v5077 = vsel %vm346, 0, %v5076
        %v5078 = vrot.slane %v4993, 4
        %v5079 = vsel %vm346, %v5078, %v4977
        %v5081 = vunpack.c.l.s4 1983009808
        %v5082 = vunpack.c.0.s8 %v5081
        %v5083 = vperm.slane %v5079, %v5082
        %v5084 = vrot.slane %v5001, 4
        %v5085 = vsel %vm346, %v5084, %v4985
        %v5087 = vunpack.c.l.s4 1983009808
        %v5088 = vunpack.c.0.s8 %v5087
        %v5089 = vperm.slane %v5085, %v5088
        %v5090 = vrot.slane %v5089, 4
        %v5091 = vsel %vm346, %v5090, %v5083
        %v5092 = vrot.slane %v5083, 4
        %v5093 = vsel %vm346, %v5089, %v5092
        %v5095 = vunpack.c.l.s4 1934713408
        %v5096 = vunpack.c.0.s8 %v5095
        %v5097 = vperm.slane %v5091, %v5096
        %v5099 = vunpack.c.l.s4 1934713408
        %v5100 = vunpack.c.0.s8 %v5099
        %v5101 = vperm.slane %v5093, %v5100
        %v5102 = vrot.slane %v5097, 4
        %v5103 = vsel %vm346, 0, %v5102
        %v5104 = vrot.slane %v5101, 4
        %v5105 = vsel %vm346, 0, %v5104
        %v5106 = vrot.slane %v4997, 4
        %v5107 = vsel %vm346, %v5106, %v4981
        %v5109 = vunpack.c.l.s4 1983009808
        %v5110 = vunpack.c.0.s8 %v5109
        %v5111 = vperm.slane %v5107, %v5110
        %v5112 = vrot.slane %v5005, 4
        %v5113 = vsel %vm346, %v5112, %v4989
        %v5115 = vunpack.c.l.s4 1983009808
        %v5116 = vunpack.c.0.s8 %v5115
        %v5117 = vperm.slane %v5113, %v5116
        %v5118 = vrot.slane %v5117, 4
        %v5119 = vsel %vm346, %v5118, %v5111
        %v5120 = vrot.slane %v5111, 4
        %v5121 = vsel %vm346, %v5117, %v5120
        %v5123 = vunpack.c.l.s4 1934713408
        %v5124 = vunpack.c.0.s8 %v5123
        %v5125 = vperm.slane %v5119, %v5124
        %v5127 = vunpack.c.l.s4 1934713408
        %v5128 = vunpack.c.0.s8 %v5127
        %v5129 = vperm.slane %v5121, %v5128
        %v5130 = vrot.slane %v5125, 4
        %v5131 = vsel %vm346, 0, %v5130
        %v5132 = vrot.slane %v5129, 4
        %v5133 = vsel %vm346, 0, %v5132
        %v5136 = vpack.i.b16 %v5069, %v5041
        %v5137 = vshrl.u32 %v5041, 16
        %v5138 = vshrl.u32 %v5069, 16
        %v5139 = vpack.i.b16 %v5138, %v5137
        %v5142 = vpack.i.b16 %v5075, %v5047
        %v5143 = vshrl.u32 %v5047, 16
        %v5144 = vshrl.u32 %v5075, 16
        %v5145 = vpack.i.b16 %v5144, %v5143
        %v5148 = vpack.i.b16 %v5073, %v5045
        %v5149 = vshrl.u32 %v5045, 16
        %v5150 = vshrl.u32 %v5073, 16
        %v5151 = vpack.i.b16 %v5150, %v5149
        %v5154 = vpack.i.b16 %v5077, %v5049
        %v5155 = vshrl.u32 %v5049, 16
        %v5156 = vshrl.u32 %v5077, 16
        %v5157 = vpack.i.b16 %v5156, %v5155
        %v5160 = vpack.i.b16 %v5125, %v5097
        %v5161 = vshrl.u32 %v5097, 16
        %v5162 = vshrl.u32 %v5125, 16
        %v5163 = vpack.i.b16 %v5162, %v5161
        %v5166 = vpack.i.b16 %v5131, %v5103
        %v5167 = vshrl.u32 %v5103, 16
        %v5168 = vshrl.u32 %v5131, 16
        %v5169 = vpack.i.b16 %v5168, %v5167
        %v5172 = vpack.i.b16 %v5129, %v5101
        %v5173 = vshrl.u32 %v5101, 16
        %v5174 = vshrl.u32 %v5129, 16
        %v5175 = vpack.i.b16 %v5174, %v5173
        %v5178 = vpack.i.b16 %v5133, %v5105
        %v5179 = vshrl.u32 %v5105, 16
        %v5180 = vshrl.u32 %v5133, 16
        %v5181 = vpack.i.b16 %v5180, %v5179
        %v5182 = vunpack.c.l.b16 %v5139
        %v5183 = vpack.c.b16 %v5182, %v5182
        %5184 = vrot.lane.b32.xlu0 %v5183, 16
        %v5185 = vpop.permute.xlu0 %5184
        %v5186 = vunpack.c.l.b16 %v5142
        %v5187 = vpack.c.b16 %v5186, %v5186
        %5188 = vrot.lane.b32.xlu0 %v5187, 32
        %v5189 = vpop.permute.xlu0 %5188
        %v5190 = vunpack.c.l.b16 %v5145
        %v5191 = vpack.c.b16 %v5190, %v5190
        %5192 = vrot.lane.b32.xlu0 %v5191, 48
        %v5193 = vpop.permute.xlu0 %5192
        %v5194 = vunpack.c.l.b16 %v5148
        %v5195 = vpack.c.b16 %v5194, %v5194
        %5196 = vrot.lane.b32.xlu0 %v5195, 64
        %v5197 = vpop.permute.xlu0 %5196
        %v5198 = vunpack.c.l.b16 %v5151
        %v5199 = vpack.c.b16 %v5198, %v5198
        %5200 = vrot.lane.b32.xlu0 %v5199, 80
        %v5201 = vpop.permute.xlu0 %5200
        %v5202 = vunpack.c.l.b16 %v5154
        %v5203 = vpack.c.b16 %v5202, %v5202
        %5204 = vrot.lane.b32.xlu0 %v5203, 96
        %v5205 = vpop.permute.xlu0 %5204
        %v5206 = vunpack.c.l.b16 %v5157
        %v5207 = vpack.c.b16 %v5206, %v5206
        %5208 = vrot.lane.b32.xlu0 %v5207, 112
        %v5209 = vpop.permute.xlu0 %5208
        %v5210 = vunpack.c.l.b16 %v5163
        %v5211 = vpack.c.b16 %v5210, %v5210
        %5212 = vrot.lane.b32.xlu0 %v5211, 16
        %v5213 = vpop.permute.xlu0 %5212
        %v5214 = vunpack.c.l.b16 %v5166
        %v5215 = vpack.c.b16 %v5214, %v5214
        %5216 = vrot.lane.b32.xlu0 %v5215, 32
        %v5217 = vpop.permute.xlu0 %5216
        %v5218 = vunpack.c.l.b16 %v5169
        %v5219 = vpack.c.b16 %v5218, %v5218
        %5220 = vrot.lane.b32.xlu0 %v5219, 48
        %v5221 = vpop.permute.xlu0 %5220
        %v5222 = vunpack.c.l.b16 %v5172
        %v5223 = vpack.c.b16 %v5222, %v5222
        %5224 = vrot.lane.b32.xlu0 %v5223, 64
        %v5225 = vpop.permute.xlu0 %5224
        %v5226 = vunpack.c.l.b16 %v5175
        %v5227 = vpack.c.b16 %v5226, %v5226
        %5228 = vrot.lane.b32.xlu0 %v5227, 80
        %v5229 = vpop.permute.xlu0 %5228
        %v5230 = vunpack.c.l.b16 %v5178
        %v5231 = vpack.c.b16 %v5230, %v5230
        %5232 = vrot.lane.b32.xlu0 %v5231, 96
        %v5233 = vpop.permute.xlu0 %5232
        %v5234 = vunpack.c.l.b16 %v5181
        %v5235 = vpack.c.b16 %v5234, %v5234
        %5236 = vrot.lane.b32.xlu0 %v5235, 112
        %v5237 = vpop.permute.xlu0 %5236
        %v5240 = vsel %vm562, %v5136, %v5185
        %v5242 = vsel %vm566, %v5240, %v5189
        %v5244 = vsel %vm569, %v5242, %v5193
        %v5246 = vsel %vm572, %v5244, %v5197
        %v5248 = vsel %vm575, %v5246, %v5201
        %v5250 = vsel %vm578, %v5248, %v5205
        %v5252 = vsel %vm581, %v5250, %v5209
        %v5255 = vsel %vm562, %v5160, %v5213
        %v5257 = vsel %vm566, %v5255, %v5217
        %v5259 = vsel %vm569, %v5257, %v5221
        %v5261 = vsel %vm572, %v5259, %v5225
        %v5263 = vsel %vm575, %v5261, %v5229
        %v5265 = vsel %vm578, %v5263, %v5233
        %v5267 = vsel %vm581, %v5265, %v5237
        %v5270 = vunpack.c.l.b16 %v5252
        %v5271 = vunpack.c.l.b16 %v5267
        %v5272 = vpack.c.b16 %v5271, %v5270
        %5274 = vst [vmem:[#allocation2 + $0x58] sm:$0xff] %v5272
        %v5275 = vld [vmem:[%s297] sm:$0xe]
        %v5276 = vld [vmem:[%s297 + $0x4] sm:$0xf]
        %v5277 = vld [vmem:[%s297 + $0x8] sm:$0x1]
        %v5278 = vld [vmem:[%s297 + $0xc] sm:$0xe]
        %v5279 = vld [vmem:[%s297 + $0x10] sm:$0xf]
        %v5280 = vld [vmem:[%s297 + $0x14] sm:$0x1]
        %v5281 = vld [vmem:[%s297 + $0x18] sm:$0xe]
        %v5282 = vld [vmem:[%s297 + $0x1c] sm:$0xf]
        %v5283 = vld [vmem:[%s297 + $0x20] sm:$0x1]
        %v5284 = vld [vmem:[%s297 + $0x24] sm:$0xe]
        %v5285 = vld [vmem:[%s297 + $0x28] sm:$0xf]
        %v5286 = vld [vmem:[%s297 + $0x2c] sm:$0x1]
        %v5287 = vld [vmem:[%s297 + $0x30] sm:$0xe]
        %v5288 = vld [vmem:[%s297 + $0x34] sm:$0xf]
        %v5289 = vld [vmem:[%s297 + $0x38] sm:$0x1]
        %v5290 = vld [vmem:[%s297 + $0x3c] sm:$0xe]
        %v5291 = vld [vmem:[%s297 + $0x40] sm:$0xf]
        %v5292 = vld [vmem:[%s297 + $0x44] sm:$0x1]
        %v5293 = vld [vmem:[%s297 + $0x48] sm:$0xe]
        %v5294 = vld [vmem:[%s297 + $0x4c] sm:$0xf]
        %v5295 = vld [vmem:[%s297 + $0x50] sm:$0x1]
        %v5296 = vld [vmem:[%s297 + $0x54] sm:$0xe]
        %v5297 = vld [vmem:[%s297 + $0x58] sm:$0xf]
        %v5298 = vld [vmem:[%s297 + $0x5c] sm:$0x1]
        %v5323 = vrot.slane %v5275, 5
        %v5324 = vrot.slane %v5323, 4
        %v5325 = vrot.slane %v5276, 5
        %v5326 = vsel %vm4544, %v5324, %v5325
        %v5327 = vrot.slane %v5325, 4
        %v5328 = vrot.slane %v5277, 5
        %v5329 = vsel %vm4544, %v5327, %v5328
        %v5330 = vrot.slane %v5278, 5
        %v5331 = vrot.slane %v5330, 4
        %v5332 = vrot.slane %v5279, 5
        %v5333 = vsel %vm4544, %v5331, %v5332
        %v5334 = vrot.slane %v5332, 4
        %v5335 = vrot.slane %v5280, 5
        %v5336 = vsel %vm4544, %v5334, %v5335
        %v5337 = vrot.slane %v5281, 5
        %v5338 = vrot.slane %v5337, 4
        %v5339 = vrot.slane %v5282, 5
        %v5340 = vsel %vm4544, %v5338, %v5339
        %v5341 = vrot.slane %v5339, 4
        %v5342 = vrot.slane %v5283, 5
        %v5343 = vsel %vm4544, %v5341, %v5342
        %v5344 = vrot.slane %v5284, 5
        %v5345 = vrot.slane %v5344, 4
        %v5346 = vrot.slane %v5285, 5
        %v5347 = vsel %vm4544, %v5345, %v5346
        %v5348 = vrot.slane %v5346, 4
        %v5349 = vrot.slane %v5286, 5
        %v5350 = vsel %vm4544, %v5348, %v5349
        %v5351 = vrot.slane %v5287, 5
        %v5352 = vrot.slane %v5351, 4
        %v5353 = vrot.slane %v5288, 5
        %v5354 = vsel %vm4544, %v5352, %v5353
        %v5355 = vrot.slane %v5353, 4
        %v5356 = vrot.slane %v5289, 5
        %v5357 = vsel %vm4544, %v5355, %v5356
        %v5358 = vrot.slane %v5290, 5
        %v5359 = vrot.slane %v5358, 4
        %v5360 = vrot.slane %v5291, 5
        %v5361 = vsel %vm4544, %v5359, %v5360
        %v5362 = vrot.slane %v5360, 4
        %v5363 = vrot.slane %v5292, 5
        %v5364 = vsel %vm4544, %v5362, %v5363
        %v5365 = vrot.slane %v5293, 5
        %v5366 = vrot.slane %v5365, 4
        %v5367 = vrot.slane %v5294, 5
        %v5368 = vsel %vm4544, %v5366, %v5367
        %v5369 = vrot.slane %v5367, 4
        %v5370 = vrot.slane %v5295, 5
        %v5371 = vsel %vm4544, %v5369, %v5370
        %v5372 = vrot.slane %v5296, 5
        %v5373 = vrot.slane %v5372, 4
        %v5374 = vrot.slane %v5297, 5
        %v5375 = vsel %vm4544, %v5373, %v5374
        %v5376 = vrot.slane %v5374, 4
        %v5377 = vrot.slane %v5298, 5
        %v5378 = vsel %vm4544, %v5376, %v5377
        %5379 = vrot.lane.b32.xlu0 %v5326, 126
        %v5380 = vpop.permute.xlu0 %5379
        %5381 = vrot.lane.b32.xlu0 %v5329, 126
        %v5382 = vpop.permute.xlu0 %5381
        %5383 = vrot.lane.b32.xlu0 %v5333, 126
        %v5384 = vpop.permute.xlu0 %5383
        %5385 = vrot.lane.b32.xlu0 %v5336, 126
        %v5386 = vpop.permute.xlu0 %5385
        %5387 = vrot.lane.b32.xlu0 %v5340, 126
        %v5388 = vpop.permute.xlu0 %5387
        %5389 = vrot.lane.b32.xlu0 %v5343, 126
        %v5390 = vpop.permute.xlu0 %5389
        %5391 = vrot.lane.b32.xlu0 %v5347, 126
        %v5392 = vpop.permute.xlu0 %5391
        %5393 = vrot.lane.b32.xlu0 %v5350, 126
        %v5394 = vpop.permute.xlu0 %5393
        %5395 = vrot.lane.b32.xlu0 %v5354, 126
        %v5396 = vpop.permute.xlu0 %5395
        %5397 = vrot.lane.b32.xlu0 %v5357, 126
        %v5398 = vpop.permute.xlu0 %5397
        %5399 = vrot.lane.b32.xlu0 %v5361, 126
        %v5400 = vpop.permute.xlu0 %5399
        %5401 = vrot.lane.b32.xlu0 %v5364, 126
        %v5402 = vpop.permute.xlu0 %5401
        %5403 = vrot.lane.b32.xlu0 %v5368, 126
        %v5404 = vpop.permute.xlu0 %5403
        %5405 = vrot.lane.b32.xlu0 %v5371, 126
        %v5406 = vpop.permute.xlu0 %5405
        %5407 = vrot.lane.b32.xlu0 %v5375, 126
        %v5408 = vpop.permute.xlu0 %5407
        %5409 = vrot.lane.b32.xlu0 %v5378, 126
        %v5410 = vpop.permute.xlu0 %5409
        %v5427 = vrot.slane %v5396, 4
        %v5428 = vsel %vm346, %v5427, %v5380
        %v5430 = vunpack.c.l.s4 1983009808
        %v5431 = vunpack.c.0.s8 %v5430
        %v5432 = vperm.slane %v5428, %v5431
        %v5433 = vrot.slane %v5404, 4
        %v5434 = vsel %vm346, %v5433, %v5388
        %v5436 = vunpack.c.l.s4 1983009808
        %v5437 = vunpack.c.0.s8 %v5436
        %v5438 = vperm.slane %v5434, %v5437
        %v5439 = vrot.slane %v5438, 4
        %v5440 = vsel %vm346, %v5439, %v5432
        %v5441 = vrot.slane %v5432, 4
        %v5442 = vsel %vm346, %v5438, %v5441
        %v5444 = vunpack.c.l.s4 1934713408
        %v5445 = vunpack.c.0.s8 %v5444
        %v5446 = vperm.slane %v5440, %v5445
        %v5448 = vunpack.c.l.s4 1934713408
        %v5449 = vunpack.c.0.s8 %v5448
        %v5450 = vperm.slane %v5442, %v5449
        %v5451 = vrot.slane %v5446, 4
        %v5452 = vsel %vm346, 0, %v5451
        %v5453 = vrot.slane %v5450, 4
        %v5454 = vsel %vm346, 0, %v5453
        %v5455 = vrot.slane %v5400, 4
        %v5456 = vsel %vm346, %v5455, %v5384
        %v5458 = vunpack.c.l.s4 1983009808
        %v5459 = vunpack.c.0.s8 %v5458
        %v5460 = vperm.slane %v5456, %v5459
        %v5461 = vrot.slane %v5408, 4
        %v5462 = vsel %vm346, %v5461, %v5392
        %v5464 = vunpack.c.l.s4 1983009808
        %v5465 = vunpack.c.0.s8 %v5464
        %v5466 = vperm.slane %v5462, %v5465
        %v5467 = vrot.slane %v5466, 4
        %v5468 = vsel %vm346, %v5467, %v5460
        %v5469 = vrot.slane %v5460, 4
        %v5470 = vsel %vm346, %v5466, %v5469
        %v5472 = vunpack.c.l.s4 1934713408
        %v5473 = vunpack.c.0.s8 %v5472
        %v5474 = vperm.slane %v5468, %v5473
        %v5476 = vunpack.c.l.s4 1934713408
        %v5477 = vunpack.c.0.s8 %v5476
        %v5478 = vperm.slane %v5470, %v5477
        %v5479 = vrot.slane %v5474, 4
        %v5480 = vsel %vm346, 0, %v5479
        %v5481 = vrot.slane %v5478, 4
        %v5482 = vsel %vm346, 0, %v5481
        %v5483 = vrot.slane %v5398, 4
        %v5484 = vsel %vm346, %v5483, %v5382
        %v5486 = vunpack.c.l.s4 1983009808
        %v5487 = vunpack.c.0.s8 %v5486
        %v5488 = vperm.slane %v5484, %v5487
        %v5489 = vrot.slane %v5406, 4
        %v5490 = vsel %vm346, %v5489, %v5390
        %v5492 = vunpack.c.l.s4 1983009808
        %v5493 = vunpack.c.0.s8 %v5492
        %v5494 = vperm.slane %v5490, %v5493
        %v5495 = vrot.slane %v5494, 4
        %v5496 = vsel %vm346, %v5495, %v5488
        %v5497 = vrot.slane %v5488, 4
        %v5498 = vsel %vm346, %v5494, %v5497
        %v5500 = vunpack.c.l.s4 1934713408
        %v5501 = vunpack.c.0.s8 %v5500
        %v5502 = vperm.slane %v5496, %v5501
        %v5504 = vunpack.c.l.s4 1934713408
        %v5505 = vunpack.c.0.s8 %v5504
        %v5506 = vperm.slane %v5498, %v5505
        %v5507 = vrot.slane %v5502, 4
        %v5508 = vsel %vm346, 0, %v5507
        %v5509 = vrot.slane %v5506, 4
        %v5510 = vsel %vm346, 0, %v5509
        %v5511 = vrot.slane %v5402, 4
        %v5512 = vsel %vm346, %v5511, %v5386
        %v5514 = vunpack.c.l.s4 1983009808
        %v5515 = vunpack.c.0.s8 %v5514
        %v5516 = vperm.slane %v5512, %v5515
        %v5517 = vrot.slane %v5410, 4
        %v5518 = vsel %vm346, %v5517, %v5394
        %v5520 = vunpack.c.l.s4 1983009808
        %v5521 = vunpack.c.0.s8 %v5520
        %v5522 = vperm.slane %v5518, %v5521
        %v5523 = vrot.slane %v5522, 4
        %v5524 = vsel %vm346, %v5523, %v5516
        %v5525 = vrot.slane %v5516, 4
        %v5526 = vsel %vm346, %v5522, %v5525
        %v5528 = vunpack.c.l.s4 1934713408
        %v5529 = vunpack.c.0.s8 %v5528
        %v5530 = vperm.slane %v5524, %v5529
        %v5532 = vunpack.c.l.s4 1934713408
        %v5533 = vunpack.c.0.s8 %v5532
        %v5534 = vperm.slane %v5526, %v5533
        %v5535 = vrot.slane %v5530, 4
        %v5536 = vsel %vm346, 0, %v5535
        %v5537 = vrot.slane %v5534, 4
        %v5538 = vsel %vm346, 0, %v5537
        %v5541 = vpack.i.b16 %v5474, %v5446
        %v5542 = vshrl.u32 %v5446, 16
        %v5543 = vshrl.u32 %v5474, 16
        %v5544 = vpack.i.b16 %v5543, %v5542
        %v5547 = vpack.i.b16 %v5480, %v5452
        %v5548 = vshrl.u32 %v5452, 16
        %v5549 = vshrl.u32 %v5480, 16
        %v5550 = vpack.i.b16 %v5549, %v5548
        %v5553 = vpack.i.b16 %v5478, %v5450
        %v5554 = vshrl.u32 %v5450, 16
        %v5555 = vshrl.u32 %v5478, 16
        %v5556 = vpack.i.b16 %v5555, %v5554
        %v5559 = vpack.i.b16 %v5482, %v5454
        %v5560 = vshrl.u32 %v5454, 16
        %v5561 = vshrl.u32 %v5482, 16
        %v5562 = vpack.i.b16 %v5561, %v5560
        %v5565 = vpack.i.b16 %v5530, %v5502
        %v5566 = vshrl.u32 %v5502, 16
        %v5567 = vshrl.u32 %v5530, 16
        %v5568 = vpack.i.b16 %v5567, %v5566
        %v5571 = vpack.i.b16 %v5536, %v5508
        %v5572 = vshrl.u32 %v5508, 16
        %v5573 = vshrl.u32 %v5536, 16
        %v5574 = vpack.i.b16 %v5573, %v5572
        %v5577 = vpack.i.b16 %v5534, %v5506
        %v5578 = vshrl.u32 %v5506, 16
        %v5579 = vshrl.u32 %v5534, 16
        %v5580 = vpack.i.b16 %v5579, %v5578
        %v5583 = vpack.i.b16 %v5538, %v5510
        %v5584 = vshrl.u32 %v5510, 16
        %v5585 = vshrl.u32 %v5538, 16
        %v5586 = vpack.i.b16 %v5585, %v5584
        %v5587 = vunpack.c.l.b16 %v5544
        %v5588 = vpack.c.b16 %v5587, %v5587
        %5589 = vrot.lane.b32.xlu0 %v5588, 16
        %v5590 = vpop.permute.xlu0 %5589
        %v5591 = vunpack.c.l.b16 %v5547
        %v5592 = vpack.c.b16 %v5591, %v5591
        %5593 = vrot.lane.b32.xlu0 %v5592, 32
        %v5594 = vpop.permute.xlu0 %5593
        %v5595 = vunpack.c.l.b16 %v5550
        %v5596 = vpack.c.b16 %v5595, %v5595
        %5597 = vrot.lane.b32.xlu0 %v5596, 48
        %v5598 = vpop.permute.xlu0 %5597
        %v5599 = vunpack.c.l.b16 %v5553
        %v5600 = vpack.c.b16 %v5599, %v5599
        %5601 = vrot.lane.b32.xlu0 %v5600, 64
        %v5602 = vpop.permute.xlu0 %5601
        %v5603 = vunpack.c.l.b16 %v5556
        %v5604 = vpack.c.b16 %v5603, %v5603
        %5605 = vrot.lane.b32.xlu0 %v5604, 80
        %v5606 = vpop.permute.xlu0 %5605
        %v5607 = vunpack.c.l.b16 %v5559
        %v5608 = vpack.c.b16 %v5607, %v5607
        %5609 = vrot.lane.b32.xlu0 %v5608, 96
        %v5610 = vpop.permute.xlu0 %5609
        %v5611 = vunpack.c.l.b16 %v5562
        %v5612 = vpack.c.b16 %v5611, %v5611
        %5613 = vrot.lane.b32.xlu0 %v5612, 112
        %v5614 = vpop.permute.xlu0 %5613
        %v5615 = vunpack.c.l.b16 %v5568
        %v5616 = vpack.c.b16 %v5615, %v5615
        %5617 = vrot.lane.b32.xlu0 %v5616, 16
        %v5618 = vpop.permute.xlu0 %5617
        %v5619 = vunpack.c.l.b16 %v5571
        %v5620 = vpack.c.b16 %v5619, %v5619
        %5621 = vrot.lane.b32.xlu0 %v5620, 32
        %v5622 = vpop.permute.xlu0 %5621
        %v5623 = vunpack.c.l.b16 %v5574
        %v5624 = vpack.c.b16 %v5623, %v5623
        %5625 = vrot.lane.b32.xlu0 %v5624, 48
        %v5626 = vpop.permute.xlu0 %5625
        %v5627 = vunpack.c.l.b16 %v5577
        %v5628 = vpack.c.b16 %v5627, %v5627
        %5629 = vrot.lane.b32.xlu0 %v5628, 64
        %v5630 = vpop.permute.xlu0 %5629
        %v5631 = vunpack.c.l.b16 %v5580
        %v5632 = vpack.c.b16 %v5631, %v5631
        %5633 = vrot.lane.b32.xlu0 %v5632, 80
        %v5634 = vpop.permute.xlu0 %5633
        %v5635 = vunpack.c.l.b16 %v5583
        %v5636 = vpack.c.b16 %v5635, %v5635
        %5637 = vrot.lane.b32.xlu0 %v5636, 96
        %v5638 = vpop.permute.xlu0 %5637
        %v5639 = vunpack.c.l.b16 %v5586
        %v5640 = vpack.c.b16 %v5639, %v5639
        %5641 = vrot.lane.b32.xlu0 %v5640, 112
        %v5642 = vpop.permute.xlu0 %5641
        %v5645 = vsel %vm562, %v5541, %v5590
        %v5647 = vsel %vm566, %v5645, %v5594
        %v5649 = vsel %vm569, %v5647, %v5598
        %v5651 = vsel %vm572, %v5649, %v5602
        %v5653 = vsel %vm575, %v5651, %v5606
        %v5655 = vsel %vm578, %v5653, %v5610
        %v5657 = vsel %vm581, %v5655, %v5614
        %v5660 = vsel %vm562, %v5565, %v5618
        %v5662 = vsel %vm566, %v5660, %v5622
        %v5664 = vsel %vm569, %v5662, %v5626
        %v5666 = vsel %vm572, %v5664, %v5630
        %v5668 = vsel %vm575, %v5666, %v5634
        %v5670 = vsel %vm578, %v5668, %v5638
        %v5672 = vsel %vm581, %v5670, %v5642
        %v5675 = vunpack.c.l.b16 %v5657
        %v5676 = vunpack.c.l.b16 %v5672
        %v5677 = vpack.c.b16 %v5676, %v5675
        %5679 = vst [vmem:[#allocation2 + $0x60] sm:$0xff] %v5677
        %v5680 = vld [vmem:[%s297] sm:$0xe]
        %v5681 = vld [vmem:[%s297 + $0x4] sm:$0xf]
        %v5682 = vld [vmem:[%s297 + $0x8] sm:$0x1]
        %v5683 = vld [vmem:[%s297 + $0xc] sm:$0xe]
        %v5684 = vld [vmem:[%s297 + $0x10] sm:$0xf]
        %v5685 = vld [vmem:[%s297 + $0x14] sm:$0x1]
        %v5686 = vld [vmem:[%s297 + $0x18] sm:$0xe]
        %v5687 = vld [vmem:[%s297 + $0x1c] sm:$0xf]
        %v5688 = vld [vmem:[%s297 + $0x20] sm:$0x1]
        %v5689 = vld [vmem:[%s297 + $0x24] sm:$0xe]
        %v5690 = vld [vmem:[%s297 + $0x28] sm:$0xf]
        %v5691 = vld [vmem:[%s297 + $0x2c] sm:$0x1]
        %v5692 = vld [vmem:[%s297 + $0x30] sm:$0xe]
        %v5693 = vld [vmem:[%s297 + $0x34] sm:$0xf]
        %v5694 = vld [vmem:[%s297 + $0x38] sm:$0x1]
        %v5695 = vld [vmem:[%s297 + $0x3c] sm:$0xe]
        %v5696 = vld [vmem:[%s297 + $0x40] sm:$0xf]
        %v5697 = vld [vmem:[%s297 + $0x44] sm:$0x1]
        %v5698 = vld [vmem:[%s297 + $0x48] sm:$0xe]
        %v5699 = vld [vmem:[%s297 + $0x4c] sm:$0xf]
        %v5700 = vld [vmem:[%s297 + $0x50] sm:$0x1]
        %v5701 = vld [vmem:[%s297 + $0x54] sm:$0xe]
        %v5702 = vld [vmem:[%s297 + $0x58] sm:$0xf]
        %v5703 = vld [vmem:[%s297 + $0x5c] sm:$0x1]
        %v5728 = vrot.slane %v5680, 5
        %v5729 = vrot.slane %v5728, 4
        %v5730 = vrot.slane %v5681, 5
        %v5731 = vsel %vm4544, %v5729, %v5730
        %v5732 = vrot.slane %v5730, 4
        %v5733 = vrot.slane %v5682, 5
        %v5734 = vsel %vm4544, %v5732, %v5733
        %v5735 = vrot.slane %v5683, 5
        %v5736 = vrot.slane %v5735, 4
        %v5737 = vrot.slane %v5684, 5
        %v5738 = vsel %vm4544, %v5736, %v5737
        %v5739 = vrot.slane %v5737, 4
        %v5740 = vrot.slane %v5685, 5
        %v5741 = vsel %vm4544, %v5739, %v5740
        %v5742 = vrot.slane %v5686, 5
        %v5743 = vrot.slane %v5742, 4
        %v5744 = vrot.slane %v5687, 5
        %v5745 = vsel %vm4544, %v5743, %v5744
        %v5746 = vrot.slane %v5744, 4
        %v5747 = vrot.slane %v5688, 5
        %v5748 = vsel %vm4544, %v5746, %v5747
        %v5749 = vrot.slane %v5689, 5
        %v5750 = vrot.slane %v5749, 4
        %v5751 = vrot.slane %v5690, 5
        %v5752 = vsel %vm4544, %v5750, %v5751
        %v5753 = vrot.slane %v5751, 4
        %v5754 = vrot.slane %v5691, 5
        %v5755 = vsel %vm4544, %v5753, %v5754
        %v5756 = vrot.slane %v5692, 5
        %v5757 = vrot.slane %v5756, 4
        %v5758 = vrot.slane %v5693, 5
        %v5759 = vsel %vm4544, %v5757, %v5758
        %v5760 = vrot.slane %v5758, 4
        %v5761 = vrot.slane %v5694, 5
        %v5762 = vsel %vm4544, %v5760, %v5761
        %v5763 = vrot.slane %v5695, 5
        %v5764 = vrot.slane %v5763, 4
        %v5765 = vrot.slane %v5696, 5
        %v5766 = vsel %vm4544, %v5764, %v5765
        %v5767 = vrot.slane %v5765, 4
        %v5768 = vrot.slane %v5697, 5
        %v5769 = vsel %vm4544, %v5767, %v5768
        %v5770 = vrot.slane %v5698, 5
        %v5771 = vrot.slane %v5770, 4
        %v5772 = vrot.slane %v5699, 5
        %v5773 = vsel %vm4544, %v5771, %v5772
        %v5774 = vrot.slane %v5772, 4
        %v5775 = vrot.slane %v5700, 5
        %v5776 = vsel %vm4544, %v5774, %v5775
        %v5777 = vrot.slane %v5701, 5
        %v5778 = vrot.slane %v5777, 4
        %v5779 = vrot.slane %v5702, 5
        %v5780 = vsel %vm4544, %v5778, %v5779
        %v5781 = vrot.slane %v5779, 4
        %v5782 = vrot.slane %v5703, 5
        %v5783 = vsel %vm4544, %v5781, %v5782
        %5784 = vrot.lane.b32.xlu0 %v5731, 125
        %v5785 = vpop.permute.xlu0 %5784
        %5786 = vrot.lane.b32.xlu0 %v5734, 125
        %v5787 = vpop.permute.xlu0 %5786
        %5788 = vrot.lane.b32.xlu0 %v5738, 125
        %v5789 = vpop.permute.xlu0 %5788
        %5790 = vrot.lane.b32.xlu0 %v5741, 125
        %v5791 = vpop.permute.xlu0 %5790
        %5792 = vrot.lane.b32.xlu0 %v5745, 125
        %v5793 = vpop.permute.xlu0 %5792
        %5794 = vrot.lane.b32.xlu0 %v5748, 125
        %v5795 = vpop.permute.xlu0 %5794
        %5796 = vrot.lane.b32.xlu0 %v5752, 125
        %v5797 = vpop.permute.xlu0 %5796
        %5798 = vrot.lane.b32.xlu0 %v5755, 125
        %v5799 = vpop.permute.xlu0 %5798
        %5800 = vrot.lane.b32.xlu0 %v5759, 125
        %v5801 = vpop.permute.xlu0 %5800
        %5802 = vrot.lane.b32.xlu0 %v5762, 125
        %v5803 = vpop.permute.xlu0 %5802
        %5804 = vrot.lane.b32.xlu0 %v5766, 125
        %v5805 = vpop.permute.xlu0 %5804
        %5806 = vrot.lane.b32.xlu0 %v5769, 125
        %v5807 = vpop.permute.xlu0 %5806
        %5808 = vrot.lane.b32.xlu0 %v5773, 125
        %v5809 = vpop.permute.xlu0 %5808
        %5810 = vrot.lane.b32.xlu0 %v5776, 125
        %v5811 = vpop.permute.xlu0 %5810
        %5812 = vrot.lane.b32.xlu0 %v5780, 125
        %v5813 = vpop.permute.xlu0 %5812
        %5814 = vrot.lane.b32.xlu0 %v5783, 125
        %v5815 = vpop.permute.xlu0 %5814
        %v5832 = vrot.slane %v5801, 4
        %v5833 = vsel %vm346, %v5832, %v5785
        %v5835 = vunpack.c.l.s4 1983009808
        %v5836 = vunpack.c.0.s8 %v5835
        %v5837 = vperm.slane %v5833, %v5836
        %v5838 = vrot.slane %v5809, 4
        %v5839 = vsel %vm346, %v5838, %v5793
        %v5841 = vunpack.c.l.s4 1983009808
        %v5842 = vunpack.c.0.s8 %v5841
        %v5843 = vperm.slane %v5839, %v5842
        %v5844 = vrot.slane %v5843, 4
        %v5845 = vsel %vm346, %v5844, %v5837
        %v5846 = vrot.slane %v5837, 4
        %v5847 = vsel %vm346, %v5843, %v5846
        %v5849 = vunpack.c.l.s4 1934713408
        %v5850 = vunpack.c.0.s8 %v5849
        %v5851 = vperm.slane %v5845, %v5850
        %v5853 = vunpack.c.l.s4 1934713408
        %v5854 = vunpack.c.0.s8 %v5853
        %v5855 = vperm.slane %v5847, %v5854
        %v5856 = vrot.slane %v5851, 4
        %v5857 = vsel %vm346, 0, %v5856
        %v5858 = vrot.slane %v5855, 4
        %v5859 = vsel %vm346, 0, %v5858
        %v5860 = vrot.slane %v5805, 4
        %v5861 = vsel %vm346, %v5860, %v5789
        %v5863 = vunpack.c.l.s4 1983009808
        %v5864 = vunpack.c.0.s8 %v5863
        %v5865 = vperm.slane %v5861, %v5864
        %v5866 = vrot.slane %v5813, 4
        %v5867 = vsel %vm346, %v5866, %v5797
        %v5869 = vunpack.c.l.s4 1983009808
        %v5870 = vunpack.c.0.s8 %v5869
        %v5871 = vperm.slane %v5867, %v5870
        %v5872 = vrot.slane %v5871, 4
        %v5873 = vsel %vm346, %v5872, %v5865
        %v5874 = vrot.slane %v5865, 4
        %v5875 = vsel %vm346, %v5871, %v5874
        %v5877 = vunpack.c.l.s4 1934713408
        %v5878 = vunpack.c.0.s8 %v5877
        %v5879 = vperm.slane %v5873, %v5878
        %v5881 = vunpack.c.l.s4 1934713408
        %v5882 = vunpack.c.0.s8 %v5881
        %v5883 = vperm.slane %v5875, %v5882
        %v5884 = vrot.slane %v5879, 4
        %v5885 = vsel %vm346, 0, %v5884
        %v5886 = vrot.slane %v5883, 4
        %v5887 = vsel %vm346, 0, %v5886
        %v5888 = vrot.slane %v5803, 4
        %v5889 = vsel %vm346, %v5888, %v5787
        %v5891 = vunpack.c.l.s4 1983009808
        %v5892 = vunpack.c.0.s8 %v5891
        %v5893 = vperm.slane %v5889, %v5892
        %v5894 = vrot.slane %v5811, 4
        %v5895 = vsel %vm346, %v5894, %v5795
        %v5897 = vunpack.c.l.s4 1983009808
        %v5898 = vunpack.c.0.s8 %v5897
        %v5899 = vperm.slane %v5895, %v5898
        %v5900 = vrot.slane %v5899, 4
        %v5901 = vsel %vm346, %v5900, %v5893
        %v5902 = vrot.slane %v5893, 4
        %v5903 = vsel %vm346, %v5899, %v5902
        %v5905 = vunpack.c.l.s4 1934713408
        %v5906 = vunpack.c.0.s8 %v5905
        %v5907 = vperm.slane %v5901, %v5906
        %v5909 = vunpack.c.l.s4 1934713408
        %v5910 = vunpack.c.0.s8 %v5909
        %v5911 = vperm.slane %v5903, %v5910
        %v5912 = vrot.slane %v5907, 4
        %v5913 = vsel %vm346, 0, %v5912
        %v5914 = vrot.slane %v5911, 4
        %v5915 = vsel %vm346, 0, %v5914
        %v5916 = vrot.slane %v5807, 4
        %v5917 = vsel %vm346, %v5916, %v5791
        %v5919 = vunpack.c.l.s4 1983009808
        %v5920 = vunpack.c.0.s8 %v5919
        %v5921 = vperm.slane %v5917, %v5920
        %v5922 = vrot.slane %v5815, 4
        %v5923 = vsel %vm346, %v5922, %v5799
        %v5925 = vunpack.c.l.s4 1983009808
        %v5926 = vunpack.c.0.s8 %v5925
        %v5927 = vperm.slane %v5923, %v5926
        %v5928 = vrot.slane %v5927, 4
        %v5929 = vsel %vm346, %v5928, %v5921
        %v5930 = vrot.slane %v5921, 4
        %v5931 = vsel %vm346, %v5927, %v5930
        %v5933 = vunpack.c.l.s4 1934713408
        %v5934 = vunpack.c.0.s8 %v5933
        %v5935 = vperm.slane %v5929, %v5934
        %v5937 = vunpack.c.l.s4 1934713408
        %v5938 = vunpack.c.0.s8 %v5937
        %v5939 = vperm.slane %v5931, %v5938
        %v5940 = vrot.slane %v5935, 4
        %v5941 = vsel %vm346, 0, %v5940
        %v5942 = vrot.slane %v5939, 4
        %v5943 = vsel %vm346, 0, %v5942
        %v5946 = vpack.i.b16 %v5879, %v5851
        %v5947 = vshrl.u32 %v5851, 16
        %v5948 = vshrl.u32 %v5879, 16
        %v5949 = vpack.i.b16 %v5948, %v5947
        %v5952 = vpack.i.b16 %v5885, %v5857
        %v5953 = vshrl.u32 %v5857, 16
        %v5954 = vshrl.u32 %v5885, 16
        %v5955 = vpack.i.b16 %v5954, %v5953
        %v5958 = vpack.i.b16 %v5883, %v5855
        %v5959 = vshrl.u32 %v5855, 16
        %v5960 = vshrl.u32 %v5883, 16
        %v5961 = vpack.i.b16 %v5960, %v5959
        %v5964 = vpack.i.b16 %v5887, %v5859
        %v5965 = vshrl.u32 %v5859, 16
        %v5966 = vshrl.u32 %v5887, 16
        %v5967 = vpack.i.b16 %v5966, %v5965
        %v5970 = vpack.i.b16 %v5935, %v5907
        %v5971 = vshrl.u32 %v5907, 16
        %v5972 = vshrl.u32 %v5935, 16
        %v5973 = vpack.i.b16 %v5972, %v5971
        %v5976 = vpack.i.b16 %v5941, %v5913
        %v5977 = vshrl.u32 %v5913, 16
        %v5978 = vshrl.u32 %v5941, 16
        %v5979 = vpack.i.b16 %v5978, %v5977
        %v5982 = vpack.i.b16 %v5939, %v5911
        %v5983 = vshrl.u32 %v5911, 16
        %v5984 = vshrl.u32 %v5939, 16
        %v5985 = vpack.i.b16 %v5984, %v5983
        %v5988 = vpack.i.b16 %v5943, %v5915
        %v5989 = vshrl.u32 %v5915, 16
        %v5990 = vshrl.u32 %v5943, 16
        %v5991 = vpack.i.b16 %v5990, %v5989
        %v5992 = vunpack.c.l.b16 %v5949
        %v5993 = vpack.c.b16 %v5992, %v5992
        %5994 = vrot.lane.b32.xlu0 %v5993, 16
        %v5995 = vpop.permute.xlu0 %5994
        %v5996 = vunpack.c.l.b16 %v5952
        %v5997 = vpack.c.b16 %v5996, %v5996
        %5998 = vrot.lane.b32.xlu0 %v5997, 32
        %v5999 = vpop.permute.xlu0 %5998
        %v6000 = vunpack.c.l.b16 %v5955
        %v6001 = vpack.c.b16 %v6000, %v6000
        %6002 = vrot.lane.b32.xlu0 %v6001, 48
        %v6003 = vpop.permute.xlu0 %6002
        %v6004 = vunpack.c.l.b16 %v5958
        %v6005 = vpack.c.b16 %v6004, %v6004
        %6006 = vrot.lane.b32.xlu0 %v6005, 64
        %v6007 = vpop.permute.xlu0 %6006
        %v6008 = vunpack.c.l.b16 %v5961
        %v6009 = vpack.c.b16 %v6008, %v6008
        %6010 = vrot.lane.b32.xlu0 %v6009, 80
        %v6011 = vpop.permute.xlu0 %6010
        %v6012 = vunpack.c.l.b16 %v5964
        %v6013 = vpack.c.b16 %v6012, %v6012
        %6014 = vrot.lane.b32.xlu0 %v6013, 96
        %v6015 = vpop.permute.xlu0 %6014
        %v6016 = vunpack.c.l.b16 %v5967
        %v6017 = vpack.c.b16 %v6016, %v6016
        %6018 = vrot.lane.b32.xlu0 %v6017, 112
        %v6019 = vpop.permute.xlu0 %6018
        %v6020 = vunpack.c.l.b16 %v5973
        %v6021 = vpack.c.b16 %v6020, %v6020
        %6022 = vrot.lane.b32.xlu0 %v6021, 16
        %v6023 = vpop.permute.xlu0 %6022
        %v6024 = vunpack.c.l.b16 %v5976
        %v6025 = vpack.c.b16 %v6024, %v6024
        %6026 = vrot.lane.b32.xlu0 %v6025, 32
        %v6027 = vpop.permute.xlu0 %6026
        %v6028 = vunpack.c.l.b16 %v5979
        %v6029 = vpack.c.b16 %v6028, %v6028
        %6030 = vrot.lane.b32.xlu0 %v6029, 48
        %v6031 = vpop.permute.xlu0 %6030
        %v6032 = vunpack.c.l.b16 %v5982
        %v6033 = vpack.c.b16 %v6032, %v6032
        %6034 = vrot.lane.b32.xlu0 %v6033, 64
        %v6035 = vpop.permute.xlu0 %6034
        %v6036 = vunpack.c.l.b16 %v5985
        %v6037 = vpack.c.b16 %v6036, %v6036
        %6038 = vrot.lane.b32.xlu0 %v6037, 80
        %v6039 = vpop.permute.xlu0 %6038
        %v6040 = vunpack.c.l.b16 %v5988
        %v6041 = vpack.c.b16 %v6040, %v6040
        %6042 = vrot.lane.b32.xlu0 %v6041, 96
        %v6043 = vpop.permute.xlu0 %6042
        %v6044 = vunpack.c.l.b16 %v5991
        %v6045 = vpack.c.b16 %v6044, %v6044
        %6046 = vrot.lane.b32.xlu0 %v6045, 112
        %v6047 = vpop.permute.xlu0 %6046
        %v6050 = vsel %vm562, %v5946, %v5995
        %v6052 = vsel %vm566, %v6050, %v5999
        %v6054 = vsel %vm569, %v6052, %v6003
        %v6056 = vsel %vm572, %v6054, %v6007
        %v6058 = vsel %vm575, %v6056, %v6011
        %v6060 = vsel %vm578, %v6058, %v6015
        %v6062 = vsel %vm581, %v6060, %v6019
        %v6065 = vsel %vm562, %v5970, %v6023
        %v6067 = vsel %vm566, %v6065, %v6027
        %v6069 = vsel %vm569, %v6067, %v6031
        %v6071 = vsel %vm572, %v6069, %v6035
        %v6073 = vsel %vm575, %v6071, %v6039
        %v6075 = vsel %vm578, %v6073, %v6043
        %v6077 = vsel %vm581, %v6075, %v6047
        %v6080 = vunpack.c.l.b16 %v6062
        %v6081 = vunpack.c.l.b16 %v6077
        %v6082 = vpack.c.b16 %v6081, %v6080
        %6084 = vst [vmem:[#allocation2 + $0x68] sm:$0xff] %v6082
        %v6085 = vld [vmem:[%s297] sm:$0xe]
        %v6086 = vld [vmem:[%s297 + $0x4] sm:$0xf]
        %v6087 = vld [vmem:[%s297 + $0x8] sm:$0x1]
        %v6088 = vld [vmem:[%s297 + $0xc] sm:$0xe]
        %v6089 = vld [vmem:[%s297 + $0x10] sm:$0xf]
        %v6090 = vld [vmem:[%s297 + $0x14] sm:$0x1]
        %v6091 = vld [vmem:[%s297 + $0x18] sm:$0xe]
        %v6092 = vld [vmem:[%s297 + $0x1c] sm:$0xf]
        %v6093 = vld [vmem:[%s297 + $0x20] sm:$0x1]
        %v6094 = vld [vmem:[%s297 + $0x24] sm:$0xe]
        %v6095 = vld [vmem:[%s297 + $0x28] sm:$0xf]
        %v6096 = vld [vmem:[%s297 + $0x2c] sm:$0x1]
        %v6097 = vld [vmem:[%s297 + $0x30] sm:$0xe]
        %v6098 = vld [vmem:[%s297 + $0x34] sm:$0xf]
        %v6099 = vld [vmem:[%s297 + $0x38] sm:$0x1]
        %v6100 = vld [vmem:[%s297 + $0x3c] sm:$0xe]
        %v6101 = vld [vmem:[%s297 + $0x40] sm:$0xf]
        %v6102 = vld [vmem:[%s297 + $0x44] sm:$0x1]
        %v6103 = vld [vmem:[%s297 + $0x48] sm:$0xe]
        %v6104 = vld [vmem:[%s297 + $0x4c] sm:$0xf]
        %v6105 = vld [vmem:[%s297 + $0x50] sm:$0x1]
        %v6106 = vld [vmem:[%s297 + $0x54] sm:$0xe]
        %v6107 = vld [vmem:[%s297 + $0x58] sm:$0xf]
        %v6108 = vld [vmem:[%s297 + $0x5c] sm:$0x1]
        %v6133 = vrot.slane %v6085, 5
        %v6134 = vrot.slane %v6133, 4
        %v6135 = vrot.slane %v6086, 5
        %v6136 = vsel %vm4544, %v6134, %v6135
        %v6137 = vrot.slane %v6135, 4
        %v6138 = vrot.slane %v6087, 5
        %v6139 = vsel %vm4544, %v6137, %v6138
        %v6140 = vrot.slane %v6088, 5
        %v6141 = vrot.slane %v6140, 4
        %v6142 = vrot.slane %v6089, 5
        %v6143 = vsel %vm4544, %v6141, %v6142
        %v6144 = vrot.slane %v6142, 4
        %v6145 = vrot.slane %v6090, 5
        %v6146 = vsel %vm4544, %v6144, %v6145
        %v6147 = vrot.slane %v6091, 5
        %v6148 = vrot.slane %v6147, 4
        %v6149 = vrot.slane %v6092, 5
        %v6150 = vsel %vm4544, %v6148, %v6149
        %v6151 = vrot.slane %v6149, 4
        %v6152 = vrot.slane %v6093, 5
        %v6153 = vsel %vm4544, %v6151, %v6152
        %v6154 = vrot.slane %v6094, 5
        %v6155 = vrot.slane %v6154, 4
        %v6156 = vrot.slane %v6095, 5
        %v6157 = vsel %vm4544, %v6155, %v6156
        %v6158 = vrot.slane %v6156, 4
        %v6159 = vrot.slane %v6096, 5
        %v6160 = vsel %vm4544, %v6158, %v6159
        %v6161 = vrot.slane %v6097, 5
        %v6162 = vrot.slane %v6161, 4
        %v6163 = vrot.slane %v6098, 5
        %v6164 = vsel %vm4544, %v6162, %v6163
        %v6165 = vrot.slane %v6163, 4
        %v6166 = vrot.slane %v6099, 5
        %v6167 = vsel %vm4544, %v6165, %v6166
        %v6168 = vrot.slane %v6100, 5
        %v6169 = vrot.slane %v6168, 4
        %v6170 = vrot.slane %v6101, 5
        %v6171 = vsel %vm4544, %v6169, %v6170
        %v6172 = vrot.slane %v6170, 4
        %v6173 = vrot.slane %v6102, 5
        %v6174 = vsel %vm4544, %v6172, %v6173
        %v6175 = vrot.slane %v6103, 5
        %v6176 = vrot.slane %v6175, 4
        %v6177 = vrot.slane %v6104, 5
        %v6178 = vsel %vm4544, %v6176, %v6177
        %v6179 = vrot.slane %v6177, 4
        %v6180 = vrot.slane %v6105, 5
        %v6181 = vsel %vm4544, %v6179, %v6180
        %v6182 = vrot.slane %v6106, 5
        %v6183 = vrot.slane %v6182, 4
        %v6184 = vrot.slane %v6107, 5
        %v6185 = vsel %vm4544, %v6183, %v6184
        %v6186 = vrot.slane %v6184, 4
        %v6187 = vrot.slane %v6108, 5
        %v6188 = vsel %vm4544, %v6186, %v6187
        %6189 = vrot.lane.b32.xlu0 %v6136, 124
        %v6190 = vpop.permute.xlu0 %6189
        %6191 = vrot.lane.b32.xlu0 %v6139, 124
        %v6192 = vpop.permute.xlu0 %6191
        %6193 = vrot.lane.b32.xlu0 %v6143, 124
        %v6194 = vpop.permute.xlu0 %6193
        %6195 = vrot.lane.b32.xlu0 %v6146, 124
        %v6196 = vpop.permute.xlu0 %6195
        %6197 = vrot.lane.b32.xlu0 %v6150, 124
        %v6198 = vpop.permute.xlu0 %6197
        %6199 = vrot.lane.b32.xlu0 %v6153, 124
        %v6200 = vpop.permute.xlu0 %6199
        %6201 = vrot.lane.b32.xlu0 %v6157, 124
        %v6202 = vpop.permute.xlu0 %6201
        %6203 = vrot.lane.b32.xlu0 %v6160, 124
        %v6204 = vpop.permute.xlu0 %6203
        %6205 = vrot.lane.b32.xlu0 %v6164, 124
        %v6206 = vpop.permute.xlu0 %6205
        %6207 = vrot.lane.b32.xlu0 %v6167, 124
        %v6208 = vpop.permute.xlu0 %6207
        %6209 = vrot.lane.b32.xlu0 %v6171, 124
        %v6210 = vpop.permute.xlu0 %6209
        %6211 = vrot.lane.b32.xlu0 %v6174, 124
        %v6212 = vpop.permute.xlu0 %6211
        %6213 = vrot.lane.b32.xlu0 %v6178, 124
        %v6214 = vpop.permute.xlu0 %6213
        %6215 = vrot.lane.b32.xlu0 %v6181, 124
        %v6216 = vpop.permute.xlu0 %6215
        %6217 = vrot.lane.b32.xlu0 %v6185, 124
        %v6218 = vpop.permute.xlu0 %6217
        %6219 = vrot.lane.b32.xlu0 %v6188, 124
        %v6220 = vpop.permute.xlu0 %6219
        %v6237 = vrot.slane %v6206, 4
        %v6238 = vsel %vm346, %v6237, %v6190
        %v6240 = vunpack.c.l.s4 1983009808
        %v6241 = vunpack.c.0.s8 %v6240
        %v6242 = vperm.slane %v6238, %v6241
        %v6243 = vrot.slane %v6214, 4
        %v6244 = vsel %vm346, %v6243, %v6198
        %v6246 = vunpack.c.l.s4 1983009808
        %v6247 = vunpack.c.0.s8 %v6246
        %v6248 = vperm.slane %v6244, %v6247
        %v6249 = vrot.slane %v6248, 4
        %v6250 = vsel %vm346, %v6249, %v6242
        %v6251 = vrot.slane %v6242, 4
        %v6252 = vsel %vm346, %v6248, %v6251
        %v6254 = vunpack.c.l.s4 1934713408
        %v6255 = vunpack.c.0.s8 %v6254
        %v6256 = vperm.slane %v6250, %v6255
        %v6258 = vunpack.c.l.s4 1934713408
        %v6259 = vunpack.c.0.s8 %v6258
        %v6260 = vperm.slane %v6252, %v6259
        %v6261 = vrot.slane %v6256, 4
        %v6262 = vsel %vm346, 0, %v6261
        %v6263 = vrot.slane %v6260, 4
        %v6264 = vsel %vm346, 0, %v6263
        %v6265 = vrot.slane %v6210, 4
        %v6266 = vsel %vm346, %v6265, %v6194
        %v6268 = vunpack.c.l.s4 1983009808
        %v6269 = vunpack.c.0.s8 %v6268
        %v6270 = vperm.slane %v6266, %v6269
        %v6271 = vrot.slane %v6218, 4
        %v6272 = vsel %vm346, %v6271, %v6202
        %v6274 = vunpack.c.l.s4 1983009808
        %v6275 = vunpack.c.0.s8 %v6274
        %v6276 = vperm.slane %v6272, %v6275
        %v6277 = vrot.slane %v6276, 4
        %v6278 = vsel %vm346, %v6277, %v6270
        %v6279 = vrot.slane %v6270, 4
        %v6280 = vsel %vm346, %v6276, %v6279
        %v6282 = vunpack.c.l.s4 1934713408
        %v6283 = vunpack.c.0.s8 %v6282
        %v6284 = vperm.slane %v6278, %v6283
        %v6286 = vunpack.c.l.s4 1934713408
        %v6287 = vunpack.c.0.s8 %v6286
        %v6288 = vperm.slane %v6280, %v6287
        %v6289 = vrot.slane %v6284, 4
        %v6290 = vsel %vm346, 0, %v6289
        %v6291 = vrot.slane %v6288, 4
        %v6292 = vsel %vm346, 0, %v6291
        %v6293 = vrot.slane %v6208, 4
        %v6294 = vsel %vm346, %v6293, %v6192
        %v6296 = vunpack.c.l.s4 1983009808
        %v6297 = vunpack.c.0.s8 %v6296
        %v6298 = vperm.slane %v6294, %v6297
        %v6299 = vrot.slane %v6216, 4
        %v6300 = vsel %vm346, %v6299, %v6200
        %v6302 = vunpack.c.l.s4 1983009808
        %v6303 = vunpack.c.0.s8 %v6302
        %v6304 = vperm.slane %v6300, %v6303
        %v6305 = vrot.slane %v6304, 4
        %v6306 = vsel %vm346, %v6305, %v6298
        %v6307 = vrot.slane %v6298, 4
        %v6308 = vsel %vm346, %v6304, %v6307
        %v6310 = vunpack.c.l.s4 1934713408
        %v6311 = vunpack.c.0.s8 %v6310
        %v6312 = vperm.slane %v6306, %v6311
        %v6314 = vunpack.c.l.s4 1934713408
        %v6315 = vunpack.c.0.s8 %v6314
        %v6316 = vperm.slane %v6308, %v6315
        %v6317 = vrot.slane %v6312, 4
        %v6318 = vsel %vm346, 0, %v6317
        %v6319 = vrot.slane %v6316, 4
        %v6320 = vsel %vm346, 0, %v6319
        %v6321 = vrot.slane %v6212, 4
        %v6322 = vsel %vm346, %v6321, %v6196
        %v6324 = vunpack.c.l.s4 1983009808
        %v6325 = vunpack.c.0.s8 %v6324
        %v6326 = vperm.slane %v6322, %v6325
        %v6327 = vrot.slane %v6220, 4
        %v6328 = vsel %vm346, %v6327, %v6204
        %v6330 = vunpack.c.l.s4 1983009808
        %v6331 = vunpack.c.0.s8 %v6330
        %v6332 = vperm.slane %v6328, %v6331
        %v6333 = vrot.slane %v6332, 4
        %v6334 = vsel %vm346, %v6333, %v6326
        %v6335 = vrot.slane %v6326, 4
        %v6336 = vsel %vm346, %v6332, %v6335
        %v6338 = vunpack.c.l.s4 1934713408
        %v6339 = vunpack.c.0.s8 %v6338
        %v6340 = vperm.slane %v6334, %v6339
        %v6342 = vunpack.c.l.s4 1934713408
        %v6343 = vunpack.c.0.s8 %v6342
        %v6344 = vperm.slane %v6336, %v6343
        %v6345 = vrot.slane %v6340, 4
        %v6346 = vsel %vm346, 0, %v6345
        %v6347 = vrot.slane %v6344, 4
        %v6348 = vsel %vm346, 0, %v6347
        %v6351 = vpack.i.b16 %v6284, %v6256
        %v6352 = vshrl.u32 %v6256, 16
        %v6353 = vshrl.u32 %v6284, 16
        %v6354 = vpack.i.b16 %v6353, %v6352
        %v6357 = vpack.i.b16 %v6290, %v6262
        %v6358 = vshrl.u32 %v6262, 16
        %v6359 = vshrl.u32 %v6290, 16
        %v6360 = vpack.i.b16 %v6359, %v6358
        %v6363 = vpack.i.b16 %v6288, %v6260
        %v6364 = vshrl.u32 %v6260, 16
        %v6365 = vshrl.u32 %v6288, 16
        %v6366 = vpack.i.b16 %v6365, %v6364
        %v6369 = vpack.i.b16 %v6292, %v6264
        %v6370 = vshrl.u32 %v6264, 16
        %v6371 = vshrl.u32 %v6292, 16
        %v6372 = vpack.i.b16 %v6371, %v6370
        %v6375 = vpack.i.b16 %v6340, %v6312
        %v6376 = vshrl.u32 %v6312, 16
        %v6377 = vshrl.u32 %v6340, 16
        %v6378 = vpack.i.b16 %v6377, %v6376
        %v6381 = vpack.i.b16 %v6346, %v6318
        %v6382 = vshrl.u32 %v6318, 16
        %v6383 = vshrl.u32 %v6346, 16
        %v6384 = vpack.i.b16 %v6383, %v6382
        %v6387 = vpack.i.b16 %v6344, %v6316
        %v6388 = vshrl.u32 %v6316, 16
        %v6389 = vshrl.u32 %v6344, 16
        %v6390 = vpack.i.b16 %v6389, %v6388
        %v6393 = vpack.i.b16 %v6348, %v6320
        %v6394 = vshrl.u32 %v6320, 16
        %v6395 = vshrl.u32 %v6348, 16
        %v6396 = vpack.i.b16 %v6395, %v6394
        %v6397 = vunpack.c.l.b16 %v6354
        %v6398 = vpack.c.b16 %v6397, %v6397
        %6399 = vrot.lane.b32.xlu0 %v6398, 16
        %v6400 = vpop.permute.xlu0 %6399
        %v6401 = vunpack.c.l.b16 %v6357
        %v6402 = vpack.c.b16 %v6401, %v6401
        %6403 = vrot.lane.b32.xlu0 %v6402, 32
        %v6404 = vpop.permute.xlu0 %6403
        %v6405 = vunpack.c.l.b16 %v6360
        %v6406 = vpack.c.b16 %v6405, %v6405
        %6407 = vrot.lane.b32.xlu0 %v6406, 48
        %v6408 = vpop.permute.xlu0 %6407
        %v6409 = vunpack.c.l.b16 %v6363
        %v6410 = vpack.c.b16 %v6409, %v6409
        %6411 = vrot.lane.b32.xlu0 %v6410, 64
        %v6412 = vpop.permute.xlu0 %6411
        %v6413 = vunpack.c.l.b16 %v6366
        %v6414 = vpack.c.b16 %v6413, %v6413
        %6415 = vrot.lane.b32.xlu0 %v6414, 80
        %v6416 = vpop.permute.xlu0 %6415
        %v6417 = vunpack.c.l.b16 %v6369
        %v6418 = vpack.c.b16 %v6417, %v6417
        %6419 = vrot.lane.b32.xlu0 %v6418, 96
        %v6420 = vpop.permute.xlu0 %6419
        %v6421 = vunpack.c.l.b16 %v6372
        %v6422 = vpack.c.b16 %v6421, %v6421
        %6423 = vrot.lane.b32.xlu0 %v6422, 112
        %v6424 = vpop.permute.xlu0 %6423
        %v6425 = vunpack.c.l.b16 %v6378
        %v6426 = vpack.c.b16 %v6425, %v6425
        %6427 = vrot.lane.b32.xlu0 %v6426, 16
        %v6428 = vpop.permute.xlu0 %6427
        %v6429 = vunpack.c.l.b16 %v6381
        %v6430 = vpack.c.b16 %v6429, %v6429
        %6431 = vrot.lane.b32.xlu0 %v6430, 32
        %v6432 = vpop.permute.xlu0 %6431
        %v6433 = vunpack.c.l.b16 %v6384
        %v6434 = vpack.c.b16 %v6433, %v6433
        %6435 = vrot.lane.b32.xlu0 %v6434, 48
        %v6436 = vpop.permute.xlu0 %6435
        %v6437 = vunpack.c.l.b16 %v6387
        %v6438 = vpack.c.b16 %v6437, %v6437
        %6439 = vrot.lane.b32.xlu0 %v6438, 64
        %v6440 = vpop.permute.xlu0 %6439
        %v6441 = vunpack.c.l.b16 %v6390
        %v6442 = vpack.c.b16 %v6441, %v6441
        %6443 = vrot.lane.b32.xlu0 %v6442, 80
        %v6444 = vpop.permute.xlu0 %6443
        %v6445 = vunpack.c.l.b16 %v6393
        %v6446 = vpack.c.b16 %v6445, %v6445
        %6447 = vrot.lane.b32.xlu0 %v6446, 96
        %v6448 = vpop.permute.xlu0 %6447
        %v6449 = vunpack.c.l.b16 %v6396
        %v6450 = vpack.c.b16 %v6449, %v6449
        %6451 = vrot.lane.b32.xlu0 %v6450, 112
        %v6452 = vpop.permute.xlu0 %6451
        %v6455 = vsel %vm562, %v6351, %v6400
        %v6457 = vsel %vm566, %v6455, %v6404
        %v6459 = vsel %vm569, %v6457, %v6408
        %v6461 = vsel %vm572, %v6459, %v6412
        %v6463 = vsel %vm575, %v6461, %v6416
        %v6465 = vsel %vm578, %v6463, %v6420
        %v6467 = vsel %vm581, %v6465, %v6424
        %v6470 = vsel %vm562, %v6375, %v6428
        %v6472 = vsel %vm566, %v6470, %v6432
        %v6474 = vsel %vm569, %v6472, %v6436
        %v6476 = vsel %vm572, %v6474, %v6440
        %v6478 = vsel %vm575, %v6476, %v6444
        %v6480 = vsel %vm578, %v6478, %v6448
        %v6482 = vsel %vm581, %v6480, %v6452
        %v6485 = vunpack.c.l.b16 %v6467
        %v6486 = vunpack.c.l.b16 %v6482
        %v6487 = vpack.c.b16 %v6486, %v6485
        %6489 = vst [vmem:[#allocation2 + $0x70] sm:$0xff] %v6487
        %v6490 = vld [vmem:[%s297] sm:$0xe]
        %v6491 = vld [vmem:[%s297 + $0x4] sm:$0xf]
        %v6492 = vld [vmem:[%s297 + $0x8] sm:$0x3]
        %v6493 = vld [vmem:[%s297 + $0xc] sm:$0xe]
        %v6494 = vld [vmem:[%s297 + $0x10] sm:$0xf]
        %v6495 = vld [vmem:[%s297 + $0x14] sm:$0x3]
        %v6496 = vld [vmem:[%s297 + $0x18] sm:$0xe]
        %v6497 = vld [vmem:[%s297 + $0x1c] sm:$0xf]
        %v6498 = vld [vmem:[%s297 + $0x20] sm:$0x3]
        %v6499 = vld [vmem:[%s297 + $0x24] sm:$0xe]
        %v6500 = vld [vmem:[%s297 + $0x28] sm:$0xf]
        %v6501 = vld [vmem:[%s297 + $0x2c] sm:$0x3]
        %v6502 = vld [vmem:[%s297 + $0x30] sm:$0xe]
        %v6503 = vld [vmem:[%s297 + $0x34] sm:$0xf]
        %v6504 = vld [vmem:[%s297 + $0x38] sm:$0x3]
        %v6505 = vld [vmem:[%s297 + $0x3c] sm:$0xe]
        %v6506 = vld [vmem:[%s297 + $0x40] sm:$0xf]
        %v6507 = vld [vmem:[%s297 + $0x44] sm:$0x3]
        %v6508 = vld [vmem:[%s297 + $0x48] sm:$0xe]
        %v6509 = vld [vmem:[%s297 + $0x4c] sm:$0xf]
        %v6510 = vld [vmem:[%s297 + $0x50] sm:$0x3]
        %v6511 = vld [vmem:[%s297 + $0x54] sm:$0xe]
        %v6512 = vld [vmem:[%s297 + $0x58] sm:$0xf]
        %v6513 = vld [vmem:[%s297 + $0x5c] sm:$0x3]
        %vm6514 = vsmask.f32 2304
        %vm6515 = vsmask.f32 6416
        %vm6516 = vmor %vm6514, %vm6515
        %v6518 = vshrl.u32 %v6490, 16
        %v6520 = vrot.slane %v6518, 5
        %v6521 = vshll.u32 %v6490, 16
        %v6523 = vrot.slane %v6521, 6
        %v6524 = vor.u32 %v6520, %v6523
        %v6525 = vrot.slane %v6524, 4
        %v6527 = vshrl.u32 %v6491, 16
        %v6529 = vrot.slane %v6527, 5
        %v6530 = vshll.u32 %v6491, 16
        %v6532 = vrot.slane %v6530, 6
        %v6533 = vor.u32 %v6529, %v6532
        %v6534 = vsel %vm6516, %v6525, %v6533
        %v6535 = vrot.slane %v6533, 4
        %v6537 = vshrl.u32 %v6492, 16
        %v6539 = vrot.slane %v6537, 5
        %v6540 = vshll.u32 %v6492, 16
        %v6542 = vrot.slane %v6540, 6
        %v6543 = vor.u32 %v6539, %v6542
        %v6544 = vsel %vm6516, %v6535, %v6543
        %v6546 = vshrl.u32 %v6493, 16
        %v6548 = vrot.slane %v6546, 5
        %v6549 = vshll.u32 %v6493, 16
        %v6551 = vrot.slane %v6549, 6
        %v6552 = vor.u32 %v6548, %v6551
        %v6553 = vrot.slane %v6552, 4
        %v6555 = vshrl.u32 %v6494, 16
        %v6557 = vrot.slane %v6555, 5
        %v6558 = vshll.u32 %v6494, 16
        %v6560 = vrot.slane %v6558, 6
        %v6561 = vor.u32 %v6557, %v6560
        %v6562 = vsel %vm6516, %v6553, %v6561
        %v6563 = vrot.slane %v6561, 4
        %v6565 = vshrl.u32 %v6495, 16
        %v6567 = vrot.slane %v6565, 5
        %v6568 = vshll.u32 %v6495, 16
        %v6570 = vrot.slane %v6568, 6
        %v6571 = vor.u32 %v6567, %v6570
        %v6572 = vsel %vm6516, %v6563, %v6571
        %v6574 = vshrl.u32 %v6496, 16
        %v6576 = vrot.slane %v6574, 5
        %v6577 = vshll.u32 %v6496, 16
        %v6579 = vrot.slane %v6577, 6
        %v6580 = vor.u32 %v6576, %v6579
        %v6581 = vrot.slane %v6580, 4
        %v6583 = vshrl.u32 %v6497, 16
        %v6585 = vrot.slane %v6583, 5
        %v6586 = vshll.u32 %v6497, 16
        %v6588 = vrot.slane %v6586, 6
        %v6589 = vor.u32 %v6585, %v6588
        %v6590 = vsel %vm6516, %v6581, %v6589
        %v6591 = vrot.slane %v6589, 4
        %v6593 = vshrl.u32 %v6498, 16
        %v6595 = vrot.slane %v6593, 5
        %v6596 = vshll.u32 %v6498, 16
        %v6598 = vrot.slane %v6596, 6
        %v6599 = vor.u32 %v6595, %v6598
        %v6600 = vsel %vm6516, %v6591, %v6599
        %v6602 = vshrl.u32 %v6499, 16
        %v6604 = vrot.slane %v6602, 5
        %v6605 = vshll.u32 %v6499, 16
        %v6607 = vrot.slane %v6605, 6
        %v6608 = vor.u32 %v6604, %v6607
        %v6609 = vrot.slane %v6608, 4
        %v6611 = vshrl.u32 %v6500, 16
        %v6613 = vrot.slane %v6611, 5
        %v6614 = vshll.u32 %v6500, 16
        %v6616 = vrot.slane %v6614, 6
        %v6617 = vor.u32 %v6613, %v6616
        %v6618 = vsel %vm6516, %v6609, %v6617
        %v6619 = vrot.slane %v6617, 4
        %v6621 = vshrl.u32 %v6501, 16
        %v6623 = vrot.slane %v6621, 5
        %v6624 = vshll.u32 %v6501, 16
        %v6626 = vrot.slane %v6624, 6
        %v6627 = vor.u32 %v6623, %v6626
        %v6628 = vsel %vm6516, %v6619, %v6627
        %v6630 = vshrl.u32 %v6502, 16
        %v6632 = vrot.slane %v6630, 5
        %v6633 = vshll.u32 %v6502, 16
        %v6635 = vrot.slane %v6633, 6
        %v6636 = vor.u32 %v6632, %v6635
        %v6637 = vrot.slane %v6636, 4
        %v6639 = vshrl.u32 %v6503, 16
        %v6641 = vrot.slane %v6639, 5
        %v6642 = vshll.u32 %v6503, 16
        %v6644 = vrot.slane %v6642, 6
        %v6645 = vor.u32 %v6641, %v6644
        %v6646 = vsel %vm6516, %v6637, %v6645
        %v6647 = vrot.slane %v6645, 4
        %v6649 = vshrl.u32 %v6504, 16
        %v6651 = vrot.slane %v6649, 5
        %v6652 = vshll.u32 %v6504, 16
        %v6654 = vrot.slane %v6652, 6
        %v6655 = vor.u32 %v6651, %v6654
        %v6656 = vsel %vm6516, %v6647, %v6655
        %v6658 = vshrl.u32 %v6505, 16
        %v6660 = vrot.slane %v6658, 5
        %v6661 = vshll.u32 %v6505, 16
        %v6663 = vrot.slane %v6661, 6
        %v6664 = vor.u32 %v6660, %v6663
        %v6665 = vrot.slane %v6664, 4
        %v6667 = vshrl.u32 %v6506, 16
        %v6669 = vrot.slane %v6667, 5
        %v6670 = vshll.u32 %v6506, 16
        %v6672 = vrot.slane %v6670, 6
        %v6673 = vor.u32 %v6669, %v6672
        %v6674 = vsel %vm6516, %v6665, %v6673
        %v6675 = vrot.slane %v6673, 4
        %v6677 = vshrl.u32 %v6507, 16
        %v6679 = vrot.slane %v6677, 5
        %v6680 = vshll.u32 %v6507, 16
        %v6682 = vrot.slane %v6680, 6
        %v6683 = vor.u32 %v6679, %v6682
        %v6684 = vsel %vm6516, %v6675, %v6683
        %v6686 = vshrl.u32 %v6508, 16
        %v6688 = vrot.slane %v6686, 5
        %v6689 = vshll.u32 %v6508, 16
        %v6691 = vrot.slane %v6689, 6
        %v6692 = vor.u32 %v6688, %v6691
        %v6693 = vrot.slane %v6692, 4
        %v6695 = vshrl.u32 %v6509, 16
        %v6697 = vrot.slane %v6695, 5
        %v6698 = vshll.u32 %v6509, 16
        %v6700 = vrot.slane %v6698, 6
        %v6701 = vor.u32 %v6697, %v6700
        %v6702 = vsel %vm6516, %v6693, %v6701
        %v6703 = vrot.slane %v6701, 4
        %v6705 = vshrl.u32 %v6510, 16
        %v6707 = vrot.slane %v6705, 5
        %v6708 = vshll.u32 %v6510, 16
        %v6710 = vrot.slane %v6708, 6
        %v6711 = vor.u32 %v6707, %v6710
        %v6712 = vsel %vm6516, %v6703, %v6711
        %v6714 = vshrl.u32 %v6511, 16
        %v6716 = vrot.slane %v6714, 5
        %v6717 = vshll.u32 %v6511, 16
        %v6719 = vrot.slane %v6717, 6
        %v6720 = vor.u32 %v6716, %v6719
        %v6721 = vrot.slane %v6720, 4
        %v6723 = vshrl.u32 %v6512, 16
        %v6725 = vrot.slane %v6723, 5
        %v6726 = vshll.u32 %v6512, 16
        %v6728 = vrot.slane %v6726, 6
        %v6729 = vor.u32 %v6725, %v6728
        %v6730 = vsel %vm6516, %v6721, %v6729
        %v6731 = vrot.slane %v6729, 4
        %v6733 = vshrl.u32 %v6513, 16
        %v6735 = vrot.slane %v6733, 5
        %v6736 = vshll.u32 %v6513, 16
        %v6738 = vrot.slane %v6736, 6
        %v6739 = vor.u32 %v6735, %v6738
        %v6740 = vsel %vm6516, %v6731, %v6739
        %v6757 = vrot.slane %v6646, 4
        %v6758 = vsel %vm346, %v6757, %v6534
        %v6760 = vunpack.c.l.s4 1983009808
        %v6761 = vunpack.c.0.s8 %v6760
        %v6762 = vperm.slane %v6758, %v6761
        %v6763 = vrot.slane %v6702, 4
        %v6764 = vsel %vm346, %v6763, %v6590
        %v6766 = vunpack.c.l.s4 1983009808
        %v6767 = vunpack.c.0.s8 %v6766
        %v6768 = vperm.slane %v6764, %v6767
        %v6769 = vrot.slane %v6768, 4
        %v6770 = vsel %vm346, %v6769, %v6762
        %v6771 = vrot.slane %v6762, 4
        %v6772 = vsel %vm346, %v6768, %v6771
        %v6774 = vunpack.c.l.s4 1934713408
        %v6775 = vunpack.c.0.s8 %v6774
        %v6776 = vperm.slane %v6770, %v6775
        %v6778 = vunpack.c.l.s4 1934713408
        %v6779 = vunpack.c.0.s8 %v6778
        %v6780 = vperm.slane %v6772, %v6779
        %v6781 = vrot.slane %v6776, 4
        %v6782 = vsel %vm346, 0, %v6781
        %v6783 = vrot.slane %v6780, 4
        %v6784 = vsel %vm346, 0, %v6783
        %v6785 = vrot.slane %v6674, 4
        %v6786 = vsel %vm346, %v6785, %v6562
        %v6788 = vunpack.c.l.s4 1983009808
        %v6789 = vunpack.c.0.s8 %v6788
        %v6790 = vperm.slane %v6786, %v6789
        %v6791 = vrot.slane %v6730, 4
        %v6792 = vsel %vm346, %v6791, %v6618
        %v6794 = vunpack.c.l.s4 1983009808
        %v6795 = vunpack.c.0.s8 %v6794
        %v6796 = vperm.slane %v6792, %v6795
        %v6797 = vrot.slane %v6796, 4
        %v6798 = vsel %vm346, %v6797, %v6790
        %v6799 = vrot.slane %v6790, 4
        %v6800 = vsel %vm346, %v6796, %v6799
        %v6802 = vunpack.c.l.s4 1934713408
        %v6803 = vunpack.c.0.s8 %v6802
        %v6804 = vperm.slane %v6798, %v6803
        %v6806 = vunpack.c.l.s4 1934713408
        %v6807 = vunpack.c.0.s8 %v6806
        %v6808 = vperm.slane %v6800, %v6807
        %v6809 = vrot.slane %v6804, 4
        %v6810 = vsel %vm346, 0, %v6809
        %v6811 = vrot.slane %v6808, 4
        %v6812 = vsel %vm346, 0, %v6811
        %v6813 = vrot.slane %v6656, 4
        %v6814 = vsel %vm346, %v6813, %v6544
        %v6816 = vunpack.c.l.s4 1983009808
        %v6817 = vunpack.c.0.s8 %v6816
        %v6818 = vperm.slane %v6814, %v6817
        %v6819 = vrot.slane %v6712, 4
        %v6820 = vsel %vm346, %v6819, %v6600
        %v6822 = vunpack.c.l.s4 1983009808
        %v6823 = vunpack.c.0.s8 %v6822
        %v6824 = vperm.slane %v6820, %v6823
        %v6825 = vrot.slane %v6824, 4
        %v6826 = vsel %vm346, %v6825, %v6818
        %v6827 = vrot.slane %v6818, 4
        %v6828 = vsel %vm346, %v6824, %v6827
        %v6830 = vunpack.c.l.s4 1934713408
        %v6831 = vunpack.c.0.s8 %v6830
        %v6832 = vperm.slane %v6826, %v6831
        %v6834 = vunpack.c.l.s4 1934713408
        %v6835 = vunpack.c.0.s8 %v6834
        %v6836 = vperm.slane %v6828, %v6835
        %v6837 = vrot.slane %v6832, 4
        %v6838 = vsel %vm346, 0, %v6837
        %v6839 = vrot.slane %v6836, 4
        %v6840 = vsel %vm346, 0, %v6839
        %v6841 = vrot.slane %v6684, 4
        %v6842 = vsel %vm346, %v6841, %v6572
        %v6844 = vunpack.c.l.s4 1983009808
        %v6845 = vunpack.c.0.s8 %v6844
        %v6846 = vperm.slane %v6842, %v6845
        %v6847 = vrot.slane %v6740, 4
        %v6848 = vsel %vm346, %v6847, %v6628
        %v6850 = vunpack.c.l.s4 1983009808
        %v6851 = vunpack.c.0.s8 %v6850
        %v6852 = vperm.slane %v6848, %v6851
        %v6853 = vrot.slane %v6852, 4
        %v6854 = vsel %vm346, %v6853, %v6846
        %v6855 = vrot.slane %v6846, 4
        %v6856 = vsel %vm346, %v6852, %v6855
        %v6858 = vunpack.c.l.s4 1934713408
        %v6859 = vunpack.c.0.s8 %v6858
        %v6860 = vperm.slane %v6854, %v6859
        %v6862 = vunpack.c.l.s4 1934713408
        %v6863 = vunpack.c.0.s8 %v6862
        %v6864 = vperm.slane %v6856, %v6863
        %v6865 = vrot.slane %v6860, 4
        %v6866 = vsel %vm346, 0, %v6865
        %v6867 = vrot.slane %v6864, 4
        %v6868 = vsel %vm346, 0, %v6867
        %v6871 = vpack.i.b16 %v6804, %v6776
        %v6872 = vshrl.u32 %v6776, 16
        %v6873 = vshrl.u32 %v6804, 16
        %v6874 = vpack.i.b16 %v6873, %v6872
        %v6877 = vpack.i.b16 %v6810, %v6782
        %v6878 = vshrl.u32 %v6782, 16
        %v6879 = vshrl.u32 %v6810, 16
        %v6880 = vpack.i.b16 %v6879, %v6878
        %v6883 = vpack.i.b16 %v6808, %v6780
        %v6884 = vshrl.u32 %v6780, 16
        %v6885 = vshrl.u32 %v6808, 16
        %v6886 = vpack.i.b16 %v6885, %v6884
        %v6889 = vpack.i.b16 %v6812, %v6784
        %v6890 = vshrl.u32 %v6784, 16
        %v6891 = vshrl.u32 %v6812, 16
        %v6892 = vpack.i.b16 %v6891, %v6890
        %v6895 = vpack.i.b16 %v6860, %v6832
        %v6896 = vshrl.u32 %v6832, 16
        %v6897 = vshrl.u32 %v6860, 16
        %v6898 = vpack.i.b16 %v6897, %v6896
        %v6901 = vpack.i.b16 %v6866, %v6838
        %v6902 = vshrl.u32 %v6838, 16
        %v6903 = vshrl.u32 %v6866, 16
        %v6904 = vpack.i.b16 %v6903, %v6902
        %v6907 = vpack.i.b16 %v6864, %v6836
        %v6908 = vshrl.u32 %v6836, 16
        %v6909 = vshrl.u32 %v6864, 16
        %v6910 = vpack.i.b16 %v6909, %v6908
        %v6913 = vpack.i.b16 %v6868, %v6840
        %v6914 = vshrl.u32 %v6840, 16
        %v6915 = vshrl.u32 %v6868, 16
        %v6916 = vpack.i.b16 %v6915, %v6914
        %v6917 = vunpack.c.l.b16 %v6874
        %v6918 = vpack.c.b16 %v6917, %v6917
        %6919 = vrot.lane.b32.xlu0 %v6918, 16
        %v6920 = vpop.permute.xlu0 %6919
        %v6921 = vunpack.c.l.b16 %v6877
        %v6922 = vpack.c.b16 %v6921, %v6921
        %6923 = vrot.lane.b32.xlu0 %v6922, 32
        %v6924 = vpop.permute.xlu0 %6923
        %v6925 = vunpack.c.l.b16 %v6880
        %v6926 = vpack.c.b16 %v6925, %v6925
        %6927 = vrot.lane.b32.xlu0 %v6926, 48
        %v6928 = vpop.permute.xlu0 %6927
        %v6929 = vunpack.c.l.b16 %v6883
        %v6930 = vpack.c.b16 %v6929, %v6929
        %6931 = vrot.lane.b32.xlu0 %v6930, 64
        %v6932 = vpop.permute.xlu0 %6931
        %v6933 = vunpack.c.l.b16 %v6886
        %v6934 = vpack.c.b16 %v6933, %v6933
        %6935 = vrot.lane.b32.xlu0 %v6934, 80
        %v6936 = vpop.permute.xlu0 %6935
        %v6937 = vunpack.c.l.b16 %v6889
        %v6938 = vpack.c.b16 %v6937, %v6937
        %6939 = vrot.lane.b32.xlu0 %v6938, 96
        %v6940 = vpop.permute.xlu0 %6939
        %v6941 = vunpack.c.l.b16 %v6892
        %v6942 = vpack.c.b16 %v6941, %v6941
        %6943 = vrot.lane.b32.xlu0 %v6942, 112
        %v6944 = vpop.permute.xlu0 %6943
        %v6945 = vunpack.c.l.b16 %v6898
        %v6946 = vpack.c.b16 %v6945, %v6945
        %6947 = vrot.lane.b32.xlu0 %v6946, 16
        %v6948 = vpop.permute.xlu0 %6947
        %v6949 = vunpack.c.l.b16 %v6901
        %v6950 = vpack.c.b16 %v6949, %v6949
        %6951 = vrot.lane.b32.xlu0 %v6950, 32
        %v6952 = vpop.permute.xlu0 %6951
        %v6953 = vunpack.c.l.b16 %v6904
        %v6954 = vpack.c.b16 %v6953, %v6953
        %6955 = vrot.lane.b32.xlu0 %v6954, 48
        %v6956 = vpop.permute.xlu0 %6955
        %v6957 = vunpack.c.l.b16 %v6907
        %v6958 = vpack.c.b16 %v6957, %v6957
        %6959 = vrot.lane.b32.xlu0 %v6958, 64
        %v6960 = vpop.permute.xlu0 %6959
        %v6961 = vunpack.c.l.b16 %v6910
        %v6962 = vpack.c.b16 %v6961, %v6961
        %6963 = vrot.lane.b32.xlu0 %v6962, 80
        %v6964 = vpop.permute.xlu0 %6963
        %v6965 = vunpack.c.l.b16 %v6913
        %v6966 = vpack.c.b16 %v6965, %v6965
        %6967 = vrot.lane.b32.xlu0 %v6966, 96
        %v6968 = vpop.permute.xlu0 %6967
        %v6969 = vunpack.c.l.b16 %v6916
        %v6970 = vpack.c.b16 %v6969, %v6969
        %6971 = vrot.lane.b32.xlu0 %v6970, 112
        %v6972 = vpop.permute.xlu0 %6971
        %v6975 = vsel %vm562, %v6871, %v6920
        %v6977 = vsel %vm566, %v6975, %v6924
        %v6979 = vsel %vm569, %v6977, %v6928
        %v6981 = vsel %vm572, %v6979, %v6932
        %v6983 = vsel %vm575, %v6981, %v6936
        %v6985 = vsel %vm578, %v6983, %v6940
        %v6987 = vsel %vm581, %v6985, %v6944
        %v6990 = vsel %vm562, %v6895, %v6948
        %v6992 = vsel %vm566, %v6990, %v6952
        %v6994 = vsel %vm569, %v6992, %v6956
        %v6996 = vsel %vm572, %v6994, %v6960
        %v6998 = vsel %vm575, %v6996, %v6964
        %v7000 = vsel %vm578, %v6998, %v6968
        %v7002 = vsel %vm581, %v7000, %v6972
        %v7005 = vunpack.c.l.b16 %v6987
        %v7006 = vunpack.c.l.b16 %v7002
        %v7007 = vpack.c.b16 %v7006, %v7005
        %7009 = vst [vmem:[#allocation2 + $0x78] sm:$0xff] %v7007
        %v7010 = vld [vmem:[%s297] sm:$0xe]
        %v7011 = vld [vmem:[%s297 + $0x4] sm:$0xf]
        %v7012 = vld [vmem:[%s297 + $0x8] sm:$0x3]
        %v7013 = vld [vmem:[%s297 + $0xc] sm:$0xe]
        %v7014 = vld [vmem:[%s297 + $0x10] sm:$0xf]
        %v7015 = vld [vmem:[%s297 + $0x14] sm:$0x3]
        %v7016 = vld [vmem:[%s297 + $0x18] sm:$0xe]
        %v7017 = vld [vmem:[%s297 + $0x1c] sm:$0xf]
        %v7018 = vld [vmem:[%s297 + $0x20] sm:$0x3]
        %v7019 = vld [vmem:[%s297 + $0x24] sm:$0xe]
        %v7020 = vld [vmem:[%s297 + $0x28] sm:$0xf]
        %v7021 = vld [vmem:[%s297 + $0x2c] sm:$0x3]
        %v7022 = vld [vmem:[%s297 + $0x30] sm:$0xe]
        %v7023 = vld [vmem:[%s297 + $0x34] sm:$0xf]
        %v7024 = vld [vmem:[%s297 + $0x38] sm:$0x3]
        %v7025 = vld [vmem:[%s297 + $0x3c] sm:$0xe]
        %v7026 = vld [vmem:[%s297 + $0x40] sm:$0xf]
        %v7027 = vld [vmem:[%s297 + $0x44] sm:$0x3]
        %v7028 = vld [vmem:[%s297 + $0x48] sm:$0xe]
        %v7029 = vld [vmem:[%s297 + $0x4c] sm:$0xf]
        %v7030 = vld [vmem:[%s297 + $0x50] sm:$0x3]
        %v7031 = vld [vmem:[%s297 + $0x54] sm:$0xe]
        %v7032 = vld [vmem:[%s297 + $0x58] sm:$0xf]
        %v7033 = vld [vmem:[%s297 + $0x5c] sm:$0x3]
        %v7035 = vshrl.u32 %v7010, 16
        %v7037 = vrot.slane %v7035, 5
        %v7038 = vshll.u32 %v7010, 16
        %v7040 = vrot.slane %v7038, 6
        %v7041 = vor.u32 %v7037, %v7040
        %v7042 = vrot.slane %v7041, 4
        %v7044 = vshrl.u32 %v7011, 16
        %v7046 = vrot.slane %v7044, 5
        %v7047 = vshll.u32 %v7011, 16
        %v7049 = vrot.slane %v7047, 6
        %v7050 = vor.u32 %v7046, %v7049
        %v7051 = vsel %vm6516, %v7042, %v7050
        %v7052 = vrot.slane %v7050, 4
        %v7054 = vshrl.u32 %v7012, 16
        %v7056 = vrot.slane %v7054, 5
        %v7057 = vshll.u32 %v7012, 16
        %v7059 = vrot.slane %v7057, 6
        %v7060 = vor.u32 %v7056, %v7059
        %v7061 = vsel %vm6516, %v7052, %v7060
        %v7063 = vshrl.u32 %v7013, 16
        %v7065 = vrot.slane %v7063, 5
        %v7066 = vshll.u32 %v7013, 16
        %v7068 = vrot.slane %v7066, 6
        %v7069 = vor.u32 %v7065, %v7068
        %v7070 = vrot.slane %v7069, 4
        %v7072 = vshrl.u32 %v7014, 16
        %v7074 = vrot.slane %v7072, 5
        %v7075 = vshll.u32 %v7014, 16
        %v7077 = vrot.slane %v7075, 6
        %v7078 = vor.u32 %v7074, %v7077
        %v7079 = vsel %vm6516, %v7070, %v7078
        %v7080 = vrot.slane %v7078, 4
        %v7082 = vshrl.u32 %v7015, 16
        %v7084 = vrot.slane %v7082, 5
        %v7085 = vshll.u32 %v7015, 16
        %v7087 = vrot.slane %v7085, 6
        %v7088 = vor.u32 %v7084, %v7087
        %v7089 = vsel %vm6516, %v7080, %v7088
        %v7091 = vshrl.u32 %v7016, 16
        %v7093 = vrot.slane %v7091, 5
        %v7094 = vshll.u32 %v7016, 16
        %v7096 = vrot.slane %v7094, 6
        %v7097 = vor.u32 %v7093, %v7096
        %v7098 = vrot.slane %v7097, 4
        %v7100 = vshrl.u32 %v7017, 16
        %v7102 = vrot.slane %v7100, 5
        %v7103 = vshll.u32 %v7017, 16
        %v7105 = vrot.slane %v7103, 6
        %v7106 = vor.u32 %v7102, %v7105
        %v7107 = vsel %vm6516, %v7098, %v7106
        %v7108 = vrot.slane %v7106, 4
        %v7110 = vshrl.u32 %v7018, 16
        %v7112 = vrot.slane %v7110, 5
        %v7113 = vshll.u32 %v7018, 16
        %v7115 = vrot.slane %v7113, 6
        %v7116 = vor.u32 %v7112, %v7115
        %v7117 = vsel %vm6516, %v7108, %v7116
        %v7119 = vshrl.u32 %v7019, 16
        %v7121 = vrot.slane %v7119, 5
        %v7122 = vshll.u32 %v7019, 16
        %v7124 = vrot.slane %v7122, 6
        %v7125 = vor.u32 %v7121, %v7124
        %v7126 = vrot.slane %v7125, 4
        %v7128 = vshrl.u32 %v7020, 16
        %v7130 = vrot.slane %v7128, 5
        %v7131 = vshll.u32 %v7020, 16
        %v7133 = vrot.slane %v7131, 6
        %v7134 = vor.u32 %v7130, %v7133
        %v7135 = vsel %vm6516, %v7126, %v7134
        %v7136 = vrot.slane %v7134, 4
        %v7138 = vshrl.u32 %v7021, 16
        %v7140 = vrot.slane %v7138, 5
        %v7141 = vshll.u32 %v7021, 16
        %v7143 = vrot.slane %v7141, 6
        %v7144 = vor.u32 %v7140, %v7143
        %v7145 = vsel %vm6516, %v7136, %v7144
        %v7147 = vshrl.u32 %v7022, 16
        %v7149 = vrot.slane %v7147, 5
        %v7150 = vshll.u32 %v7022, 16
        %v7152 = vrot.slane %v7150, 6
        %v7153 = vor.u32 %v7149, %v7152
        %v7154 = vrot.slane %v7153, 4
        %v7156 = vshrl.u32 %v7023, 16
        %v7158 = vrot.slane %v7156, 5
        %v7159 = vshll.u32 %v7023, 16
        %v7161 = vrot.slane %v7159, 6
        %v7162 = vor.u32 %v7158, %v7161
        %v7163 = vsel %vm6516, %v7154, %v7162
        %v7164 = vrot.slane %v7162, 4
        %v7166 = vshrl.u32 %v7024, 16
        %v7168 = vrot.slane %v7166, 5
        %v7169 = vshll.u32 %v7024, 16
        %v7171 = vrot.slane %v7169, 6
        %v7172 = vor.u32 %v7168, %v7171
        %v7173 = vsel %vm6516, %v7164, %v7172
        %v7175 = vshrl.u32 %v7025, 16
        %v7177 = vrot.slane %v7175, 5
        %v7178 = vshll.u32 %v7025, 16
        %v7180 = vrot.slane %v7178, 6
        %v7181 = vor.u32 %v7177, %v7180
        %v7182 = vrot.slane %v7181, 4
        %v7184 = vshrl.u32 %v7026, 16
        %v7186 = vrot.slane %v7184, 5
        %v7187 = vshll.u32 %v7026, 16
        %v7189 = vrot.slane %v7187, 6
        %v7190 = vor.u32 %v7186, %v7189
        %v7191 = vsel %vm6516, %v7182, %v7190
        %v7192 = vrot.slane %v7190, 4
        %v7194 = vshrl.u32 %v7027, 16
        %v7196 = vrot.slane %v7194, 5
        %v7197 = vshll.u32 %v7027, 16
        %v7199 = vrot.slane %v7197, 6
        %v7200 = vor.u32 %v7196, %v7199
        %v7201 = vsel %vm6516, %v7192, %v7200
        %v7203 = vshrl.u32 %v7028, 16
        %v7205 = vrot.slane %v7203, 5
        %v7206 = vshll.u32 %v7028, 16
        %v7208 = vrot.slane %v7206, 6
        %v7209 = vor.u32 %v7205, %v7208
        %v7210 = vrot.slane %v7209, 4
        %v7212 = vshrl.u32 %v7029, 16
        %v7214 = vrot.slane %v7212, 5
        %v7215 = vshll.u32 %v7029, 16
        %v7217 = vrot.slane %v7215, 6
        %v7218 = vor.u32 %v7214, %v7217
        %v7219 = vsel %vm6516, %v7210, %v7218
        %v7220 = vrot.slane %v7218, 4
        %v7222 = vshrl.u32 %v7030, 16
        %v7224 = vrot.slane %v7222, 5
        %v7225 = vshll.u32 %v7030, 16
        %v7227 = vrot.slane %v7225, 6
        %v7228 = vor.u32 %v7224, %v7227
        %v7229 = vsel %vm6516, %v7220, %v7228
        %v7231 = vshrl.u32 %v7031, 16
        %v7233 = vrot.slane %v7231, 5
        %v7234 = vshll.u32 %v7031, 16
        %v7236 = vrot.slane %v7234, 6
        %v7237 = vor.u32 %v7233, %v7236
        %v7238 = vrot.slane %v7237, 4
        %v7240 = vshrl.u32 %v7032, 16
        %v7242 = vrot.slane %v7240, 5
        %v7243 = vshll.u32 %v7032, 16
        %v7245 = vrot.slane %v7243, 6
        %v7246 = vor.u32 %v7242, %v7245
        %v7247 = vsel %vm6516, %v7238, %v7246
        %v7248 = vrot.slane %v7246, 4
        %v7250 = vshrl.u32 %v7033, 16
        %v7252 = vrot.slane %v7250, 5
        %v7253 = vshll.u32 %v7033, 16
        %v7255 = vrot.slane %v7253, 6
        %v7256 = vor.u32 %v7252, %v7255
        %v7257 = vsel %vm6516, %v7248, %v7256
        %7258 = vrot.lane.b32.xlu0 %v7051, 127
        %v7259 = vpop.permute.xlu0 %7258
        %7260 = vrot.lane.b32.xlu0 %v7061, 127
        %v7261 = vpop.permute.xlu0 %7260
        %7262 = vrot.lane.b32.xlu0 %v7079, 127
        %v7263 = vpop.permute.xlu0 %7262
        %7264 = vrot.lane.b32.xlu0 %v7089, 127
        %v7265 = vpop.permute.xlu0 %7264
        %7266 = vrot.lane.b32.xlu0 %v7107, 127
        %v7267 = vpop.permute.xlu0 %7266
        %7268 = vrot.lane.b32.xlu0 %v7117, 127
        %v7269 = vpop.permute.xlu0 %7268
        %7270 = vrot.lane.b32.xlu0 %v7135, 127
        %v7271 = vpop.permute.xlu0 %7270
        %7272 = vrot.lane.b32.xlu0 %v7145, 127
        %v7273 = vpop.permute.xlu0 %7272
        %7274 = vrot.lane.b32.xlu0 %v7163, 127
        %v7275 = vpop.permute.xlu0 %7274
        %7276 = vrot.lane.b32.xlu0 %v7173, 127
        %v7277 = vpop.permute.xlu0 %7276
        %7278 = vrot.lane.b32.xlu0 %v7191, 127
        %v7279 = vpop.permute.xlu0 %7278
        %7280 = vrot.lane.b32.xlu0 %v7201, 127
        %v7281 = vpop.permute.xlu0 %7280
        %7282 = vrot.lane.b32.xlu0 %v7219, 127
        %v7283 = vpop.permute.xlu0 %7282
        %7284 = vrot.lane.b32.xlu0 %v7229, 127
        %v7285 = vpop.permute.xlu0 %7284
        %7286 = vrot.lane.b32.xlu0 %v7247, 127
        %v7287 = vpop.permute.xlu0 %7286
        %7288 = vrot.lane.b32.xlu0 %v7257, 127
        %v7289 = vpop.permute.xlu0 %7288
        %v7306 = vrot.slane %v7275, 4
        %v7307 = vsel %vm346, %v7306, %v7259
        %v7309 = vunpack.c.l.s4 1983009808
        %v7310 = vunpack.c.0.s8 %v7309
        %v7311 = vperm.slane %v7307, %v7310
        %v7312 = vrot.slane %v7283, 4
        %v7313 = vsel %vm346, %v7312, %v7267
        %v7315 = vunpack.c.l.s4 1983009808
        %v7316 = vunpack.c.0.s8 %v7315
        %v7317 = vperm.slane %v7313, %v7316
        %v7318 = vrot.slane %v7317, 4
        %v7319 = vsel %vm346, %v7318, %v7311
        %v7320 = vrot.slane %v7311, 4
        %v7321 = vsel %vm346, %v7317, %v7320
        %v7323 = vunpack.c.l.s4 1934713408
        %v7324 = vunpack.c.0.s8 %v7323
        %v7325 = vperm.slane %v7319, %v7324
        %v7327 = vunpack.c.l.s4 1934713408
        %v7328 = vunpack.c.0.s8 %v7327
        %v7329 = vperm.slane %v7321, %v7328
        %v7330 = vrot.slane %v7325, 4
        %v7331 = vsel %vm346, 0, %v7330
        %v7332 = vrot.slane %v7329, 4
        %v7333 = vsel %vm346, 0, %v7332
        %v7334 = vrot.slane %v7279, 4
        %v7335 = vsel %vm346, %v7334, %v7263
        %v7337 = vunpack.c.l.s4 1983009808
        %v7338 = vunpack.c.0.s8 %v7337
        %v7339 = vperm.slane %v7335, %v7338
        %v7340 = vrot.slane %v7287, 4
        %v7341 = vsel %vm346, %v7340, %v7271
        %v7343 = vunpack.c.l.s4 1983009808
        %v7344 = vunpack.c.0.s8 %v7343
        %v7345 = vperm.slane %v7341, %v7344
        %v7346 = vrot.slane %v7345, 4
        %v7347 = vsel %vm346, %v7346, %v7339
        %v7348 = vrot.slane %v7339, 4
        %v7349 = vsel %vm346, %v7345, %v7348
        %v7351 = vunpack.c.l.s4 1934713408
        %v7352 = vunpack.c.0.s8 %v7351
        %v7353 = vperm.slane %v7347, %v7352
        %v7355 = vunpack.c.l.s4 1934713408
        %v7356 = vunpack.c.0.s8 %v7355
        %v7357 = vperm.slane %v7349, %v7356
        %v7358 = vrot.slane %v7353, 4
        %v7359 = vsel %vm346, 0, %v7358
        %v7360 = vrot.slane %v7357, 4
        %v7361 = vsel %vm346, 0, %v7360
        %v7362 = vrot.slane %v7277, 4
        %v7363 = vsel %vm346, %v7362, %v7261
        %v7365 = vunpack.c.l.s4 1983009808
        %v7366 = vunpack.c.0.s8 %v7365
        %v7367 = vperm.slane %v7363, %v7366
        %v7368 = vrot.slane %v7285, 4
        %v7369 = vsel %vm346, %v7368, %v7269
        %v7371 = vunpack.c.l.s4 1983009808
        %v7372 = vunpack.c.0.s8 %v7371
        %v7373 = vperm.slane %v7369, %v7372
        %v7374 = vrot.slane %v7373, 4
        %v7375 = vsel %vm346, %v7374, %v7367
        %v7376 = vrot.slane %v7367, 4
        %v7377 = vsel %vm346, %v7373, %v7376
        %v7379 = vunpack.c.l.s4 1934713408
        %v7380 = vunpack.c.0.s8 %v7379
        %v7381 = vperm.slane %v7375, %v7380
        %v7383 = vunpack.c.l.s4 1934713408
        %v7384 = vunpack.c.0.s8 %v7383
        %v7385 = vperm.slane %v7377, %v7384
        %v7386 = vrot.slane %v7381, 4
        %v7387 = vsel %vm346, 0, %v7386
        %v7388 = vrot.slane %v7385, 4
        %v7389 = vsel %vm346, 0, %v7388
        %v7390 = vrot.slane %v7281, 4
        %v7391 = vsel %vm346, %v7390, %v7265
        %v7393 = vunpack.c.l.s4 1983009808
        %v7394 = vunpack.c.0.s8 %v7393
        %v7395 = vperm.slane %v7391, %v7394
        %v7396 = vrot.slane %v7289, 4
        %v7397 = vsel %vm346, %v7396, %v7273
        %v7399 = vunpack.c.l.s4 1983009808
        %v7400 = vunpack.c.0.s8 %v7399
        %v7401 = vperm.slane %v7397, %v7400
        %v7402 = vrot.slane %v7401, 4
        %v7403 = vsel %vm346, %v7402, %v7395
        %v7404 = vrot.slane %v7395, 4
        %v7405 = vsel %vm346, %v7401, %v7404
        %v7407 = vunpack.c.l.s4 1934713408
        %v7408 = vunpack.c.0.s8 %v7407
        %v7409 = vperm.slane %v7403, %v7408
        %v7411 = vunpack.c.l.s4 1934713408
        %v7412 = vunpack.c.0.s8 %v7411
        %v7413 = vperm.slane %v7405, %v7412
        %v7414 = vrot.slane %v7409, 4
        %v7415 = vsel %vm346, 0, %v7414
        %v7416 = vrot.slane %v7413, 4
        %v7417 = vsel %vm346, 0, %v7416
        %v7420 = vpack.i.b16 %v7353, %v7325
        %v7421 = vshrl.u32 %v7325, 16
        %v7422 = vshrl.u32 %v7353, 16
        %v7423 = vpack.i.b16 %v7422, %v7421
        %v7426 = vpack.i.b16 %v7359, %v7331
        %v7427 = vshrl.u32 %v7331, 16
        %v7428 = vshrl.u32 %v7359, 16
        %v7429 = vpack.i.b16 %v7428, %v7427
        %v7432 = vpack.i.b16 %v7357, %v7329
        %v7433 = vshrl.u32 %v7329, 16
        %v7434 = vshrl.u32 %v7357, 16
        %v7435 = vpack.i.b16 %v7434, %v7433
        %v7438 = vpack.i.b16 %v7361, %v7333
        %v7439 = vshrl.u32 %v7333, 16
        %v7440 = vshrl.u32 %v7361, 16
        %v7441 = vpack.i.b16 %v7440, %v7439
        %v7444 = vpack.i.b16 %v7409, %v7381
        %v7445 = vshrl.u32 %v7381, 16
        %v7446 = vshrl.u32 %v7409, 16
        %v7447 = vpack.i.b16 %v7446, %v7445
        %v7450 = vpack.i.b16 %v7415, %v7387
        %v7451 = vshrl.u32 %v7387, 16
        %v7452 = vshrl.u32 %v7415, 16
        %v7453 = vpack.i.b16 %v7452, %v7451
        %v7456 = vpack.i.b16 %v7413, %v7385
        %v7457 = vshrl.u32 %v7385, 16
        %v7458 = vshrl.u32 %v7413, 16
        %v7459 = vpack.i.b16 %v7458, %v7457
        %v7462 = vpack.i.b16 %v7417, %v7389
        %v7463 = vshrl.u32 %v7389, 16
        %v7464 = vshrl.u32 %v7417, 16
        %v7465 = vpack.i.b16 %v7464, %v7463
        %v7466 = vunpack.c.l.b16 %v7423
        %v7467 = vpack.c.b16 %v7466, %v7466
        %7468 = vrot.lane.b32.xlu0 %v7467, 16
        %v7469 = vpop.permute.xlu0 %7468
        %v7470 = vunpack.c.l.b16 %v7426
        %v7471 = vpack.c.b16 %v7470, %v7470
        %7472 = vrot.lane.b32.xlu0 %v7471, 32
        %v7473 = vpop.permute.xlu0 %7472
        %v7474 = vunpack.c.l.b16 %v7429
        %v7475 = vpack.c.b16 %v7474, %v7474
        %7476 = vrot.lane.b32.xlu0 %v7475, 48
        %v7477 = vpop.permute.xlu0 %7476
        %v7478 = vunpack.c.l.b16 %v7432
        %v7479 = vpack.c.b16 %v7478, %v7478
        %7480 = vrot.lane.b32.xlu0 %v7479, 64
        %v7481 = vpop.permute.xlu0 %7480
        %v7482 = vunpack.c.l.b16 %v7435
        %v7483 = vpack.c.b16 %v7482, %v7482
        %7484 = vrot.lane.b32.xlu0 %v7483, 80
        %v7485 = vpop.permute.xlu0 %7484
        %v7486 = vunpack.c.l.b16 %v7438
        %v7487 = vpack.c.b16 %v7486, %v7486
        %7488 = vrot.lane.b32.xlu0 %v7487, 96
        %v7489 = vpop.permute.xlu0 %7488
        %v7490 = vunpack.c.l.b16 %v7441
        %v7491 = vpack.c.b16 %v7490, %v7490
        %7492 = vrot.lane.b32.xlu0 %v7491, 112
        %v7493 = vpop.permute.xlu0 %7492
        %v7494 = vunpack.c.l.b16 %v7447
        %v7495 = vpack.c.b16 %v7494, %v7494
        %7496 = vrot.lane.b32.xlu0 %v7495, 16
        %v7497 = vpop.permute.xlu0 %7496
        %v7498 = vunpack.c.l.b16 %v7450
        %v7499 = vpack.c.b16 %v7498, %v7498
        %7500 = vrot.lane.b32.xlu0 %v7499, 32
        %v7501 = vpop.permute.xlu0 %7500
        %v7502 = vunpack.c.l.b16 %v7453
        %v7503 = vpack.c.b16 %v7502, %v7502
        %7504 = vrot.lane.b32.xlu0 %v7503, 48
        %v7505 = vpop.permute.xlu0 %7504
        %v7506 = vunpack.c.l.b16 %v7456
        %v7507 = vpack.c.b16 %v7506, %v7506
        %7508 = vrot.lane.b32.xlu0 %v7507, 64
        %v7509 = vpop.permute.xlu0 %7508
        %v7510 = vunpack.c.l.b16 %v7459
        %v7511 = vpack.c.b16 %v7510, %v7510
        %7512 = vrot.lane.b32.xlu0 %v7511, 80
        %v7513 = vpop.permute.xlu0 %7512
        %v7514 = vunpack.c.l.b16 %v7462
        %v7515 = vpack.c.b16 %v7514, %v7514
        %7516 = vrot.lane.b32.xlu0 %v7515, 96
        %v7517 = vpop.permute.xlu0 %7516
        %v7518 = vunpack.c.l.b16 %v7465
        %v7519 = vpack.c.b16 %v7518, %v7518
        %7520 = vrot.lane.b32.xlu0 %v7519, 112
        %v7521 = vpop.permute.xlu0 %7520
        %v7524 = vsel %vm562, %v7420, %v7469
        %v7526 = vsel %vm566, %v7524, %v7473
        %v7528 = vsel %vm569, %v7526, %v7477
        %v7530 = vsel %vm572, %v7528, %v7481
        %v7532 = vsel %vm575, %v7530, %v7485
        %v7534 = vsel %vm578, %v7532, %v7489
        %v7536 = vsel %vm581, %v7534, %v7493
        %v7539 = vsel %vm562, %v7444, %v7497
        %v7541 = vsel %vm566, %v7539, %v7501
        %v7543 = vsel %vm569, %v7541, %v7505
        %v7545 = vsel %vm572, %v7543, %v7509
        %v7547 = vsel %vm575, %v7545, %v7513
        %v7549 = vsel %vm578, %v7547, %v7517
        %v7551 = vsel %vm581, %v7549, %v7521
        %v7554 = vunpack.c.l.b16 %v7536
        %v7555 = vunpack.c.l.b16 %v7551
        %v7556 = vpack.c.b16 %v7555, %v7554
        %7558 = vst [vmem:[#allocation2 + $0x80] sm:$0xff] %v7556
        %v7559 = vld [vmem:[%s297] sm:$0xe]
        %v7560 = vld [vmem:[%s297 + $0x4] sm:$0xf]
        %v7561 = vld [vmem:[%s297 + $0x8] sm:$0x3]
        %v7562 = vld [vmem:[%s297 + $0xc] sm:$0xe]
        %v7563 = vld [vmem:[%s297 + $0x10] sm:$0xf]
        %v7564 = vld [vmem:[%s297 + $0x14] sm:$0x3]
        %v7565 = vld [vmem:[%s297 + $0x18] sm:$0xe]
        %v7566 = vld [vmem:[%s297 + $0x1c] sm:$0xf]
        %v7567 = vld [vmem:[%s297 + $0x20] sm:$0x3]
        %v7568 = vld [vmem:[%s297 + $0x24] sm:$0xe]
        %v7569 = vld [vmem:[%s297 + $0x28] sm:$0xf]
        %v7570 = vld [vmem:[%s297 + $0x2c] sm:$0x3]
        %v7571 = vld [vmem:[%s297 + $0x30] sm:$0xe]
        %v7572 = vld [vmem:[%s297 + $0x34] sm:$0xf]
        %v7573 = vld [vmem:[%s297 + $0x38] sm:$0x3]
        %v7574 = vld [vmem:[%s297 + $0x3c] sm:$0xe]
        %v7575 = vld [vmem:[%s297 + $0x40] sm:$0xf]
        %v7576 = vld [vmem:[%s297 + $0x44] sm:$0x3]
        %v7577 = vld [vmem:[%s297 + $0x48] sm:$0xe]
        %v7578 = vld [vmem:[%s297 + $0x4c] sm:$0xf]
        %v7579 = vld [vmem:[%s297 + $0x50] sm:$0x3]
        %v7580 = vld [vmem:[%s297 + $0x54] sm:$0xe]
        %v7581 = vld [vmem:[%s297 + $0x58] sm:$0xf]
        %v7582 = vld [vmem:[%s297 + $0x5c] sm:$0x3]
        %v7584 = vshrl.u32 %v7559, 16
        %v7586 = vrot.slane %v7584, 5
        %v7587 = vshll.u32 %v7559, 16
        %v7589 = vrot.slane %v7587, 6
        %v7590 = vor.u32 %v7586, %v7589
        %v7591 = vrot.slane %v7590, 4
        %v7593 = vshrl.u32 %v7560, 16
        %v7595 = vrot.slane %v7593, 5
        %v7596 = vshll.u32 %v7560, 16
        %v7598 = vrot.slane %v7596, 6
        %v7599 = vor.u32 %v7595, %v7598
        %v7600 = vsel %vm6516, %v7591, %v7599
        %v7601 = vrot.slane %v7599, 4
        %v7603 = vshrl.u32 %v7561, 16
        %v7605 = vrot.slane %v7603, 5
        %v7606 = vshll.u32 %v7561, 16
        %v7608 = vrot.slane %v7606, 6
        %v7609 = vor.u32 %v7605, %v7608
        %v7610 = vsel %vm6516, %v7601, %v7609
        %v7612 = vshrl.u32 %v7562, 16
        %v7614 = vrot.slane %v7612, 5
        %v7615 = vshll.u32 %v7562, 16
        %v7617 = vrot.slane %v7615, 6
        %v7618 = vor.u32 %v7614, %v7617
        %v7619 = vrot.slane %v7618, 4
        %v7621 = vshrl.u32 %v7563, 16
        %v7623 = vrot.slane %v7621, 5
        %v7624 = vshll.u32 %v7563, 16
        %v7626 = vrot.slane %v7624, 6
        %v7627 = vor.u32 %v7623, %v7626
        %v7628 = vsel %vm6516, %v7619, %v7627
        %v7629 = vrot.slane %v7627, 4
        %v7631 = vshrl.u32 %v7564, 16
        %v7633 = vrot.slane %v7631, 5
        %v7634 = vshll.u32 %v7564, 16
        %v7636 = vrot.slane %v7634, 6
        %v7637 = vor.u32 %v7633, %v7636
        %v7638 = vsel %vm6516, %v7629, %v7637
        %v7640 = vshrl.u32 %v7565, 16
        %v7642 = vrot.slane %v7640, 5
        %v7643 = vshll.u32 %v7565, 16
        %v7645 = vrot.slane %v7643, 6
        %v7646 = vor.u32 %v7642, %v7645
        %v7647 = vrot.slane %v7646, 4
        %v7649 = vshrl.u32 %v7566, 16
        %v7651 = vrot.slane %v7649, 5
        %v7652 = vshll.u32 %v7566, 16
        %v7654 = vrot.slane %v7652, 6
        %v7655 = vor.u32 %v7651, %v7654
        %v7656 = vsel %vm6516, %v7647, %v7655
        %v7657 = vrot.slane %v7655, 4
        %v7659 = vshrl.u32 %v7567, 16
        %v7661 = vrot.slane %v7659, 5
        %v7662 = vshll.u32 %v7567, 16
        %v7664 = vrot.slane %v7662, 6
        %v7665 = vor.u32 %v7661, %v7664
        %v7666 = vsel %vm6516, %v7657, %v7665
        %v7668 = vshrl.u32 %v7568, 16
        %v7670 = vrot.slane %v7668, 5
        %v7671 = vshll.u32 %v7568, 16
        %v7673 = vrot.slane %v7671, 6
        %v7674 = vor.u32 %v7670, %v7673
        %v7675 = vrot.slane %v7674, 4
        %v7677 = vshrl.u32 %v7569, 16
        %v7679 = vrot.slane %v7677, 5
        %v7680 = vshll.u32 %v7569, 16
        %v7682 = vrot.slane %v7680, 6
        %v7683 = vor.u32 %v7679, %v7682
        %v7684 = vsel %vm6516, %v7675, %v7683
        %v7685 = vrot.slane %v7683, 4
        %v7687 = vshrl.u32 %v7570, 16
        %v7689 = vrot.slane %v7687, 5
        %v7690 = vshll.u32 %v7570, 16
        %v7692 = vrot.slane %v7690, 6
        %v7693 = vor.u32 %v7689, %v7692
        %v7694 = vsel %vm6516, %v7685, %v7693
        %v7696 = vshrl.u32 %v7571, 16
        %v7698 = vrot.slane %v7696, 5
        %v7699 = vshll.u32 %v7571, 16
        %v7701 = vrot.slane %v7699, 6
        %v7702 = vor.u32 %v7698, %v7701
        %v7703 = vrot.slane %v7702, 4
        %v7705 = vshrl.u32 %v7572, 16
        %v7707 = vrot.slane %v7705, 5
        %v7708 = vshll.u32 %v7572, 16
        %v7710 = vrot.slane %v7708, 6
        %v7711 = vor.u32 %v7707, %v7710
        %v7712 = vsel %vm6516, %v7703, %v7711
        %v7713 = vrot.slane %v7711, 4
        %v7715 = vshrl.u32 %v7573, 16
        %v7717 = vrot.slane %v7715, 5
        %v7718 = vshll.u32 %v7573, 16
        %v7720 = vrot.slane %v7718, 6
        %v7721 = vor.u32 %v7717, %v7720
        %v7722 = vsel %vm6516, %v7713, %v7721
        %v7724 = vshrl.u32 %v7574, 16
        %v7726 = vrot.slane %v7724, 5
        %v7727 = vshll.u32 %v7574, 16
        %v7729 = vrot.slane %v7727, 6
        %v7730 = vor.u32 %v7726, %v7729
        %v7731 = vrot.slane %v7730, 4
        %v7733 = vshrl.u32 %v7575, 16
        %v7735 = vrot.slane %v7733, 5
        %v7736 = vshll.u32 %v7575, 16
        %v7738 = vrot.slane %v7736, 6
        %v7739 = vor.u32 %v7735, %v7738
        %v7740 = vsel %vm6516, %v7731, %v7739
        %v7741 = vrot.slane %v7739, 4
        %v7743 = vshrl.u32 %v7576, 16
        %v7745 = vrot.slane %v7743, 5
        %v7746 = vshll.u32 %v7576, 16
        %v7748 = vrot.slane %v7746, 6
        %v7749 = vor.u32 %v7745, %v7748
        %v7750 = vsel %vm6516, %v7741, %v7749
        %v7752 = vshrl.u32 %v7577, 16
        %v7754 = vrot.slane %v7752, 5
        %v7755 = vshll.u32 %v7577, 16
        %v7757 = vrot.slane %v7755, 6
        %v7758 = vor.u32 %v7754, %v7757
        %v7759 = vrot.slane %v7758, 4
        %v7761 = vshrl.u32 %v7578, 16
        %v7763 = vrot.slane %v7761, 5
        %v7764 = vshll.u32 %v7578, 16
        %v7766 = vrot.slane %v7764, 6
        %v7767 = vor.u32 %v7763, %v7766
        %v7768 = vsel %vm6516, %v7759, %v7767
        %v7769 = vrot.slane %v7767, 4
        %v7771 = vshrl.u32 %v7579, 16
        %v7773 = vrot.slane %v7771, 5
        %v7774 = vshll.u32 %v7579, 16
        %v7776 = vrot.slane %v7774, 6
        %v7777 = vor.u32 %v7773, %v7776
        %v7778 = vsel %vm6516, %v7769, %v7777
        %v7780 = vshrl.u32 %v7580, 16
        %v7782 = vrot.slane %v7780, 5
        %v7783 = vshll.u32 %v7580, 16
        %v7785 = vrot.slane %v7783, 6
        %v7786 = vor.u32 %v7782, %v7785
        %v7787 = vrot.slane %v7786, 4
        %v7789 = vshrl.u32 %v7581, 16
        %v7791 = vrot.slane %v7789, 5
        %v7792 = vshll.u32 %v7581, 16
        %v7794 = vrot.slane %v7792, 6
        %v7795 = vor.u32 %v7791, %v7794
        %v7796 = vsel %vm6516, %v7787, %v7795
        %v7797 = vrot.slane %v7795, 4
        %v7799 = vshrl.u32 %v7582, 16
        %v7801 = vrot.slane %v7799, 5
        %v7802 = vshll.u32 %v7582, 16
        %v7804 = vrot.slane %v7802, 6
        %v7805 = vor.u32 %v7801, %v7804
        %v7806 = vsel %vm6516, %v7797, %v7805
        %7807 = vrot.lane.b32.xlu0 %v7600, 126
        %v7808 = vpop.permute.xlu0 %7807
        %7809 = vrot.lane.b32.xlu0 %v7610, 126
        %v7810 = vpop.permute.xlu0 %7809
        %7811 = vrot.lane.b32.xlu0 %v7628, 126
        %v7812 = vpop.permute.xlu0 %7811
        %7813 = vrot.lane.b32.xlu0 %v7638, 126
        %v7814 = vpop.permute.xlu0 %7813
        %7815 = vrot.lane.b32.xlu0 %v7656, 126
        %v7816 = vpop.permute.xlu0 %7815
        %7817 = vrot.lane.b32.xlu0 %v7666, 126
        %v7818 = vpop.permute.xlu0 %7817
        %7819 = vrot.lane.b32.xlu0 %v7684, 126
        %v7820 = vpop.permute.xlu0 %7819
        %7821 = vrot.lane.b32.xlu0 %v7694, 126
        %v7822 = vpop.permute.xlu0 %7821
        %7823 = vrot.lane.b32.xlu0 %v7712, 126
        %v7824 = vpop.permute.xlu0 %7823
        %7825 = vrot.lane.b32.xlu0 %v7722, 126
        %v7826 = vpop.permute.xlu0 %7825
        %7827 = vrot.lane.b32.xlu0 %v7740, 126
        %v7828 = vpop.permute.xlu0 %7827
        %7829 = vrot.lane.b32.xlu0 %v7750, 126
        %v7830 = vpop.permute.xlu0 %7829
        %7831 = vrot.lane.b32.xlu0 %v7768, 126
        %v7832 = vpop.permute.xlu0 %7831
        %7833 = vrot.lane.b32.xlu0 %v7778, 126
        %v7834 = vpop.permute.xlu0 %7833
        %7835 = vrot.lane.b32.xlu0 %v7796, 126
        %v7836 = vpop.permute.xlu0 %7835
        %7837 = vrot.lane.b32.xlu0 %v7806, 126
        %v7838 = vpop.permute.xlu0 %7837
        %v7855 = vrot.slane %v7824, 4
        %v7856 = vsel %vm346, %v7855, %v7808
        %v7858 = vunpack.c.l.s4 1983009808
        %v7859 = vunpack.c.0.s8 %v7858
        %v7860 = vperm.slane %v7856, %v7859
        %v7861 = vrot.slane %v7832, 4
        %v7862 = vsel %vm346, %v7861, %v7816
        %v7864 = vunpack.c.l.s4 1983009808
        %v7865 = vunpack.c.0.s8 %v7864
        %v7866 = vperm.slane %v7862, %v7865
        %v7867 = vrot.slane %v7866, 4
        %v7868 = vsel %vm346, %v7867, %v7860
        %v7869 = vrot.slane %v7860, 4
        %v7870 = vsel %vm346, %v7866, %v7869
        %v7872 = vunpack.c.l.s4 1934713408
        %v7873 = vunpack.c.0.s8 %v7872
        %v7874 = vperm.slane %v7868, %v7873
        %v7876 = vunpack.c.l.s4 1934713408
        %v7877 = vunpack.c.0.s8 %v7876
        %v7878 = vperm.slane %v7870, %v7877
        %v7879 = vrot.slane %v7874, 4
        %v7880 = vsel %vm346, 0, %v7879
        %v7881 = vrot.slane %v7878, 4
        %v7882 = vsel %vm346, 0, %v7881
        %v7883 = vrot.slane %v7828, 4
        %v7884 = vsel %vm346, %v7883, %v7812
        %v7886 = vunpack.c.l.s4 1983009808
        %v7887 = vunpack.c.0.s8 %v7886
        %v7888 = vperm.slane %v7884, %v7887
        %v7889 = vrot.slane %v7836, 4
        %v7890 = vsel %vm346, %v7889, %v7820
        %v7892 = vunpack.c.l.s4 1983009808
        %v7893 = vunpack.c.0.s8 %v7892
        %v7894 = vperm.slane %v7890, %v7893
        %v7895 = vrot.slane %v7894, 4
        %v7896 = vsel %vm346, %v7895, %v7888
        %v7897 = vrot.slane %v7888, 4
        %v7898 = vsel %vm346, %v7894, %v7897
        %v7900 = vunpack.c.l.s4 1934713408
        %v7901 = vunpack.c.0.s8 %v7900
        %v7902 = vperm.slane %v7896, %v7901
        %v7904 = vunpack.c.l.s4 1934713408
        %v7905 = vunpack.c.0.s8 %v7904
        %v7906 = vperm.slane %v7898, %v7905
        %v7907 = vrot.slane %v7902, 4
        %v7908 = vsel %vm346, 0, %v7907
        %v7909 = vrot.slane %v7906, 4
        %v7910 = vsel %vm346, 0, %v7909
        %v7911 = vrot.slane %v7826, 4
        %v7912 = vsel %vm346, %v7911, %v7810
        %v7914 = vunpack.c.l.s4 1983009808
        %v7915 = vunpack.c.0.s8 %v7914
        %v7916 = vperm.slane %v7912, %v7915
        %v7917 = vrot.slane %v7834, 4
        %v7918 = vsel %vm346, %v7917, %v7818
        %v7920 = vunpack.c.l.s4 1983009808
        %v7921 = vunpack.c.0.s8 %v7920
        %v7922 = vperm.slane %v7918, %v7921
        %v7923 = vrot.slane %v7922, 4
        %v7924 = vsel %vm346, %v7923, %v7916
        %v7925 = vrot.slane %v7916, 4
        %v7926 = vsel %vm346, %v7922, %v7925
        %v7928 = vunpack.c.l.s4 1934713408
        %v7929 = vunpack.c.0.s8 %v7928
        %v7930 = vperm.slane %v7924, %v7929
        %v7932 = vunpack.c.l.s4 1934713408
        %v7933 = vunpack.c.0.s8 %v7932
        %v7934 = vperm.slane %v7926, %v7933
        %v7935 = vrot.slane %v7930, 4
        %v7936 = vsel %vm346, 0, %v7935
        %v7937 = vrot.slane %v7934, 4
        %v7938 = vsel %vm346, 0, %v7937
        %v7939 = vrot.slane %v7830, 4
        %v7940 = vsel %vm346, %v7939, %v7814
        %v7942 = vunpack.c.l.s4 1983009808
        %v7943 = vunpack.c.0.s8 %v7942
        %v7944 = vperm.slane %v7940, %v7943
        %v7945 = vrot.slane %v7838, 4
        %v7946 = vsel %vm346, %v7945, %v7822
        %v7948 = vunpack.c.l.s4 1983009808
        %v7949 = vunpack.c.0.s8 %v7948
        %v7950 = vperm.slane %v7946, %v7949
        %v7951 = vrot.slane %v7950, 4
        %v7952 = vsel %vm346, %v7951, %v7944
        %v7953 = vrot.slane %v7944, 4
        %v7954 = vsel %vm346, %v7950, %v7953
        %v7956 = vunpack.c.l.s4 1934713408
        %v7957 = vunpack.c.0.s8 %v7956
        %v7958 = vperm.slane %v7952, %v7957
        %v7960 = vunpack.c.l.s4 1934713408
        %v7961 = vunpack.c.0.s8 %v7960
        %v7962 = vperm.slane %v7954, %v7961
        %v7963 = vrot.slane %v7958, 4
        %v7964 = vsel %vm346, 0, %v7963
        %v7965 = vrot.slane %v7962, 4
        %v7966 = vsel %vm346, 0, %v7965
        %v7969 = vpack.i.b16 %v7902, %v7874
        %v7970 = vshrl.u32 %v7874, 16
        %v7971 = vshrl.u32 %v7902, 16
        %v7972 = vpack.i.b16 %v7971, %v7970
        %v7975 = vpack.i.b16 %v7908, %v7880
        %v7976 = vshrl.u32 %v7880, 16
        %v7977 = vshrl.u32 %v7908, 16
        %v7978 = vpack.i.b16 %v7977, %v7976
        %v7981 = vpack.i.b16 %v7906, %v7878
        %v7982 = vshrl.u32 %v7878, 16
        %v7983 = vshrl.u32 %v7906, 16
        %v7984 = vpack.i.b16 %v7983, %v7982
        %v7987 = vpack.i.b16 %v7910, %v7882
        %v7988 = vshrl.u32 %v7882, 16
        %v7989 = vshrl.u32 %v7910, 16
        %v7990 = vpack.i.b16 %v7989, %v7988
        %v7993 = vpack.i.b16 %v7958, %v7930
        %v7994 = vshrl.u32 %v7930, 16
        %v7995 = vshrl.u32 %v7958, 16
        %v7996 = vpack.i.b16 %v7995, %v7994
        %v7999 = vpack.i.b16 %v7964, %v7936
        %v8000 = vshrl.u32 %v7936, 16
        %v8001 = vshrl.u32 %v7964, 16
        %v8002 = vpack.i.b16 %v8001, %v8000
        %v8005 = vpack.i.b16 %v7962, %v7934
        %v8006 = vshrl.u32 %v7934, 16
        %v8007 = vshrl.u32 %v7962, 16
        %v8008 = vpack.i.b16 %v8007, %v8006
        %v8011 = vpack.i.b16 %v7966, %v7938
        %v8012 = vshrl.u32 %v7938, 16
        %v8013 = vshrl.u32 %v7966, 16
        %v8014 = vpack.i.b16 %v8013, %v8012
        %v8015 = vunpack.c.l.b16 %v7972
        %v8016 = vpack.c.b16 %v8015, %v8015
        %8017 = vrot.lane.b32.xlu0 %v8016, 16
        %v8018 = vpop.permute.xlu0 %8017
        %v8019 = vunpack.c.l.b16 %v7975
        %v8020 = vpack.c.b16 %v8019, %v8019
        %8021 = vrot.lane.b32.xlu0 %v8020, 32
        %v8022 = vpop.permute.xlu0 %8021
        %v8023 = vunpack.c.l.b16 %v7978
        %v8024 = vpack.c.b16 %v8023, %v8023
        %8025 = vrot.lane.b32.xlu0 %v8024, 48
        %v8026 = vpop.permute.xlu0 %8025
        %v8027 = vunpack.c.l.b16 %v7981
        %v8028 = vpack.c.b16 %v8027, %v8027
        %8029 = vrot.lane.b32.xlu0 %v8028, 64
        %v8030 = vpop.permute.xlu0 %8029
        %v8031 = vunpack.c.l.b16 %v7984
        %v8032 = vpack.c.b16 %v8031, %v8031
        %8033 = vrot.lane.b32.xlu0 %v8032, 80
        %v8034 = vpop.permute.xlu0 %8033
        %v8035 = vunpack.c.l.b16 %v7987
        %v8036 = vpack.c.b16 %v8035, %v8035
        %8037 = vrot.lane.b32.xlu0 %v8036, 96
        %v8038 = vpop.permute.xlu0 %8037
        %v8039 = vunpack.c.l.b16 %v7990
        %v8040 = vpack.c.b16 %v8039, %v8039
        %8041 = vrot.lane.b32.xlu0 %v8040, 112
        %v8042 = vpop.permute.xlu0 %8041
        %v8043 = vunpack.c.l.b16 %v7996
        %v8044 = vpack.c.b16 %v8043, %v8043
        %8045 = vrot.lane.b32.xlu0 %v8044, 16
        %v8046 = vpop.permute.xlu0 %8045
        %v8047 = vunpack.c.l.b16 %v7999
        %v8048 = vpack.c.b16 %v8047, %v8047
        %8049 = vrot.lane.b32.xlu0 %v8048, 32
        %v8050 = vpop.permute.xlu0 %8049
        %v8051 = vunpack.c.l.b16 %v8002
        %v8052 = vpack.c.b16 %v8051, %v8051
        %8053 = vrot.lane.b32.xlu0 %v8052, 48
        %v8054 = vpop.permute.xlu0 %8053
        %v8055 = vunpack.c.l.b16 %v8005
        %v8056 = vpack.c.b16 %v8055, %v8055
        %8057 = vrot.lane.b32.xlu0 %v8056, 64
        %v8058 = vpop.permute.xlu0 %8057
        %v8059 = vunpack.c.l.b16 %v8008
        %v8060 = vpack.c.b16 %v8059, %v8059
        %8061 = vrot.lane.b32.xlu0 %v8060, 80
        %v8062 = vpop.permute.xlu0 %8061
        %v8063 = vunpack.c.l.b16 %v8011
        %v8064 = vpack.c.b16 %v8063, %v8063
        %8065 = vrot.lane.b32.xlu0 %v8064, 96
        %v8066 = vpop.permute.xlu0 %8065
        %v8067 = vunpack.c.l.b16 %v8014
        %v8068 = vpack.c.b16 %v8067, %v8067
        %8069 = vrot.lane.b32.xlu0 %v8068, 112
        %v8070 = vpop.permute.xlu0 %8069
        %v8073 = vsel %vm562, %v7969, %v8018
        %v8075 = vsel %vm566, %v8073, %v8022
        %v8077 = vsel %vm569, %v8075, %v8026
        %v8079 = vsel %vm572, %v8077, %v8030
        %v8081 = vsel %vm575, %v8079, %v8034
        %v8083 = vsel %vm578, %v8081, %v8038
        %v8085 = vsel %vm581, %v8083, %v8042
        %v8088 = vsel %vm562, %v7993, %v8046
        %v8090 = vsel %vm566, %v8088, %v8050
        %v8092 = vsel %vm569, %v8090, %v8054
        %v8094 = vsel %vm572, %v8092, %v8058
        %v8096 = vsel %vm575, %v8094, %v8062
        %v8098 = vsel %vm578, %v8096, %v8066
        %v8100 = vsel %vm581, %v8098, %v8070
        %v8103 = vunpack.c.l.b16 %v8085
        %v8104 = vunpack.c.l.b16 %v8100
        %v8105 = vpack.c.b16 %v8104, %v8103
        %8107 = vst [vmem:[#allocation2 + $0x88] sm:$0xff] %v8105
        %v8108 = vld [vmem:[%s297] sm:$0xe]
        %v8109 = vld [vmem:[%s297 + $0x4] sm:$0xf]
        %v8110 = vld [vmem:[%s297 + $0x8] sm:$0x3]
        %v8111 = vld [vmem:[%s297 + $0xc] sm:$0xe]
        %v8112 = vld [vmem:[%s297 + $0x10] sm:$0xf]
        %v8113 = vld [vmem:[%s297 + $0x14] sm:$0x3]
        %v8114 = vld [vmem:[%s297 + $0x18] sm:$0xe]
        %v8115 = vld [vmem:[%s297 + $0x1c] sm:$0xf]
        %v8116 = vld [vmem:[%s297 + $0x20] sm:$0x3]
        %v8117 = vld [vmem:[%s297 + $0x24] sm:$0xe]
        %v8118 = vld [vmem:[%s297 + $0x28] sm:$0xf]
        %v8119 = vld [vmem:[%s297 + $0x2c] sm:$0x3]
        %v8120 = vld [vmem:[%s297 + $0x30] sm:$0xe]
        %v8121 = vld [vmem:[%s297 + $0x34] sm:$0xf]
        %v8122 = vld [vmem:[%s297 + $0x38] sm:$0x3]
        %v8123 = vld [vmem:[%s297 + $0x3c] sm:$0xe]
        %v8124 = vld [vmem:[%s297 + $0x40] sm:$0xf]
        %v8125 = vld [vmem:[%s297 + $0x44] sm:$0x3]
        %v8126 = vld [vmem:[%s297 + $0x48] sm:$0xe]
        %v8127 = vld [vmem:[%s297 + $0x4c] sm:$0xf]
        %v8128 = vld [vmem:[%s297 + $0x50] sm:$0x3]
        %v8129 = vld [vmem:[%s297 + $0x54] sm:$0xe]
        %v8130 = vld [vmem:[%s297 + $0x58] sm:$0xf]
        %v8131 = vld [vmem:[%s297 + $0x5c] sm:$0x3]
        %v8133 = vshrl.u32 %v8108, 16
        %v8135 = vrot.slane %v8133, 5
        %v8136 = vshll.u32 %v8108, 16
        %v8138 = vrot.slane %v8136, 6
        %v8139 = vor.u32 %v8135, %v8138
        %v8140 = vrot.slane %v8139, 4
        %v8142 = vshrl.u32 %v8109, 16
        %v8144 = vrot.slane %v8142, 5
        %v8145 = vshll.u32 %v8109, 16
        %v8147 = vrot.slane %v8145, 6
        %v8148 = vor.u32 %v8144, %v8147
        %v8149 = vsel %vm6516, %v8140, %v8148
        %v8150 = vrot.slane %v8148, 4
        %v8152 = vshrl.u32 %v8110, 16
        %v8154 = vrot.slane %v8152, 5
        %v8155 = vshll.u32 %v8110, 16
        %v8157 = vrot.slane %v8155, 6
        %v8158 = vor.u32 %v8154, %v8157
        %v8159 = vsel %vm6516, %v8150, %v8158
        %v8161 = vshrl.u32 %v8111, 16
        %v8163 = vrot.slane %v8161, 5
        %v8164 = vshll.u32 %v8111, 16
        %v8166 = vrot.slane %v8164, 6
        %v8167 = vor.u32 %v8163, %v8166
        %v8168 = vrot.slane %v8167, 4
        %v8170 = vshrl.u32 %v8112, 16
        %v8172 = vrot.slane %v8170, 5
        %v8173 = vshll.u32 %v8112, 16
        %v8175 = vrot.slane %v8173, 6
        %v8176 = vor.u32 %v8172, %v8175
        %v8177 = vsel %vm6516, %v8168, %v8176
        %v8178 = vrot.slane %v8176, 4
        %v8180 = vshrl.u32 %v8113, 16
        %v8182 = vrot.slane %v8180, 5
        %v8183 = vshll.u32 %v8113, 16
        %v8185 = vrot.slane %v8183, 6
        %v8186 = vor.u32 %v8182, %v8185
        %v8187 = vsel %vm6516, %v8178, %v8186
        %v8189 = vshrl.u32 %v8114, 16
        %v8191 = vrot.slane %v8189, 5
        %v8192 = vshll.u32 %v8114, 16
        %v8194 = vrot.slane %v8192, 6
        %v8195 = vor.u32 %v8191, %v8194
        %v8196 = vrot.slane %v8195, 4
        %v8198 = vshrl.u32 %v8115, 16
        %v8200 = vrot.slane %v8198, 5
        %v8201 = vshll.u32 %v8115, 16
        %v8203 = vrot.slane %v8201, 6
        %v8204 = vor.u32 %v8200, %v8203
        %v8205 = vsel %vm6516, %v8196, %v8204
        %v8206 = vrot.slane %v8204, 4
        %v8208 = vshrl.u32 %v8116, 16
        %v8210 = vrot.slane %v8208, 5
        %v8211 = vshll.u32 %v8116, 16
        %v8213 = vrot.slane %v8211, 6
        %v8214 = vor.u32 %v8210, %v8213
        %v8215 = vsel %vm6516, %v8206, %v8214
        %v8217 = vshrl.u32 %v8117, 16
        %v8219 = vrot.slane %v8217, 5
        %v8220 = vshll.u32 %v8117, 16
        %v8222 = vrot.slane %v8220, 6
        %v8223 = vor.u32 %v8219, %v8222
        %v8224 = vrot.slane %v8223, 4
        %v8226 = vshrl.u32 %v8118, 16
        %v8228 = vrot.slane %v8226, 5
        %v8229 = vshll.u32 %v8118, 16
        %v8231 = vrot.slane %v8229, 6
        %v8232 = vor.u32 %v8228, %v8231
        %v8233 = vsel %vm6516, %v8224, %v8232
        %v8234 = vrot.slane %v8232, 4
        %v8236 = vshrl.u32 %v8119, 16
        %v8238 = vrot.slane %v8236, 5
        %v8239 = vshll.u32 %v8119, 16
        %v8241 = vrot.slane %v8239, 6
        %v8242 = vor.u32 %v8238, %v8241
        %v8243 = vsel %vm6516, %v8234, %v8242
        %v8245 = vshrl.u32 %v8120, 16
        %v8247 = vrot.slane %v8245, 5
        %v8248 = vshll.u32 %v8120, 16
        %v8250 = vrot.slane %v8248, 6
        %v8251 = vor.u32 %v8247, %v8250
        %v8252 = vrot.slane %v8251, 4
        %v8254 = vshrl.u32 %v8121, 16
        %v8256 = vrot.slane %v8254, 5
        %v8257 = vshll.u32 %v8121, 16
        %v8259 = vrot.slane %v8257, 6
        %v8260 = vor.u32 %v8256, %v8259
        %v8261 = vsel %vm6516, %v8252, %v8260
        %v8262 = vrot.slane %v8260, 4
        %v8264 = vshrl.u32 %v8122, 16
        %v8266 = vrot.slane %v8264, 5
        %v8267 = vshll.u32 %v8122, 16
        %v8269 = vrot.slane %v8267, 6
        %v8270 = vor.u32 %v8266, %v8269
        %v8271 = vsel %vm6516, %v8262, %v8270
        %v8273 = vshrl.u32 %v8123, 16
        %v8275 = vrot.slane %v8273, 5
        %v8276 = vshll.u32 %v8123, 16
        %v8278 = vrot.slane %v8276, 6
        %v8279 = vor.u32 %v8275, %v8278
        %v8280 = vrot.slane %v8279, 4
        %v8282 = vshrl.u32 %v8124, 16
        %v8284 = vrot.slane %v8282, 5
        %v8285 = vshll.u32 %v8124, 16
        %v8287 = vrot.slane %v8285, 6
        %v8288 = vor.u32 %v8284, %v8287
        %v8289 = vsel %vm6516, %v8280, %v8288
        %v8290 = vrot.slane %v8288, 4
        %v8292 = vshrl.u32 %v8125, 16
        %v8294 = vrot.slane %v8292, 5
        %v8295 = vshll.u32 %v8125, 16
        %v8297 = vrot.slane %v8295, 6
        %v8298 = vor.u32 %v8294, %v8297
        %v8299 = vsel %vm6516, %v8290, %v8298
        %v8301 = vshrl.u32 %v8126, 16
        %v8303 = vrot.slane %v8301, 5
        %v8304 = vshll.u32 %v8126, 16
        %v8306 = vrot.slane %v8304, 6
        %v8307 = vor.u32 %v8303, %v8306
        %v8308 = vrot.slane %v8307, 4
        %v8310 = vshrl.u32 %v8127, 16
        %v8312 = vrot.slane %v8310, 5
        %v8313 = vshll.u32 %v8127, 16
        %v8315 = vrot.slane %v8313, 6
        %v8316 = vor.u32 %v8312, %v8315
        %v8317 = vsel %vm6516, %v8308, %v8316
        %v8318 = vrot.slane %v8316, 4
        %v8320 = vshrl.u32 %v8128, 16
        %v8322 = vrot.slane %v8320, 5
        %v8323 = vshll.u32 %v8128, 16
        %v8325 = vrot.slane %v8323, 6
        %v8326 = vor.u32 %v8322, %v8325
        %v8327 = vsel %vm6516, %v8318, %v8326
        %v8329 = vshrl.u32 %v8129, 16
        %v8331 = vrot.slane %v8329, 5
        %v8332 = vshll.u32 %v8129, 16
        %v8334 = vrot.slane %v8332, 6
        %v8335 = vor.u32 %v8331, %v8334
        %v8336 = vrot.slane %v8335, 4
        %v8338 = vshrl.u32 %v8130, 16
        %v8340 = vrot.slane %v8338, 5
        %v8341 = vshll.u32 %v8130, 16
        %v8343 = vrot.slane %v8341, 6
        %v8344 = vor.u32 %v8340, %v8343
        %v8345 = vsel %vm6516, %v8336, %v8344
        %v8346 = vrot.slane %v8344, 4
        %v8348 = vshrl.u32 %v8131, 16
        %v8350 = vrot.slane %v8348, 5
        %v8351 = vshll.u32 %v8131, 16
        %v8353 = vrot.slane %v8351, 6
        %v8354 = vor.u32 %v8350, %v8353
        %v8355 = vsel %vm6516, %v8346, %v8354
        %8356 = vrot.lane.b32.xlu0 %v8149, 125
        %v8357 = vpop.permute.xlu0 %8356
        %8358 = vrot.lane.b32.xlu0 %v8159, 125
        %v8359 = vpop.permute.xlu0 %8358
        %8360 = vrot.lane.b32.xlu0 %v8177, 125
        %v8361 = vpop.permute.xlu0 %8360
        %8362 = vrot.lane.b32.xlu0 %v8187, 125
        %v8363 = vpop.permute.xlu0 %8362
        %8364 = vrot.lane.b32.xlu0 %v8205, 125
        %v8365 = vpop.permute.xlu0 %8364
        %8366 = vrot.lane.b32.xlu0 %v8215, 125
        %v8367 = vpop.permute.xlu0 %8366
        %8368 = vrot.lane.b32.xlu0 %v8233, 125
        %v8369 = vpop.permute.xlu0 %8368
        %8370 = vrot.lane.b32.xlu0 %v8243, 125
        %v8371 = vpop.permute.xlu0 %8370
        %8372 = vrot.lane.b32.xlu0 %v8261, 125
        %v8373 = vpop.permute.xlu0 %8372
        %8374 = vrot.lane.b32.xlu0 %v8271, 125
        %v8375 = vpop.permute.xlu0 %8374
        %8376 = vrot.lane.b32.xlu0 %v8289, 125
        %v8377 = vpop.permute.xlu0 %8376
        %8378 = vrot.lane.b32.xlu0 %v8299, 125
        %v8379 = vpop.permute.xlu0 %8378
        %8380 = vrot.lane.b32.xlu0 %v8317, 125
        %v8381 = vpop.permute.xlu0 %8380
        %8382 = vrot.lane.b32.xlu0 %v8327, 125
        %v8383 = vpop.permute.xlu0 %8382
        %8384 = vrot.lane.b32.xlu0 %v8345, 125
        %v8385 = vpop.permute.xlu0 %8384
        %8386 = vrot.lane.b32.xlu0 %v8355, 125
        %v8387 = vpop.permute.xlu0 %8386
        %v8404 = vrot.slane %v8373, 4
        %v8405 = vsel %vm346, %v8404, %v8357
        %v8407 = vunpack.c.l.s4 1983009808
        %v8408 = vunpack.c.0.s8 %v8407
        %v8409 = vperm.slane %v8405, %v8408
        %v8410 = vrot.slane %v8381, 4
        %v8411 = vsel %vm346, %v8410, %v8365
        %v8413 = vunpack.c.l.s4 1983009808
        %v8414 = vunpack.c.0.s8 %v8413
        %v8415 = vperm.slane %v8411, %v8414
        %v8416 = vrot.slane %v8415, 4
        %v8417 = vsel %vm346, %v8416, %v8409
        %v8418 = vrot.slane %v8409, 4
        %v8419 = vsel %vm346, %v8415, %v8418
        %v8421 = vunpack.c.l.s4 1934713408
        %v8422 = vunpack.c.0.s8 %v8421
        %v8423 = vperm.slane %v8417, %v8422
        %v8425 = vunpack.c.l.s4 1934713408
        %v8426 = vunpack.c.0.s8 %v8425
        %v8427 = vperm.slane %v8419, %v8426
        %v8428 = vrot.slane %v8423, 4
        %v8429 = vsel %vm346, 0, %v8428
        %v8430 = vrot.slane %v8427, 4
        %v8431 = vsel %vm346, 0, %v8430
        %v8432 = vrot.slane %v8377, 4
        %v8433 = vsel %vm346, %v8432, %v8361
        %v8435 = vunpack.c.l.s4 1983009808
        %v8436 = vunpack.c.0.s8 %v8435
        %v8437 = vperm.slane %v8433, %v8436
        %v8438 = vrot.slane %v8385, 4
        %v8439 = vsel %vm346, %v8438, %v8369
        %v8441 = vunpack.c.l.s4 1983009808
        %v8442 = vunpack.c.0.s8 %v8441
        %v8443 = vperm.slane %v8439, %v8442
        %v8444 = vrot.slane %v8443, 4
        %v8445 = vsel %vm346, %v8444, %v8437
        %v8446 = vrot.slane %v8437, 4
        %v8447 = vsel %vm346, %v8443, %v8446
        %v8449 = vunpack.c.l.s4 1934713408
        %v8450 = vunpack.c.0.s8 %v8449
        %v8451 = vperm.slane %v8445, %v8450
        %v8453 = vunpack.c.l.s4 1934713408
        %v8454 = vunpack.c.0.s8 %v8453
        %v8455 = vperm.slane %v8447, %v8454
        %v8456 = vrot.slane %v8451, 4
        %v8457 = vsel %vm346, 0, %v8456
        %v8458 = vrot.slane %v8455, 4
        %v8459 = vsel %vm346, 0, %v8458
        %v8460 = vrot.slane %v8375, 4
        %v8461 = vsel %vm346, %v8460, %v8359
        %v8463 = vunpack.c.l.s4 1983009808
        %v8464 = vunpack.c.0.s8 %v8463
        %v8465 = vperm.slane %v8461, %v8464
        %v8466 = vrot.slane %v8383, 4
        %v8467 = vsel %vm346, %v8466, %v8367
        %v8469 = vunpack.c.l.s4 1983009808
        %v8470 = vunpack.c.0.s8 %v8469
        %v8471 = vperm.slane %v8467, %v8470
        %v8472 = vrot.slane %v8471, 4
        %v8473 = vsel %vm346, %v8472, %v8465
        %v8474 = vrot.slane %v8465, 4
        %v8475 = vsel %vm346, %v8471, %v8474
        %v8477 = vunpack.c.l.s4 1934713408
        %v8478 = vunpack.c.0.s8 %v8477
        %v8479 = vperm.slane %v8473, %v8478
        %v8481 = vunpack.c.l.s4 1934713408
        %v8482 = vunpack.c.0.s8 %v8481
        %v8483 = vperm.slane %v8475, %v8482
        %v8484 = vrot.slane %v8479, 4
        %v8485 = vsel %vm346, 0, %v8484
        %v8486 = vrot.slane %v8483, 4
        %v8487 = vsel %vm346, 0, %v8486
        %v8488 = vrot.slane %v8379, 4
        %v8489 = vsel %vm346, %v8488, %v8363
        %v8491 = vunpack.c.l.s4 1983009808
        %v8492 = vunpack.c.0.s8 %v8491
        %v8493 = vperm.slane %v8489, %v8492
        %v8494 = vrot.slane %v8387, 4
        %v8495 = vsel %vm346, %v8494, %v8371
        %v8497 = vunpack.c.l.s4 1983009808
        %v8498 = vunpack.c.0.s8 %v8497
        %v8499 = vperm.slane %v8495, %v8498
        %v8500 = vrot.slane %v8499, 4
        %v8501 = vsel %vm346, %v8500, %v8493
        %v8502 = vrot.slane %v8493, 4
        %v8503 = vsel %vm346, %v8499, %v8502
        %v8505 = vunpack.c.l.s4 1934713408
        %v8506 = vunpack.c.0.s8 %v8505
        %v8507 = vperm.slane %v8501, %v8506
        %v8509 = vunpack.c.l.s4 1934713408
        %v8510 = vunpack.c.0.s8 %v8509
        %v8511 = vperm.slane %v8503, %v8510
        %v8512 = vrot.slane %v8507, 4
        %v8513 = vsel %vm346, 0, %v8512
        %v8514 = vrot.slane %v8511, 4
        %v8515 = vsel %vm346, 0, %v8514
        %v8518 = vpack.i.b16 %v8451, %v8423
        %v8519 = vshrl.u32 %v8423, 16
        %v8520 = vshrl.u32 %v8451, 16
        %v8521 = vpack.i.b16 %v8520, %v8519
        %v8524 = vpack.i.b16 %v8457, %v8429
        %v8525 = vshrl.u32 %v8429, 16
        %v8526 = vshrl.u32 %v8457, 16
        %v8527 = vpack.i.b16 %v8526, %v8525
        %v8530 = vpack.i.b16 %v8455, %v8427
        %v8531 = vshrl.u32 %v8427, 16
        %v8532 = vshrl.u32 %v8455, 16
        %v8533 = vpack.i.b16 %v8532, %v8531
        %v8536 = vpack.i.b16 %v8459, %v8431
        %v8537 = vshrl.u32 %v8431, 16
        %v8538 = vshrl.u32 %v8459, 16
        %v8539 = vpack.i.b16 %v8538, %v8537
        %v8542 = vpack.i.b16 %v8507, %v8479
        %v8543 = vshrl.u32 %v8479, 16
        %v8544 = vshrl.u32 %v8507, 16
        %v8545 = vpack.i.b16 %v8544, %v8543
        %v8548 = vpack.i.b16 %v8513, %v8485
        %v8549 = vshrl.u32 %v8485, 16
        %v8550 = vshrl.u32 %v8513, 16
        %v8551 = vpack.i.b16 %v8550, %v8549
        %v8554 = vpack.i.b16 %v8511, %v8483
        %v8555 = vshrl.u32 %v8483, 16
        %v8556 = vshrl.u32 %v8511, 16
        %v8557 = vpack.i.b16 %v8556, %v8555
        %v8560 = vpack.i.b16 %v8515, %v8487
        %v8561 = vshrl.u32 %v8487, 16
        %v8562 = vshrl.u32 %v8515, 16
        %v8563 = vpack.i.b16 %v8562, %v8561
        %v8564 = vunpack.c.l.b16 %v8521
        %v8565 = vpack.c.b16 %v8564, %v8564
        %8566 = vrot.lane.b32.xlu0 %v8565, 16
        %v8567 = vpop.permute.xlu0 %8566
        %v8568 = vunpack.c.l.b16 %v8524
        %v8569 = vpack.c.b16 %v8568, %v8568
        %8570 = vrot.lane.b32.xlu0 %v8569, 32
        %v8571 = vpop.permute.xlu0 %8570
        %v8572 = vunpack.c.l.b16 %v8527
        %v8573 = vpack.c.b16 %v8572, %v8572
        %8574 = vrot.lane.b32.xlu0 %v8573, 48
        %v8575 = vpop.permute.xlu0 %8574
        %v8576 = vunpack.c.l.b16 %v8530
        %v8577 = vpack.c.b16 %v8576, %v8576
        %8578 = vrot.lane.b32.xlu0 %v8577, 64
        %v8579 = vpop.permute.xlu0 %8578
        %v8580 = vunpack.c.l.b16 %v8533
        %v8581 = vpack.c.b16 %v8580, %v8580
        %8582 = vrot.lane.b32.xlu0 %v8581, 80
        %v8583 = vpop.permute.xlu0 %8582
        %v8584 = vunpack.c.l.b16 %v8536
        %v8585 = vpack.c.b16 %v8584, %v8584
        %8586 = vrot.lane.b32.xlu0 %v8585, 96
        %v8587 = vpop.permute.xlu0 %8586
        %v8588 = vunpack.c.l.b16 %v8539
        %v8589 = vpack.c.b16 %v8588, %v8588
        %8590 = vrot.lane.b32.xlu0 %v8589, 112
        %v8591 = vpop.permute.xlu0 %8590
        %v8592 = vunpack.c.l.b16 %v8545
        %v8593 = vpack.c.b16 %v8592, %v8592
        %8594 = vrot.lane.b32.xlu0 %v8593, 16
        %v8595 = vpop.permute.xlu0 %8594
        %v8596 = vunpack.c.l.b16 %v8548
        %v8597 = vpack.c.b16 %v8596, %v8596
        %8598 = vrot.lane.b32.xlu0 %v8597, 32
        %v8599 = vpop.permute.xlu0 %8598
        %v8600 = vunpack.c.l.b16 %v8551
        %v8601 = vpack.c.b16 %v8600, %v8600
        %8602 = vrot.lane.b32.xlu0 %v8601, 48
        %v8603 = vpop.permute.xlu0 %8602
        %v8604 = vunpack.c.l.b16 %v8554
        %v8605 = vpack.c.b16 %v8604, %v8604
        %8606 = vrot.lane.b32.xlu0 %v8605, 64
        %v8607 = vpop.permute.xlu0 %8606
        %v8608 = vunpack.c.l.b16 %v8557
        %v8609 = vpack.c.b16 %v8608, %v8608
        %8610 = vrot.lane.b32.xlu0 %v8609, 80
        %v8611 = vpop.permute.xlu0 %8610
        %v8612 = vunpack.c.l.b16 %v8560
        %v8613 = vpack.c.b16 %v8612, %v8612
        %8614 = vrot.lane.b32.xlu0 %v8613, 96
        %v8615 = vpop.permute.xlu0 %8614
        %v8616 = vunpack.c.l.b16 %v8563
        %v8617 = vpack.c.b16 %v8616, %v8616
        %8618 = vrot.lane.b32.xlu0 %v8617, 112
        %v8619 = vpop.permute.xlu0 %8618
        %v8622 = vsel %vm562, %v8518, %v8567
        %v8624 = vsel %vm566, %v8622, %v8571
        %v8626 = vsel %vm569, %v8624, %v8575
        %v8628 = vsel %vm572, %v8626, %v8579
        %v8630 = vsel %vm575, %v8628, %v8583
        %v8632 = vsel %vm578, %v8630, %v8587
        %v8634 = vsel %vm581, %v8632, %v8591
        %v8637 = vsel %vm562, %v8542, %v8595
        %v8639 = vsel %vm566, %v8637, %v8599
        %v8641 = vsel %vm569, %v8639, %v8603
        %v8643 = vsel %vm572, %v8641, %v8607
        %v8645 = vsel %vm575, %v8643, %v8611
        %v8647 = vsel %vm578, %v8645, %v8615
        %v8649 = vsel %vm581, %v8647, %v8619
        %v8652 = vunpack.c.l.b16 %v8634
        %v8653 = vunpack.c.l.b16 %v8649
        %v8654 = vpack.c.b16 %v8653, %v8652
        %8656 = vst [vmem:[#allocation2 + $0x90] sm:$0xff] %v8654
        %v8657 = vld [vmem:[%s297] sm:$0xe]
        %v8658 = vld [vmem:[%s297 + $0x4] sm:$0xf]
        %v8659 = vld [vmem:[%s297 + $0x8] sm:$0x3]
        %v8660 = vld [vmem:[%s297 + $0xc] sm:$0xe]
        %v8661 = vld [vmem:[%s297 + $0x10] sm:$0xf]
        %v8662 = vld [vmem:[%s297 + $0x14] sm:$0x3]
        %v8663 = vld [vmem:[%s297 + $0x18] sm:$0xe]
        %v8664 = vld [vmem:[%s297 + $0x1c] sm:$0xf]
        %v8665 = vld [vmem:[%s297 + $0x20] sm:$0x3]
        %v8666 = vld [vmem:[%s297 + $0x24] sm:$0xe]
        %v8667 = vld [vmem:[%s297 + $0x28] sm:$0xf]
        %v8668 = vld [vmem:[%s297 + $0x2c] sm:$0x3]
        %v8669 = vld [vmem:[%s297 + $0x30] sm:$0xe]
        %v8670 = vld [vmem:[%s297 + $0x34] sm:$0xf]
        %v8671 = vld [vmem:[%s297 + $0x38] sm:$0x3]
        %v8672 = vld [vmem:[%s297 + $0x3c] sm:$0xe]
        %v8673 = vld [vmem:[%s297 + $0x40] sm:$0xf]
        %v8674 = vld [vmem:[%s297 + $0x44] sm:$0x3]
        %v8675 = vld [vmem:[%s297 + $0x48] sm:$0xe]
        %v8676 = vld [vmem:[%s297 + $0x4c] sm:$0xf]
        %v8677 = vld [vmem:[%s297 + $0x50] sm:$0x3]
        %v8678 = vld [vmem:[%s297 + $0x54] sm:$0xe]
        %v8679 = vld [vmem:[%s297 + $0x58] sm:$0xf]
        %v8680 = vld [vmem:[%s297 + $0x5c] sm:$0x3]
        %v8682 = vshrl.u32 %v8657, 16
        %v8684 = vrot.slane %v8682, 5
        %v8685 = vshll.u32 %v8657, 16
        %v8687 = vrot.slane %v8685, 6
        %v8688 = vor.u32 %v8684, %v8687
        %v8689 = vrot.slane %v8688, 4
        %v8691 = vshrl.u32 %v8658, 16
        %v8693 = vrot.slane %v8691, 5
        %v8694 = vshll.u32 %v8658, 16
        %v8696 = vrot.slane %v8694, 6
        %v8697 = vor.u32 %v8693, %v8696
        %v8698 = vsel %vm6516, %v8689, %v8697
        %v8699 = vrot.slane %v8697, 4
        %v8701 = vshrl.u32 %v8659, 16
        %v8703 = vrot.slane %v8701, 5
        %v8704 = vshll.u32 %v8659, 16
        %v8706 = vrot.slane %v8704, 6
        %v8707 = vor.u32 %v8703, %v8706
        %v8708 = vsel %vm6516, %v8699, %v8707
        %v8710 = vshrl.u32 %v8660, 16
        %v8712 = vrot.slane %v8710, 5
        %v8713 = vshll.u32 %v8660, 16
        %v8715 = vrot.slane %v8713, 6
        %v8716 = vor.u32 %v8712, %v8715
        %v8717 = vrot.slane %v8716, 4
        %v8719 = vshrl.u32 %v8661, 16
        %v8721 = vrot.slane %v8719, 5
        %v8722 = vshll.u32 %v8661, 16
        %v8724 = vrot.slane %v8722, 6
        %v8725 = vor.u32 %v8721, %v8724
        %v8726 = vsel %vm6516, %v8717, %v8725
        %v8727 = vrot.slane %v8725, 4
        %v8729 = vshrl.u32 %v8662, 16
        %v8731 = vrot.slane %v8729, 5
        %v8732 = vshll.u32 %v8662, 16
        %v8734 = vrot.slane %v8732, 6
        %v8735 = vor.u32 %v8731, %v8734
        %v8736 = vsel %vm6516, %v8727, %v8735
        %v8738 = vshrl.u32 %v8663, 16
        %v8740 = vrot.slane %v8738, 5
        %v8741 = vshll.u32 %v8663, 16
        %v8743 = vrot.slane %v8741, 6
        %v8744 = vor.u32 %v8740, %v8743
        %v8745 = vrot.slane %v8744, 4
        %v8747 = vshrl.u32 %v8664, 16
        %v8749 = vrot.slane %v8747, 5
        %v8750 = vshll.u32 %v8664, 16
        %v8752 = vrot.slane %v8750, 6
        %v8753 = vor.u32 %v8749, %v8752
        %v8754 = vsel %vm6516, %v8745, %v8753
        %v8755 = vrot.slane %v8753, 4
        %v8757 = vshrl.u32 %v8665, 16
        %v8759 = vrot.slane %v8757, 5
        %v8760 = vshll.u32 %v8665, 16
        %v8762 = vrot.slane %v8760, 6
        %v8763 = vor.u32 %v8759, %v8762
        %v8764 = vsel %vm6516, %v8755, %v8763
        %v8766 = vshrl.u32 %v8666, 16
        %v8768 = vrot.slane %v8766, 5
        %v8769 = vshll.u32 %v8666, 16
        %v8771 = vrot.slane %v8769, 6
        %v8772 = vor.u32 %v8768, %v8771
        %v8773 = vrot.slane %v8772, 4
        %v8775 = vshrl.u32 %v8667, 16
        %v8777 = vrot.slane %v8775, 5
        %v8778 = vshll.u32 %v8667, 16
        %v8780 = vrot.slane %v8778, 6
        %v8781 = vor.u32 %v8777, %v8780
        %v8782 = vsel %vm6516, %v8773, %v8781
        %v8783 = vrot.slane %v8781, 4
        %v8785 = vshrl.u32 %v8668, 16
        %v8787 = vrot.slane %v8785, 5
        %v8788 = vshll.u32 %v8668, 16
        %v8790 = vrot.slane %v8788, 6
        %v8791 = vor.u32 %v8787, %v8790
        %v8792 = vsel %vm6516, %v8783, %v8791
        %v8794 = vshrl.u32 %v8669, 16
        %v8796 = vrot.slane %v8794, 5
        %v8797 = vshll.u32 %v8669, 16
        %v8799 = vrot.slane %v8797, 6
        %v8800 = vor.u32 %v8796, %v8799
        %v8801 = vrot.slane %v8800, 4
        %v8803 = vshrl.u32 %v8670, 16
        %v8805 = vrot.slane %v8803, 5
        %v8806 = vshll.u32 %v8670, 16
        %v8808 = vrot.slane %v8806, 6
        %v8809 = vor.u32 %v8805, %v8808
        %v8810 = vsel %vm6516, %v8801, %v8809
        %v8811 = vrot.slane %v8809, 4
        %v8813 = vshrl.u32 %v8671, 16
        %v8815 = vrot.slane %v8813, 5
        %v8816 = vshll.u32 %v8671, 16
        %v8818 = vrot.slane %v8816, 6
        %v8819 = vor.u32 %v8815, %v8818
        %v8820 = vsel %vm6516, %v8811, %v8819
        %v8822 = vshrl.u32 %v8672, 16
        %v8824 = vrot.slane %v8822, 5
        %v8825 = vshll.u32 %v8672, 16
        %v8827 = vrot.slane %v8825, 6
        %v8828 = vor.u32 %v8824, %v8827
        %v8829 = vrot.slane %v8828, 4
        %v8831 = vshrl.u32 %v8673, 16
        %v8833 = vrot.slane %v8831, 5
        %v8834 = vshll.u32 %v8673, 16
        %v8836 = vrot.slane %v8834, 6
        %v8837 = vor.u32 %v8833, %v8836
        %v8838 = vsel %vm6516, %v8829, %v8837
        %v8839 = vrot.slane %v8837, 4
        %v8841 = vshrl.u32 %v8674, 16
        %v8843 = vrot.slane %v8841, 5
        %v8844 = vshll.u32 %v8674, 16
        %v8846 = vrot.slane %v8844, 6
        %v8847 = vor.u32 %v8843, %v8846
        %v8848 = vsel %vm6516, %v8839, %v8847
        %v8850 = vshrl.u32 %v8675, 16
        %v8852 = vrot.slane %v8850, 5
        %v8853 = vshll.u32 %v8675, 16
        %v8855 = vrot.slane %v8853, 6
        %v8856 = vor.u32 %v8852, %v8855
        %v8857 = vrot.slane %v8856, 4
        %v8859 = vshrl.u32 %v8676, 16
        %v8861 = vrot.slane %v8859, 5
        %v8862 = vshll.u32 %v8676, 16
        %v8864 = vrot.slane %v8862, 6
        %v8865 = vor.u32 %v8861, %v8864
        %v8866 = vsel %vm6516, %v8857, %v8865
        %v8867 = vrot.slane %v8865, 4
        %v8869 = vshrl.u32 %v8677, 16
        %v8871 = vrot.slane %v8869, 5
        %v8872 = vshll.u32 %v8677, 16
        %v8874 = vrot.slane %v8872, 6
        %v8875 = vor.u32 %v8871, %v8874
        %v8876 = vsel %vm6516, %v8867, %v8875
        %v8878 = vshrl.u32 %v8678, 16
        %v8880 = vrot.slane %v8878, 5
        %v8881 = vshll.u32 %v8678, 16
        %v8883 = vrot.slane %v8881, 6
        %v8884 = vor.u32 %v8880, %v8883
        %v8885 = vrot.slane %v8884, 4
        %v8887 = vshrl.u32 %v8679, 16
        %v8889 = vrot.slane %v8887, 5
        %v8890 = vshll.u32 %v8679, 16
        %v8892 = vrot.slane %v8890, 6
        %v8893 = vor.u32 %v8889, %v8892
        %v8894 = vsel %vm6516, %v8885, %v8893
        %v8895 = vrot.slane %v8893, 4
        %v8897 = vshrl.u32 %v8680, 16
        %v8899 = vrot.slane %v8897, 5
        %v8900 = vshll.u32 %v8680, 16
        %v8902 = vrot.slane %v8900, 6
        %v8903 = vor.u32 %v8899, %v8902
        %v8904 = vsel %vm6516, %v8895, %v8903
        %8905 = vrot.lane.b32.xlu0 %v8698, 124
        %v8906 = vpop.permute.xlu0 %8905
        %8907 = vrot.lane.b32.xlu0 %v8708, 124
        %v8908 = vpop.permute.xlu0 %8907
        %8909 = vrot.lane.b32.xlu0 %v8726, 124
        %v8910 = vpop.permute.xlu0 %8909
        %8911 = vrot.lane.b32.xlu0 %v8736, 124
        %v8912 = vpop.permute.xlu0 %8911
        %8913 = vrot.lane.b32.xlu0 %v8754, 124
        %v8914 = vpop.permute.xlu0 %8913
        %8915 = vrot.lane.b32.xlu0 %v8764, 124
        %v8916 = vpop.permute.xlu0 %8915
        %8917 = vrot.lane.b32.xlu0 %v8782, 124
        %v8918 = vpop.permute.xlu0 %8917
        %8919 = vrot.lane.b32.xlu0 %v8792, 124
        %v8920 = vpop.permute.xlu0 %8919
        %8921 = vrot.lane.b32.xlu0 %v8810, 124
        %v8922 = vpop.permute.xlu0 %8921
        %8923 = vrot.lane.b32.xlu0 %v8820, 124
        %v8924 = vpop.permute.xlu0 %8923
        %8925 = vrot.lane.b32.xlu0 %v8838, 124
        %v8926 = vpop.permute.xlu0 %8925
        %8927 = vrot.lane.b32.xlu0 %v8848, 124
        %v8928 = vpop.permute.xlu0 %8927
        %8929 = vrot.lane.b32.xlu0 %v8866, 124
        %v8930 = vpop.permute.xlu0 %8929
        %8931 = vrot.lane.b32.xlu0 %v8876, 124
        %v8932 = vpop.permute.xlu0 %8931
        %8933 = vrot.lane.b32.xlu0 %v8894, 124
        %v8934 = vpop.permute.xlu0 %8933
        %8935 = vrot.lane.b32.xlu0 %v8904, 124
        %v8936 = vpop.permute.xlu0 %8935
        %v8953 = vrot.slane %v8922, 4
        %v8954 = vsel %vm346, %v8953, %v8906
        %v8956 = vunpack.c.l.s4 1983009808
        %v8957 = vunpack.c.0.s8 %v8956
        %v8958 = vperm.slane %v8954, %v8957
        %v8959 = vrot.slane %v8930, 4
        %v8960 = vsel %vm346, %v8959, %v8914
        %v8962 = vunpack.c.l.s4 1983009808
        %v8963 = vunpack.c.0.s8 %v8962
        %v8964 = vperm.slane %v8960, %v8963
        %v8965 = vrot.slane %v8964, 4
        %v8966 = vsel %vm346, %v8965, %v8958
        %v8967 = vrot.slane %v8958, 4
        %v8968 = vsel %vm346, %v8964, %v8967
        %v8970 = vunpack.c.l.s4 1934713408
        %v8971 = vunpack.c.0.s8 %v8970
        %v8972 = vperm.slane %v8966, %v8971
        %v8974 = vunpack.c.l.s4 1934713408
        %v8975 = vunpack.c.0.s8 %v8974
        %v8976 = vperm.slane %v8968, %v8975
        %v8977 = vrot.slane %v8972, 4
        %v8978 = vsel %vm346, 0, %v8977
        %v8979 = vrot.slane %v8976, 4
        %v8980 = vsel %vm346, 0, %v8979
        %v8981 = vrot.slane %v8926, 4
        %v8982 = vsel %vm346, %v8981, %v8910
        %v8984 = vunpack.c.l.s4 1983009808
        %v8985 = vunpack.c.0.s8 %v8984
        %v8986 = vperm.slane %v8982, %v8985
        %v8987 = vrot.slane %v8934, 4
        %v8988 = vsel %vm346, %v8987, %v8918
        %v8990 = vunpack.c.l.s4 1983009808
        %v8991 = vunpack.c.0.s8 %v8990
        %v8992 = vperm.slane %v8988, %v8991
        %v8993 = vrot.slane %v8992, 4
        %v8994 = vsel %vm346, %v8993, %v8986
        %v8995 = vrot.slane %v8986, 4
        %v8996 = vsel %vm346, %v8992, %v8995
        %v8998 = vunpack.c.l.s4 1934713408
        %v8999 = vunpack.c.0.s8 %v8998
        %v9000 = vperm.slane %v8994, %v8999
        %v9002 = vunpack.c.l.s4 1934713408
        %v9003 = vunpack.c.0.s8 %v9002
        %v9004 = vperm.slane %v8996, %v9003
        %v9005 = vrot.slane %v9000, 4
        %v9006 = vsel %vm346, 0, %v9005
        %v9007 = vrot.slane %v9004, 4
        %v9008 = vsel %vm346, 0, %v9007
        %v9009 = vrot.slane %v8924, 4
        %v9010 = vsel %vm346, %v9009, %v8908
        %v9012 = vunpack.c.l.s4 1983009808
        %v9013 = vunpack.c.0.s8 %v9012
        %v9014 = vperm.slane %v9010, %v9013
        %v9015 = vrot.slane %v8932, 4
        %v9016 = vsel %vm346, %v9015, %v8916
        %v9018 = vunpack.c.l.s4 1983009808
        %v9019 = vunpack.c.0.s8 %v9018
        %v9020 = vperm.slane %v9016, %v9019
        %v9021 = vrot.slane %v9020, 4
        %v9022 = vsel %vm346, %v9021, %v9014
        %v9023 = vrot.slane %v9014, 4
        %v9024 = vsel %vm346, %v9020, %v9023
        %v9026 = vunpack.c.l.s4 1934713408
        %v9027 = vunpack.c.0.s8 %v9026
        %v9028 = vperm.slane %v9022, %v9027
        %v9030 = vunpack.c.l.s4 1934713408
        %v9031 = vunpack.c.0.s8 %v9030
        %v9032 = vperm.slane %v9024, %v9031
        %v9033 = vrot.slane %v9028, 4
        %v9034 = vsel %vm346, 0, %v9033
        %v9035 = vrot.slane %v9032, 4
        %v9036 = vsel %vm346, 0, %v9035
        %v9037 = vrot.slane %v8928, 4
        %v9038 = vsel %vm346, %v9037, %v8912
        %v9040 = vunpack.c.l.s4 1983009808
        %v9041 = vunpack.c.0.s8 %v9040
        %v9042 = vperm.slane %v9038, %v9041
        %v9043 = vrot.slane %v8936, 4
        %v9044 = vsel %vm346, %v9043, %v8920
        %v9046 = vunpack.c.l.s4 1983009808
        %v9047 = vunpack.c.0.s8 %v9046
        %v9048 = vperm.slane %v9044, %v9047
        %v9049 = vrot.slane %v9048, 4
        %v9050 = vsel %vm346, %v9049, %v9042
        %v9051 = vrot.slane %v9042, 4
        %v9052 = vsel %vm346, %v9048, %v9051
        %v9054 = vunpack.c.l.s4 1934713408
        %v9055 = vunpack.c.0.s8 %v9054
        %v9056 = vperm.slane %v9050, %v9055
        %v9058 = vunpack.c.l.s4 1934713408
        %v9059 = vunpack.c.0.s8 %v9058
        %v9060 = vperm.slane %v9052, %v9059
        %v9061 = vrot.slane %v9056, 4
        %v9062 = vsel %vm346, 0, %v9061
        %v9063 = vrot.slane %v9060, 4
        %v9064 = vsel %vm346, 0, %v9063
        %v9067 = vpack.i.b16 %v9000, %v8972
        %v9068 = vshrl.u32 %v8972, 16
        %v9069 = vshrl.u32 %v9000, 16
        %v9070 = vpack.i.b16 %v9069, %v9068
        %v9073 = vpack.i.b16 %v9006, %v8978
        %v9074 = vshrl.u32 %v8978, 16
        %v9075 = vshrl.u32 %v9006, 16
        %v9076 = vpack.i.b16 %v9075, %v9074
        %v9079 = vpack.i.b16 %v9004, %v8976
        %v9080 = vshrl.u32 %v8976, 16
        %v9081 = vshrl.u32 %v9004, 16
        %v9082 = vpack.i.b16 %v9081, %v9080
        %v9085 = vpack.i.b16 %v9008, %v8980
        %v9086 = vshrl.u32 %v8980, 16
        %v9087 = vshrl.u32 %v9008, 16
        %v9088 = vpack.i.b16 %v9087, %v9086
        %v9091 = vpack.i.b16 %v9056, %v9028
        %v9092 = vshrl.u32 %v9028, 16
        %v9093 = vshrl.u32 %v9056, 16
        %v9094 = vpack.i.b16 %v9093, %v9092
        %v9097 = vpack.i.b16 %v9062, %v9034
        %v9098 = vshrl.u32 %v9034, 16
        %v9099 = vshrl.u32 %v9062, 16
        %v9100 = vpack.i.b16 %v9099, %v9098
        %v9103 = vpack.i.b16 %v9060, %v9032
        %v9104 = vshrl.u32 %v9032, 16
        %v9105 = vshrl.u32 %v9060, 16
        %v9106 = vpack.i.b16 %v9105, %v9104
        %v9109 = vpack.i.b16 %v9064, %v9036
        %v9110 = vshrl.u32 %v9036, 16
        %v9111 = vshrl.u32 %v9064, 16
        %v9112 = vpack.i.b16 %v9111, %v9110
        %v9113 = vunpack.c.l.b16 %v9070
        %v9114 = vpack.c.b16 %v9113, %v9113
        %9115 = vrot.lane.b32.xlu0 %v9114, 16
        %v9116 = vpop.permute.xlu0 %9115
        %v9117 = vunpack.c.l.b16 %v9073
        %v9118 = vpack.c.b16 %v9117, %v9117
        %9119 = vrot.lane.b32.xlu0 %v9118, 32
        %v9120 = vpop.permute.xlu0 %9119
        %v9121 = vunpack.c.l.b16 %v9076
        %v9122 = vpack.c.b16 %v9121, %v9121
        %9123 = vrot.lane.b32.xlu0 %v9122, 48
        %v9124 = vpop.permute.xlu0 %9123
        %v9125 = vunpack.c.l.b16 %v9079
        %v9126 = vpack.c.b16 %v9125, %v9125
        %9127 = vrot.lane.b32.xlu0 %v9126, 64
        %v9128 = vpop.permute.xlu0 %9127
        %v9129 = vunpack.c.l.b16 %v9082
        %v9130 = vpack.c.b16 %v9129, %v9129
        %9131 = vrot.lane.b32.xlu0 %v9130, 80
        %v9132 = vpop.permute.xlu0 %9131
        %v9133 = vunpack.c.l.b16 %v9085
        %v9134 = vpack.c.b16 %v9133, %v9133
        %9135 = vrot.lane.b32.xlu0 %v9134, 96
        %v9136 = vpop.permute.xlu0 %9135
        %v9137 = vunpack.c.l.b16 %v9088
        %v9138 = vpack.c.b16 %v9137, %v9137
        %9139 = vrot.lane.b32.xlu0 %v9138, 112
        %v9140 = vpop.permute.xlu0 %9139
        %v9141 = vunpack.c.l.b16 %v9094
        %v9142 = vpack.c.b16 %v9141, %v9141
        %9143 = vrot.lane.b32.xlu0 %v9142, 16
        %v9144 = vpop.permute.xlu0 %9143
        %v9145 = vunpack.c.l.b16 %v9097
        %v9146 = vpack.c.b16 %v9145, %v9145
        %9147 = vrot.lane.b32.xlu0 %v9146, 32
        %v9148 = vpop.permute.xlu0 %9147
        %v9149 = vunpack.c.l.b16 %v9100
        %v9150 = vpack.c.b16 %v9149, %v9149
        %9151 = vrot.lane.b32.xlu0 %v9150, 48
        %v9152 = vpop.permute.xlu0 %9151
        %v9153 = vunpack.c.l.b16 %v9103
        %v9154 = vpack.c.b16 %v9153, %v9153
        %9155 = vrot.lane.b32.xlu0 %v9154, 64
        %v9156 = vpop.permute.xlu0 %9155
        %v9157 = vunpack.c.l.b16 %v9106
        %v9158 = vpack.c.b16 %v9157, %v9157
        %9159 = vrot.lane.b32.xlu0 %v9158, 80
        %v9160 = vpop.permute.xlu0 %9159
        %v9161 = vunpack.c.l.b16 %v9109
        %v9162 = vpack.c.b16 %v9161, %v9161
        %9163 = vrot.lane.b32.xlu0 %v9162, 96
        %v9164 = vpop.permute.xlu0 %9163
        %v9165 = vunpack.c.l.b16 %v9112
        %v9166 = vpack.c.b16 %v9165, %v9165
        %9167 = vrot.lane.b32.xlu0 %v9166, 112
        %v9168 = vpop.permute.xlu0 %9167
        %v9171 = vsel %vm562, %v9067, %v9116
        %v9173 = vsel %vm566, %v9171, %v9120
        %v9175 = vsel %vm569, %v9173, %v9124
        %v9177 = vsel %vm572, %v9175, %v9128
        %v9179 = vsel %vm575, %v9177, %v9132
        %v9181 = vsel %vm578, %v9179, %v9136
        %v9183 = vsel %vm581, %v9181, %v9140
        %v9186 = vsel %vm562, %v9091, %v9144
        %v9188 = vsel %vm566, %v9186, %v9148
        %v9190 = vsel %vm569, %v9188, %v9152
        %v9192 = vsel %vm572, %v9190, %v9156
        %v9194 = vsel %vm575, %v9192, %v9160
        %v9196 = vsel %vm578, %v9194, %v9164
        %v9198 = vsel %vm581, %v9196, %v9168
        %v9201 = vunpack.c.l.b16 %v9183
        %v9202 = vunpack.c.l.b16 %v9198
        %v9203 = vpack.c.b16 %v9202, %v9201
        %9205 = vst [vmem:[#allocation2 + $0x98] sm:$0xff] %v9203
        %v9206 = vld [vmem:[%s297] sm:$0xc]
        %v9207 = vld [vmem:[%s297 + $0x4] sm:$0xf]
        %v9208 = vld [vmem:[%s297 + $0x8] sm:$0x3]
        %v9209 = vld [vmem:[%s297 + $0xc] sm:$0xc]
        %v9210 = vld [vmem:[%s297 + $0x10] sm:$0xf]
        %v9211 = vld [vmem:[%s297 + $0x14] sm:$0x3]
        %v9212 = vld [vmem:[%s297 + $0x18] sm:$0xc]
        %v9213 = vld [vmem:[%s297 + $0x1c] sm:$0xf]
        %v9214 = vld [vmem:[%s297 + $0x20] sm:$0x3]
        %v9215 = vld [vmem:[%s297 + $0x24] sm:$0xc]
        %v9216 = vld [vmem:[%s297 + $0x28] sm:$0xf]
        %v9217 = vld [vmem:[%s297 + $0x2c] sm:$0x3]
        %v9218 = vld [vmem:[%s297 + $0x30] sm:$0xc]
        %v9219 = vld [vmem:[%s297 + $0x34] sm:$0xf]
        %v9220 = vld [vmem:[%s297 + $0x38] sm:$0x3]
        %v9221 = vld [vmem:[%s297 + $0x3c] sm:$0xc]
        %v9222 = vld [vmem:[%s297 + $0x40] sm:$0xf]
        %v9223 = vld [vmem:[%s297 + $0x44] sm:$0x3]
        %v9224 = vld [vmem:[%s297 + $0x48] sm:$0xc]
        %v9225 = vld [vmem:[%s297 + $0x4c] sm:$0xf]
        %v9226 = vld [vmem:[%s297 + $0x50] sm:$0x3]
        %v9227 = vld [vmem:[%s297 + $0x54] sm:$0xc]
        %v9228 = vld [vmem:[%s297 + $0x58] sm:$0xf]
        %v9229 = vld [vmem:[%s297 + $0x5c] sm:$0x3]
        %vm9254 = vcmask 1041408
        %vm9255 = vcmask 1045508
        %vm9256 = vmor %vm9254, %vm9255
        %v9257 = vrot.slane %v9206, 6
        %v9258 = vrot.slane %v9257, 4
        %v9259 = vrot.slane %v9207, 6
        %v9260 = vsel %vm9256, %v9258, %v9259
        %v9261 = vrot.slane %v9259, 4
        %v9262 = vrot.slane %v9208, 6
        %v9263 = vsel %vm9256, %v9261, %v9262
        %v9264 = vrot.slane %v9209, 6
        %v9265 = vrot.slane %v9264, 4
        %v9266 = vrot.slane %v9210, 6
        %v9267 = vsel %vm9256, %v9265, %v9266
        %v9268 = vrot.slane %v9266, 4
        %v9269 = vrot.slane %v9211, 6
        %v9270 = vsel %vm9256, %v9268, %v9269
        %v9271 = vrot.slane %v9212, 6
        %v9272 = vrot.slane %v9271, 4
        %v9273 = vrot.slane %v9213, 6
        %v9274 = vsel %vm9256, %v9272, %v9273
        %v9275 = vrot.slane %v9273, 4
        %v9276 = vrot.slane %v9214, 6
        %v9277 = vsel %vm9256, %v9275, %v9276
        %v9278 = vrot.slane %v9215, 6
        %v9279 = vrot.slane %v9278, 4
        %v9280 = vrot.slane %v9216, 6
        %v9281 = vsel %vm9256, %v9279, %v9280
        %v9282 = vrot.slane %v9280, 4
        %v9283 = vrot.slane %v9217, 6
        %v9284 = vsel %vm9256, %v9282, %v9283
        %v9285 = vrot.slane %v9218, 6
        %v9286 = vrot.slane %v9285, 4
        %v9287 = vrot.slane %v9219, 6
        %v9288 = vsel %vm9256, %v9286, %v9287
        %v9289 = vrot.slane %v9287, 4
        %v9290 = vrot.slane %v9220, 6
        %v9291 = vsel %vm9256, %v9289, %v9290
        %v9292 = vrot.slane %v9221, 6
        %v9293 = vrot.slane %v9292, 4
        %v9294 = vrot.slane %v9222, 6
        %v9295 = vsel %vm9256, %v9293, %v9294
        %v9296 = vrot.slane %v9294, 4
        %v9297 = vrot.slane %v9223, 6
        %v9298 = vsel %vm9256, %v9296, %v9297
        %v9299 = vrot.slane %v9224, 6
        %v9300 = vrot.slane %v9299, 4
        %v9301 = vrot.slane %v9225, 6
        %v9302 = vsel %vm9256, %v9300, %v9301
        %v9303 = vrot.slane %v9301, 4
        %v9304 = vrot.slane %v9226, 6
        %v9305 = vsel %vm9256, %v9303, %v9304
        %v9306 = vrot.slane %v9227, 6
        %v9307 = vrot.slane %v9306, 4
        %v9308 = vrot.slane %v9228, 6
        %v9309 = vsel %vm9256, %v9307, %v9308
        %v9310 = vrot.slane %v9308, 4
        %v9311 = vrot.slane %v9229, 6
        %v9312 = vsel %vm9256, %v9310, %v9311
        %v9329 = vrot.slane %v9288, 4
        %v9330 = vsel %vm346, %v9329, %v9260
        %v9332 = vunpack.c.l.s4 1983009808
        %v9333 = vunpack.c.0.s8 %v9332
        %v9334 = vperm.slane %v9330, %v9333
        %v9335 = vrot.slane %v9302, 4
        %v9336 = vsel %vm346, %v9335, %v9274
        %v9338 = vunpack.c.l.s4 1983009808
        %v9339 = vunpack.c.0.s8 %v9338
        %v9340 = vperm.slane %v9336, %v9339
        %v9341 = vrot.slane %v9340, 4
        %v9342 = vsel %vm346, %v9341, %v9334
        %v9343 = vrot.slane %v9334, 4
        %v9344 = vsel %vm346, %v9340, %v9343
        %v9346 = vunpack.c.l.s4 1934713408
        %v9347 = vunpack.c.0.s8 %v9346
        %v9348 = vperm.slane %v9342, %v9347
        %v9350 = vunpack.c.l.s4 1934713408
        %v9351 = vunpack.c.0.s8 %v9350
        %v9352 = vperm.slane %v9344, %v9351
        %v9353 = vrot.slane %v9348, 4
        %v9354 = vsel %vm346, 0, %v9353
        %v9355 = vrot.slane %v9352, 4
        %v9356 = vsel %vm346, 0, %v9355
        %v9357 = vrot.slane %v9295, 4
        %v9358 = vsel %vm346, %v9357, %v9267
        %v9360 = vunpack.c.l.s4 1983009808
        %v9361 = vunpack.c.0.s8 %v9360
        %v9362 = vperm.slane %v9358, %v9361
        %v9363 = vrot.slane %v9309, 4
        %v9364 = vsel %vm346, %v9363, %v9281
        %v9366 = vunpack.c.l.s4 1983009808
        %v9367 = vunpack.c.0.s8 %v9366
        %v9368 = vperm.slane %v9364, %v9367
        %v9369 = vrot.slane %v9368, 4
        %v9370 = vsel %vm346, %v9369, %v9362
        %v9371 = vrot.slane %v9362, 4
        %v9372 = vsel %vm346, %v9368, %v9371
        %v9374 = vunpack.c.l.s4 1934713408
        %v9375 = vunpack.c.0.s8 %v9374
        %v9376 = vperm.slane %v9370, %v9375
        %v9378 = vunpack.c.l.s4 1934713408
        %v9379 = vunpack.c.0.s8 %v9378
        %v9380 = vperm.slane %v9372, %v9379
        %v9381 = vrot.slane %v9376, 4
        %v9382 = vsel %vm346, 0, %v9381
        %v9383 = vrot.slane %v9380, 4
        %v9384 = vsel %vm346, 0, %v9383
        %v9385 = vrot.slane %v9291, 4
        %v9386 = vsel %vm346, %v9385, %v9263
        %v9388 = vunpack.c.l.s4 1983009808
        %v9389 = vunpack.c.0.s8 %v9388
        %v9390 = vperm.slane %v9386, %v9389
        %v9391 = vrot.slane %v9305, 4
        %v9392 = vsel %vm346, %v9391, %v9277
        %v9394 = vunpack.c.l.s4 1983009808
        %v9395 = vunpack.c.0.s8 %v9394
        %v9396 = vperm.slane %v9392, %v9395
        %v9397 = vrot.slane %v9396, 4
        %v9398 = vsel %vm346, %v9397, %v9390
        %v9399 = vrot.slane %v9390, 4
        %v9400 = vsel %vm346, %v9396, %v9399
        %v9402 = vunpack.c.l.s4 1934713408
        %v9403 = vunpack.c.0.s8 %v9402
        %v9404 = vperm.slane %v9398, %v9403
        %v9406 = vunpack.c.l.s4 1934713408
        %v9407 = vunpack.c.0.s8 %v9406
        %v9408 = vperm.slane %v9400, %v9407
        %v9409 = vrot.slane %v9404, 4
        %v9410 = vsel %vm346, 0, %v9409
        %v9411 = vrot.slane %v9408, 4
        %v9412 = vsel %vm346, 0, %v9411
        %v9413 = vrot.slane %v9298, 4
        %v9414 = vsel %vm346, %v9413, %v9270
        %v9416 = vunpack.c.l.s4 1983009808
        %v9417 = vunpack.c.0.s8 %v9416
        %v9418 = vperm.slane %v9414, %v9417
        %v9419 = vrot.slane %v9312, 4
        %v9420 = vsel %vm346, %v9419, %v9284
        %v9422 = vunpack.c.l.s4 1983009808
        %v9423 = vunpack.c.0.s8 %v9422
        %v9424 = vperm.slane %v9420, %v9423
        %v9425 = vrot.slane %v9424, 4
        %v9426 = vsel %vm346, %v9425, %v9418
        %v9427 = vrot.slane %v9418, 4
        %v9428 = vsel %vm346, %v9424, %v9427
        %v9430 = vunpack.c.l.s4 1934713408
        %v9431 = vunpack.c.0.s8 %v9430
        %v9432 = vperm.slane %v9426, %v9431
        %v9434 = vunpack.c.l.s4 1934713408
        %v9435 = vunpack.c.0.s8 %v9434
        %v9436 = vperm.slane %v9428, %v9435
        %v9437 = vrot.slane %v9432, 4
        %v9438 = vsel %vm346, 0, %v9437
        %v9439 = vrot.slane %v9436, 4
        %v9440 = vsel %vm346, 0, %v9439
        %v9443 = vpack.i.b16 %v9376, %v9348
        %v9444 = vshrl.u32 %v9348, 16
        %v9445 = vshrl.u32 %v9376, 16
        %v9446 = vpack.i.b16 %v9445, %v9444
        %v9449 = vpack.i.b16 %v9382, %v9354
        %v9450 = vshrl.u32 %v9354, 16
        %v9451 = vshrl.u32 %v9382, 16
        %v9452 = vpack.i.b16 %v9451, %v9450
        %v9455 = vpack.i.b16 %v9380, %v9352
        %v9456 = vshrl.u32 %v9352, 16
        %v9457 = vshrl.u32 %v9380, 16
        %v9458 = vpack.i.b16 %v9457, %v9456
        %v9461 = vpack.i.b16 %v9384, %v9356
        %v9462 = vshrl.u32 %v9356, 16
        %v9463 = vshrl.u32 %v9384, 16
        %v9464 = vpack.i.b16 %v9463, %v9462
        %v9467 = vpack.i.b16 %v9432, %v9404
        %v9468 = vshrl.u32 %v9404, 16
        %v9469 = vshrl.u32 %v9432, 16
        %v9470 = vpack.i.b16 %v9469, %v9468
        %v9473 = vpack.i.b16 %v9438, %v9410
        %v9474 = vshrl.u32 %v9410, 16
        %v9475 = vshrl.u32 %v9438, 16
        %v9476 = vpack.i.b16 %v9475, %v9474
        %v9479 = vpack.i.b16 %v9436, %v9408
        %v9480 = vshrl.u32 %v9408, 16
        %v9481 = vshrl.u32 %v9436, 16
        %v9482 = vpack.i.b16 %v9481, %v9480
        %v9485 = vpack.i.b16 %v9440, %v9412
        %v9486 = vshrl.u32 %v9412, 16
        %v9487 = vshrl.u32 %v9440, 16
        %v9488 = vpack.i.b16 %v9487, %v9486
        %v9489 = vunpack.c.l.b16 %v9446
        %v9490 = vpack.c.b16 %v9489, %v9489
        %9491 = vrot.lane.b32.xlu0 %v9490, 16
        %v9492 = vpop.permute.xlu0 %9491
        %v9493 = vunpack.c.l.b16 %v9449
        %v9494 = vpack.c.b16 %v9493, %v9493
        %9495 = vrot.lane.b32.xlu0 %v9494, 32
        %v9496 = vpop.permute.xlu0 %9495
        %v9497 = vunpack.c.l.b16 %v9452
        %v9498 = vpack.c.b16 %v9497, %v9497
        %9499 = vrot.lane.b32.xlu0 %v9498, 48
        %v9500 = vpop.permute.xlu0 %9499
        %v9501 = vunpack.c.l.b16 %v9455
        %v9502 = vpack.c.b16 %v9501, %v9501
        %9503 = vrot.lane.b32.xlu0 %v9502, 64
        %v9504 = vpop.permute.xlu0 %9503
        %v9505 = vunpack.c.l.b16 %v9458
        %v9506 = vpack.c.b16 %v9505, %v9505
        %9507 = vrot.lane.b32.xlu0 %v9506, 80
        %v9508 = vpop.permute.xlu0 %9507
        %v9509 = vunpack.c.l.b16 %v9461
        %v9510 = vpack.c.b16 %v9509, %v9509
        %9511 = vrot.lane.b32.xlu0 %v9510, 96
        %v9512 = vpop.permute.xlu0 %9511
        %v9513 = vunpack.c.l.b16 %v9464
        %v9514 = vpack.c.b16 %v9513, %v9513
        %9515 = vrot.lane.b32.xlu0 %v9514, 112
        %v9516 = vpop.permute.xlu0 %9515
        %v9517 = vunpack.c.l.b16 %v9470
        %v9518 = vpack.c.b16 %v9517, %v9517
        %9519 = vrot.lane.b32.xlu0 %v9518, 16
        %v9520 = vpop.permute.xlu0 %9519
        %v9521 = vunpack.c.l.b16 %v9473
        %v9522 = vpack.c.b16 %v9521, %v9521
        %9523 = vrot.lane.b32.xlu0 %v9522, 32
        %v9524 = vpop.permute.xlu0 %9523
        %v9525 = vunpack.c.l.b16 %v9476
        %v9526 = vpack.c.b16 %v9525, %v9525
        %9527 = vrot.lane.b32.xlu0 %v9526, 48
        %v9528 = vpop.permute.xlu0 %9527
        %v9529 = vunpack.c.l.b16 %v9479
        %v9530 = vpack.c.b16 %v9529, %v9529
        %9531 = vrot.lane.b32.xlu0 %v9530, 64
        %v9532 = vpop.permute.xlu0 %9531
        %v9533 = vunpack.c.l.b16 %v9482
        %v9534 = vpack.c.b16 %v9533, %v9533
        %9535 = vrot.lane.b32.xlu0 %v9534, 80
        %v9536 = vpop.permute.xlu0 %9535
        %v9537 = vunpack.c.l.b16 %v9485
        %v9538 = vpack.c.b16 %v9537, %v9537
        %9539 = vrot.lane.b32.xlu0 %v9538, 96
        %v9540 = vpop.permute.xlu0 %9539
        %v9541 = vunpack.c.l.b16 %v9488
        %v9542 = vpack.c.b16 %v9541, %v9541
        %9543 = vrot.lane.b32.xlu0 %v9542, 112
        %v9544 = vpop.permute.xlu0 %9543
        %v9547 = vsel %vm562, %v9443, %v9492
        %v9549 = vsel %vm566, %v9547, %v9496
        %v9551 = vsel %vm569, %v9549, %v9500
        %v9553 = vsel %vm572, %v9551, %v9504
        %v9555 = vsel %vm575, %v9553, %v9508
        %v9557 = vsel %vm578, %v9555, %v9512
        %v9559 = vsel %vm581, %v9557, %v9516
        %v9562 = vsel %vm562, %v9467, %v9520
        %v9564 = vsel %vm566, %v9562, %v9524
        %v9566 = vsel %vm569, %v9564, %v9528
        %v9568 = vsel %vm572, %v9566, %v9532
        %v9570 = vsel %vm575, %v9568, %v9536
        %v9572 = vsel %vm578, %v9570, %v9540
        %v9574 = vsel %vm581, %v9572, %v9544
        %v9577 = vunpack.c.l.b16 %v9559
        %v9578 = vunpack.c.l.b16 %v9574
        %v9579 = vpack.c.b16 %v9578, %v9577
        %9581 = vst [vmem:[#allocation2 + $0xa0] sm:$0xff] %v9579
        %v9582 = vld [vmem:[%s297] sm:$0xc]
        %v9583 = vld [vmem:[%s297 + $0x4] sm:$0xf]
        %v9584 = vld [vmem:[%s297 + $0x8] sm:$0x3]
        %v9585 = vld [vmem:[%s297 + $0xc] sm:$0xc]
        %v9586 = vld [vmem:[%s297 + $0x10] sm:$0xf]
        %v9587 = vld [vmem:[%s297 + $0x14] sm:$0x3]
        %v9588 = vld [vmem:[%s297 + $0x18] sm:$0xc]
        %v9589 = vld [vmem:[%s297 + $0x1c] sm:$0xf]
        %v9590 = vld [vmem:[%s297 + $0x20] sm:$0x3]
        %v9591 = vld [vmem:[%s297 + $0x24] sm:$0xc]
        %v9592 = vld [vmem:[%s297 + $0x28] sm:$0xf]
        %v9593 = vld [vmem:[%s297 + $0x2c] sm:$0x3]
        %v9594 = vld [vmem:[%s297 + $0x30] sm:$0xc]
        %v9595 = vld [vmem:[%s297 + $0x34] sm:$0xf]
        %v9596 = vld [vmem:[%s297 + $0x38] sm:$0x3]
        %v9597 = vld [vmem:[%s297 + $0x3c] sm:$0xc]
        %v9598 = vld [vmem:[%s297 + $0x40] sm:$0xf]
        %v9599 = vld [vmem:[%s297 + $0x44] sm:$0x3]
        %v9600 = vld [vmem:[%s297 + $0x48] sm:$0xc]
        %v9601 = vld [vmem:[%s297 + $0x4c] sm:$0xf]
        %v9602 = vld [vmem:[%s297 + $0x50] sm:$0x3]
        %v9603 = vld [vmem:[%s297 + $0x54] sm:$0xc]
        %v9604 = vld [vmem:[%s297 + $0x58] sm:$0xf]
        %v9605 = vld [vmem:[%s297 + $0x5c] sm:$0x3]
        %v9630 = vrot.slane %v9582, 6
        %v9631 = vrot.slane %v9630, 4
        %v9632 = vrot.slane %v9583, 6
        %v9633 = vsel %vm9256, %v9631, %v9632
        %v9634 = vrot.slane %v9632, 4
        %v9635 = vrot.slane %v9584, 6
        %v9636 = vsel %vm9256, %v9634, %v9635
        %v9637 = vrot.slane %v9585, 6
        %v9638 = vrot.slane %v9637, 4
        %v9639 = vrot.slane %v9586, 6
        %v9640 = vsel %vm9256, %v9638, %v9639
        %v9641 = vrot.slane %v9639, 4
        %v9642 = vrot.slane %v9587, 6
        %v9643 = vsel %vm9256, %v9641, %v9642
        %v9644 = vrot.slane %v9588, 6
        %v9645 = vrot.slane %v9644, 4
        %v9646 = vrot.slane %v9589, 6
        %v9647 = vsel %vm9256, %v9645, %v9646
        %v9648 = vrot.slane %v9646, 4
        %v9649 = vrot.slane %v9590, 6
        %v9650 = vsel %vm9256, %v9648, %v9649
        %v9651 = vrot.slane %v9591, 6
        %v9652 = vrot.slane %v9651, 4
        %v9653 = vrot.slane %v9592, 6
        %v9654 = vsel %vm9256, %v9652, %v9653
        %v9655 = vrot.slane %v9653, 4
        %v9656 = vrot.slane %v9593, 6
        %v9657 = vsel %vm9256, %v9655, %v9656
        %v9658 = vrot.slane %v9594, 6
        %v9659 = vrot.slane %v9658, 4
        %v9660 = vrot.slane %v9595, 6
        %v9661 = vsel %vm9256, %v9659, %v9660
        %v9662 = vrot.slane %v9660, 4
        %v9663 = vrot.slane %v9596, 6
        %v9664 = vsel %vm9256, %v9662, %v9663
        %v9665 = vrot.slane %v9597, 6
        %v9666 = vrot.slane %v9665, 4
        %v9667 = vrot.slane %v9598, 6
        %v9668 = vsel %vm9256, %v9666, %v9667
        %v9669 = vrot.slane %v9667, 4
        %v9670 = vrot.slane %v9599, 6
        %v9671 = vsel %vm9256, %v9669, %v9670
        %v9672 = vrot.slane %v9600, 6
        %v9673 = vrot.slane %v9672, 4
        %v9674 = vrot.slane %v9601, 6
        %v9675 = vsel %vm9256, %v9673, %v9674
        %v9676 = vrot.slane %v9674, 4
        %v9677 = vrot.slane %v9602, 6
        %v9678 = vsel %vm9256, %v9676, %v9677
        %v9679 = vrot.slane %v9603, 6
        %v9680 = vrot.slane %v9679, 4
        %v9681 = vrot.slane %v9604, 6
        %v9682 = vsel %vm9256, %v9680, %v9681
        %v9683 = vrot.slane %v9681, 4
        %v9684 = vrot.slane %v9605, 6
        %v9685 = vsel %vm9256, %v9683, %v9684
        %9686 = vrot.lane.b32.xlu0 %v9633, 127
        %v9687 = vpop.permute.xlu0 %9686
        %9688 = vrot.lane.b32.xlu0 %v9636, 127
        %v9689 = vpop.permute.xlu0 %9688
        %9690 = vrot.lane.b32.xlu0 %v9640, 127
        %v9691 = vpop.permute.xlu0 %9690
        %9692 = vrot.lane.b32.xlu0 %v9643, 127
        %v9693 = vpop.permute.xlu0 %9692
        %9694 = vrot.lane.b32.xlu0 %v9647, 127
        %v9695 = vpop.permute.xlu0 %9694
        %9696 = vrot.lane.b32.xlu0 %v9650, 127
        %v9697 = vpop.permute.xlu0 %9696
        %9698 = vrot.lane.b32.xlu0 %v9654, 127
        %v9699 = vpop.permute.xlu0 %9698
        %9700 = vrot.lane.b32.xlu0 %v9657, 127
        %v9701 = vpop.permute.xlu0 %9700
        %9702 = vrot.lane.b32.xlu0 %v9661, 127
        %v9703 = vpop.permute.xlu0 %9702
        %9704 = vrot.lane.b32.xlu0 %v9664, 127
        %v9705 = vpop.permute.xlu0 %9704
        %9706 = vrot.lane.b32.xlu0 %v9668, 127
        %v9707 = vpop.permute.xlu0 %9706
        %9708 = vrot.lane.b32.xlu0 %v9671, 127
        %v9709 = vpop.permute.xlu0 %9708
        %9710 = vrot.lane.b32.xlu0 %v9675, 127
        %v9711 = vpop.permute.xlu0 %9710
        %9712 = vrot.lane.b32.xlu0 %v9678, 127
        %v9713 = vpop.permute.xlu0 %9712
        %9714 = vrot.lane.b32.xlu0 %v9682, 127
        %v9715 = vpop.permute.xlu0 %9714
        %9716 = vrot.lane.b32.xlu0 %v9685, 127
        %v9717 = vpop.permute.xlu0 %9716
        %v9734 = vrot.slane %v9703, 4
        %v9735 = vsel %vm346, %v9734, %v9687
        %v9737 = vunpack.c.l.s4 1983009808
        %v9738 = vunpack.c.0.s8 %v9737
        %v9739 = vperm.slane %v9735, %v9738
        %v9740 = vrot.slane %v9711, 4
        %v9741 = vsel %vm346, %v9740, %v9695
        %v9743 = vunpack.c.l.s4 1983009808
        %v9744 = vunpack.c.0.s8 %v9743
        %v9745 = vperm.slane %v9741, %v9744
        %v9746 = vrot.slane %v9745, 4
        %v9747 = vsel %vm346, %v9746, %v9739
        %v9748 = vrot.slane %v9739, 4
        %v9749 = vsel %vm346, %v9745, %v9748
        %v9751 = vunpack.c.l.s4 1934713408
        %v9752 = vunpack.c.0.s8 %v9751
        %v9753 = vperm.slane %v9747, %v9752
        %v9755 = vunpack.c.l.s4 1934713408
        %v9756 = vunpack.c.0.s8 %v9755
        %v9757 = vperm.slane %v9749, %v9756
        %v9758 = vrot.slane %v9753, 4
        %v9759 = vsel %vm346, 0, %v9758
        %v9760 = vrot.slane %v9757, 4
        %v9761 = vsel %vm346, 0, %v9760
        %v9762 = vrot.slane %v9707, 4
        %v9763 = vsel %vm346, %v9762, %v9691
        %v9765 = vunpack.c.l.s4 1983009808
        %v9766 = vunpack.c.0.s8 %v9765
        %v9767 = vperm.slane %v9763, %v9766
        %v9768 = vrot.slane %v9715, 4
        %v9769 = vsel %vm346, %v9768, %v9699
        %v9771 = vunpack.c.l.s4 1983009808
        %v9772 = vunpack.c.0.s8 %v9771
        %v9773 = vperm.slane %v9769, %v9772
        %v9774 = vrot.slane %v9773, 4
        %v9775 = vsel %vm346, %v9774, %v9767
        %v9776 = vrot.slane %v9767, 4
        %v9777 = vsel %vm346, %v9773, %v9776
        %v9779 = vunpack.c.l.s4 1934713408
        %v9780 = vunpack.c.0.s8 %v9779
        %v9781 = vperm.slane %v9775, %v9780
        %v9783 = vunpack.c.l.s4 1934713408
        %v9784 = vunpack.c.0.s8 %v9783
        %v9785 = vperm.slane %v9777, %v9784
        %v9786 = vrot.slane %v9781, 4
        %v9787 = vsel %vm346, 0, %v9786
        %v9788 = vrot.slane %v9785, 4
        %v9789 = vsel %vm346, 0, %v9788
        %v9790 = vrot.slane %v9705, 4
        %v9791 = vsel %vm346, %v9790, %v9689
        %v9793 = vunpack.c.l.s4 1983009808
        %v9794 = vunpack.c.0.s8 %v9793
        %v9795 = vperm.slane %v9791, %v9794
        %v9796 = vrot.slane %v9713, 4
        %v9797 = vsel %vm346, %v9796, %v9697
        %v9799 = vunpack.c.l.s4 1983009808
        %v9800 = vunpack.c.0.s8 %v9799
        %v9801 = vperm.slane %v9797, %v9800
        %v9802 = vrot.slane %v9801, 4
        %v9803 = vsel %vm346, %v9802, %v9795
        %v9804 = vrot.slane %v9795, 4
        %v9805 = vsel %vm346, %v9801, %v9804
        %v9807 = vunpack.c.l.s4 1934713408
        %v9808 = vunpack.c.0.s8 %v9807
        %v9809 = vperm.slane %v9803, %v9808
        %v9811 = vunpack.c.l.s4 1934713408
        %v9812 = vunpack.c.0.s8 %v9811
        %v9813 = vperm.slane %v9805, %v9812
        %v9814 = vrot.slane %v9809, 4
        %v9815 = vsel %vm346, 0, %v9814
        %v9816 = vrot.slane %v9813, 4
        %v9817 = vsel %vm346, 0, %v9816
        %v9818 = vrot.slane %v9709, 4
        %v9819 = vsel %vm346, %v9818, %v9693
        %v9821 = vunpack.c.l.s4 1983009808
        %v9822 = vunpack.c.0.s8 %v9821
        %v9823 = vperm.slane %v9819, %v9822
        %v9824 = vrot.slane %v9717, 4
        %v9825 = vsel %vm346, %v9824, %v9701
        %v9827 = vunpack.c.l.s4 1983009808
        %v9828 = vunpack.c.0.s8 %v9827
        %v9829 = vperm.slane %v9825, %v9828
        %v9830 = vrot.slane %v9829, 4
        %v9831 = vsel %vm346, %v9830, %v9823
        %v9832 = vrot.slane %v9823, 4
        %v9833 = vsel %vm346, %v9829, %v9832
        %v9835 = vunpack.c.l.s4 1934713408
        %v9836 = vunpack.c.0.s8 %v9835
        %v9837 = vperm.slane %v9831, %v9836
        %v9839 = vunpack.c.l.s4 1934713408
        %v9840 = vunpack.c.0.s8 %v9839
        %v9841 = vperm.slane %v9833, %v9840
        %v9842 = vrot.slane %v9837, 4
        %v9843 = vsel %vm346, 0, %v9842
        %v9844 = vrot.slane %v9841, 4
        %v9845 = vsel %vm346, 0, %v9844
        %v9848 = vpack.i.b16 %v9781, %v9753
        %v9849 = vshrl.u32 %v9753, 16
        %v9850 = vshrl.u32 %v9781, 16
        %v9851 = vpack.i.b16 %v9850, %v9849
        %v9854 = vpack.i.b16 %v9787, %v9759
        %v9855 = vshrl.u32 %v9759, 16
        %v9856 = vshrl.u32 %v9787, 16
        %v9857 = vpack.i.b16 %v9856, %v9855
        %v9860 = vpack.i.b16 %v9785, %v9757
        %v9861 = vshrl.u32 %v9757, 16
        %v9862 = vshrl.u32 %v9785, 16
        %v9863 = vpack.i.b16 %v9862, %v9861
        %v9866 = vpack.i.b16 %v9789, %v9761
        %v9867 = vshrl.u32 %v9761, 16
        %v9868 = vshrl.u32 %v9789, 16
        %v9869 = vpack.i.b16 %v9868, %v9867
        %v9872 = vpack.i.b16 %v9837, %v9809
        %v9873 = vshrl.u32 %v9809, 16
        %v9874 = vshrl.u32 %v9837, 16
        %v9875 = vpack.i.b16 %v9874, %v9873
        %v9878 = vpack.i.b16 %v9843, %v9815
        %v9879 = vshrl.u32 %v9815, 16
        %v9880 = vshrl.u32 %v9843, 16
        %v9881 = vpack.i.b16 %v9880, %v9879
        %v9884 = vpack.i.b16 %v9841, %v9813
        %v9885 = vshrl.u32 %v9813, 16
        %v9886 = vshrl.u32 %v9841, 16
        %v9887 = vpack.i.b16 %v9886, %v9885
        %v9890 = vpack.i.b16 %v9845, %v9817
        %v9891 = vshrl.u32 %v9817, 16
        %v9892 = vshrl.u32 %v9845, 16
        %v9893 = vpack.i.b16 %v9892, %v9891
        %v9894 = vunpack.c.l.b16 %v9851
        %v9895 = vpack.c.b16 %v9894, %v9894
        %9896 = vrot.lane.b32.xlu0 %v9895, 16
        %v9897 = vpop.permute.xlu0 %9896
        %v9898 = vunpack.c.l.b16 %v9854
        %v9899 = vpack.c.b16 %v9898, %v9898
        %9900 = vrot.lane.b32.xlu0 %v9899, 32
        %v9901 = vpop.permute.xlu0 %9900
        %v9902 = vunpack.c.l.b16 %v9857
        %v9903 = vpack.c.b16 %v9902, %v9902
        %9904 = vrot.lane.b32.xlu0 %v9903, 48
        %v9905 = vpop.permute.xlu0 %9904
        %v9906 = vunpack.c.l.b16 %v9860
        %v9907 = vpack.c.b16 %v9906, %v9906
        %9908 = vrot.lane.b32.xlu0 %v9907, 64
        %v9909 = vpop.permute.xlu0 %9908
        %v9910 = vunpack.c.l.b16 %v9863
        %v9911 = vpack.c.b16 %v9910, %v9910
        %9912 = vrot.lane.b32.xlu0 %v9911, 80
        %v9913 = vpop.permute.xlu0 %9912
        %v9914 = vunpack.c.l.b16 %v9866
        %v9915 = vpack.c.b16 %v9914, %v9914
        %9916 = vrot.lane.b32.xlu0 %v9915, 96
        %v9917 = vpop.permute.xlu0 %9916
        %v9918 = vunpack.c.l.b16 %v9869
        %v9919 = vpack.c.b16 %v9918, %v9918
        %9920 = vrot.lane.b32.xlu0 %v9919, 112
        %v9921 = vpop.permute.xlu0 %9920
        %v9922 = vunpack.c.l.b16 %v9875
        %v9923 = vpack.c.b16 %v9922, %v9922
        %9924 = vrot.lane.b32.xlu0 %v9923, 16
        %v9925 = vpop.permute.xlu0 %9924
        %v9926 = vunpack.c.l.b16 %v9878
        %v9927 = vpack.c.b16 %v9926, %v9926
        %9928 = vrot.lane.b32.xlu0 %v9927, 32
        %v9929 = vpop.permute.xlu0 %9928
        %v9930 = vunpack.c.l.b16 %v9881
        %v9931 = vpack.c.b16 %v9930, %v9930
        %9932 = vrot.lane.b32.xlu0 %v9931, 48
        %v9933 = vpop.permute.xlu0 %9932
        %v9934 = vunpack.c.l.b16 %v9884
        %v9935 = vpack.c.b16 %v9934, %v9934
        %9936 = vrot.lane.b32.xlu0 %v9935, 64
        %v9937 = vpop.permute.xlu0 %9936
        %v9938 = vunpack.c.l.b16 %v9887
        %v9939 = vpack.c.b16 %v9938, %v9938
        %9940 = vrot.lane.b32.xlu0 %v9939, 80
        %v9941 = vpop.permute.xlu0 %9940
        %v9942 = vunpack.c.l.b16 %v9890
        %v9943 = vpack.c.b16 %v9942, %v9942
        %9944 = vrot.lane.b32.xlu0 %v9943, 96
        %v9945 = vpop.permute.xlu0 %9944
        %v9946 = vunpack.c.l.b16 %v9893
        %v9947 = vpack.c.b16 %v9946, %v9946
        %9948 = vrot.lane.b32.xlu0 %v9947, 112
        %v9949 = vpop.permute.xlu0 %9948
        %v9952 = vsel %vm562, %v9848, %v9897
        %v9954 = vsel %vm566, %v9952, %v9901
        %v9956 = vsel %vm569, %v9954, %v9905
        %v9958 = vsel %vm572, %v9956, %v9909
        %v9960 = vsel %vm575, %v9958, %v9913
        %v9962 = vsel %vm578, %v9960, %v9917
        %v9964 = vsel %vm581, %v9962, %v9921
        %v9967 = vsel %vm562, %v9872, %v9925
        %v9969 = vsel %vm566, %v9967, %v9929
        %v9971 = vsel %vm569, %v9969, %v9933
        %v9973 = vsel %vm572, %v9971, %v9937
        %v9975 = vsel %vm575, %v9973, %v9941
        %v9977 = vsel %vm578, %v9975, %v9945
        %v9979 = vsel %vm581, %v9977, %v9949
        %v9982 = vunpack.c.l.b16 %v9964
        %v9983 = vunpack.c.l.b16 %v9979
        %v9984 = vpack.c.b16 %v9983, %v9982
        %9986 = vst [vmem:[#allocation2 + $0xa8] sm:$0xff] %v9984
        %v9987 = vld [vmem:[%s297] sm:$0xc]
        %v9988 = vld [vmem:[%s297 + $0x4] sm:$0xf]
        %v9989 = vld [vmem:[%s297 + $0x8] sm:$0x3]
        %v9990 = vld [vmem:[%s297 + $0xc] sm:$0xc]
        %v9991 = vld [vmem:[%s297 + $0x10] sm:$0xf]
        %v9992 = vld [vmem:[%s297 + $0x14] sm:$0x3]
        %v9993 = vld [vmem:[%s297 + $0x18] sm:$0xc]
        %v9994 = vld [vmem:[%s297 + $0x1c] sm:$0xf]
        %v9995 = vld [vmem:[%s297 + $0x20] sm:$0x3]
        %v9996 = vld [vmem:[%s297 + $0x24] sm:$0xc]
        %v9997 = vld [vmem:[%s297 + $0x28] sm:$0xf]
        %v9998 = vld [vmem:[%s297 + $0x2c] sm:$0x3]
        %v9999 = vld [vmem:[%s297 + $0x30] sm:$0xc]
        %v10000 = vld [vmem:[%s297 + $0x34] sm:$0xf]
        %v10001 = vld [vmem:[%s297 + $0x38] sm:$0x3]
        %v10002 = vld [vmem:[%s297 + $0x3c] sm:$0xc]
        %v10003 = vld [vmem:[%s297 + $0x40] sm:$0xf]
        %v10004 = vld [vmem:[%s297 + $0x44] sm:$0x3]
        %v10005 = vld [vmem:[%s297 + $0x48] sm:$0xc]
        %v10006 = vld [vmem:[%s297 + $0x4c] sm:$0xf]
        %v10007 = vld [vmem:[%s297 + $0x50] sm:$0x3]
        %v10008 = vld [vmem:[%s297 + $0x54] sm:$0xc]
        %v10009 = vld [vmem:[%s297 + $0x58] sm:$0xf]
        %v10010 = vld [vmem:[%s297 + $0x5c] sm:$0x3]
        %v10035 = vrot.slane %v9987, 6
        %v10036 = vrot.slane %v10035, 4
        %v10037 = vrot.slane %v9988, 6
        %v10038 = vsel %vm9256, %v10036, %v10037
        %v10039 = vrot.slane %v10037, 4
        %v10040 = vrot.slane %v9989, 6
        %v10041 = vsel %vm9256, %v10039, %v10040
        %v10042 = vrot.slane %v9990, 6
        %v10043 = vrot.slane %v10042, 4
        %v10044 = vrot.slane %v9991, 6
        %v10045 = vsel %vm9256, %v10043, %v10044
        %v10046 = vrot.slane %v10044, 4
        %v10047 = vrot.slane %v9992, 6
        %v10048 = vsel %vm9256, %v10046, %v10047
        %v10049 = vrot.slane %v9993, 6
        %v10050 = vrot.slane %v10049, 4
        %v10051 = vrot.slane %v9994, 6
        %v10052 = vsel %vm9256, %v10050, %v10051
        %v10053 = vrot.slane %v10051, 4
        %v10054 = vrot.slane %v9995, 6
        %v10055 = vsel %vm9256, %v10053, %v10054
        %v10056 = vrot.slane %v9996, 6
        %v10057 = vrot.slane %v10056, 4
        %v10058 = vrot.slane %v9997, 6
        %v10059 = vsel %vm9256, %v10057, %v10058
        %v10060 = vrot.slane %v10058, 4
        %v10061 = vrot.slane %v9998, 6
        %v10062 = vsel %vm9256, %v10060, %v10061
        %v10063 = vrot.slane %v9999, 6
        %v10064 = vrot.slane %v10063, 4
        %v10065 = vrot.slane %v10000, 6
        %v10066 = vsel %vm9256, %v10064, %v10065
        %v10067 = vrot.slane %v10065, 4
        %v10068 = vrot.slane %v10001, 6
        %v10069 = vsel %vm9256, %v10067, %v10068
        %v10070 = vrot.slane %v10002, 6
        %v10071 = vrot.slane %v10070, 4
        %v10072 = vrot.slane %v10003, 6
        %v10073 = vsel %vm9256, %v10071, %v10072
        %v10074 = vrot.slane %v10072, 4
        %v10075 = vrot.slane %v10004, 6
        %v10076 = vsel %vm9256, %v10074, %v10075
        %v10077 = vrot.slane %v10005, 6
        %v10078 = vrot.slane %v10077, 4
        %v10079 = vrot.slane %v10006, 6
        %v10080 = vsel %vm9256, %v10078, %v10079
        %v10081 = vrot.slane %v10079, 4
        %v10082 = vrot.slane %v10007, 6
        %v10083 = vsel %vm9256, %v10081, %v10082
        %v10084 = vrot.slane %v10008, 6
        %v10085 = vrot.slane %v10084, 4
        %v10086 = vrot.slane %v10009, 6
        %v10087 = vsel %vm9256, %v10085, %v10086
        %v10088 = vrot.slane %v10086, 4
        %v10089 = vrot.slane %v10010, 6
        %v10090 = vsel %vm9256, %v10088, %v10089
        %10091 = vrot.lane.b32.xlu0 %v10038, 126
        %v10092 = vpop.permute.xlu0 %10091
        %10093 = vrot.lane.b32.xlu0 %v10041, 126
        %v10094 = vpop.permute.xlu0 %10093
        %10095 = vrot.lane.b32.xlu0 %v10045, 126
        %v10096 = vpop.permute.xlu0 %10095
        %10097 = vrot.lane.b32.xlu0 %v10048, 126
        %v10098 = vpop.permute.xlu0 %10097
        %10099 = vrot.lane.b32.xlu0 %v10052, 126
        %v10100 = vpop.permute.xlu0 %10099
        %10101 = vrot.lane.b32.xlu0 %v10055, 126
        %v10102 = vpop.permute.xlu0 %10101
        %10103 = vrot.lane.b32.xlu0 %v10059, 126
        %v10104 = vpop.permute.xlu0 %10103
        %10105 = vrot.lane.b32.xlu0 %v10062, 126
        %v10106 = vpop.permute.xlu0 %10105
        %10107 = vrot.lane.b32.xlu0 %v10066, 126
        %v10108 = vpop.permute.xlu0 %10107
        %10109 = vrot.lane.b32.xlu0 %v10069, 126
        %v10110 = vpop.permute.xlu0 %10109
        %10111 = vrot.lane.b32.xlu0 %v10073, 126
        %v10112 = vpop.permute.xlu0 %10111
        %10113 = vrot.lane.b32.xlu0 %v10076, 126
        %v10114 = vpop.permute.xlu0 %10113
        %10115 = vrot.lane.b32.xlu0 %v10080, 126
        %v10116 = vpop.permute.xlu0 %10115
        %10117 = vrot.lane.b32.xlu0 %v10083, 126
        %v10118 = vpop.permute.xlu0 %10117
        %10119 = vrot.lane.b32.xlu0 %v10087, 126
        %v10120 = vpop.permute.xlu0 %10119
        %10121 = vrot.lane.b32.xlu0 %v10090, 126
        %v10122 = vpop.permute.xlu0 %10121
        %v10139 = vrot.slane %v10108, 4
        %v10140 = vsel %vm346, %v10139, %v10092
        %v10142 = vunpack.c.l.s4 1983009808
        %v10143 = vunpack.c.0.s8 %v10142
        %v10144 = vperm.slane %v10140, %v10143
        %v10145 = vrot.slane %v10116, 4
        %v10146 = vsel %vm346, %v10145, %v10100
        %v10148 = vunpack.c.l.s4 1983009808
        %v10149 = vunpack.c.0.s8 %v10148
        %v10150 = vperm.slane %v10146, %v10149
        %v10151 = vrot.slane %v10150, 4
        %v10152 = vsel %vm346, %v10151, %v10144
        %v10153 = vrot.slane %v10144, 4
        %v10154 = vsel %vm346, %v10150, %v10153
        %v10156 = vunpack.c.l.s4 1934713408
        %v10157 = vunpack.c.0.s8 %v10156
        %v10158 = vperm.slane %v10152, %v10157
        %v10160 = vunpack.c.l.s4 1934713408
        %v10161 = vunpack.c.0.s8 %v10160
        %v10162 = vperm.slane %v10154, %v10161
        %v10163 = vrot.slane %v10158, 4
        %v10164 = vsel %vm346, 0, %v10163
        %v10165 = vrot.slane %v10162, 4
        %v10166 = vsel %vm346, 0, %v10165
        %v10167 = vrot.slane %v10112, 4
        %v10168 = vsel %vm346, %v10167, %v10096
        %v10170 = vunpack.c.l.s4 1983009808
        %v10171 = vunpack.c.0.s8 %v10170
        %v10172 = vperm.slane %v10168, %v10171
        %v10173 = vrot.slane %v10120, 4
        %v10174 = vsel %vm346, %v10173, %v10104
        %v10176 = vunpack.c.l.s4 1983009808
        %v10177 = vunpack.c.0.s8 %v10176
        %v10178 = vperm.slane %v10174, %v10177
        %v10179 = vrot.slane %v10178, 4
        %v10180 = vsel %vm346, %v10179, %v10172
        %v10181 = vrot.slane %v10172, 4
        %v10182 = vsel %vm346, %v10178, %v10181
        %v10184 = vunpack.c.l.s4 1934713408
        %v10185 = vunpack.c.0.s8 %v10184
        %v10186 = vperm.slane %v10180, %v10185
        %v10188 = vunpack.c.l.s4 1934713408
        %v10189 = vunpack.c.0.s8 %v10188
        %v10190 = vperm.slane %v10182, %v10189
        %v10191 = vrot.slane %v10186, 4
        %v10192 = vsel %vm346, 0, %v10191
        %v10193 = vrot.slane %v10190, 4
        %v10194 = vsel %vm346, 0, %v10193
        %v10195 = vrot.slane %v10110, 4
        %v10196 = vsel %vm346, %v10195, %v10094
        %v10198 = vunpack.c.l.s4 1983009808
        %v10199 = vunpack.c.0.s8 %v10198
        %v10200 = vperm.slane %v10196, %v10199
        %v10201 = vrot.slane %v10118, 4
        %v10202 = vsel %vm346, %v10201, %v10102
        %v10204 = vunpack.c.l.s4 1983009808
        %v10205 = vunpack.c.0.s8 %v10204
        %v10206 = vperm.slane %v10202, %v10205
        %v10207 = vrot.slane %v10206, 4
        %v10208 = vsel %vm346, %v10207, %v10200
        %v10209 = vrot.slane %v10200, 4
        %v10210 = vsel %vm346, %v10206, %v10209
        %v10212 = vunpack.c.l.s4 1934713408
        %v10213 = vunpack.c.0.s8 %v10212
        %v10214 = vperm.slane %v10208, %v10213
        %v10216 = vunpack.c.l.s4 1934713408
        %v10217 = vunpack.c.0.s8 %v10216
        %v10218 = vperm.slane %v10210, %v10217
        %v10219 = vrot.slane %v10214, 4
        %v10220 = vsel %vm346, 0, %v10219
        %v10221 = vrot.slane %v10218, 4
        %v10222 = vsel %vm346, 0, %v10221
        %v10223 = vrot.slane %v10114, 4
        %v10224 = vsel %vm346, %v10223, %v10098
        %v10226 = vunpack.c.l.s4 1983009808
        %v10227 = vunpack.c.0.s8 %v10226
        %v10228 = vperm.slane %v10224, %v10227
        %v10229 = vrot.slane %v10122, 4
        %v10230 = vsel %vm346, %v10229, %v10106
        %v10232 = vunpack.c.l.s4 1983009808
        %v10233 = vunpack.c.0.s8 %v10232
        %v10234 = vperm.slane %v10230, %v10233
        %v10235 = vrot.slane %v10234, 4
        %v10236 = vsel %vm346, %v10235, %v10228
        %v10237 = vrot.slane %v10228, 4
        %v10238 = vsel %vm346, %v10234, %v10237
        %v10240 = vunpack.c.l.s4 1934713408
        %v10241 = vunpack.c.0.s8 %v10240
        %v10242 = vperm.slane %v10236, %v10241
        %v10244 = vunpack.c.l.s4 1934713408
        %v10245 = vunpack.c.0.s8 %v10244
        %v10246 = vperm.slane %v10238, %v10245
        %v10247 = vrot.slane %v10242, 4
        %v10248 = vsel %vm346, 0, %v10247
        %v10249 = vrot.slane %v10246, 4
        %v10250 = vsel %vm346, 0, %v10249
        %v10253 = vpack.i.b16 %v10186, %v10158
        %v10254 = vshrl.u32 %v10158, 16
        %v10255 = vshrl.u32 %v10186, 16
        %v10256 = vpack.i.b16 %v10255, %v10254
        %v10259 = vpack.i.b16 %v10192, %v10164
        %v10260 = vshrl.u32 %v10164, 16
        %v10261 = vshrl.u32 %v10192, 16
        %v10262 = vpack.i.b16 %v10261, %v10260
        %v10265 = vpack.i.b16 %v10190, %v10162
        %v10266 = vshrl.u32 %v10162, 16
        %v10267 = vshrl.u32 %v10190, 16
        %v10268 = vpack.i.b16 %v10267, %v10266
        %v10271 = vpack.i.b16 %v10194, %v10166
        %v10272 = vshrl.u32 %v10166, 16
        %v10273 = vshrl.u32 %v10194, 16
        %v10274 = vpack.i.b16 %v10273, %v10272
        %v10277 = vpack.i.b16 %v10242, %v10214
        %v10278 = vshrl.u32 %v10214, 16
        %v10279 = vshrl.u32 %v10242, 16
        %v10280 = vpack.i.b16 %v10279, %v10278
        %v10283 = vpack.i.b16 %v10248, %v10220
        %v10284 = vshrl.u32 %v10220, 16
        %v10285 = vshrl.u32 %v10248, 16
        %v10286 = vpack.i.b16 %v10285, %v10284
        %v10289 = vpack.i.b16 %v10246, %v10218
        %v10290 = vshrl.u32 %v10218, 16
        %v10291 = vshrl.u32 %v10246, 16
        %v10292 = vpack.i.b16 %v10291, %v10290
        %v10295 = vpack.i.b16 %v10250, %v10222
        %v10296 = vshrl.u32 %v10222, 16
        %v10297 = vshrl.u32 %v10250, 16
        %v10298 = vpack.i.b16 %v10297, %v10296
        %v10299 = vunpack.c.l.b16 %v10256
        %v10300 = vpack.c.b16 %v10299, %v10299
        %10301 = vrot.lane.b32.xlu0 %v10300, 16
        %v10302 = vpop.permute.xlu0 %10301
        %v10303 = vunpack.c.l.b16 %v10259
        %v10304 = vpack.c.b16 %v10303, %v10303
        %10305 = vrot.lane.b32.xlu0 %v10304, 32
        %v10306 = vpop.permute.xlu0 %10305
        %v10307 = vunpack.c.l.b16 %v10262
        %v10308 = vpack.c.b16 %v10307, %v10307
        %10309 = vrot.lane.b32.xlu0 %v10308, 48
        %v10310 = vpop.permute.xlu0 %10309
        %v10311 = vunpack.c.l.b16 %v10265
        %v10312 = vpack.c.b16 %v10311, %v10311
        %10313 = vrot.lane.b32.xlu0 %v10312, 64
        %v10314 = vpop.permute.xlu0 %10313
        %v10315 = vunpack.c.l.b16 %v10268
        %v10316 = vpack.c.b16 %v10315, %v10315
        %10317 = vrot.lane.b32.xlu0 %v10316, 80
        %v10318 = vpop.permute.xlu0 %10317
        %v10319 = vunpack.c.l.b16 %v10271
        %v10320 = vpack.c.b16 %v10319, %v10319
        %10321 = vrot.lane.b32.xlu0 %v10320, 96
        %v10322 = vpop.permute.xlu0 %10321
        %v10323 = vunpack.c.l.b16 %v10274
        %v10324 = vpack.c.b16 %v10323, %v10323
        %10325 = vrot.lane.b32.xlu0 %v10324, 112
        %v10326 = vpop.permute.xlu0 %10325
        %v10327 = vunpack.c.l.b16 %v10280
        %v10328 = vpack.c.b16 %v10327, %v10327
        %10329 = vrot.lane.b32.xlu0 %v10328, 16
        %v10330 = vpop.permute.xlu0 %10329
        %v10331 = vunpack.c.l.b16 %v10283
        %v10332 = vpack.c.b16 %v10331, %v10331
        %10333 = vrot.lane.b32.xlu0 %v10332, 32
        %v10334 = vpop.permute.xlu0 %10333
        %v10335 = vunpack.c.l.b16 %v10286
        %v10336 = vpack.c.b16 %v10335, %v10335
        %10337 = vrot.lane.b32.xlu0 %v10336, 48
        %v10338 = vpop.permute.xlu0 %10337
        %v10339 = vunpack.c.l.b16 %v10289
        %v10340 = vpack.c.b16 %v10339, %v10339
        %10341 = vrot.lane.b32.xlu0 %v10340, 64
        %v10342 = vpop.permute.xlu0 %10341
        %v10343 = vunpack.c.l.b16 %v10292
        %v10344 = vpack.c.b16 %v10343, %v10343
        %10345 = vrot.lane.b32.xlu0 %v10344, 80
        %v10346 = vpop.permute.xlu0 %10345
        %v10347 = vunpack.c.l.b16 %v10295
        %v10348 = vpack.c.b16 %v10347, %v10347
        %10349 = vrot.lane.b32.xlu0 %v10348, 96
        %v10350 = vpop.permute.xlu0 %10349
        %v10351 = vunpack.c.l.b16 %v10298
        %v10352 = vpack.c.b16 %v10351, %v10351
        %10353 = vrot.lane.b32.xlu0 %v10352, 112
        %v10354 = vpop.permute.xlu0 %10353
        %v10357 = vsel %vm562, %v10253, %v10302
        %v10359 = vsel %vm566, %v10357, %v10306
        %v10361 = vsel %vm569, %v10359, %v10310
        %v10363 = vsel %vm572, %v10361, %v10314
        %v10365 = vsel %vm575, %v10363, %v10318
        %v10367 = vsel %vm578, %v10365, %v10322
        %v10369 = vsel %vm581, %v10367, %v10326
        %v10372 = vsel %vm562, %v10277, %v10330
        %v10374 = vsel %vm566, %v10372, %v10334
        %v10376 = vsel %vm569, %v10374, %v10338
        %v10378 = vsel %vm572, %v10376, %v10342
        %v10380 = vsel %vm575, %v10378, %v10346
        %v10382 = vsel %vm578, %v10380, %v10350
        %v10384 = vsel %vm581, %v10382, %v10354
        %v10387 = vunpack.c.l.b16 %v10369
        %v10388 = vunpack.c.l.b16 %v10384
        %v10389 = vpack.c.b16 %v10388, %v10387
        %10391 = vst [vmem:[#allocation2 + $0xb0] sm:$0xff] %v10389
        %v10392 = vld [vmem:[%s297] sm:$0xc]
        %v10393 = vld [vmem:[%s297 + $0x4] sm:$0xf]
        %v10394 = vld [vmem:[%s297 + $0x8] sm:$0x3]
        %v10395 = vld [vmem:[%s297 + $0xc] sm:$0xc]
        %v10396 = vld [vmem:[%s297 + $0x10] sm:$0xf]
        %v10397 = vld [vmem:[%s297 + $0x14] sm:$0x3]
        %v10398 = vld [vmem:[%s297 + $0x18] sm:$0xc]
        %v10399 = vld [vmem:[%s297 + $0x1c] sm:$0xf]
        %v10400 = vld [vmem:[%s297 + $0x20] sm:$0x3]
        %v10401 = vld [vmem:[%s297 + $0x24] sm:$0xc]
        %v10402 = vld [vmem:[%s297 + $0x28] sm:$0xf]
        %v10403 = vld [vmem:[%s297 + $0x2c] sm:$0x3]
        %v10404 = vld [vmem:[%s297 + $0x30] sm:$0xc]
        %v10405 = vld [vmem:[%s297 + $0x34] sm:$0xf]
        %v10406 = vld [vmem:[%s297 + $0x38] sm:$0x3]
        %v10407 = vld [vmem:[%s297 + $0x3c] sm:$0xc]
        %v10408 = vld [vmem:[%s297 + $0x40] sm:$0xf]
        %v10409 = vld [vmem:[%s297 + $0x44] sm:$0x3]
        %v10410 = vld [vmem:[%s297 + $0x48] sm:$0xc]
        %v10411 = vld [vmem:[%s297 + $0x4c] sm:$0xf]
        %v10412 = vld [vmem:[%s297 + $0x50] sm:$0x3]
        %v10413 = vld [vmem:[%s297 + $0x54] sm:$0xc]
        %v10414 = vld [vmem:[%s297 + $0x58] sm:$0xf]
        %v10415 = vld [vmem:[%s297 + $0x5c] sm:$0x3]
        %v10440 = vrot.slane %v10392, 6
        %v10441 = vrot.slane %v10440, 4
        %v10442 = vrot.slane %v10393, 6
        %v10443 = vsel %vm9256, %v10441, %v10442
        %v10444 = vrot.slane %v10442, 4
        %v10445 = vrot.slane %v10394, 6
        %v10446 = vsel %vm9256, %v10444, %v10445
        %v10447 = vrot.slane %v10395, 6
        %v10448 = vrot.slane %v10447, 4
        %v10449 = vrot.slane %v10396, 6
        %v10450 = vsel %vm9256, %v10448, %v10449
        %v10451 = vrot.slane %v10449, 4
        %v10452 = vrot.slane %v10397, 6
        %v10453 = vsel %vm9256, %v10451, %v10452
        %v10454 = vrot.slane %v10398, 6
        %v10455 = vrot.slane %v10454, 4
        %v10456 = vrot.slane %v10399, 6
        %v10457 = vsel %vm9256, %v10455, %v10456
        %v10458 = vrot.slane %v10456, 4
        %v10459 = vrot.slane %v10400, 6
        %v10460 = vsel %vm9256, %v10458, %v10459
        %v10461 = vrot.slane %v10401, 6
        %v10462 = vrot.slane %v10461, 4
        %v10463 = vrot.slane %v10402, 6
        %v10464 = vsel %vm9256, %v10462, %v10463
        %v10465 = vrot.slane %v10463, 4
        %v10466 = vrot.slane %v10403, 6
        %v10467 = vsel %vm9256, %v10465, %v10466
        %v10468 = vrot.slane %v10404, 6
        %v10469 = vrot.slane %v10468, 4
        %v10470 = vrot.slane %v10405, 6
        %v10471 = vsel %vm9256, %v10469, %v10470
        %v10472 = vrot.slane %v10470, 4
        %v10473 = vrot.slane %v10406, 6
        %v10474 = vsel %vm9256, %v10472, %v10473
        %v10475 = vrot.slane %v10407, 6
        %v10476 = vrot.slane %v10475, 4
        %v10477 = vrot.slane %v10408, 6
        %v10478 = vsel %vm9256, %v10476, %v10477
        %v10479 = vrot.slane %v10477, 4
        %v10480 = vrot.slane %v10409, 6
        %v10481 = vsel %vm9256, %v10479, %v10480
        %v10482 = vrot.slane %v10410, 6
        %v10483 = vrot.slane %v10482, 4
        %v10484 = vrot.slane %v10411, 6
        %v10485 = vsel %vm9256, %v10483, %v10484
        %v10486 = vrot.slane %v10484, 4
        %v10487 = vrot.slane %v10412, 6
        %v10488 = vsel %vm9256, %v10486, %v10487
        %v10489 = vrot.slane %v10413, 6
        %v10490 = vrot.slane %v10489, 4
        %v10491 = vrot.slane %v10414, 6
        %v10492 = vsel %vm9256, %v10490, %v10491
        %v10493 = vrot.slane %v10491, 4
        %v10494 = vrot.slane %v10415, 6
        %v10495 = vsel %vm9256, %v10493, %v10494
        %10496 = vrot.lane.b32.xlu0 %v10443, 125
        %v10497 = vpop.permute.xlu0 %10496
        %10498 = vrot.lane.b32.xlu0 %v10446, 125
        %v10499 = vpop.permute.xlu0 %10498
        %10500 = vrot.lane.b32.xlu0 %v10450, 125
        %v10501 = vpop.permute.xlu0 %10500
        %10502 = vrot.lane.b32.xlu0 %v10453, 125
        %v10503 = vpop.permute.xlu0 %10502
        %10504 = vrot.lane.b32.xlu0 %v10457, 125
        %v10505 = vpop.permute.xlu0 %10504
        %10506 = vrot.lane.b32.xlu0 %v10460, 125
        %v10507 = vpop.permute.xlu0 %10506
        %10508 = vrot.lane.b32.xlu0 %v10464, 125
        %v10509 = vpop.permute.xlu0 %10508
        %10510 = vrot.lane.b32.xlu0 %v10467, 125
        %v10511 = vpop.permute.xlu0 %10510
        %10512 = vrot.lane.b32.xlu0 %v10471, 125
        %v10513 = vpop.permute.xlu0 %10512
        %10514 = vrot.lane.b32.xlu0 %v10474, 125
        %v10515 = vpop.permute.xlu0 %10514
        %10516 = vrot.lane.b32.xlu0 %v10478, 125
        %v10517 = vpop.permute.xlu0 %10516
        %10518 = vrot.lane.b32.xlu0 %v10481, 125
        %v10519 = vpop.permute.xlu0 %10518
        %10520 = vrot.lane.b32.xlu0 %v10485, 125
        %v10521 = vpop.permute.xlu0 %10520
        %10522 = vrot.lane.b32.xlu0 %v10488, 125
        %v10523 = vpop.permute.xlu0 %10522
        %10524 = vrot.lane.b32.xlu0 %v10492, 125
        %v10525 = vpop.permute.xlu0 %10524
        %10526 = vrot.lane.b32.xlu0 %v10495, 125
        %v10527 = vpop.permute.xlu0 %10526
        %v10544 = vrot.slane %v10513, 4
        %v10545 = vsel %vm346, %v10544, %v10497
        %v10547 = vunpack.c.l.s4 1983009808
        %v10548 = vunpack.c.0.s8 %v10547
        %v10549 = vperm.slane %v10545, %v10548
        %v10550 = vrot.slane %v10521, 4
        %v10551 = vsel %vm346, %v10550, %v10505
        %v10553 = vunpack.c.l.s4 1983009808
        %v10554 = vunpack.c.0.s8 %v10553
        %v10555 = vperm.slane %v10551, %v10554
        %v10556 = vrot.slane %v10555, 4
        %v10557 = vsel %vm346, %v10556, %v10549
        %v10558 = vrot.slane %v10549, 4
        %v10559 = vsel %vm346, %v10555, %v10558
        %v10561 = vunpack.c.l.s4 1934713408
        %v10562 = vunpack.c.0.s8 %v10561
        %v10563 = vperm.slane %v10557, %v10562
        %v10565 = vunpack.c.l.s4 1934713408
        %v10566 = vunpack.c.0.s8 %v10565
        %v10567 = vperm.slane %v10559, %v10566
        %v10568 = vrot.slane %v10563, 4
        %v10569 = vsel %vm346, 0, %v10568
        %v10570 = vrot.slane %v10567, 4
        %v10571 = vsel %vm346, 0, %v10570
        %v10572 = vrot.slane %v10517, 4
        %v10573 = vsel %vm346, %v10572, %v10501
        %v10575 = vunpack.c.l.s4 1983009808
        %v10576 = vunpack.c.0.s8 %v10575
        %v10577 = vperm.slane %v10573, %v10576
        %v10578 = vrot.slane %v10525, 4
        %v10579 = vsel %vm346, %v10578, %v10509
        %v10581 = vunpack.c.l.s4 1983009808
        %v10582 = vunpack.c.0.s8 %v10581
        %v10583 = vperm.slane %v10579, %v10582
        %v10584 = vrot.slane %v10583, 4
        %v10585 = vsel %vm346, %v10584, %v10577
        %v10586 = vrot.slane %v10577, 4
        %v10587 = vsel %vm346, %v10583, %v10586
        %v10589 = vunpack.c.l.s4 1934713408
        %v10590 = vunpack.c.0.s8 %v10589
        %v10591 = vperm.slane %v10585, %v10590
        %v10593 = vunpack.c.l.s4 1934713408
        %v10594 = vunpack.c.0.s8 %v10593
        %v10595 = vperm.slane %v10587, %v10594
        %v10596 = vrot.slane %v10591, 4
        %v10597 = vsel %vm346, 0, %v10596
        %v10598 = vrot.slane %v10595, 4
        %v10599 = vsel %vm346, 0, %v10598
        %v10600 = vrot.slane %v10515, 4
        %v10601 = vsel %vm346, %v10600, %v10499
        %v10603 = vunpack.c.l.s4 1983009808
        %v10604 = vunpack.c.0.s8 %v10603
        %v10605 = vperm.slane %v10601, %v10604
        %v10606 = vrot.slane %v10523, 4
        %v10607 = vsel %vm346, %v10606, %v10507
        %v10609 = vunpack.c.l.s4 1983009808
        %v10610 = vunpack.c.0.s8 %v10609
        %v10611 = vperm.slane %v10607, %v10610
        %v10612 = vrot.slane %v10611, 4
        %v10613 = vsel %vm346, %v10612, %v10605
        %v10614 = vrot.slane %v10605, 4
        %v10615 = vsel %vm346, %v10611, %v10614
        %v10617 = vunpack.c.l.s4 1934713408
        %v10618 = vunpack.c.0.s8 %v10617
        %v10619 = vperm.slane %v10613, %v10618
        %v10621 = vunpack.c.l.s4 1934713408
        %v10622 = vunpack.c.0.s8 %v10621
        %v10623 = vperm.slane %v10615, %v10622
        %v10624 = vrot.slane %v10619, 4
        %v10625 = vsel %vm346, 0, %v10624
        %v10626 = vrot.slane %v10623, 4
        %v10627 = vsel %vm346, 0, %v10626
        %v10628 = vrot.slane %v10519, 4
        %v10629 = vsel %vm346, %v10628, %v10503
        %v10631 = vunpack.c.l.s4 1983009808
        %v10632 = vunpack.c.0.s8 %v10631
        %v10633 = vperm.slane %v10629, %v10632
        %v10634 = vrot.slane %v10527, 4
        %v10635 = vsel %vm346, %v10634, %v10511
        %v10637 = vunpack.c.l.s4 1983009808
        %v10638 = vunpack.c.0.s8 %v10637
        %v10639 = vperm.slane %v10635, %v10638
        %v10640 = vrot.slane %v10639, 4
        %v10641 = vsel %vm346, %v10640, %v10633
        %v10642 = vrot.slane %v10633, 4
        %v10643 = vsel %vm346, %v10639, %v10642
        %v10645 = vunpack.c.l.s4 1934713408
        %v10646 = vunpack.c.0.s8 %v10645
        %v10647 = vperm.slane %v10641, %v10646
        %v10649 = vunpack.c.l.s4 1934713408
        %v10650 = vunpack.c.0.s8 %v10649
        %v10651 = vperm.slane %v10643, %v10650
        %v10652 = vrot.slane %v10647, 4
        %v10653 = vsel %vm346, 0, %v10652
        %v10654 = vrot.slane %v10651, 4
        %v10655 = vsel %vm346, 0, %v10654
        %v10658 = vpack.i.b16 %v10591, %v10563
        %v10659 = vshrl.u32 %v10563, 16
        %v10660 = vshrl.u32 %v10591, 16
        %v10661 = vpack.i.b16 %v10660, %v10659
        %v10664 = vpack.i.b16 %v10597, %v10569
        %v10665 = vshrl.u32 %v10569, 16
        %v10666 = vshrl.u32 %v10597, 16
        %v10667 = vpack.i.b16 %v10666, %v10665
        %v10670 = vpack.i.b16 %v10595, %v10567
        %v10671 = vshrl.u32 %v10567, 16
        %v10672 = vshrl.u32 %v10595, 16
        %v10673 = vpack.i.b16 %v10672, %v10671
        %v10676 = vpack.i.b16 %v10599, %v10571
        %v10677 = vshrl.u32 %v10571, 16
        %v10678 = vshrl.u32 %v10599, 16
        %v10679 = vpack.i.b16 %v10678, %v10677
        %v10682 = vpack.i.b16 %v10647, %v10619
        %v10683 = vshrl.u32 %v10619, 16
        %v10684 = vshrl.u32 %v10647, 16
        %v10685 = vpack.i.b16 %v10684, %v10683
        %v10688 = vpack.i.b16 %v10653, %v10625
        %v10689 = vshrl.u32 %v10625, 16
        %v10690 = vshrl.u32 %v10653, 16
        %v10691 = vpack.i.b16 %v10690, %v10689
        %v10694 = vpack.i.b16 %v10651, %v10623
        %v10695 = vshrl.u32 %v10623, 16
        %v10696 = vshrl.u32 %v10651, 16
        %v10697 = vpack.i.b16 %v10696, %v10695
        %v10700 = vpack.i.b16 %v10655, %v10627
        %v10701 = vshrl.u32 %v10627, 16
        %v10702 = vshrl.u32 %v10655, 16
        %v10703 = vpack.i.b16 %v10702, %v10701
        %v10704 = vunpack.c.l.b16 %v10661
        %v10705 = vpack.c.b16 %v10704, %v10704
        %10706 = vrot.lane.b32.xlu0 %v10705, 16
        %v10707 = vpop.permute.xlu0 %10706
        %v10708 = vunpack.c.l.b16 %v10664
        %v10709 = vpack.c.b16 %v10708, %v10708
        %10710 = vrot.lane.b32.xlu0 %v10709, 32
        %v10711 = vpop.permute.xlu0 %10710
        %v10712 = vunpack.c.l.b16 %v10667
        %v10713 = vpack.c.b16 %v10712, %v10712
        %10714 = vrot.lane.b32.xlu0 %v10713, 48
        %v10715 = vpop.permute.xlu0 %10714
        %v10716 = vunpack.c.l.b16 %v10670
        %v10717 = vpack.c.b16 %v10716, %v10716
        %10718 = vrot.lane.b32.xlu0 %v10717, 64
        %v10719 = vpop.permute.xlu0 %10718
        %v10720 = vunpack.c.l.b16 %v10673
        %v10721 = vpack.c.b16 %v10720, %v10720
        %10722 = vrot.lane.b32.xlu0 %v10721, 80
        %v10723 = vpop.permute.xlu0 %10722
        %v10724 = vunpack.c.l.b16 %v10676
        %v10725 = vpack.c.b16 %v10724, %v10724
        %10726 = vrot.lane.b32.xlu0 %v10725, 96
        %v10727 = vpop.permute.xlu0 %10726
        %v10728 = vunpack.c.l.b16 %v10679
        %v10729 = vpack.c.b16 %v10728, %v10728
        %10730 = vrot.lane.b32.xlu0 %v10729, 112
        %v10731 = vpop.permute.xlu0 %10730
        %v10732 = vunpack.c.l.b16 %v10685
        %v10733 = vpack.c.b16 %v10732, %v10732
        %10734 = vrot.lane.b32.xlu0 %v10733, 16
        %v10735 = vpop.permute.xlu0 %10734
        %v10736 = vunpack.c.l.b16 %v10688
        %v10737 = vpack.c.b16 %v10736, %v10736
        %10738 = vrot.lane.b32.xlu0 %v10737, 32
        %v10739 = vpop.permute.xlu0 %10738
        %v10740 = vunpack.c.l.b16 %v10691
        %v10741 = vpack.c.b16 %v10740, %v10740
        %10742 = vrot.lane.b32.xlu0 %v10741, 48
        %v10743 = vpop.permute.xlu0 %10742
        %v10744 = vunpack.c.l.b16 %v10694
        %v10745 = vpack.c.b16 %v10744, %v10744
        %10746 = vrot.lane.b32.xlu0 %v10745, 64
        %v10747 = vpop.permute.xlu0 %10746
        %v10748 = vunpack.c.l.b16 %v10697
        %v10749 = vpack.c.b16 %v10748, %v10748
        %10750 = vrot.lane.b32.xlu0 %v10749, 80
        %v10751 = vpop.permute.xlu0 %10750
        %v10752 = vunpack.c.l.b16 %v10700
        %v10753 = vpack.c.b16 %v10752, %v10752
        %10754 = vrot.lane.b32.xlu0 %v10753, 96
        %v10755 = vpop.permute.xlu0 %10754
        %v10756 = vunpack.c.l.b16 %v10703
        %v10757 = vpack.c.b16 %v10756, %v10756
        %10758 = vrot.lane.b32.xlu0 %v10757, 112
        %v10759 = vpop.permute.xlu0 %10758
        %v10762 = vsel %vm562, %v10658, %v10707
        %v10764 = vsel %vm566, %v10762, %v10711
        %v10766 = vsel %vm569, %v10764, %v10715
        %v10768 = vsel %vm572, %v10766, %v10719
        %v10770 = vsel %vm575, %v10768, %v10723
        %v10772 = vsel %vm578, %v10770, %v10727
        %v10774 = vsel %vm581, %v10772, %v10731
        %v10777 = vsel %vm562, %v10682, %v10735
        %v10779 = vsel %vm566, %v10777, %v10739
        %v10781 = vsel %vm569, %v10779, %v10743
        %v10783 = vsel %vm572, %v10781, %v10747
        %v10785 = vsel %vm575, %v10783, %v10751
        %v10787 = vsel %vm578, %v10785, %v10755
        %v10789 = vsel %vm581, %v10787, %v10759
        %v10792 = vunpack.c.l.b16 %v10774
        %v10793 = vunpack.c.l.b16 %v10789
        %v10794 = vpack.c.b16 %v10793, %v10792
        %10796 = vst [vmem:[#allocation2 + $0xb8] sm:$0xff] %v10794
        %v10797 = vld [vmem:[%s297] sm:$0xc]
        %v10798 = vld [vmem:[%s297 + $0x4] sm:$0xf]
        %v10799 = vld [vmem:[%s297 + $0x8] sm:$0x3]
        %v10800 = vld [vmem:[%s297 + $0xc] sm:$0xc]
        %v10801 = vld [vmem:[%s297 + $0x10] sm:$0xf]
        %v10802 = vld [vmem:[%s297 + $0x14] sm:$0x3]
        %v10803 = vld [vmem:[%s297 + $0x18] sm:$0xc]
        %v10804 = vld [vmem:[%s297 + $0x1c] sm:$0xf]
        %v10805 = vld [vmem:[%s297 + $0x20] sm:$0x3]
        %v10806 = vld [vmem:[%s297 + $0x24] sm:$0xc]
        %v10807 = vld [vmem:[%s297 + $0x28] sm:$0xf]
        %v10808 = vld [vmem:[%s297 + $0x2c] sm:$0x3]
        %v10809 = vld [vmem:[%s297 + $0x30] sm:$0xc]
        %v10810 = vld [vmem:[%s297 + $0x34] sm:$0xf]
        %v10811 = vld [vmem:[%s297 + $0x38] sm:$0x3]
        %v10812 = vld [vmem:[%s297 + $0x3c] sm:$0xc]
        %v10813 = vld [vmem:[%s297 + $0x40] sm:$0xf]
        %v10814 = vld [vmem:[%s297 + $0x44] sm:$0x3]
        %v10815 = vld [vmem:[%s297 + $0x48] sm:$0xc]
        %v10816 = vld [vmem:[%s297 + $0x4c] sm:$0xf]
        %v10817 = vld [vmem:[%s297 + $0x50] sm:$0x3]
        %v10818 = vld [vmem:[%s297 + $0x54] sm:$0xc]
        %v10819 = vld [vmem:[%s297 + $0x58] sm:$0xf]
        %v10820 = vld [vmem:[%s297 + $0x5c] sm:$0x3]
        %v10845 = vrot.slane %v10797, 6
        %v10846 = vrot.slane %v10845, 4
        %v10847 = vrot.slane %v10798, 6
        %v10848 = vsel %vm9256, %v10846, %v10847
        %v10849 = vrot.slane %v10847, 4
        %v10850 = vrot.slane %v10799, 6
        %v10851 = vsel %vm9256, %v10849, %v10850
        %v10852 = vrot.slane %v10800, 6
        %v10853 = vrot.slane %v10852, 4
        %v10854 = vrot.slane %v10801, 6
        %v10855 = vsel %vm9256, %v10853, %v10854
        %v10856 = vrot.slane %v10854, 4
        %v10857 = vrot.slane %v10802, 6
        %v10858 = vsel %vm9256, %v10856, %v10857
        %v10859 = vrot.slane %v10803, 6
        %v10860 = vrot.slane %v10859, 4
        %v10861 = vrot.slane %v10804, 6
        %v10862 = vsel %vm9256, %v10860, %v10861
        %v10863 = vrot.slane %v10861, 4
        %v10864 = vrot.slane %v10805, 6
        %v10865 = vsel %vm9256, %v10863, %v10864
        %v10866 = vrot.slane %v10806, 6
        %v10867 = vrot.slane %v10866, 4
        %v10868 = vrot.slane %v10807, 6
        %v10869 = vsel %vm9256, %v10867, %v10868
        %v10870 = vrot.slane %v10868, 4
        %v10871 = vrot.slane %v10808, 6
        %v10872 = vsel %vm9256, %v10870, %v10871
        %v10873 = vrot.slane %v10809, 6
        %v10874 = vrot.slane %v10873, 4
        %v10875 = vrot.slane %v10810, 6
        %v10876 = vsel %vm9256, %v10874, %v10875
        %v10877 = vrot.slane %v10875, 4
        %v10878 = vrot.slane %v10811, 6
        %v10879 = vsel %vm9256, %v10877, %v10878
        %v10880 = vrot.slane %v10812, 6
        %v10881 = vrot.slane %v10880, 4
        %v10882 = vrot.slane %v10813, 6
        %v10883 = vsel %vm9256, %v10881, %v10882
        %v10884 = vrot.slane %v10882, 4
        %v10885 = vrot.slane %v10814, 6
        %v10886 = vsel %vm9256, %v10884, %v10885
        %v10887 = vrot.slane %v10815, 6
        %v10888 = vrot.slane %v10887, 4
        %v10889 = vrot.slane %v10816, 6
        %v10890 = vsel %vm9256, %v10888, %v10889
        %v10891 = vrot.slane %v10889, 4
        %v10892 = vrot.slane %v10817, 6
        %v10893 = vsel %vm9256, %v10891, %v10892
        %v10894 = vrot.slane %v10818, 6
        %v10895 = vrot.slane %v10894, 4
        %v10896 = vrot.slane %v10819, 6
        %v10897 = vsel %vm9256, %v10895, %v10896
        %v10898 = vrot.slane %v10896, 4
        %v10899 = vrot.slane %v10820, 6
        %v10900 = vsel %vm9256, %v10898, %v10899
        %10901 = vrot.lane.b32.xlu0 %v10848, 124
        %v10902 = vpop.permute.xlu0 %10901
        %10903 = vrot.lane.b32.xlu0 %v10851, 124
        %v10904 = vpop.permute.xlu0 %10903
        %10905 = vrot.lane.b32.xlu0 %v10855, 124
        %v10906 = vpop.permute.xlu0 %10905
        %10907 = vrot.lane.b32.xlu0 %v10858, 124
        %v10908 = vpop.permute.xlu0 %10907
        %10909 = vrot.lane.b32.xlu0 %v10862, 124
        %v10910 = vpop.permute.xlu0 %10909
        %10911 = vrot.lane.b32.xlu0 %v10865, 124
        %v10912 = vpop.permute.xlu0 %10911
        %10913 = vrot.lane.b32.xlu0 %v10869, 124
        %v10914 = vpop.permute.xlu0 %10913
        %10915 = vrot.lane.b32.xlu0 %v10872, 124
        %v10916 = vpop.permute.xlu0 %10915
        %10917 = vrot.lane.b32.xlu0 %v10876, 124
        %v10918 = vpop.permute.xlu0 %10917
        %10919 = vrot.lane.b32.xlu0 %v10879, 124
        %v10920 = vpop.permute.xlu0 %10919
        %10921 = vrot.lane.b32.xlu0 %v10883, 124
        %v10922 = vpop.permute.xlu0 %10921
        %10923 = vrot.lane.b32.xlu0 %v10886, 124
        %v10924 = vpop.permute.xlu0 %10923
        %10925 = vrot.lane.b32.xlu0 %v10890, 124
        %v10926 = vpop.permute.xlu0 %10925
        %10927 = vrot.lane.b32.xlu0 %v10893, 124
        %v10928 = vpop.permute.xlu0 %10927
        %10929 = vrot.lane.b32.xlu0 %v10897, 124
        %v10930 = vpop.permute.xlu0 %10929
        %10931 = vrot.lane.b32.xlu0 %v10900, 124
        %v10932 = vpop.permute.xlu0 %10931
        %v10949 = vrot.slane %v10918, 4
        %v10950 = vsel %vm346, %v10949, %v10902
        %v10952 = vunpack.c.l.s4 1983009808
        %v10953 = vunpack.c.0.s8 %v10952
        %v10954 = vperm.slane %v10950, %v10953
        %v10955 = vrot.slane %v10926, 4
        %v10956 = vsel %vm346, %v10955, %v10910
        %v10958 = vunpack.c.l.s4 1983009808
        %v10959 = vunpack.c.0.s8 %v10958
        %v10960 = vperm.slane %v10956, %v10959
        %v10961 = vrot.slane %v10960, 4
        %v10962 = vsel %vm346, %v10961, %v10954
        %v10963 = vrot.slane %v10954, 4
        %v10964 = vsel %vm346, %v10960, %v10963
        %v10966 = vunpack.c.l.s4 1934713408
        %v10967 = vunpack.c.0.s8 %v10966
        %v10968 = vperm.slane %v10962, %v10967
        %v10970 = vunpack.c.l.s4 1934713408
        %v10971 = vunpack.c.0.s8 %v10970
        %v10972 = vperm.slane %v10964, %v10971
        %v10973 = vrot.slane %v10968, 4
        %v10974 = vsel %vm346, 0, %v10973
        %v10975 = vrot.slane %v10972, 4
        %v10976 = vsel %vm346, 0, %v10975
        %v10977 = vrot.slane %v10922, 4
        %v10978 = vsel %vm346, %v10977, %v10906
        %v10980 = vunpack.c.l.s4 1983009808
        %v10981 = vunpack.c.0.s8 %v10980
        %v10982 = vperm.slane %v10978, %v10981
        %v10983 = vrot.slane %v10930, 4
        %v10984 = vsel %vm346, %v10983, %v10914
        %v10986 = vunpack.c.l.s4 1983009808
        %v10987 = vunpack.c.0.s8 %v10986
        %v10988 = vperm.slane %v10984, %v10987
        %v10989 = vrot.slane %v10988, 4
        %v10990 = vsel %vm346, %v10989, %v10982
        %v10991 = vrot.slane %v10982, 4
        %v10992 = vsel %vm346, %v10988, %v10991
        %v10994 = vunpack.c.l.s4 1934713408
        %v10995 = vunpack.c.0.s8 %v10994
        %v10996 = vperm.slane %v10990, %v10995
        %v10998 = vunpack.c.l.s4 1934713408
        %v10999 = vunpack.c.0.s8 %v10998
        %v11000 = vperm.slane %v10992, %v10999
        %v11001 = vrot.slane %v10996, 4
        %v11002 = vsel %vm346, 0, %v11001
        %v11003 = vrot.slane %v11000, 4
        %v11004 = vsel %vm346, 0, %v11003
        %v11005 = vrot.slane %v10920, 4
        %v11006 = vsel %vm346, %v11005, %v10904
        %v11008 = vunpack.c.l.s4 1983009808
        %v11009 = vunpack.c.0.s8 %v11008
        %v11010 = vperm.slane %v11006, %v11009
        %v11011 = vrot.slane %v10928, 4
        %v11012 = vsel %vm346, %v11011, %v10912
        %v11014 = vunpack.c.l.s4 1983009808
        %v11015 = vunpack.c.0.s8 %v11014
        %v11016 = vperm.slane %v11012, %v11015
        %v11017 = vrot.slane %v11016, 4
        %v11018 = vsel %vm346, %v11017, %v11010
        %v11019 = vrot.slane %v11010, 4
        %v11020 = vsel %vm346, %v11016, %v11019
        %v11022 = vunpack.c.l.s4 1934713408
        %v11023 = vunpack.c.0.s8 %v11022
        %v11024 = vperm.slane %v11018, %v11023
        %v11026 = vunpack.c.l.s4 1934713408
        %v11027 = vunpack.c.0.s8 %v11026
        %v11028 = vperm.slane %v11020, %v11027
        %v11029 = vrot.slane %v11024, 4
        %v11030 = vsel %vm346, 0, %v11029
        %v11031 = vrot.slane %v11028, 4
        %v11032 = vsel %vm346, 0, %v11031
        %v11033 = vrot.slane %v10924, 4
        %v11034 = vsel %vm346, %v11033, %v10908
        %v11036 = vunpack.c.l.s4 1983009808
        %v11037 = vunpack.c.0.s8 %v11036
        %v11038 = vperm.slane %v11034, %v11037
        %v11039 = vrot.slane %v10932, 4
        %v11040 = vsel %vm346, %v11039, %v10916
        %v11042 = vunpack.c.l.s4 1983009808
        %v11043 = vunpack.c.0.s8 %v11042
        %v11044 = vperm.slane %v11040, %v11043
        %v11045 = vrot.slane %v11044, 4
        %v11046 = vsel %vm346, %v11045, %v11038
        %v11047 = vrot.slane %v11038, 4
        %v11048 = vsel %vm346, %v11044, %v11047
        %v11050 = vunpack.c.l.s4 1934713408
        %v11051 = vunpack.c.0.s8 %v11050
        %v11052 = vperm.slane %v11046, %v11051
        %v11054 = vunpack.c.l.s4 1934713408
        %v11055 = vunpack.c.0.s8 %v11054
        %v11056 = vperm.slane %v11048, %v11055
        %v11057 = vrot.slane %v11052, 4
        %v11058 = vsel %vm346, 0, %v11057
        %v11059 = vrot.slane %v11056, 4
        %v11060 = vsel %vm346, 0, %v11059
        %v11063 = vpack.i.b16 %v10996, %v10968
        %v11064 = vshrl.u32 %v10968, 16
        %v11065 = vshrl.u32 %v10996, 16
        %v11066 = vpack.i.b16 %v11065, %v11064
        %v11069 = vpack.i.b16 %v11002, %v10974
        %v11070 = vshrl.u32 %v10974, 16
        %v11071 = vshrl.u32 %v11002, 16
        %v11072 = vpack.i.b16 %v11071, %v11070
        %v11075 = vpack.i.b16 %v11000, %v10972
        %v11076 = vshrl.u32 %v10972, 16
        %v11077 = vshrl.u32 %v11000, 16
        %v11078 = vpack.i.b16 %v11077, %v11076
        %v11081 = vpack.i.b16 %v11004, %v10976
        %v11082 = vshrl.u32 %v10976, 16
        %v11083 = vshrl.u32 %v11004, 16
        %v11084 = vpack.i.b16 %v11083, %v11082
        %v11087 = vpack.i.b16 %v11052, %v11024
        %v11088 = vshrl.u32 %v11024, 16
        %v11089 = vshrl.u32 %v11052, 16
        %v11090 = vpack.i.b16 %v11089, %v11088
        %v11093 = vpack.i.b16 %v11058, %v11030
        %v11094 = vshrl.u32 %v11030, 16
        %v11095 = vshrl.u32 %v11058, 16
        %v11096 = vpack.i.b16 %v11095, %v11094
        %v11099 = vpack.i.b16 %v11056, %v11028
        %v11100 = vshrl.u32 %v11028, 16
        %v11101 = vshrl.u32 %v11056, 16
        %v11102 = vpack.i.b16 %v11101, %v11100
        %v11105 = vpack.i.b16 %v11060, %v11032
        %v11106 = vshrl.u32 %v11032, 16
        %v11107 = vshrl.u32 %v11060, 16
        %v11108 = vpack.i.b16 %v11107, %v11106
        %v11109 = vunpack.c.l.b16 %v11066
        %v11110 = vpack.c.b16 %v11109, %v11109
        %11111 = vrot.lane.b32.xlu0 %v11110, 16
        %v11112 = vpop.permute.xlu0 %11111
        %v11113 = vunpack.c.l.b16 %v11069
        %v11114 = vpack.c.b16 %v11113, %v11113
        %11115 = vrot.lane.b32.xlu0 %v11114, 32
        %v11116 = vpop.permute.xlu0 %11115
        %v11117 = vunpack.c.l.b16 %v11072
        %v11118 = vpack.c.b16 %v11117, %v11117
        %11119 = vrot.lane.b32.xlu0 %v11118, 48
        %v11120 = vpop.permute.xlu0 %11119
        %v11121 = vunpack.c.l.b16 %v11075
        %v11122 = vpack.c.b16 %v11121, %v11121
        %11123 = vrot.lane.b32.xlu0 %v11122, 64
        %v11124 = vpop.permute.xlu0 %11123
        %v11125 = vunpack.c.l.b16 %v11078
        %v11126 = vpack.c.b16 %v11125, %v11125
        %11127 = vrot.lane.b32.xlu0 %v11126, 80
        %v11128 = vpop.permute.xlu0 %11127
        %v11129 = vunpack.c.l.b16 %v11081
        %v11130 = vpack.c.b16 %v11129, %v11129
        %11131 = vrot.lane.b32.xlu0 %v11130, 96
        %v11132 = vpop.permute.xlu0 %11131
        %v11133 = vunpack.c.l.b16 %v11084
        %v11134 = vpack.c.b16 %v11133, %v11133
        %11135 = vrot.lane.b32.xlu0 %v11134, 112
        %v11136 = vpop.permute.xlu0 %11135
        %v11137 = vunpack.c.l.b16 %v11090
        %v11138 = vpack.c.b16 %v11137, %v11137
        %11139 = vrot.lane.b32.xlu0 %v11138, 16
        %v11140 = vpop.permute.xlu0 %11139
        %v11141 = vunpack.c.l.b16 %v11093
        %v11142 = vpack.c.b16 %v11141, %v11141
        %11143 = vrot.lane.b32.xlu0 %v11142, 32
        %v11144 = vpop.permute.xlu0 %11143
        %v11145 = vunpack.c.l.b16 %v11096
        %v11146 = vpack.c.b16 %v11145, %v11145
        %11147 = vrot.lane.b32.xlu0 %v11146, 48
        %v11148 = vpop.permute.xlu0 %11147
        %v11149 = vunpack.c.l.b16 %v11099
        %v11150 = vpack.c.b16 %v11149, %v11149
        %11151 = vrot.lane.b32.xlu0 %v11150, 64
        %v11152 = vpop.permute.xlu0 %11151
        %v11153 = vunpack.c.l.b16 %v11102
        %v11154 = vpack.c.b16 %v11153, %v11153
        %11155 = vrot.lane.b32.xlu0 %v11154, 80
        %v11156 = vpop.permute.xlu0 %11155
        %v11157 = vunpack.c.l.b16 %v11105
        %v11158 = vpack.c.b16 %v11157, %v11157
        %11159 = vrot.lane.b32.xlu0 %v11158, 96
        %v11160 = vpop.permute.xlu0 %11159
        %v11161 = vunpack.c.l.b16 %v11108
        %v11162 = vpack.c.b16 %v11161, %v11161
        %11163 = vrot.lane.b32.xlu0 %v11162, 112
        %v11164 = vpop.permute.xlu0 %11163
        %v11167 = vsel %vm562, %v11063, %v11112
        %v11169 = vsel %vm566, %v11167, %v11116
        %v11171 = vsel %vm569, %v11169, %v11120
        %v11173 = vsel %vm572, %v11171, %v11124
        %v11175 = vsel %vm575, %v11173, %v11128
        %v11177 = vsel %vm578, %v11175, %v11132
        %v11179 = vsel %vm581, %v11177, %v11136
        %v11182 = vsel %vm562, %v11087, %v11140
        %v11184 = vsel %vm566, %v11182, %v11144
        %v11186 = vsel %vm569, %v11184, %v11148
        %v11188 = vsel %vm572, %v11186, %v11152
        %v11190 = vsel %vm575, %v11188, %v11156
        %v11192 = vsel %vm578, %v11190, %v11160
        %v11194 = vsel %vm581, %v11192, %v11164
        %v11197 = vunpack.c.l.b16 %v11179
        %v11198 = vunpack.c.l.b16 %v11194
        %v11199 = vpack.c.b16 %v11198, %v11197
        %11201 = vst [vmem:[#allocation2 + $0xc0] sm:$0xff] %v11199
        %s11202 = smul.u32 %s23, 2
        %s11203 = smul.addr %s11202, 4
        %s11204 = scalar_lea.vmem %s326, %s11203
        %v11205 = vld [vmem:[%s11204] sm:$0xff]
        %v11206 = vld [vmem:[#allocation2] sm:$0xff]
        %v11207 = vld [vmem:[#allocation2 + $0x8] sm:$0xff]
        %v11208 = vld [vmem:[#allocation2 + $0x10] sm:$0xff]
        %v11209 = vld [vmem:[#allocation2 + $0x18] sm:$0xff]
        %v11210 = vld [vmem:[#allocation2 + $0x20] sm:$0xff]
        %v11211 = vld [vmem:[#allocation2 + $0x28] sm:$0xff]
        %v11212 = vld [vmem:[#allocation2 + $0x30] sm:$0xff]
        %v11213 = vld [vmem:[#allocation2 + $0x38] sm:$0xff]
        %v11214 = vld [vmem:[#allocation2 + $0x40] sm:$0xff]
        %v11215 = vld [vmem:[#allocation2 + $0x48] sm:$0xff]
        %v11216 = vld [vmem:[#allocation2 + $0x50] sm:$0xff]
        %v11217 = vld [vmem:[#allocation2 + $0x58] sm:$0xff]
        %v11218 = vld [vmem:[#allocation2 + $0x60] sm:$0xff]
        %v11219 = vld [vmem:[#allocation2 + $0x68] sm:$0xff]
        %v11220 = vld [vmem:[#allocation2 + $0x70] sm:$0xff]
        %v11221 = vld [vmem:[#allocation2 + $0x78] sm:$0xff]
        %v11222 = vld [vmem:[#allocation2 + $0x80] sm:$0xff]
        %v11223 = vld [vmem:[#allocation2 + $0x88] sm:$0xff]
        %v11224 = vld [vmem:[#allocation2 + $0x90] sm:$0xff]
        %v11225 = vld [vmem:[#allocation2 + $0x98] sm:$0xff]
        %v11226 = vld [vmem:[#allocation2 + $0xa0] sm:$0xff]
        %v11227 = vld [vmem:[#allocation2 + $0xa8] sm:$0xff]
        %v11228 = vld [vmem:[#allocation2 + $0xb0] sm:$0xff]
        %v11229 = vld [vmem:[#allocation2 + $0xb8] sm:$0xff]
        %v11230 = vld [vmem:[#allocation2 + $0xc0] sm:$0xff]
        %v11232 = vunpack.c.l.b16 %v11205
        %v11233 = vunpack.c.h.b16 %v11205
        %v11234 = vpack.c.b16 %v11232, %v11232
        %v11235 = vpack.c.b16 %v11233, %v11233
        %v11262 = vunpack.c.l.b16 %v11206
        %v11263 = vunpack.c.h.b16 %v11206
        %v11264 = vunpack.c.l.b16 %v11207
        %v11265 = vunpack.c.h.b16 %v11207
        %v11266 = vunpack.c.l.b16 %v11208
        %v11267 = vunpack.c.h.b16 %v11208
        %v11268 = vunpack.c.l.b16 %v11209
        %v11269 = vunpack.c.h.b16 %v11209
        %v11270 = vunpack.c.l.b16 %v11210
        %v11271 = vunpack.c.h.b16 %v11210
        %v11272 = vunpack.c.l.b16 %v11211
        %v11273 = vunpack.c.h.b16 %v11211
        %v11274 = vunpack.c.l.b16 %v11212
        %v11275 = vunpack.c.h.b16 %v11212
        %v11276 = vunpack.c.l.b16 %v11213
        %v11277 = vunpack.c.h.b16 %v11213
        %v11278 = vunpack.c.l.b16 %v11214
        %v11279 = vunpack.c.h.b16 %v11214
        %v11280 = vunpack.c.l.b16 %v11215
        %v11281 = vunpack.c.h.b16 %v11215
        %v11282 = vunpack.c.l.b16 %v11216
        %v11283 = vunpack.c.h.b16 %v11216
        %v11284 = vunpack.c.l.b16 %v11217
        %v11285 = vunpack.c.h.b16 %v11217
        %v11286 = vunpack.c.l.b16 %v11218
        %v11287 = vunpack.c.h.b16 %v11218
        %v11288 = vunpack.c.l.b16 %v11219
        %v11289 = vunpack.c.h.b16 %v11219
        %v11290 = vunpack.c.l.b16 %v11220
        %v11291 = vunpack.c.h.b16 %v11220
        %v11292 = vunpack.c.l.b16 %v11221
        %v11293 = vunpack.c.h.b16 %v11221
        %v11294 = vunpack.c.l.b16 %v11222
        %v11295 = vunpack.c.h.b16 %v11222
        %v11296 = vunpack.c.l.b16 %v11223
        %v11297 = vunpack.c.h.b16 %v11223
        %v11298 = vunpack.c.l.b16 %v11224
        %v11299 = vunpack.c.h.b16 %v11224
        %v11300 = vunpack.c.l.b16 %v11225
        %v11301 = vunpack.c.h.b16 %v11225
        %v11302 = vunpack.c.l.b16 %v11226
        %v11303 = vunpack.c.h.b16 %v11226
        %v11304 = vunpack.c.l.b16 %v11227
        %v11305 = vunpack.c.h.b16 %v11227
        %v11306 = vunpack.c.l.b16 %v11228
        %v11307 = vunpack.c.h.b16 %v11228
        %v11308 = vunpack.c.l.b16 %v11229
        %v11309 = vunpack.c.h.b16 %v11229
        %v11310 = vunpack.c.l.b16 %v11230
        %v11311 = vunpack.c.h.b16 %v11230
        %v11312 = vpack.c.b16 %v11264, %v11262
        %v11313 = vpack.c.b16 %v11265, %v11263
        %v11314 = vpack.c.b16 %v11268, %v11266
        %v11315 = vpack.c.b16 %v11269, %v11267
        %v11316 = vpack.c.b16 %v11272, %v11270
        %v11317 = vpack.c.b16 %v11273, %v11271
        %v11318 = vpack.c.b16 %v11276, %v11274
        %v11319 = vpack.c.b16 %v11277, %v11275
        %v11320 = vpack.c.b16 %v11280, %v11278
        %v11321 = vpack.c.b16 %v11281, %v11279
        %v11322 = vpack.c.b16 %v11284, %v11282
        %v11323 = vpack.c.b16 %v11285, %v11283
        %v11324 = vpack.c.b16 %v11288, %v11286
        %v11325 = vpack.c.b16 %v11289, %v11287
        %v11326 = vpack.c.b16 %v11292, %v11290
        %v11327 = vpack.c.b16 %v11293, %v11291
        %v11328 = vpack.c.b16 %v11296, %v11294
        %v11329 = vpack.c.b16 %v11297, %v11295
        %v11330 = vpack.c.b16 %v11300, %v11298
        %v11331 = vpack.c.b16 %v11301, %v11299
        %v11332 = vpack.c.b16 %v11304, %v11302
        %v11333 = vpack.c.b16 %v11305, %v11303
        %v11334 = vpack.c.b16 %v11308, %v11306
        %v11335 = vpack.c.b16 %v11309, %v11307
        %v11336 = vpack.c.b16 %v11310, %v11310
        %v11337 = vpack.c.b16 %v11311, %v11311
        %vm11362 = vcmask 588800
        %v11364 = vsel %vm11362, %v11235, 0
        %vm11366 = vcmask 1043456
        %v11368 = vsel %vm11366, %v11336, 0
        %v11371 = vsel %vm11366, %v11337, 0
        %11373 = vmatpush.bf16.msra.mxu0 %v11326
        %11374 = vmatpush.bf16.msra.mxu0 %v11324
        %11375 = vmatpush.bf16.msra.mxu0 %v11322
        %11376 = vmatpush.bf16.msra.mxu0 %v11320
        %11377 = vmatpush.bf16.msra.mxu0 %v11318
        %11378 = vmatpush.bf16.msra.mxu0 %v11316
        %11379 = vmatpush.bf16.msra.mxu0 %v11314
        %11380 = vmatpush.bf16.msra.mxu0 %v11312
        %11381 = vmatmul.bf16.gmra.mxu0 %v11234
        %v11382 = vpop.f32.mrf.mxu0
        %v11383 = vadd.f32 0.0, %v11382
        %v11384 = vpop.f32.mrf.mxu0
        %11385 = vdwg.mxu0
        %11386 = vmatpush.bf16.msra.mxu0 0
        %11387 = vmatpush.bf16.msra.mxu0 0
        %11388 = vmatpush.bf16.msra.mxu0 0
        %11389 = vmatpush.bf16.msra.mxu0 %v11368
        %11390 = vmatpush.bf16.msra.mxu0 %v11334
        %11391 = vmatpush.bf16.msra.mxu0 %v11332
        %11392 = vmatpush.bf16.msra.mxu0 %v11330
        %11393 = vmatpush.bf16.msra.mxu0 %v11328
        %11394 = vmatmul.bf16.gmra.mxu0 %v11364
        %v11395 = vpop.f32.mrf.mxu0
        %v11396 = vadd.f32 %v11383, %v11395
        %v11397 = vpop.f32.mrf.mxu0
        %11398 = vdwg.mxu0
        %11399 = vmatpush.bf16.msra.mxu0 %v11327
        %11400 = vmatpush.bf16.msra.mxu0 %v11325
        %11401 = vmatpush.bf16.msra.mxu0 %v11323
        %11402 = vmatpush.bf16.msra.mxu0 %v11321
        %11403 = vmatpush.bf16.msra.mxu0 %v11319
        %11404 = vmatpush.bf16.msra.mxu0 %v11317
        %11405 = vmatpush.bf16.msra.mxu0 %v11315
        %11406 = vmatpush.bf16.msra.mxu0 %v11313
        %11407 = vmatmul.bf16.gmra.mxu0 %v11234
        %v11408 = vpop.f32.mrf.mxu0
        %v11409 = vadd.f32 0.0, %v11408
        %v11410 = vpop.f32.mrf.mxu0
        %11411 = vdwg.mxu0
        %11412 = vmatpush.bf16.msra.mxu0 0
        %11413 = vmatpush.bf16.msra.mxu0 0
        %11414 = vmatpush.bf16.msra.mxu0 0
        %11415 = vmatpush.bf16.msra.mxu0 %v11371
        %11416 = vmatpush.bf16.msra.mxu0 %v11335
        %11417 = vmatpush.bf16.msra.mxu0 %v11333
        %11418 = vmatpush.bf16.msra.mxu0 %v11331
        %11419 = vmatpush.bf16.msra.mxu0 %v11329
        %11420 = vmatmul.bf16.gmra.mxu0 %v11364
        %v11421 = vpop.f32.mrf.mxu0
        %v11422 = vadd.f32 %v11409, %v11421
        %v11423 = vpop.f32.mrf.mxu0
        %11424 = vdwg.mxu0
        %p11425 = scmp.eq.s32.totalorder %s23, 0
        // Predicated region
        $region70: #{tpu_custom_call.1} parent=64 // pred_check
          %p11426 = pneg %p11425
        $region71: #{tpu_custom_call.1} parent=64 // pred_check_branch
          %11428 = sbr.rel (%p11426) target = $region73
        $region72: #{tpu_custom_call.1} parent=64 // pred_region
          %11429 = vst [vmem:[%s320] sm:$0xff] %v11396
          %11430 = vst [vmem:[%s320 + $0x8] sm:$0xff] %v11422
        $region73: #{tpu_custom_call.1} parent=64 // pred_fallthru
          _
        %p11431 = scmp.ne.s32.totalorder %s23, 0
        // Predicated region
        $region74: #{tpu_custom_call.1} parent=64 // pred_check
          %p11432 = pneg %p11431
        $region75: #{tpu_custom_call.1} parent=64 // pred_check_branch
          %11434 = sbr.rel (%p11432) target = $region77
        $region76: #{tpu_custom_call.1} parent=64 // pred_region
          %v11435 = vld [vmem:[%s320] sm:$0xff]
          %v11436 = vld [vmem:[%s320 + $0x8] sm:$0xff]
          %v11437 = vadd.f32 %v11435, %v11396
          %v11438 = vadd.f32 %v11436, %v11422
          %11439 = vst [vmem:[%s320] sm:$0xff] %v11437
          %11440 = vst [vmem:[%s320 + $0x8] sm:$0xff] %v11438
        $region77: #{tpu_custom_call.1} parent=64 // pred_fallthru
          _
        %s11441 = sand.u32 %s101, 1
        %s11442 = scalar_lea.sflag [#allocation5], %s11441
        %s11443 = sand.u32 %s101, 1
        %s11444 = smul.addr %s11443, 16
        %s11445 = scalar_lea.vmem [#allocation4], %s11444
        // Predicated region
        $region78: #{tpu_custom_call.1} parent=64 // pred_check
          %p11446 = pneg %p111
        $region79: #{tpu_custom_call.1} parent=64 // pred_check_branch
          %11448 = sbr.rel (%p11446) target = $region81
        $region80: #{tpu_custom_call.1} parent=64 // pred_region
          %s11449 = smul.u32 2, %s21
          %11451 = vsyncadd %s11442, 0
          %s11452 = smul.addr %s22, 6
          %s11453 = sadd.s32 %s11449, %s11452
          %s11454 = smul.addr %s11453, 8
          %s11455 = scalar_lea.hbm %s2, %s11454
          %s11457 = sshll.u32 %s11445, 4
          %s11458 = int_to_ptr.vmem [resolvable:$true] %s11457
          %s11459 = sshll.u32 %s11455, 4
          %s11460 = int_to_ptr.hbm [resolvable:$true] %s11459
          %11462 = dma.vmem_to_hbm [thread:$0]  %s11458, 256, %s11460, %s11442
        $region81: #{tpu_custom_call.1} parent=64 // pred_fallthru
          _
      $region65: #{tpu_custom_call.1} parent=5 // pred_fallthru
        _
      %p11463 = scmp.le.s32.totalorder 2, %s11
      // Predicated region
      $region82: #{tpu_custom_call.1} parent=5 // pred_check
        %p11464 = pneg %p11463
      $region83: #{tpu_custom_call.1} parent=5 // pred_check_branch
        %11466 = sbr.rel (%p11464) target = $region85
      $region84: #{tpu_custom_call.1} parent=5 // pred_region
        %s11467 = ssub.s32 %s11, 2
        // Predicated region
        $region86: #{tpu_custom_call.1} parent=84 // pred_check
          %p11468 = pneg %p117
        $region87: #{tpu_custom_call.1} parent=84 // pred_check_branch
          %11470 = sbr.rel (%p11468) target = $region89
        $region88: #{tpu_custom_call.1} parent=84 // pred_region
          %s11471 = sand.u32 %s102, 1
          %s11472 = scalar_lea.sflag [#allocation5], %s11471
          %s11473 = sand.u32 %s102, 1
          %s11474 = smul.addr %s11473, 16
          %s11475 = scalar_lea.vmem [#allocation4], %s11474
          %11477 = dma.done %s11472, 256
        $region89: #{tpu_custom_call.1} parent=84 // pred_fallthru
          _
      $region85: #{tpu_custom_call.1} parent=5 // pred_fallthru
        _
    $region6: #{tpu_custom_call.1} parent=1 // loop_footer
      %s15 = sadd.s32 1, %s11
    $region7: #{tpu_custom_call.1} parent=1 // loop_footer_branch
      %10 = sbr.rel target = $region3
    $region8: #{tpu_custom_call.1} parent=1 // loop_exit
      _
    %11478 = vsyncpa [#allocation5], 1
    %s11479 = scalar_lea.sflag [#allocation5], 1
    %11480 = vsyncpa %s11479, 1

</llo_original>
